<compile_context>
chip_gen: v6e
topology: v6e:2x2x1
jax: 0.10.0
libtpu: 0.0.40
codegen_flags: <defaults>
</compile_context>

<pallas_src>
import jax
import jax.numpy as jnp
from jax.experimental import pallas as pl
from jax.experimental.pallas import tpu as pltpu


H = W = 56
C_OUT = 24
K_IN = 551
N_OUT = H * W               # 3136
TAPS_PAD = 16               # 9 conv taps zero-padded to 16 (8-aligned contraction)
PAD = 128                   # zero border (lanes) around the flat image; >= 57, lane aligned
YP_W = N_OUT + 2 * PAD      # 3392
BN_EPS = 1e-5

# Tap order t = di*3 + dj, matching conv_w.reshape(24, 9).
# Flat-index offset of tap (di, dj): out[i, j] needs img[i+di-1, j+dj-1],
# i.e. flat index p + (di-1)*56 + (dj-1) of the unpadded flat image (row/col
# overruns land in the zero border / are masked by the column masks).
_TAP_OFFSETS = tuple((di - 1) * W + (dj - 1) for di in range(3) for dj in range(3))
_TAP_DJ = tuple(dj for di in range(3) for dj in range(3))


# --------------------------------------------------------------------------
# Fused kernel: fc2 -> conv3x3(1->24, pad=1) -> BatchNorm(eval) -> HardSwish
# --------------------------------------------------------------------------
def _pre_layer_kernel(x_ref, w_ref, b_ref, wc_ref, shift_ref, mask_ref,
                      o_ref, ypad_ref, p_ref):
    # x_ref:     (B, 551)        input features
    # w_ref:     (551, 3136)     fc2 weight (resident in VMEM)
    # b_ref:     (1, 3136)       fc2 bias
    # wc_ref:    (24, 16)        conv weights * BN scale, taps 9..15 zero
    # shift_ref: (24, 1)         beta + (conv_bias - mean) * scale
    # mask_ref:  (2, 3136)       row 0: zero where j == 0; row 1: zero where j == 55
    # o_ref:     (B, 24, 3136)   lane-dense output (reshaped to NCHW by wrapper)
    # ypad_ref:  (B, 1, 3392)    zero-bordered flat fc2 output   (VMEM scratch)
    # p_ref:     (16, 3136)      im2col rows (padded to 16 taps) (VMEM scratch)
    bsz = x_ref.shape[0]

    # ---- fc2 on the MXU, once for the whole batch (M = B) -----------------
    y = (jnp.dot(x_ref[...], w_ref[...], preferred_element_type=jnp.float32)
         + b_ref[...])                                            # (B, 3136)

    # ---- scatter the flat images into a zero-bordered scratch -------------
    ypad_ref[...] = jnp.zeros_like(ypad_ref)
    p_ref[...] = jnp.zeros_like(p_ref)       # rows 9..15 stay zero (padded taps)
    for bb in range(bsz):
        ypad_ref[bb, :, PAD:PAD + N_OUT] = y[bb:bb + 1, :]        # aligned store

    for bb in range(bsz):
        # ---- build the 9 im2col rows: static lane-shifted loads + masks ----
        for t, (off, dj) in enumerate(zip(_TAP_OFFSETS, _TAP_DJ)):
            row = ypad_ref[bb, :, PAD + off:PAD + off + N_OUT]    # (1, 3136)
            if dj == 0:                                           # needs img[:, j-1]
                row = row * mask_ref[0:1, :]
            elif dj == 2:                                         # needs img[:, j+1]
                row = row * mask_ref[1:2, :]
            p_ref[t:t + 1, :] = row

        # ---- conv as MXU matmul (BN scale pre-folded into wc) -------------
        conv = jnp.dot(wc_ref[...], p_ref[...],
                       preferred_element_type=jnp.float32)        # (24, 3136)
        z = conv + shift_ref[...]                                 # + per-channel shift

        # ---- HardSwish: z * relu6(z + 3) / 6 -------------------------------
        o_ref[bb] = (z * jnp.clip(z + 3.0, 0.0, 6.0) * (1.0 / 6.0)
                     ).astype(o_ref.dtype)


def _pre_layer_pallas(x, fc2_w, fc2_b, wc16, shift, masks):
    bsz = x.shape[0]
    flops = (2 * bsz * K_IN * N_OUT
             + bsz * (2 * TAPS_PAD * C_OUT * N_OUT + 5 * C_OUT * N_OUT))
    bytes_accessed = 4 * (bsz * K_IN + K_IN * N_OUT + N_OUT
                          + C_OUT * TAPS_PAD + C_OUT + 2 * N_OUT
                          + bsz * C_OUT * N_OUT)
    return pl.pallas_call(
        _pre_layer_kernel,
        out_shape=jax.ShapeDtypeStruct((bsz, C_OUT, N_OUT), x.dtype),
        grid=(1,),
        in_specs=[
            pl.BlockSpec((bsz, K_IN), lambda i: (0, 0)),        # x
            pl.BlockSpec((K_IN, N_OUT), lambda i: (0, 0)),      # fc2 weight
            pl.BlockSpec((1, N_OUT), lambda i: (0, 0)),         # fc2 bias
            pl.BlockSpec((C_OUT, TAPS_PAD), lambda i: (0, 0)),  # scaled conv weights
            pl.BlockSpec((C_OUT, 1), lambda i: (0, 0)),         # per-channel shift
            pl.BlockSpec((2, N_OUT), lambda i: (0, 0)),         # column-border masks
        ],
        out_specs=pl.BlockSpec((bsz, C_OUT, N_OUT), lambda i: (0, 0, 0)),
        scratch_shapes=[
            pltpu.VMEM((bsz, 1, YP_W), jnp.float32),            # zero-bordered image
            pltpu.VMEM((TAPS_PAD, N_OUT), jnp.float32),         # im2col rows
        ],
        compiler_params=pltpu.CompilerParams(
            dimension_semantics=("arbitrary",),
            vmem_limit_bytes=32 * 1024 * 1024,
        ),
        cost_estimate=pl.CostEstimate(
            flops=flops, transcendentals=0, bytes_accessed=bytes_accessed),
    )(x, fc2_w, fc2_b.reshape(1, N_OUT), wc16, shift, masks)


# --------------------------------------------------------------------------
# Full PreLayer forward
# --------------------------------------------------------------------------
def _pre_layer_forward(x, params):
    bsz = x.shape[0]

    # Fold conv bias + inference-mode BatchNorm into per-channel weight scale
    # and shift (applied inside the kernel).
    # TODO(synk): training-mode BatchNorm (batch statistics) is not computed
    # in-kernel; this implements the eval-time affine form (running stats).
    inv_std = jax.lax.rsqrt(params["bn_var"] + BN_EPS)
    scale = params["bn_gamma"] * inv_std                          # (24,)
    shift = params["bn_beta"] + (params["conv_b"] - params["bn_mean"]) * scale
    w9 = params["conv_w"].reshape(C_OUT, 9) * scale[:, None]      # BN folded in
    wc16 = jnp.pad(w9, ((0, 0), (0, TAPS_PAD - 9)))               # (24, 16)

    # Column-border masks for the flat-shift im2col (left / right neighbours).
    col = jnp.arange(N_OUT, dtype=jnp.int32) % W
    masks = jnp.stack([(col != 0), (col != W - 1)]).astype(x.dtype)  # (2, 3136)

    out_flat = _pre_layer_pallas(x, params["fc2_w"], params["fc2_b"],
                                 wc16, shift.reshape(C_OUT, 1), masks)
    return out_flat.reshape(bsz, C_OUT, H, W)


pre_layer_forward = jax.jit(_pre_layer_forward)


# --------------------------------------------------------------------------
# Pure-JAX reference
# --------------------------------------------------------------------------
def pre_layer_ref(x, params):
    y = x @ params["fc2_w"] + params["fc2_b"]
    img = y.reshape(-1, 1, H, W)
    conv = jax.lax.conv_general_dilated(
        img, params["conv_w"], window_strides=(1, 1),
        padding=((1, 1), (1, 1)),
        dimension_numbers=("NCHW", "OIHW", "NCHW"))
    conv = conv + params["conv_b"].reshape(1, C_OUT, 1, 1)
    inv_std = 1.0 / jnp.sqrt(params["bn_var"] + BN_EPS)
    bn = ((conv - params["bn_mean"].reshape(1, C_OUT, 1, 1))
          * (params["bn_gamma"] * inv_std).reshape(1, C_OUT, 1, 1)
          + params["bn_beta"].reshape(1, C_OUT, 1, 1))
    return bn * jnp.clip(bn + 3.0, 0.0, 6.0) / 6.0


if __name__ == "__main__":
    key = jax.random.PRNGKey(0)
    keys = jax.random.split(key, 9)
    bsz = 2
    x = jax.random.normal(keys[0], (bsz, K_IN), jnp.float32)

    lim_fc = 1.0 / (K_IN ** 0.5)
    lim_cv = 1.0 / 3.0
    params = {
        "fc2_w": jax.random.uniform(keys[1], (K_IN, N_OUT), jnp.float32,
                                    -lim_fc, lim_fc),
        "fc2_b": jax.random.uniform(keys[2], (N_OUT,), jnp.float32,
                                    -lim_fc, lim_fc),
        "conv_w": jax.random.uniform(keys[3], (C_OUT, 1, 3, 3), jnp.float32,
                                     -lim_cv, lim_cv),
        "conv_b": jax.random.uniform(keys[4], (C_OUT,), jnp.float32,
                                     -lim_cv, lim_cv),
        "bn_gamma": jax.random.uniform(keys[5], (C_OUT,), jnp.float32,
                                       0.5, 1.5),
        "bn_beta": 0.1 * jax.random.normal(keys[6], (C_OUT,), jnp.float32),
        "bn_mean": 0.1 * jax.random.normal(keys[7], (C_OUT,), jnp.float32),
        "bn_var": jnp.abs(jax.random.normal(keys[8], (C_OUT,),
                                            jnp.float32)) + 0.5,
    }

    out = pre_layer_forward(x, params)
    out = jax.block_until_ready(out)

    ref = pre_layer_ref(x, params)
    assert out.shape == (bsz, C_OUT, H, W) and out.dtype == x.dtype
    assert jnp.allclose(out, ref, atol=5e-3, rtol=5e-3), float(
        jnp.max(jnp.abs(out - ref)))

    print("KERNEL_OK")
</pallas_src>

<mosaic_0001>
module attributes {stable_mosaic.version = 11 : i64} {
  func.func @_pre_layer_kernel(%arg0: i32, %arg1: memref<2x551xf32, #tpu.memory_space<vmem>>, %arg2: memref<551x3136xf32, #tpu.memory_space<vmem>>, %arg3: memref<1x3136xf32, #tpu.memory_space<vmem>>, %arg4: memref<24x16xf32, #tpu.memory_space<vmem>>, %arg5: memref<24x1xf32, #tpu.memory_space<vmem>>, %arg6: memref<2x3136xf32, #tpu.memory_space<vmem>>, %arg7: memref<2x24x3136xf32, #tpu.memory_space<vmem>>, %arg8: memref<2x1x3392xf32, #tpu.memory_space<vmem>>, %arg9: memref<16x3136xf32, #tpu.memory_space<vmem>>) attributes {dimension_semantics = [#tpu.dimension_semantics<arbitrary>], iteration_bounds = array<i64: 1>, scalar_prefetch = 0 : i64, scratch_operands = 2 : i64, tpu.core_type = #tpu.core_type<tc>, window_params = [{pipeline_mode = #tpu.pipeline_mode<synchronous>, transform_indices = @transform_0, window_bounds = array<i64: 2, 551>}, {pipeline_mode = #tpu.pipeline_mode<synchronous>, transform_indices = @transform_1, window_bounds = array<i64: 551, 3136>}, {pipeline_mode = #tpu.pipeline_mode<synchronous>, transform_indices = @transform_2, window_bounds = array<i64: 1, 3136>}, {pipeline_mode = #tpu.pipeline_mode<synchronous>, transform_indices = @transform_3, window_bounds = array<i64: 24, 16>}, {pipeline_mode = #tpu.pipeline_mode<synchronous>, transform_indices = @transform_4, window_bounds = array<i64: 24, 1>}, {pipeline_mode = #tpu.pipeline_mode<synchronous>, transform_indices = @transform_5, window_bounds = array<i64: 2, 3136>}, {pipeline_mode = #tpu.pipeline_mode<synchronous>, transform_indices = @transform_6, window_bounds = array<i64: 2, 24, 3136>}]} {
    %c0 = arith.constant 0 : index
    %c0_0 = arith.constant 0 : index
    %0 = vector.load %arg1[%c0, %c0_0] : memref<2x551xf32, #tpu.memory_space<vmem>>, vector<2x551xf32>
    %c0_1 = arith.constant 0 : index
    %c0_2 = arith.constant 0 : index
    %1 = vector.load %arg2[%c0_1, %c0_2] : memref<551x3136xf32, #tpu.memory_space<vmem>>, vector<551x3136xf32>
    %cst = arith.constant dense<0.000000e+00> : vector<2x3136xf32>
    %2 = tpu.matmul %0, %1, %cst {dimension_numbers = #tpu.dot_dimension_numbers<[1], [0], [0], [1], [0, 0, 1, 1], [], []>} : vector<2x551xf32>, vector<551x3136xf32>, vector<2x3136xf32> -> vector<2x3136xf32>
    %c0_3 = arith.constant 0 : index
    %c0_4 = arith.constant 0 : index
    %3 = vector.load %arg3[%c0_3, %c0_4] : memref<1x3136xf32, #tpu.memory_space<vmem>>, vector<1x3136xf32>
    %4 = vector.broadcast %3 : vector<1x3136xf32> to vector<2x3136xf32>
    %5 = arith.addf %2, %4 : vector<2x3136xf32>
    %cst_5 = arith.constant 0.000000e+00 : f32
    %6 = vector.broadcast %cst_5 : f32 to vector<2x1x3392xf32>
    %c0_6 = arith.constant 0 : index
    %c0_7 = arith.constant 0 : index
    %c0_8 = arith.constant 0 : index
    %7 = vector.load %arg8[%c0_6, %c0_7, %c0_8] : memref<2x1x3392xf32, #tpu.memory_space<vmem>>, vector<2x1x3392xf32>
    tpu.vector_store %arg8[%c0_6, %c0_7, %c0_8], %6 {strides = array<i32>} : memref<2x1x3392xf32, #tpu.memory_space<vmem>>, vector<2x1x3392xf32>,
    %cst_9 = arith.constant 0.000000e+00 : f32
    %8 = vector.broadcast %cst_9 : f32 to vector<16x3136xf32>
    %c0_10 = arith.constant 0 : index
    %c0_11 = arith.constant 0 : index
    %9 = vector.load %arg9[%c0_10, %c0_11] : memref<16x3136xf32, #tpu.memory_space<vmem>>, vector<16x3136xf32>
    tpu.vector_store %arg9[%c0_10, %c0_11], %8 {strides = array<i32>} : memref<16x3136xf32, #tpu.memory_space<vmem>>, vector<16x3136xf32>,
    %10 = vector.extract_strided_slice %5 {offsets = [0, 0], sizes = [1, 3136], strides = [1, 1]} : vector<2x3136xf32> to vector<1x3136xf32>
    %c0_12 = arith.constant 0 : index
    %c0_13 = arith.constant 0 : index
    %c128 = arith.constant 128 : index
    %11 = vector.load %arg8[%c0_12, %c0_13, %c128] : memref<2x1x3392xf32, #tpu.memory_space<vmem>>, vector<1x1x3136xf32>
    %12 = vector.shape_cast %11 : vector<1x1x3136xf32> to vector<1x3136xf32>
    %13 = vector.shape_cast %10 : vector<1x3136xf32> to vector<1x1x3136xf32>
    tpu.vector_store %arg8[%c0_12, %c0_13, %c128], %13 {strides = array<i32>} : memref<2x1x3392xf32, #tpu.memory_space<vmem>>, vector<1x1x3136xf32>,
    %14 = vector.extract_strided_slice %5 {offsets = [1, 0], sizes = [1, 3136], strides = [1, 1]} : vector<2x3136xf32> to vector<1x3136xf32>
    %c1 = arith.constant 1 : index
    %c0_14 = arith.constant 0 : index
    %c128_15 = arith.constant 128 : index
    %15 = vector.load %arg8[%c1, %c0_14, %c128_15] : memref<2x1x3392xf32, #tpu.memory_space<vmem>>, vector<1x1x3136xf32>
    %16 = vector.shape_cast %15 : vector<1x1x3136xf32> to vector<1x3136xf32>
    %17 = vector.shape_cast %14 : vector<1x3136xf32> to vector<1x1x3136xf32>
    tpu.vector_store %arg8[%c1, %c0_14, %c128_15], %17 {strides = array<i32>} : memref<2x1x3392xf32, #tpu.memory_space<vmem>>, vector<1x1x3136xf32>,
    %c0_16 = arith.constant 0 : index
    %c0_17 = arith.constant 0 : index
    %c71 = arith.constant 71 : index
    %18 = vector.load %arg8[%c0_16, %c0_17, %c71] : memref<2x1x3392xf32, #tpu.memory_space<vmem>>, vector<1x1x3136xf32>
    %19 = vector.shape_cast %18 : vector<1x1x3136xf32> to vector<1x3136xf32>
    %c0_18 = arith.constant 0 : index
    %c0_19 = arith.constant 0 : index
    %20 = vector.load %arg6[%c0_18, %c0_19] : memref<2x3136xf32, #tpu.memory_space<vmem>>, vector<1x3136xf32>
    %21 = arith.mulf %19, %20 : vector<1x3136xf32>
    %c0_20 = arith.constant 0 : index
    %c0_21 = arith.constant 0 : index
    %22 = vector.load %arg9[%c0_20, %c0_21] : memref<16x3136xf32, #tpu.memory_space<vmem>>, vector<1x3136xf32>
    tpu.vector_store %arg9[%c0_20, %c0_21], %21 {strides = array<i32>} : memref<16x3136xf32, #tpu.memory_space<vmem>>, vector<1x3136xf32>,
    %c0_22 = arith.constant 0 : index
    %c0_23 = arith.constant 0 : index
    %c72 = arith.constant 72 : index
    %23 = vector.load %arg8[%c0_22, %c0_23, %c72] : memref<2x1x3392xf32, #tpu.memory_space<vmem>>, vector<1x1x3136xf32>
    %24 = vector.shape_cast %23 : vector<1x1x3136xf32> to vector<1x3136xf32>
    %c1_24 = arith.constant 1 : index
    %c0_25 = arith.constant 0 : index
    %25 = vector.load %arg9[%c1_24, %c0_25] : memref<16x3136xf32, #tpu.memory_space<vmem>>, vector<1x3136xf32>
    tpu.vector_store %arg9[%c1_24, %c0_25], %24 {strides = array<i32>} : memref<16x3136xf32, #tpu.memory_space<vmem>>, vector<1x3136xf32>,
    %c0_26 = arith.constant 0 : index
    %c0_27 = arith.constant 0 : index
    %c73 = arith.constant 73 : index
    %26 = vector.load %arg8[%c0_26, %c0_27, %c73] : memref<2x1x3392xf32, #tpu.memory_space<vmem>>, vector<1x1x3136xf32>
    %27 = vector.shape_cast %26 : vector<1x1x3136xf32> to vector<1x3136xf32>
    %c1_28 = arith.constant 1 : index
    %c0_29 = arith.constant 0 : index
    %28 = vector.load %arg6[%c1_28, %c0_29] : memref<2x3136xf32, #tpu.memory_space<vmem>>, vector<1x3136xf32>
    %29 = arith.mulf %27, %28 : vector<1x3136xf32>
    %c2 = arith.constant 2 : index
    %c0_30 = arith.constant 0 : index
    %30 = vector.load %arg9[%c2, %c0_30] : memref<16x3136xf32, #tpu.memory_space<vmem>>, vector<1x3136xf32>
    tpu.vector_store %arg9[%c2, %c0_30], %29 {strides = array<i32>} : memref<16x3136xf32, #tpu.memory_space<vmem>>, vector<1x3136xf32>,
    %c0_31 = arith.constant 0 : index
    %c0_32 = arith.constant 0 : index
    %c127 = arith.constant 127 : index
    %31 = vector.load %arg8[%c0_31, %c0_32, %c127] : memref<2x1x3392xf32, #tpu.memory_space<vmem>>, vector<1x1x3136xf32>
    %32 = vector.shape_cast %31 : vector<1x1x3136xf32> to vector<1x3136xf32>
    %c0_33 = arith.constant 0 : index
    %c0_34 = arith.constant 0 : index
    %33 = vector.load %arg6[%c0_33, %c0_34] : memref<2x3136xf32, #tpu.memory_space<vmem>>, vector<1x3136xf32>
    %34 = arith.mulf %32, %33 : vector<1x3136xf32>
    %c3 = arith.constant 3 : index
    %c0_35 = arith.constant 0 : index
    %35 = vector.load %arg9[%c3, %c0_35] : memref<16x3136xf32, #tpu.memory_space<vmem>>, vector<1x3136xf32>
    tpu.vector_store %arg9[%c3, %c0_35], %34 {strides = array<i32>} : memref<16x3136xf32, #tpu.memory_space<vmem>>, vector<1x3136xf32>,
    %c0_36 = arith.constant 0 : index
    %c0_37 = arith.constant 0 : index
    %c128_38 = arith.constant 128 : index
    %36 = vector.load %arg8[%c0_36, %c0_37, %c128_38] : memref<2x1x3392xf32, #tpu.memory_space<vmem>>, vector<1x1x3136xf32>
    %37 = vector.shape_cast %36 : vector<1x1x3136xf32> to vector<1x3136xf32>
    %c4 = arith.constant 4 : index
    %c0_39 = arith.constant 0 : index
    %38 = vector.load %arg9[%c4, %c0_39] : memref<16x3136xf32, #tpu.memory_space<vmem>>, vector<1x3136xf32>
    tpu.vector_store %arg9[%c4, %c0_39], %37 {strides = array<i32>} : memref<16x3136xf32, #tpu.memory_space<vmem>>, vector<1x3136xf32>,
    %c0_40 = arith.constant 0 : index
    %c0_41 = arith.constant 0 : index
    %c129 = arith.constant 129 : index
    %39 = vector.load %arg8[%c0_40, %c0_41, %c129] : memref<2x1x3392xf32, #tpu.memory_space<vmem>>, vector<1x1x3136xf32>
    %40 = vector.shape_cast %39 : vector<1x1x3136xf32> to vector<1x3136xf32>
    %c1_42 = arith.constant 1 : index
    %c0_43 = arith.constant 0 : index
    %41 = vector.load %arg6[%c1_42, %c0_43] : memref<2x3136xf32, #tpu.memory_space<vmem>>, vector<1x3136xf32>
    %42 = arith.mulf %40, %41 : vector<1x3136xf32>
    %c5 = arith.constant 5 : index
    %c0_44 = arith.constant 0 : index
    %43 = vector.load %arg9[%c5, %c0_44] : memref<16x3136xf32, #tpu.memory_space<vmem>>, vector<1x3136xf32>
    tpu.vector_store %arg9[%c5, %c0_44], %42 {strides = array<i32>} : memref<16x3136xf32, #tpu.memory_space<vmem>>, vector<1x3136xf32>,
    %c0_45 = arith.constant 0 : index
    %c0_46 = arith.constant 0 : index
    %c183 = arith.constant 183 : index
    %44 = vector.load %arg8[%c0_45, %c0_46, %c183] : memref<2x1x3392xf32, #tpu.memory_space<vmem>>, vector<1x1x3136xf32>
    %45 = vector.shape_cast %44 : vector<1x1x3136xf32> to vector<1x3136xf32>
    %c0_47 = arith.constant 0 : index
    %c0_48 = arith.constant 0 : index
    %46 = vector.load %arg6[%c0_47, %c0_48] : memref<2x3136xf32, #tpu.memory_space<vmem>>, vector<1x3136xf32>
    %47 = arith.mulf %45, %46 : vector<1x3136xf32>
    %c6 = arith.constant 6 : index
    %c0_49 = arith.constant 0 : index
    %48 = vector.load %arg9[%c6, %c0_49] : memref<16x3136xf32, #tpu.memory_space<vmem>>, vector<1x3136xf32>
    tpu.vector_store %arg9[%c6, %c0_49], %47 {strides = array<i32>} : memref<16x3136xf32, #tpu.memory_space<vmem>>, vector<1x3136xf32>,
    %c0_50 = arith.constant 0 : index
    %c0_51 = arith.constant 0 : index
    %c184 = arith.constant 184 : index
    %49 = vector.load %arg8[%c0_50, %c0_51, %c184] : memref<2x1x3392xf32, #tpu.memory_space<vmem>>, vector<1x1x3136xf32>
    %50 = vector.shape_cast %49 : vector<1x1x3136xf32> to vector<1x3136xf32>
    %c7 = arith.constant 7 : index
    %c0_52 = arith.constant 0 : index
    %51 = vector.load %arg9[%c7, %c0_52] : memref<16x3136xf32, #tpu.memory_space<vmem>>, vector<1x3136xf32>
    tpu.vector_store %arg9[%c7, %c0_52], %50 {strides = array<i32>} : memref<16x3136xf32, #tpu.memory_space<vmem>>, vector<1x3136xf32>,
    %c0_53 = arith.constant 0 : index
    %c0_54 = arith.constant 0 : index
    %c185 = arith.constant 185 : index
    %52 = vector.load %arg8[%c0_53, %c0_54, %c185] : memref<2x1x3392xf32, #tpu.memory_space<vmem>>, vector<1x1x3136xf32>
    %53 = vector.shape_cast %52 : vector<1x1x3136xf32> to vector<1x3136xf32>
    %c1_55 = arith.constant 1 : index
    %c0_56 = arith.constant 0 : index
    %54 = vector.load %arg6[%c1_55, %c0_56] : memref<2x3136xf32, #tpu.memory_space<vmem>>, vector<1x3136xf32>
    %55 = arith.mulf %53, %54 : vector<1x3136xf32>
    %c8 = arith.constant 8 : index
    %c0_57 = arith.constant 0 : index
    %56 = vector.load %arg9[%c8, %c0_57] : memref<16x3136xf32, #tpu.memory_space<vmem>>, vector<1x3136xf32>
    tpu.vector_store %arg9[%c8, %c0_57], %55 {strides = array<i32>} : memref<16x3136xf32, #tpu.memory_space<vmem>>, vector<1x3136xf32>,
    %c0_58 = arith.constant 0 : index
    %c0_59 = arith.constant 0 : index
    %57 = vector.load %arg4[%c0_58, %c0_59] : memref<24x16xf32, #tpu.memory_space<vmem>>, vector<24x16xf32>
    %c0_60 = arith.constant 0 : index
    %c0_61 = arith.constant 0 : index
    %58 = vector.load %arg9[%c0_60, %c0_61] : memref<16x3136xf32, #tpu.memory_space<vmem>>, vector<16x3136xf32>
    %cst_62 = arith.constant dense<0.000000e+00> : vector<24x3136xf32>
    %59 = tpu.matmul %57, %58, %cst_62 {dimension_numbers = #tpu.dot_dimension_numbers<[1], [0], [0], [1], [0, 0, 1, 1], [], []>} : vector<24x16xf32>, vector<16x3136xf32>, vector<24x3136xf32> -> vector<24x3136xf32>
    %c0_63 = arith.constant 0 : index
    %c0_64 = arith.constant 0 : index
    %60 = vector.load %arg5[%c0_63, %c0_64] : memref<24x1xf32, #tpu.memory_space<vmem>>, vector<24x1xf32>
    %61 = vector.broadcast %60 : vector<24x1xf32> to vector<24x3136xf32>
    %62 = arith.addf %59, %61 : vector<24x3136xf32>
    %cst_65 = arith.constant 3.000000e+00 : f32
    %63 = vector.broadcast %cst_65 : f32 to vector<24x3136xf32>
    %64 = arith.addf %62, %63 : vector<24x3136xf32>
    %cst_66 = arith.constant 0.000000e+00 : f32
    %cst_67 = arith.constant 6.000000e+00 : f32
    %65 = vector.broadcast %cst_66 : f32 to vector<24x3136xf32>
    %66 = arith.maximumf %65, %64 : vector<24x3136xf32>
    %67 = vector.broadcast %cst_67 : f32 to vector<24x3136xf32>
    %68 = arith.minimumf %67, %66 : vector<24x3136xf32>
    %69 = arith.mulf %62, %68 : vector<24x3136xf32>
    %cst_68 = arith.constant 0.166666672 : f32
    %70 = vector.broadcast %cst_68 : f32 to vector<24x3136xf32>
    %71 = arith.mulf %69, %70 : vector<24x3136xf32>
    %c0_69 = arith.constant 0 : index
    %c0_70 = arith.constant 0 : index
    %c0_71 = arith.constant 0 : index
    %72 = vector.load %arg7[%c0_69, %c0_70, %c0_71] : memref<2x24x3136xf32, #tpu.memory_space<vmem>>, vector<1x24x3136xf32>
    %73 = vector.shape_cast %72 : vector<1x24x3136xf32> to vector<24x3136xf32>
    %74 = vector.shape_cast %71 : vector<24x3136xf32> to vector<1x24x3136xf32>
    tpu.vector_store %arg7[%c0_69, %c0_70, %c0_71], %74 {strides = array<i32>} : memref<2x24x3136xf32, #tpu.memory_space<vmem>>, vector<1x24x3136xf32>,
    %c1_72 = arith.constant 1 : index
    %c0_73 = arith.constant 0 : index
    %c71_74 = arith.constant 71 : index
    %75 = vector.load %arg8[%c1_72, %c0_73, %c71_74] : memref<2x1x3392xf32, #tpu.memory_space<vmem>>, vector<1x1x3136xf32>
    %76 = vector.shape_cast %75 : vector<1x1x3136xf32> to vector<1x3136xf32>
    %c0_75 = arith.constant 0 : index
    %c0_76 = arith.constant 0 : index
    %77 = vector.load %arg6[%c0_75, %c0_76] : memref<2x3136xf32, #tpu.memory_space<vmem>>, vector<1x3136xf32>
    %78 = arith.mulf %76, %77 : vector<1x3136xf32>
    %c0_77 = arith.constant 0 : index
    %c0_78 = arith.constant 0 : index
    %79 = vector.load %arg9[%c0_77, %c0_78] : memref<16x3136xf32, #tpu.memory_space<vmem>>, vector<1x3136xf32>
    tpu.vector_store %arg9[%c0_77, %c0_78], %78 {strides = array<i32>} : memref<16x3136xf32, #tpu.memory_space<vmem>>, vector<1x3136xf32>,
    %c1_79 = arith.constant 1 : index
    %c0_80 = arith.constant 0 : index
    %c72_81 = arith.constant 72 : index
    %80 = vector.load %arg8[%c1_79, %c0_80, %c72_81] : memref<2x1x3392xf32, #tpu.memory_space<vmem>>, vector<1x1x3136xf32>
    %81 = vector.shape_cast %80 : vector<1x1x3136xf32> to vector<1x3136xf32>
    %c1_82 = arith.constant 1 : index
    %c0_83 = arith.constant 0 : index
    %82 = vector.load %arg9[%c1_82, %c0_83] : memref<16x3136xf32, #tpu.memory_space<vmem>>, vector<1x3136xf32>
    tpu.vector_store %arg9[%c1_82, %c0_83], %81 {strides = array<i32>} : memref<16x3136xf32, #tpu.memory_space<vmem>>, vector<1x3136xf32>,
    %c1_84 = arith.constant 1 : index
    %c0_85 = arith.constant 0 : index
    %c73_86 = arith.constant 73 : index
    %83 = vector.load %arg8[%c1_84, %c0_85, %c73_86] : memref<2x1x3392xf32, #tpu.memory_space<vmem>>, vector<1x1x3136xf32>
    %84 = vector.shape_cast %83 : vector<1x1x3136xf32> to vector<1x3136xf32>
    %c1_87 = arith.constant 1 : index
    %c0_88 = arith.constant 0 : index
    %85 = vector.load %arg6[%c1_87, %c0_88] : memref<2x3136xf32, #tpu.memory_space<vmem>>, vector<1x3136xf32>
    %86 = arith.mulf %84, %85 : vector<1x3136xf32>
    %c2_89 = arith.constant 2 : index
    %c0_90 = arith.constant 0 : index
    %87 = vector.load %arg9[%c2_89, %c0_90] : memref<16x3136xf32, #tpu.memory_space<vmem>>, vector<1x3136xf32>
    tpu.vector_store %arg9[%c2_89, %c0_90], %86 {strides = array<i32>} : memref<16x3136xf32, #tpu.memory_space<vmem>>, vector<1x3136xf32>,
    %c1_91 = arith.constant 1 : index
    %c0_92 = arith.constant 0 : index
    %c127_93 = arith.constant 127 : index
    %88 = vector.load %arg8[%c1_91, %c0_92, %c127_93] : memref<2x1x3392xf32, #tpu.memory_space<vmem>>, vector<1x1x3136xf32>
    %89 = vector.shape_cast %88 : vector<1x1x3136xf32> to vector<1x3136xf32>
    %c0_94 = arith.constant 0 : index
    %c0_95 = arith.constant 0 : index
    %90 = vector.load %arg6[%c0_94, %c0_95] : memref<2x3136xf32, #tpu.memory_space<vmem>>, vector<1x3136xf32>
    %91 = arith.mulf %89, %90 : vector<1x3136xf32>
    %c3_96 = arith.constant 3 : index
    %c0_97 = arith.constant 0 : index
    %92 = vector.load %arg9[%c3_96, %c0_97] : memref<16x3136xf32, #tpu.memory_space<vmem>>, vector<1x3136xf32>
    tpu.vector_store %arg9[%c3_96, %c0_97], %91 {strides = array<i32>} : memref<16x3136xf32, #tpu.memory_space<vmem>>, vector<1x3136xf32>,
    %c1_98 = arith.constant 1 : index
    %c0_99 = arith.constant 0 : index
    %c128_100 = arith.constant 128 : index
    %93 = vector.load %arg8[%c1_98, %c0_99, %c128_100] : memref<2x1x3392xf32, #tpu.memory_space<vmem>>, vector<1x1x3136xf32>
    %94 = vector.shape_cast %93 : vector<1x1x3136xf32> to vector<1x3136xf32>
    %c4_101 = arith.constant 4 : index
    %c0_102 = arith.constant 0 : index
    %95 = vector.load %arg9[%c4_101, %c0_102] : memref<16x3136xf32, #tpu.memory_space<vmem>>, vector<1x3136xf32>
    tpu.vector_store %arg9[%c4_101, %c0_102], %94 {strides = array<i32>} : memref<16x3136xf32, #tpu.memory_space<vmem>>, vector<1x3136xf32>,
    %c1_103 = arith.constant 1 : index
    %c0_104 = arith.constant 0 : index
    %c129_105 = arith.constant 129 : index
    %96 = vector.load %arg8[%c1_103, %c0_104, %c129_105] : memref<2x1x3392xf32, #tpu.memory_space<vmem>>, vector<1x1x3136xf32>
    %97 = vector.shape_cast %96 : vector<1x1x3136xf32> to vector<1x3136xf32>
    %c1_106 = arith.constant 1 : index
    %c0_107 = arith.constant 0 : index
    %98 = vector.load %arg6[%c1_106, %c0_107] : memref<2x3136xf32, #tpu.memory_space<vmem>>, vector<1x3136xf32>
    %99 = arith.mulf %97, %98 : vector<1x3136xf32>
    %c5_108 = arith.constant 5 : index
    %c0_109 = arith.constant 0 : index
    %100 = vector.load %arg9[%c5_108, %c0_109] : memref<16x3136xf32, #tpu.memory_space<vmem>>, vector<1x3136xf32>
    tpu.vector_store %arg9[%c5_108, %c0_109], %99 {strides = array<i32>} : memref<16x3136xf32, #tpu.memory_space<vmem>>, vector<1x3136xf32>,
    %c1_110 = arith.constant 1 : index
    %c0_111 = arith.constant 0 : index
    %c183_112 = arith.constant 183 : index
    %101 = vector.load %arg8[%c1_110, %c0_111, %c183_112] : memref<2x1x3392xf32, #tpu.memory_space<vmem>>, vector<1x1x3136xf32>
    %102 = vector.shape_cast %101 : vector<1x1x3136xf32> to vector<1x3136xf32>
    %c0_113 = arith.constant 0 : index
    %c0_114 = arith.constant 0 : index
    %103 = vector.load %arg6[%c0_113, %c0_114] : memref<2x3136xf32, #tpu.memory_space<vmem>>, vector<1x3136xf32>
    %104 = arith.mulf %102, %103 : vector<1x3136xf32>
    %c6_115 = arith.constant 6 : index
    %c0_116 = arith.constant 0 : index
    %105 = vector.load %arg9[%c6_115, %c0_116] : memref<16x3136xf32, #tpu.memory_space<vmem>>, vector<1x3136xf32>
    tpu.vector_store %arg9[%c6_115, %c0_116], %104 {strides = array<i32>} : memref<16x3136xf32, #tpu.memory_space<vmem>>, vector<1x3136xf32>,
    %c1_117 = arith.constant 1 : index
    %c0_118 = arith.constant 0 : index
    %c184_119 = arith.constant 184 : index
    %106 = vector.load %arg8[%c1_117, %c0_118, %c184_119] : memref<2x1x3392xf32, #tpu.memory_space<vmem>>, vector<1x1x3136xf32>
    %107 = vector.shape_cast %106 : vector<1x1x3136xf32> to vector<1x3136xf32>
    %c7_120 = arith.constant 7 : index
    %c0_121 = arith.constant 0 : index
    %108 = vector.load %arg9[%c7_120, %c0_121] : memref<16x3136xf32, #tpu.memory_space<vmem>>, vector<1x3136xf32>
    tpu.vector_store %arg9[%c7_120, %c0_121], %107 {strides = array<i32>} : memref<16x3136xf32, #tpu.memory_space<vmem>>, vector<1x3136xf32>,
    %c1_122 = arith.constant 1 : index
    %c0_123 = arith.constant 0 : index
    %c185_124 = arith.constant 185 : index
    %109 = vector.load %arg8[%c1_122, %c0_123, %c185_124] : memref<2x1x3392xf32, #tpu.memory_space<vmem>>, vector<1x1x3136xf32>
    %110 = vector.shape_cast %109 : vector<1x1x3136xf32> to vector<1x3136xf32>
    %c1_125 = arith.constant 1 : index
    %c0_126 = arith.constant 0 : index
    %111 = vector.load %arg6[%c1_125, %c0_126] : memref<2x3136xf32, #tpu.memory_space<vmem>>, vector<1x3136xf32>
    %112 = arith.mulf %110, %111 : vector<1x3136xf32>
    %c8_127 = arith.constant 8 : index
    %c0_128 = arith.constant 0 : index
    %113 = vector.load %arg9[%c8_127, %c0_128] : memref<16x3136xf32, #tpu.memory_space<vmem>>, vector<1x3136xf32>
    tpu.vector_store %arg9[%c8_127, %c0_128], %112 {strides = array<i32>} : memref<16x3136xf32, #tpu.memory_space<vmem>>, vector<1x3136xf32>,
    %c0_129 = arith.constant 0 : index
    %c0_130 = arith.constant 0 : index
    %114 = vector.load %arg4[%c0_129, %c0_130] : memref<24x16xf32, #tpu.memory_space<vmem>>, vector<24x16xf32>
    %c0_131 = arith.constant 0 : index
    %c0_132 = arith.constant 0 : index
    %115 = vector.load %arg9[%c0_131, %c0_132] : memref<16x3136xf32, #tpu.memory_space<vmem>>, vector<16x3136xf32>
    %cst_133 = arith.constant dense<0.000000e+00> : vector<24x3136xf32>
    %116 = tpu.matmul %114, %115, %cst_133 {dimension_numbers = #tpu.dot_dimension_numbers<[1], [0], [0], [1], [0, 0, 1, 1], [], []>} : vector<24x16xf32>, vector<16x3136xf32>, vector<24x3136xf32> -> vector<24x3136xf32>
    %c0_134 = arith.constant 0 : index
    %c0_135 = arith.constant 0 : index
    %117 = vector.load %arg5[%c0_134, %c0_135] : memref<24x1xf32, #tpu.memory_space<vmem>>, vector<24x1xf32>
    %118 = vector.broadcast %117 : vector<24x1xf32> to vector<24x3136xf32>
    %119 = arith.addf %116, %118 : vector<24x3136xf32>
    %cst_136 = arith.constant 3.000000e+00 : f32
    %120 = vector.broadcast %cst_136 : f32 to vector<24x3136xf32>
    %121 = arith.addf %119, %120 : vector<24x3136xf32>
    %cst_137 = arith.constant 0.000000e+00 : f32
    %cst_138 = arith.constant 6.000000e+00 : f32
    %122 = vector.broadcast %cst_137 : f32 to vector<24x3136xf32>
    %123 = arith.maximumf %122, %121 : vector<24x3136xf32>
    %124 = vector.broadcast %cst_138 : f32 to vector<24x3136xf32>
    %125 = arith.minimumf %124, %123 : vector<24x3136xf32>
    %126 = arith.mulf %119, %125 : vector<24x3136xf32>
    %cst_139 = arith.constant 0.166666672 : f32
    %127 = vector.broadcast %cst_139 : f32 to vector<24x3136xf32>
    %128 = arith.mulf %126, %127 : vector<24x3136xf32>
    %c1_140 = arith.constant 1 : index
    %c0_141 = arith.constant 0 : index
    %c0_142 = arith.constant 0 : index
    %129 = vector.load %arg7[%c1_140, %c0_141, %c0_142] : memref<2x24x3136xf32, #tpu.memory_space<vmem>>, vector<1x24x3136xf32>
    %130 = vector.shape_cast %129 : vector<1x24x3136xf32> to vector<24x3136xf32>
    %131 = vector.shape_cast %128 : vector<24x3136xf32> to vector<1x24x3136xf32>
    tpu.vector_store %arg7[%c1_140, %c0_141, %c0_142], %131 {strides = array<i32>} : memref<2x24x3136xf32, #tpu.memory_space<vmem>>, vector<1x24x3136xf32>,
    return
  }
  func.func @transform_0(%arg0: i32) -> (i32, i32) {
    %c0_i32 = arith.constant 0 : i32
    %c0_i32_0 = arith.constant 0 : i32
    %c0_i32_1 = arith.constant 0 : i32
    return %c0_i32, %c0_i32_0 : i32, i32
  }
  func.func @transform_1(%arg0: i32) -> (i32, i32) {
    %c0_i32 = arith.constant 0 : i32
    %c0_i32_0 = arith.constant 0 : i32
    %c0_i32_1 = arith.constant 0 : i32
    return %c0_i32, %c0_i32_0 : i32, i32
  }
  func.func @transform_2(%arg0: i32) -> (i32, i32) {
    %c0_i32 = arith.constant 0 : i32
    %c0_i32_0 = arith.constant 0 : i32
    %c0_i32_1 = arith.constant 0 : i32
    return %c0_i32, %c0_i32_0 : i32, i32
  }
  func.func @transform_3(%arg0: i32) -> (i32, i32) {
    %c0_i32 = arith.constant 0 : i32
    %c0_i32_0 = arith.constant 0 : i32
    %c0_i32_1 = arith.constant 0 : i32
    return %c0_i32, %c0_i32_0 : i32, i32
  }
  func.func @transform_4(%arg0: i32) -> (i32, i32) {
    %c0_i32 = arith.constant 0 : i32
    %c0_i32_0 = arith.constant 0 : i32
    %c0_i32_1 = arith.constant 0 : i32
    return %c0_i32, %c0_i32_0 : i32, i32
  }
  func.func @transform_5(%arg0: i32) -> (i32, i32) {
    %c0_i32 = arith.constant 0 : i32
    %c0_i32_0 = arith.constant 0 : i32
    %c0_i32_1 = arith.constant 0 : i32
    return %c0_i32, %c0_i32_0 : i32, i32
  }
  func.func @transform_6(%arg0: i32) -> (i32, i32, i32) {
    %c0_i32 = arith.constant 0 : i32
    %c0_i32_0 = arith.constant 0 : i32
    %c0_i32_1 = arith.constant 0 : i32
    %c0_i32_2 = arith.constant 0 : i32
    return %c0_i32, %c0_i32_0, %c0_i32_1 : i32, i32, i32
  }
}

</mosaic_0001>

<llo_original>
// kernel: _pre_layer_forward.1
$region0: #{_pre_layer_forward.1}
  #allocation0 [shape = 'u32[]', space=smem, size = 0x4, offset = 0x4, fixed_abs, tag = 'smem constant byte address 0x4 - core index']
  #allocation1 [shape = 'u32[144,128]{1,0:T(1,128)}', space=vmem, size = 0x12000, scoped, tag = 'internal scratch']
  #allocation2 [shape = 'f32[2,1,3392]{2,1,0:T(1,128)}', space=vmem, size = 0x6c00, scoped, tag = 'scratch operand']
  #allocation3 [shape = 'f32[16,3136]{1,0:T(8,128)}', space=vmem, size = 0x32000, scoped, tag = 'scratch operand']
  %s0 = inlined_call_operand.hbm [shape: f32[2,551], index: 0, kind: input, shape index: {}]
  %s1 = inlined_call_operand.hbm [shape: f32[551,3136], index: 1, kind: input, shape index: {}]
  %s2 = inlined_call_operand.vmem [shape: f32[1,3136], index: 2, kind: input, shape index: {}]
  %s3 = inlined_call_operand.vmem [shape: f32[24,16], index: 3, kind: input, shape index: {}]
  %s4 = inlined_call_operand.vmem [shape: f32[24,1], index: 4, kind: input, shape index: {}]
  %s5 = inlined_call_operand.vmem [shape: f32[2,3136], index: 5, kind: input, shape index: {}]
  %s6 = inlined_call_operand.vmem [shape: f32[2,24,3136], index: 6, kind: output, shape index: {}]
  %s7 = sld [smem:[#allocation0]]
  $region42: #{_pre_layer_forward.1} parent=0
    _
  %s9 = ssub.s32 1, %s7
  %s10 = scalar_select 0, %s9, %s7
  $region1: #{_pre_layer_forward.1} parent=0
    #allocation4 [shape = 'u8[5120]{0}', space=vmem, size = 0x1400, scoped, tag = 'input window, operand 0, single buffered']
    #allocation5 [shape = 's32[1]{0}', space=sflag, size = 0x4, scoped, tag = 'scoped memory for _pre_layer_forward.1']
    #allocation6 [shape = 'u8[7065600]{0}', space=vmem, size = 0x6bd000, scoped, tag = 'input window, operand 1, single buffered']
    #allocation7 [shape = 's32[1]{0}', space=sflag, size = 0x4, scoped, tag = 'scoped memory for _pre_layer_forward.1']
    %11 = vsyncpa [#allocation5], 0
    %12 = vsyncpa [#allocation7], 0
    // Predicated region
    $region2: #{_pre_layer_forward.1} parent=1 // pred_check
      _
    $region3: #{_pre_layer_forward.1} parent=1 // pred_check_branch
      %14 = sbr.rel (0) target = $region5
    $region4: #{_pre_layer_forward.1} parent=1 // pred_region
      %s16 = ssub.s32 160, 160
      %17 = vsyncadd [#allocation5], %s16
      %s19 = sshll.u32 [#allocation4], 4
      %s20 = int_to_ptr.vmem [resolvable:$true] %s19
      %22 = dma.hbm_to_vmem [thread:$0]  %s0, 160, %s20, [#allocation5]
    $region5: #{_pre_layer_forward.1} parent=1 // pred_fallthru
      _
    // Predicated region
    $region6: #{_pre_layer_forward.1} parent=1 // pred_check
      _
    $region7: #{_pre_layer_forward.1} parent=1 // pred_check_branch
      %24 = sbr.rel (0) target = $region9
    $region8: #{_pre_layer_forward.1} parent=1 // pred_region
      %s26 = ssub.s32 220800, 220800
      %27 = vsyncadd [#allocation7], %s26
      %s28 = sshll.u32 [#allocation6], 4
      %s29 = int_to_ptr.vmem [resolvable:$true] %s28
      %34 = dma.hbm_to_vmem [thread:$0]  %s1, 220800, %s29, [#allocation7], 3200, 3200, 200
    $region9: #{_pre_layer_forward.1} parent=1 // pred_fallthru
      _
    // Predicated region
    $region10: #{_pre_layer_forward.1} parent=1 // pred_check
      _
    $region11: #{_pre_layer_forward.1} parent=1 // pred_check_branch
      %36 = sbr.rel (0) target = $region13
    $region12: #{_pre_layer_forward.1} parent=1 // pred_region
      _
    $region13: #{_pre_layer_forward.1} parent=1 // pred_fallthru
      _
    // Predicated region
    $region14: #{_pre_layer_forward.1} parent=1 // pred_check
      _
    $region15: #{_pre_layer_forward.1} parent=1 // pred_check_branch
      %38 = sbr.rel (0) target = $region17
    $region16: #{_pre_layer_forward.1} parent=1 // pred_region
      _
    $region17: #{_pre_layer_forward.1} parent=1 // pred_fallthru
      _
    // Predicated region
    $region18: #{_pre_layer_forward.1} parent=1 // pred_check
      _
    $region19: #{_pre_layer_forward.1} parent=1 // pred_check_branch
      %40 = sbr.rel (0) target = $region21
    $region20: #{_pre_layer_forward.1} parent=1 // pred_region
      _
    $region21: #{_pre_layer_forward.1} parent=1 // pred_fallthru
      _
    // Predicated region
    $region22: #{_pre_layer_forward.1} parent=1 // pred_check
      _
    $region23: #{_pre_layer_forward.1} parent=1 // pred_check_branch
      %42 = sbr.rel (0) target = $region25
    $region24: #{_pre_layer_forward.1} parent=1 // pred_region
      _
    $region25: #{_pre_layer_forward.1} parent=1 // pred_fallthru
      _
    // Predicated region
    $region26: #{_pre_layer_forward.1} parent=1 // pred_check
      _
    $region27: #{_pre_layer_forward.1} parent=1 // pred_check_branch
      %44 = sbr.rel (0) target = $region29
    $region28: #{_pre_layer_forward.1} parent=1 // pred_region
      %45 = dma.done [#allocation5], 160
    $region29: #{_pre_layer_forward.1} parent=1 // pred_fallthru
      _
    // Predicated region
    $region30: #{_pre_layer_forward.1} parent=1 // pred_check
      _
    $region31: #{_pre_layer_forward.1} parent=1 // pred_check_branch
      %47 = sbr.rel (0) target = $region33
    $region32: #{_pre_layer_forward.1} parent=1 // pred_region
      %48 = dma.done [#allocation7], 220800
    $region33: #{_pre_layer_forward.1} parent=1 // pred_fallthru
      _
    %v49 = vld [vmem:[#allocation4] sm:$0xff]
    %v50 = vld [vmem:[#allocation4 + $0x8] sm:$0x3]
    %v51 = vld [vmem:[#allocation6] sm:$0xff]
    %v52 = vld [vmem:[#allocation6 + $0x8] sm:$0xff]
    %v53 = vld [vmem:[#allocation6 + $0x10] sm:$0xff]
    %v54 = vld [vmem:[#allocation6 + $0x18] sm:$0xff]
    %v55 = vld [vmem:[#allocation6 + $0x20] sm:$0xff]
    %v56 = vld [vmem:[#allocation6 + $0x28] sm:$0xff]
    %v57 = vld [vmem:[#allocation6 + $0x30] sm:$0xff]
    %v58 = vld [vmem:[#allocation6 + $0x38] sm:$0xff]
    %v59 = vld [vmem:[#allocation6 + $0x40] sm:$0xff]
    %v60 = vld [vmem:[#allocation6 + $0x48] sm:$0xff]
    %v61 = vld [vmem:[#allocation6 + $0x50] sm:$0xff]
    %v62 = vld [vmem:[#allocation6 + $0x58] sm:$0xff]
    %v63 = vld [vmem:[#allocation6 + $0x60] sm:$0xff]
    %v64 = vld [vmem:[#allocation6 + $0x68] sm:$0xff]
    %v65 = vld [vmem:[#allocation6 + $0x70] sm:$0xff]
    %v66 = vld [vmem:[#allocation6 + $0x78] sm:$0xff]
    %v67 = vld [vmem:[#allocation6 + $0x80] sm:$0xff]
    %v68 = vld [vmem:[#allocation6 + $0x88] sm:$0xff]
    %v69 = vld [vmem:[#allocation6 + $0x90] sm:$0xff]
    %v70 = vld [vmem:[#allocation6 + $0x98] sm:$0xff]
    %v71 = vld [vmem:[#allocation6 + $0xa0] sm:$0xff]
    %v72 = vld [vmem:[#allocation6 + $0xa8] sm:$0xff]
    %v73 = vld [vmem:[#allocation6 + $0xb0] sm:$0xff]
    %v74 = vld [vmem:[#allocation6 + $0xb8] sm:$0xff]
    %v75 = vld [vmem:[#allocation6 + $0xc0] sm:$0xff]
    %v76 = vld [vmem:[#allocation6 + $0xc8] sm:$0xff]
    %v77 = vld [vmem:[#allocation6 + $0xd0] sm:$0xff]
    %v78 = vld [vmem:[#allocation6 + $0xd8] sm:$0xff]
    %v79 = vld [vmem:[#allocation6 + $0xe0] sm:$0xff]
    %v80 = vld [vmem:[#allocation6 + $0xe8] sm:$0xff]
    %v81 = vld [vmem:[#allocation6 + $0xf0] sm:$0xff]
    %v82 = vld [vmem:[#allocation6 + $0xf8] sm:$0xff]
    %v83 = vld [vmem:[#allocation6 + $0x100] sm:$0xff]
    %v84 = vld [vmem:[#allocation6 + $0x108] sm:$0xff]
    %v85 = vld [vmem:[#allocation6 + $0x110] sm:$0xff]
    %v86 = vld [vmem:[#allocation6 + $0x118] sm:$0xff]
    %v87 = vld [vmem:[#allocation6 + $0x120] sm:$0xff]
    %v88 = vld [vmem:[#allocation6 + $0x128] sm:$0xff]
    %v89 = vld [vmem:[#allocation6 + $0x130] sm:$0xff]
    %v90 = vld [vmem:[#allocation6 + $0x138] sm:$0xff]
    %v91 = vld [vmem:[#allocation6 + $0x140] sm:$0xff]
    %v92 = vld [vmem:[#allocation6 + $0x148] sm:$0xff]
    %v93 = vld [vmem:[#allocation6 + $0x150] sm:$0xff]
    %v94 = vld [vmem:[#allocation6 + $0x158] sm:$0xff]
    %v95 = vld [vmem:[#allocation6 + $0x160] sm:$0xff]
    %v96 = vld [vmem:[#allocation6 + $0x168] sm:$0xff]
    %v97 = vld [vmem:[#allocation6 + $0x170] sm:$0xff]
    %v98 = vld [vmem:[#allocation6 + $0x178] sm:$0xff]
    %v99 = vld [vmem:[#allocation6 + $0x180] sm:$0xff]
    %v100 = vld [vmem:[#allocation6 + $0x188] sm:$0xff]
    %v101 = vld [vmem:[#allocation6 + $0x190] sm:$0xff]
    %v102 = vld [vmem:[#allocation6 + $0x198] sm:$0xff]
    %v103 = vld [vmem:[#allocation6 + $0x1a0] sm:$0xff]
    %v104 = vld [vmem:[#allocation6 + $0x1a8] sm:$0xff]
    %v105 = vld [vmem:[#allocation6 + $0x1b0] sm:$0xff]
    %v106 = vld [vmem:[#allocation6 + $0x1b8] sm:$0xff]
    %v107 = vld [vmem:[#allocation6 + $0x1c0] sm:$0xff]
    %v108 = vld [vmem:[#allocation6 + $0x1c8] sm:$0xff]
    %v109 = vld [vmem:[#allocation6 + $0x1d0] sm:$0xff]
    %v110 = vld [vmem:[#allocation6 + $0x1d8] sm:$0xff]
    %v111 = vld [vmem:[#allocation6 + $0x1e0] sm:$0xff]
    %v112 = vld [vmem:[#allocation6 + $0x1e8] sm:$0xff]
    %v113 = vld [vmem:[#allocation6 + $0x1f0] sm:$0xff]
    %v114 = vld [vmem:[#allocation6 + $0x1f8] sm:$0xff]
    %v115 = vld [vmem:[#allocation6 + $0x200] sm:$0xff]
    %v116 = vld [vmem:[#allocation6 + $0x208] sm:$0xff]
    %v117 = vld [vmem:[#allocation6 + $0x210] sm:$0xff]
    %v118 = vld [vmem:[#allocation6 + $0x218] sm:$0xff]
    %v119 = vld [vmem:[#allocation6 + $0x220] sm:$0xff]
    %v120 = vld [vmem:[#allocation6 + $0x228] sm:$0xff]
    %v121 = vld [vmem:[#allocation6 + $0x230] sm:$0xff]
    %v122 = vld [vmem:[#allocation6 + $0x238] sm:$0xff]
    %v123 = vld [vmem:[#allocation6 + $0x240] sm:$0xff]
    %v124 = vld [vmem:[#allocation6 + $0x248] sm:$0xff]
    %v125 = vld [vmem:[#allocation6 + $0x250] sm:$0xff]
    %v126 = vld [vmem:[#allocation6 + $0x258] sm:$0xff]
    %v127 = vld [vmem:[#allocation6 + $0x260] sm:$0xff]
    %v128 = vld [vmem:[#allocation6 + $0x268] sm:$0xff]
    %v129 = vld [vmem:[#allocation6 + $0x270] sm:$0xff]
    %v130 = vld [vmem:[#allocation6 + $0x278] sm:$0xff]
    %v131 = vld [vmem:[#allocation6 + $0x280] sm:$0xff]
    %v132 = vld [vmem:[#allocation6 + $0x288] sm:$0xff]
    %v133 = vld [vmem:[#allocation6 + $0x290] sm:$0xff]
    %v134 = vld [vmem:[#allocation6 + $0x298] sm:$0xff]
    %v135 = vld [vmem:[#allocation6 + $0x2a0] sm:$0xff]
    %v136 = vld [vmem:[#allocation6 + $0x2a8] sm:$0xff]
    %v137 = vld [vmem:[#allocation6 + $0x2b0] sm:$0xff]
    %v138 = vld [vmem:[#allocation6 + $0x2b8] sm:$0xff]
    %v139 = vld [vmem:[#allocation6 + $0x2c0] sm:$0xff]
    %v140 = vld [vmem:[#allocation6 + $0x2c8] sm:$0xff]
    %v141 = vld [vmem:[#allocation6 + $0x2d0] sm:$0xff]
    %v142 = vld [vmem:[#allocation6 + $0x2d8] sm:$0xff]
    %v143 = vld [vmem:[#allocation6 + $0x2e0] sm:$0xff]
    %v144 = vld [vmem:[#allocation6 + $0x2e8] sm:$0xff]
    %v145 = vld [vmem:[#allocation6 + $0x2f0] sm:$0xff]
    %v146 = vld [vmem:[#allocation6 + $0x2f8] sm:$0xff]
    %v147 = vld [vmem:[#allocation6 + $0x300] sm:$0xff]
    %v148 = vld [vmem:[#allocation6 + $0x308] sm:$0xff]
    %v149 = vld [vmem:[#allocation6 + $0x310] sm:$0xff]
    %v150 = vld [vmem:[#allocation6 + $0x318] sm:$0xff]
    %v151 = vld [vmem:[#allocation6 + $0x320] sm:$0xff]
    %v152 = vld [vmem:[#allocation6 + $0x328] sm:$0xff]
    %v153 = vld [vmem:[#allocation6 + $0x330] sm:$0xff]
    %v154 = vld [vmem:[#allocation6 + $0x338] sm:$0xff]
    %v155 = vld [vmem:[#allocation6 + $0x340] sm:$0xff]
    %v156 = vld [vmem:[#allocation6 + $0x348] sm:$0xff]
    %v157 = vld [vmem:[#allocation6 + $0x350] sm:$0xff]
    %v158 = vld [vmem:[#allocation6 + $0x358] sm:$0xff]
    %v159 = vld [vmem:[#allocation6 + $0x360] sm:$0xff]
    %v160 = vld [vmem:[#allocation6 + $0x368] sm:$0xff]
    %v161 = vld [vmem:[#allocation6 + $0x370] sm:$0xff]
    %v162 = vld [vmem:[#allocation6 + $0x378] sm:$0xff]
    %v163 = vld [vmem:[#allocation6 + $0x380] sm:$0xff]
    %v164 = vld [vmem:[#allocation6 + $0x388] sm:$0xff]
    %v165 = vld [vmem:[#allocation6 + $0x390] sm:$0xff]
    %v166 = vld [vmem:[#allocation6 + $0x398] sm:$0xff]
    %v167 = vld [vmem:[#allocation6 + $0x3a0] sm:$0xff]
    %v168 = vld [vmem:[#allocation6 + $0x3a8] sm:$0xff]
    %v169 = vld [vmem:[#allocation6 + $0x3b0] sm:$0xff]
    %v170 = vld [vmem:[#allocation6 + $0x3b8] sm:$0xff]
    %v171 = vld [vmem:[#allocation6 + $0x3c0] sm:$0xff]
    %v172 = vld [vmem:[#allocation6 + $0x3c8] sm:$0xff]
    %v173 = vld [vmem:[#allocation6 + $0x3d0] sm:$0xff]
    %v174 = vld [vmem:[#allocation6 + $0x3d8] sm:$0xff]
    %v175 = vld [vmem:[#allocation6 + $0x3e0] sm:$0xff]
    %v176 = vld [vmem:[#allocation6 + $0x3e8] sm:$0xff]
    %v177 = vld [vmem:[#allocation6 + $0x3f0] sm:$0xff]
    %v178 = vld [vmem:[#allocation6 + $0x3f8] sm:$0xff]
    %v179 = vld [vmem:[#allocation6 + $0x400] sm:$0xff]
    %v180 = vld [vmem:[#allocation6 + $0x408] sm:$0xff]
    %v181 = vld [vmem:[#allocation6 + $0x410] sm:$0xff]
    %v182 = vld [vmem:[#allocation6 + $0x418] sm:$0xff]
    %v183 = vld [vmem:[#allocation6 + $0x420] sm:$0xff]
    %v184 = vld [vmem:[#allocation6 + $0x428] sm:$0xff]
    %v185 = vld [vmem:[#allocation6 + $0x430] sm:$0xff]
    %v186 = vld [vmem:[#allocation6 + $0x438] sm:$0xff]
    %v187 = vld [vmem:[#allocation6 + $0x440] sm:$0xff]
    %v188 = vld [vmem:[#allocation6 + $0x448] sm:$0xff]
    %v189 = vld [vmem:[#allocation6 + $0x450] sm:$0xff]
    %v190 = vld [vmem:[#allocation6 + $0x458] sm:$0xff]
    %v191 = vld [vmem:[#allocation6 + $0x460] sm:$0xff]
    %v192 = vld [vmem:[#allocation6 + $0x468] sm:$0xff]
    %v193 = vld [vmem:[#allocation6 + $0x470] sm:$0xff]
    %v194 = vld [vmem:[#allocation6 + $0x478] sm:$0xff]
    %v195 = vld [vmem:[#allocation6 + $0x480] sm:$0xff]
    %v196 = vld [vmem:[#allocation6 + $0x488] sm:$0xff]
    %v197 = vld [vmem:[#allocation6 + $0x490] sm:$0xff]
    %v198 = vld [vmem:[#allocation6 + $0x498] sm:$0xff]
    %v199 = vld [vmem:[#allocation6 + $0x4a0] sm:$0xff]
    %v200 = vld [vmem:[#allocation6 + $0x4a8] sm:$0xff]
    %v201 = vld [vmem:[#allocation6 + $0x4b0] sm:$0xff]
    %v202 = vld [vmem:[#allocation6 + $0x4b8] sm:$0xff]
    %v203 = vld [vmem:[#allocation6 + $0x4c0] sm:$0xff]
    %v204 = vld [vmem:[#allocation6 + $0x4c8] sm:$0xff]
    %v205 = vld [vmem:[#allocation6 + $0x4d0] sm:$0xff]
    %v206 = vld [vmem:[#allocation6 + $0x4d8] sm:$0xff]
    %v207 = vld [vmem:[#allocation6 + $0x4e0] sm:$0xff]
    %v208 = vld [vmem:[#allocation6 + $0x4e8] sm:$0xff]
    %v209 = vld [vmem:[#allocation6 + $0x4f0] sm:$0xff]
    %v210 = vld [vmem:[#allocation6 + $0x4f8] sm:$0xff]
    %v211 = vld [vmem:[#allocation6 + $0x500] sm:$0xff]
    %v212 = vld [vmem:[#allocation6 + $0x508] sm:$0xff]
    %v213 = vld [vmem:[#allocation6 + $0x510] sm:$0xff]
    %v214 = vld [vmem:[#allocation6 + $0x518] sm:$0xff]
    %v215 = vld [vmem:[#allocation6 + $0x520] sm:$0xff]
    %v216 = vld [vmem:[#allocation6 + $0x528] sm:$0xff]
    %v217 = vld [vmem:[#allocation6 + $0x530] sm:$0xff]
    %v218 = vld [vmem:[#allocation6 + $0x538] sm:$0xff]
    %v219 = vld [vmem:[#allocation6 + $0x540] sm:$0xff]
    %v220 = vld [vmem:[#allocation6 + $0x548] sm:$0xff]
    %v221 = vld [vmem:[#allocation6 + $0x550] sm:$0xff]
    %v222 = vld [vmem:[#allocation6 + $0x558] sm:$0xff]
    %v223 = vld [vmem:[#allocation6 + $0x560] sm:$0xff]
    %v224 = vld [vmem:[#allocation6 + $0x568] sm:$0xff]
    %v225 = vld [vmem:[#allocation6 + $0x570] sm:$0xff]
    %v226 = vld [vmem:[#allocation6 + $0x578] sm:$0xff]
    %v227 = vld [vmem:[#allocation6 + $0x580] sm:$0xff]
    %v228 = vld [vmem:[#allocation6 + $0x588] sm:$0xff]
    %v229 = vld [vmem:[#allocation6 + $0x590] sm:$0xff]
    %v230 = vld [vmem:[#allocation6 + $0x598] sm:$0xff]
    %v231 = vld [vmem:[#allocation6 + $0x5a0] sm:$0xff]
    %v232 = vld [vmem:[#allocation6 + $0x5a8] sm:$0xff]
    %v233 = vld [vmem:[#allocation6 + $0x5b0] sm:$0xff]
    %v234 = vld [vmem:[#allocation6 + $0x5b8] sm:$0xff]
    %v235 = vld [vmem:[#allocation6 + $0x5c0] sm:$0xff]
    %v236 = vld [vmem:[#allocation6 + $0x5c8] sm:$0xff]
    %v237 = vld [vmem:[#allocation6 + $0x5d0] sm:$0xff]
    %v238 = vld [vmem:[#allocation6 + $0x5d8] sm:$0xff]
    %v239 = vld [vmem:[#allocation6 + $0x5e0] sm:$0xff]
    %v240 = vld [vmem:[#allocation6 + $0x5e8] sm:$0xff]
    %v241 = vld [vmem:[#allocation6 + $0x5f0] sm:$0xff]
    %v242 = vld [vmem:[#allocation6 + $0x5f8] sm:$0xff]
    %v243 = vld [vmem:[#allocation6 + $0x600] sm:$0xff]
    %v244 = vld [vmem:[#allocation6 + $0x608] sm:$0xff]
    %v245 = vld [vmem:[#allocation6 + $0x610] sm:$0xff]
    %v246 = vld [vmem:[#allocation6 + $0x618] sm:$0xff]
    %v247 = vld [vmem:[#allocation6 + $0x620] sm:$0xff]
    %v248 = vld [vmem:[#allocation6 + $0x628] sm:$0xff]
    %v249 = vld [vmem:[#allocation6 + $0x630] sm:$0xff]
    %v250 = vld [vmem:[#allocation6 + $0x638] sm:$0xff]
    %v251 = vld [vmem:[#allocation6 + $0x640] sm:$0xff]
    %v252 = vld [vmem:[#allocation6 + $0x648] sm:$0xff]
    %v253 = vld [vmem:[#allocation6 + $0x650] sm:$0xff]
    %v254 = vld [vmem:[#allocation6 + $0x658] sm:$0xff]
    %v255 = vld [vmem:[#allocation6 + $0x660] sm:$0xff]
    %v256 = vld [vmem:[#allocation6 + $0x668] sm:$0xff]
    %v257 = vld [vmem:[#allocation6 + $0x670] sm:$0xff]
    %v258 = vld [vmem:[#allocation6 + $0x678] sm:$0xff]
    %v259 = vld [vmem:[#allocation6 + $0x680] sm:$0xff]
    %v260 = vld [vmem:[#allocation6 + $0x688] sm:$0xff]
    %v261 = vld [vmem:[#allocation6 + $0x690] sm:$0xff]
    %v262 = vld [vmem:[#allocation6 + $0x698] sm:$0xff]
    %v263 = vld [vmem:[#allocation6 + $0x6a0] sm:$0xff]
    %v264 = vld [vmem:[#allocation6 + $0x6a8] sm:$0xff]
    %v265 = vld [vmem:[#allocation6 + $0x6b0] sm:$0xff]
    %v266 = vld [vmem:[#allocation6 + $0x6b8] sm:$0xff]
    %v267 = vld [vmem:[#allocation6 + $0x6c0] sm:$0xff]
    %v268 = vld [vmem:[#allocation6 + $0x6c8] sm:$0xff]
    %v269 = vld [vmem:[#allocation6 + $0x6d0] sm:$0xff]
    %v270 = vld [vmem:[#allocation6 + $0x6d8] sm:$0xff]
    %v271 = vld [vmem:[#allocation6 + $0x6e0] sm:$0xff]
    %v272 = vld [vmem:[#allocation6 + $0x6e8] sm:$0xff]
    %v273 = vld [vmem:[#allocation6 + $0x6f0] sm:$0xff]
    %v274 = vld [vmem:[#allocation6 + $0x6f8] sm:$0xff]
    %v275 = vld [vmem:[#allocation6 + $0x700] sm:$0xff]
    %v276 = vld [vmem:[#allocation6 + $0x708] sm:$0xff]
    %v277 = vld [vmem:[#allocation6 + $0x710] sm:$0xff]
    %v278 = vld [vmem:[#allocation6 + $0x718] sm:$0xff]
    %v279 = vld [vmem:[#allocation6 + $0x720] sm:$0xff]
    %v280 = vld [vmem:[#allocation6 + $0x728] sm:$0xff]
    %v281 = vld [vmem:[#allocation6 + $0x730] sm:$0xff]
    %v282 = vld [vmem:[#allocation6 + $0x738] sm:$0xff]
    %v283 = vld [vmem:[#allocation6 + $0x740] sm:$0xff]
    %v284 = vld [vmem:[#allocation6 + $0x748] sm:$0xff]
    %v285 = vld [vmem:[#allocation6 + $0x750] sm:$0xff]
    %v286 = vld [vmem:[#allocation6 + $0x758] sm:$0xff]
    %v287 = vld [vmem:[#allocation6 + $0x760] sm:$0xff]
    %v288 = vld [vmem:[#allocation6 + $0x768] sm:$0xff]
    %v289 = vld [vmem:[#allocation6 + $0x770] sm:$0xff]
    %v290 = vld [vmem:[#allocation6 + $0x778] sm:$0xff]
    %v291 = vld [vmem:[#allocation6 + $0x780] sm:$0xff]
    %v292 = vld [vmem:[#allocation6 + $0x788] sm:$0xff]
    %v293 = vld [vmem:[#allocation6 + $0x790] sm:$0xff]
    %v294 = vld [vmem:[#allocation6 + $0x798] sm:$0xff]
    %v295 = vld [vmem:[#allocation6 + $0x7a0] sm:$0xff]
    %v296 = vld [vmem:[#allocation6 + $0x7a8] sm:$0xff]
    %v297 = vld [vmem:[#allocation6 + $0x7b0] sm:$0xff]
    %v298 = vld [vmem:[#allocation6 + $0x7b8] sm:$0xff]
    %v299 = vld [vmem:[#allocation6 + $0x7c0] sm:$0xff]
    %v300 = vld [vmem:[#allocation6 + $0x7c8] sm:$0xff]
    %v301 = vld [vmem:[#allocation6 + $0x7d0] sm:$0xff]
    %v302 = vld [vmem:[#allocation6 + $0x7d8] sm:$0xff]
    %v303 = vld [vmem:[#allocation6 + $0x7e0] sm:$0xff]
    %v304 = vld [vmem:[#allocation6 + $0x7e8] sm:$0xff]
    %v305 = vld [vmem:[#allocation6 + $0x7f0] sm:$0xff]
    %v306 = vld [vmem:[#allocation6 + $0x7f8] sm:$0xff]
    %v307 = vld [vmem:[#allocation6 + $0x800] sm:$0xff]
    %v308 = vld [vmem:[#allocation6 + $0x808] sm:$0xff]
    %v309 = vld [vmem:[#allocation6 + $0x810] sm:$0xff]
    %v310 = vld [vmem:[#allocation6 + $0x818] sm:$0xff]
    %v311 = vld [vmem:[#allocation6 + $0x820] sm:$0xff]
    %v312 = vld [vmem:[#allocation6 + $0x828] sm:$0xff]
    %v313 = vld [vmem:[#allocation6 + $0x830] sm:$0xff]
    %v314 = vld [vmem:[#allocation6 + $0x838] sm:$0xff]
    %v315 = vld [vmem:[#allocation6 + $0x840] sm:$0xff]
    %v316 = vld [vmem:[#allocation6 + $0x848] sm:$0xff]
    %v317 = vld [vmem:[#allocation6 + $0x850] sm:$0xff]
    %v318 = vld [vmem:[#allocation6 + $0x858] sm:$0xff]
    %v319 = vld [vmem:[#allocation6 + $0x860] sm:$0xff]
    %v320 = vld [vmem:[#allocation6 + $0x868] sm:$0xff]
    %v321 = vld [vmem:[#allocation6 + $0x870] sm:$0xff]
    %v322 = vld [vmem:[#allocation6 + $0x878] sm:$0xff]
    %v323 = vld [vmem:[#allocation6 + $0x880] sm:$0xff]
    %v324 = vld [vmem:[#allocation6 + $0x888] sm:$0xff]
    %v325 = vld [vmem:[#allocation6 + $0x890] sm:$0xff]
    %v326 = vld [vmem:[#allocation6 + $0x898] sm:$0xff]
    %v327 = vld [vmem:[#allocation6 + $0x8a0] sm:$0xff]
    %v328 = vld [vmem:[#allocation6 + $0x8a8] sm:$0xff]
    %v329 = vld [vmem:[#allocation6 + $0x8b0] sm:$0xff]
    %v330 = vld [vmem:[#allocation6 + $0x8b8] sm:$0xff]
    %v331 = vld [vmem:[#allocation6 + $0x8c0] sm:$0xff]
    %v332 = vld [vmem:[#allocation6 + $0x8c8] sm:$0xff]
    %v333 = vld [vmem:[#allocation6 + $0x8d0] sm:$0xff]
    %v334 = vld [vmem:[#allocation6 + $0x8d8] sm:$0xff]
    %v335 = vld [vmem:[#allocation6 + $0x8e0] sm:$0xff]
    %v336 = vld [vmem:[#allocation6 + $0x8e8] sm:$0xff]
    %v337 = vld [vmem:[#allocation6 + $0x8f0] sm:$0xff]
    %v338 = vld [vmem:[#allocation6 + $0x8f8] sm:$0xff]
    %v339 = vld [vmem:[#allocation6 + $0x900] sm:$0xff]
    %v340 = vld [vmem:[#allocation6 + $0x908] sm:$0xff]
    %v341 = vld [vmem:[#allocation6 + $0x910] sm:$0xff]
    %v342 = vld [vmem:[#allocation6 + $0x918] sm:$0xff]
    %v343 = vld [vmem:[#allocation6 + $0x920] sm:$0xff]
    %v344 = vld [vmem:[#allocation6 + $0x928] sm:$0xff]
    %v345 = vld [vmem:[#allocation6 + $0x930] sm:$0xff]
    %v346 = vld [vmem:[#allocation6 + $0x938] sm:$0xff]
    %v347 = vld [vmem:[#allocation6 + $0x940] sm:$0xff]
    %v348 = vld [vmem:[#allocation6 + $0x948] sm:$0xff]
    %v349 = vld [vmem:[#allocation6 + $0x950] sm:$0xff]
    %v350 = vld [vmem:[#allocation6 + $0x958] sm:$0xff]
    %v351 = vld [vmem:[#allocation6 + $0x960] sm:$0xff]
    %v352 = vld [vmem:[#allocation6 + $0x968] sm:$0xff]
    %v353 = vld [vmem:[#allocation6 + $0x970] sm:$0xff]
    %v354 = vld [vmem:[#allocation6 + $0x978] sm:$0xff]
    %v355 = vld [vmem:[#allocation6 + $0x980] sm:$0xff]
    %v356 = vld [vmem:[#allocation6 + $0x988] sm:$0xff]
    %v357 = vld [vmem:[#allocation6 + $0x990] sm:$0xff]
    %v358 = vld [vmem:[#allocation6 + $0x998] sm:$0xff]
    %v359 = vld [vmem:[#allocation6 + $0x9a0] sm:$0xff]
    %v360 = vld [vmem:[#allocation6 + $0x9a8] sm:$0xff]
    %v361 = vld [vmem:[#allocation6 + $0x9b0] sm:$0xff]
    %v362 = vld [vmem:[#allocation6 + $0x9b8] sm:$0xff]
    %v363 = vld [vmem:[#allocation6 + $0x9c0] sm:$0xff]
    %v364 = vld [vmem:[#allocation6 + $0x9c8] sm:$0xff]
    %v365 = vld [vmem:[#allocation6 + $0x9d0] sm:$0xff]
    %v366 = vld [vmem:[#allocation6 + $0x9d8] sm:$0xff]
    %v367 = vld [vmem:[#allocation6 + $0x9e0] sm:$0xff]
    %v368 = vld [vmem:[#allocation6 + $0x9e8] sm:$0xff]
    %v369 = vld [vmem:[#allocation6 + $0x9f0] sm:$0xff]
    %v370 = vld [vmem:[#allocation6 + $0x9f8] sm:$0xff]
    %v371 = vld [vmem:[#allocation6 + $0xa00] sm:$0xff]
    %v372 = vld [vmem:[#allocation6 + $0xa08] sm:$0xff]
    %v373 = vld [vmem:[#allocation6 + $0xa10] sm:$0xff]
    %v374 = vld [vmem:[#allocation6 + $0xa18] sm:$0xff]
    %v375 = vld [vmem:[#allocation6 + $0xa20] sm:$0xff]
    %v376 = vld [vmem:[#allocation6 + $0xa28] sm:$0xff]
    %v377 = vld [vmem:[#allocation6 + $0xa30] sm:$0xff]
    %v378 = vld [vmem:[#allocation6 + $0xa38] sm:$0xff]
    %v379 = vld [vmem:[#allocation6 + $0xa40] sm:$0xff]
    %v380 = vld [vmem:[#allocation6 + $0xa48] sm:$0xff]
    %v381 = vld [vmem:[#allocation6 + $0xa50] sm:$0xff]
    %v382 = vld [vmem:[#allocation6 + $0xa58] sm:$0xff]
    %v383 = vld [vmem:[#allocation6 + $0xa60] sm:$0xff]
    %v384 = vld [vmem:[#allocation6 + $0xa68] sm:$0xff]
    %v385 = vld [vmem:[#allocation6 + $0xa70] sm:$0xff]
    %v386 = vld [vmem:[#allocation6 + $0xa78] sm:$0xff]
    %v387 = vld [vmem:[#allocation6 + $0xa80] sm:$0xff]
    %v388 = vld [vmem:[#allocation6 + $0xa88] sm:$0xff]
    %v389 = vld [vmem:[#allocation6 + $0xa90] sm:$0xff]
    %v390 = vld [vmem:[#allocation6 + $0xa98] sm:$0xff]
    %v391 = vld [vmem:[#allocation6 + $0xaa0] sm:$0xff]
    %v392 = vld [vmem:[#allocation6 + $0xaa8] sm:$0xff]
    %v393 = vld [vmem:[#allocation6 + $0xab0] sm:$0xff]
    %v394 = vld [vmem:[#allocation6 + $0xab8] sm:$0xff]
    %v395 = vld [vmem:[#allocation6 + $0xac0] sm:$0xff]
    %v396 = vld [vmem:[#allocation6 + $0xac8] sm:$0xff]
    %v397 = vld [vmem:[#allocation6 + $0xad0] sm:$0xff]
    %v398 = vld [vmem:[#allocation6 + $0xad8] sm:$0xff]
    %v399 = vld [vmem:[#allocation6 + $0xae0] sm:$0xff]
    %v400 = vld [vmem:[#allocation6 + $0xae8] sm:$0xff]
    %v401 = vld [vmem:[#allocation6 + $0xaf0] sm:$0xff]
    %v402 = vld [vmem:[#allocation6 + $0xaf8] sm:$0xff]
    %v403 = vld [vmem:[#allocation6 + $0xb00] sm:$0xff]
    %v404 = vld [vmem:[#allocation6 + $0xb08] sm:$0xff]
    %v405 = vld [vmem:[#allocation6 + $0xb10] sm:$0xff]
    %v406 = vld [vmem:[#allocation6 + $0xb18] sm:$0xff]
    %v407 = vld [vmem:[#allocation6 + $0xb20] sm:$0xff]
    %v408 = vld [vmem:[#allocation6 + $0xb28] sm:$0xff]
    %v409 = vld [vmem:[#allocation6 + $0xb30] sm:$0xff]
    %v410 = vld [vmem:[#allocation6 + $0xb38] sm:$0xff]
    %v411 = vld [vmem:[#allocation6 + $0xb40] sm:$0xff]
    %v412 = vld [vmem:[#allocation6 + $0xb48] sm:$0xff]
    %v413 = vld [vmem:[#allocation6 + $0xb50] sm:$0xff]
    %v414 = vld [vmem:[#allocation6 + $0xb58] sm:$0xff]
    %v415 = vld [vmem:[#allocation6 + $0xb60] sm:$0xff]
    %v416 = vld [vmem:[#allocation6 + $0xb68] sm:$0xff]
    %v417 = vld [vmem:[#allocation6 + $0xb70] sm:$0xff]
    %v418 = vld [vmem:[#allocation6 + $0xb78] sm:$0xff]
    %v419 = vld [vmem:[#allocation6 + $0xb80] sm:$0xff]
    %v420 = vld [vmem:[#allocation6 + $0xb88] sm:$0xff]
    %v421 = vld [vmem:[#allocation6 + $0xb90] sm:$0xff]
    %v422 = vld [vmem:[#allocation6 + $0xb98] sm:$0xff]
    %v423 = vld [vmem:[#allocation6 + $0xba0] sm:$0xff]
    %v424 = vld [vmem:[#allocation6 + $0xba8] sm:$0xff]
    %v425 = vld [vmem:[#allocation6 + $0xbb0] sm:$0xff]
    %v426 = vld [vmem:[#allocation6 + $0xbb8] sm:$0xff]
    %v427 = vld [vmem:[#allocation6 + $0xbc0] sm:$0xff]
    %v428 = vld [vmem:[#allocation6 + $0xbc8] sm:$0xff]
    %v429 = vld [vmem:[#allocation6 + $0xbd0] sm:$0xff]
    %v430 = vld [vmem:[#allocation6 + $0xbd8] sm:$0xff]
    %v431 = vld [vmem:[#allocation6 + $0xbe0] sm:$0xff]
    %v432 = vld [vmem:[#allocation6 + $0xbe8] sm:$0xff]
    %v433 = vld [vmem:[#allocation6 + $0xbf0] sm:$0xff]
    %v434 = vld [vmem:[#allocation6 + $0xbf8] sm:$0xff]
    %v435 = vld [vmem:[#allocation6 + $0xc00] sm:$0xff]
    %v436 = vld [vmem:[#allocation6 + $0xc08] sm:$0xff]
    %v437 = vld [vmem:[#allocation6 + $0xc10] sm:$0xff]
    %v438 = vld [vmem:[#allocation6 + $0xc18] sm:$0xff]
    %v439 = vld [vmem:[#allocation6 + $0xc20] sm:$0xff]
    %v440 = vld [vmem:[#allocation6 + $0xc28] sm:$0xff]
    %v441 = vld [vmem:[#allocation6 + $0xc30] sm:$0xff]
    %v442 = vld [vmem:[#allocation6 + $0xc38] sm:$0xff]
    %v443 = vld [vmem:[#allocation6 + $0xc40] sm:$0xff]
    %v444 = vld [vmem:[#allocation6 + $0xc48] sm:$0xff]
    %v445 = vld [vmem:[#allocation6 + $0xc50] sm:$0xff]
    %v446 = vld [vmem:[#allocation6 + $0xc58] sm:$0xff]
    %v447 = vld [vmem:[#allocation6 + $0xc60] sm:$0xff]
    %v448 = vld [vmem:[#allocation6 + $0xc68] sm:$0xff]
    %v449 = vld [vmem:[#allocation6 + $0xc70] sm:$0xff]
    %v450 = vld [vmem:[#allocation6 + $0xc78] sm:$0xff]
    %v451 = vld [vmem:[#allocation6 + $0xc80] sm:$0xff]
    %v452 = vld [vmem:[#allocation6 + $0xc88] sm:$0xff]
    %v453 = vld [vmem:[#allocation6 + $0xc90] sm:$0xff]
    %v454 = vld [vmem:[#allocation6 + $0xc98] sm:$0xff]
    %v455 = vld [vmem:[#allocation6 + $0xca0] sm:$0xff]
    %v456 = vld [vmem:[#allocation6 + $0xca8] sm:$0xff]
    %v457 = vld [vmem:[#allocation6 + $0xcb0] sm:$0xff]
    %v458 = vld [vmem:[#allocation6 + $0xcb8] sm:$0xff]
    %v459 = vld [vmem:[#allocation6 + $0xcc0] sm:$0xff]
    %v460 = vld [vmem:[#allocation6 + $0xcc8] sm:$0xff]
    %v461 = vld [vmem:[#allocation6 + $0xcd0] sm:$0xff]
    %v462 = vld [vmem:[#allocation6 + $0xcd8] sm:$0xff]
    %v463 = vld [vmem:[#allocation6 + $0xce0] sm:$0xff]
    %v464 = vld [vmem:[#allocation6 + $0xce8] sm:$0xff]
    %v465 = vld [vmem:[#allocation6 + $0xcf0] sm:$0xff]
    %v466 = vld [vmem:[#allocation6 + $0xcf8] sm:$0xff]
    %v467 = vld [vmem:[#allocation6 + $0xd00] sm:$0xff]
    %v468 = vld [vmem:[#allocation6 + $0xd08] sm:$0xff]
    %v469 = vld [vmem:[#allocation6 + $0xd10] sm:$0xff]
    %v470 = vld [vmem:[#allocation6 + $0xd18] sm:$0xff]
    %v471 = vld [vmem:[#allocation6 + $0xd20] sm:$0xff]
    %v472 = vld [vmem:[#allocation6 + $0xd28] sm:$0xff]
    %v473 = vld [vmem:[#allocation6 + $0xd30] sm:$0xff]
    %v474 = vld [vmem:[#allocation6 + $0xd38] sm:$0xff]
    %v475 = vld [vmem:[#allocation6 + $0xd40] sm:$0xff]
    %v476 = vld [vmem:[#allocation6 + $0xd48] sm:$0xff]
    %v477 = vld [vmem:[#allocation6 + $0xd50] sm:$0xff]
    %v478 = vld [vmem:[#allocation6 + $0xd58] sm:$0xff]
    %v479 = vld [vmem:[#allocation6 + $0xd60] sm:$0xff]
    %v480 = vld [vmem:[#allocation6 + $0xd68] sm:$0xff]
    %v481 = vld [vmem:[#allocation6 + $0xd70] sm:$0xff]
    %v482 = vld [vmem:[#allocation6 + $0xd78] sm:$0xff]
    %v483 = vld [vmem:[#allocation6 + $0xd80] sm:$0xff]
    %v484 = vld [vmem:[#allocation6 + $0xd88] sm:$0xff]
    %v485 = vld [vmem:[#allocation6 + $0xd90] sm:$0xff]
    %v486 = vld [vmem:[#allocation6 + $0xd98] sm:$0xff]
    %v487 = vld [vmem:[#allocation6 + $0xda0] sm:$0xff]
    %v488 = vld [vmem:[#allocation6 + $0xda8] sm:$0xff]
    %v489 = vld [vmem:[#allocation6 + $0xdb0] sm:$0xff]
    %v490 = vld [vmem:[#allocation6 + $0xdb8] sm:$0xff]
    %v491 = vld [vmem:[#allocation6 + $0xdc0] sm:$0xff]
    %v492 = vld [vmem:[#allocation6 + $0xdc8] sm:$0xff]
    %v493 = vld [vmem:[#allocation6 + $0xdd0] sm:$0xff]
    %v494 = vld [vmem:[#allocation6 + $0xdd8] sm:$0xff]
    %v495 = vld [vmem:[#allocation6 + $0xde0] sm:$0xff]
    %v496 = vld [vmem:[#allocation6 + $0xde8] sm:$0xff]
    %v497 = vld [vmem:[#allocation6 + $0xdf0] sm:$0xff]
    %v498 = vld [vmem:[#allocation6 + $0xdf8] sm:$0xff]
    %v499 = vld [vmem:[#allocation6 + $0xe00] sm:$0xff]
    %v500 = vld [vmem:[#allocation6 + $0xe08] sm:$0xff]
    %v501 = vld [vmem:[#allocation6 + $0xe10] sm:$0xff]
    %v502 = vld [vmem:[#allocation6 + $0xe18] sm:$0xff]
    %v503 = vld [vmem:[#allocation6 + $0xe20] sm:$0xff]
    %v504 = vld [vmem:[#allocation6 + $0xe28] sm:$0xff]
    %v505 = vld [vmem:[#allocation6 + $0xe30] sm:$0xff]
    %v506 = vld [vmem:[#allocation6 + $0xe38] sm:$0xff]
    %v507 = vld [vmem:[#allocation6 + $0xe40] sm:$0xff]
    %v508 = vld [vmem:[#allocation6 + $0xe48] sm:$0xff]
    %v509 = vld [vmem:[#allocation6 + $0xe50] sm:$0xff]
    %v510 = vld [vmem:[#allocation6 + $0xe58] sm:$0xff]
    %v511 = vld [vmem:[#allocation6 + $0xe60] sm:$0xff]
    %v512 = vld [vmem:[#allocation6 + $0xe68] sm:$0xff]
    %v513 = vld [vmem:[#allocation6 + $0xe70] sm:$0xff]
    %v514 = vld [vmem:[#allocation6 + $0xe78] sm:$0xff]
    %v515 = vld [vmem:[#allocation6 + $0xe80] sm:$0xff]
    %v516 = vld [vmem:[#allocation6 + $0xe88] sm:$0xff]
    %v517 = vld [vmem:[#allocation6 + $0xe90] sm:$0xff]
    %v518 = vld [vmem:[#allocation6 + $0xe98] sm:$0xff]
    %v519 = vld [vmem:[#allocation6 + $0xea0] sm:$0xff]
    %v520 = vld [vmem:[#allocation6 + $0xea8] sm:$0xff]
    %v521 = vld [vmem:[#allocation6 + $0xeb0] sm:$0xff]
    %v522 = vld [vmem:[#allocation6 + $0xeb8] sm:$0xff]
    %v523 = vld [vmem:[#allocation6 + $0xec0] sm:$0xff]
    %v524 = vld [vmem:[#allocation6 + $0xec8] sm:$0xff]
    %v525 = vld [vmem:[#allocation6 + $0xed0] sm:$0xff]
    %v526 = vld [vmem:[#allocation6 + $0xed8] sm:$0xff]
    %v527 = vld [vmem:[#allocation6 + $0xee0] sm:$0xff]
    %v528 = vld [vmem:[#allocation6 + $0xee8] sm:$0xff]
    %v529 = vld [vmem:[#allocation6 + $0xef0] sm:$0xff]
    %v530 = vld [vmem:[#allocation6 + $0xef8] sm:$0xff]
    %v531 = vld [vmem:[#allocation6 + $0xf00] sm:$0xff]
    %v532 = vld [vmem:[#allocation6 + $0xf08] sm:$0xff]
    %v533 = vld [vmem:[#allocation6 + $0xf10] sm:$0xff]
    %v534 = vld [vmem:[#allocation6 + $0xf18] sm:$0xff]
    %v535 = vld [vmem:[#allocation6 + $0xf20] sm:$0xff]
    %v536 = vld [vmem:[#allocation6 + $0xf28] sm:$0xff]
    %v537 = vld [vmem:[#allocation6 + $0xf30] sm:$0xff]
    %v538 = vld [vmem:[#allocation6 + $0xf38] sm:$0xff]
    %v539 = vld [vmem:[#allocation6 + $0xf40] sm:$0xff]
    %v540 = vld [vmem:[#allocation6 + $0xf48] sm:$0xff]
    %v541 = vld [vmem:[#allocation6 + $0xf50] sm:$0xff]
    %v542 = vld [vmem:[#allocation6 + $0xf58] sm:$0xff]
    %v543 = vld [vmem:[#allocation6 + $0xf60] sm:$0xff]
    %v544 = vld [vmem:[#allocation6 + $0xf68] sm:$0xff]
    %v545 = vld [vmem:[#allocation6 + $0xf70] sm:$0xff]
    %v546 = vld [vmem:[#allocation6 + $0xf78] sm:$0xff]
    %v547 = vld [vmem:[#allocation6 + $0xf80] sm:$0xff]
    %v548 = vld [vmem:[#allocation6 + $0xf88] sm:$0xff]
    %v549 = vld [vmem:[#allocation6 + $0xf90] sm:$0xff]
    %v550 = vld [vmem:[#allocation6 + $0xf98] sm:$0xff]
    %v551 = vld [vmem:[#allocation6 + $0xfa0] sm:$0xff]
    %v552 = vld [vmem:[#allocation6 + $0xfa8] sm:$0xff]
    %v553 = vld [vmem:[#allocation6 + $0xfb0] sm:$0xff]
    %v554 = vld [vmem:[#allocation6 + $0xfb8] sm:$0xff]
    %v555 = vld [vmem:[#allocation6 + $0xfc0] sm:$0xff]
    %v556 = vld [vmem:[#allocation6 + $0xfc8] sm:$0xff]
    %v557 = vld [vmem:[#allocation6 + $0xfd0] sm:$0xff]
    %v558 = vld [vmem:[#allocation6 + $0xfd8] sm:$0xff]
    %v559 = vld [vmem:[#allocation6 + $0xfe0] sm:$0xff]
    %v560 = vld [vmem:[#allocation6 + $0xfe8] sm:$0xff]
    %v561 = vld [vmem:[#allocation6 + $0xff0] sm:$0xff]
    %v562 = vld [vmem:[#allocation6 + $0xff8] sm:$0xff]
    %v563 = vld [vmem:[#allocation6 + $0x1000] sm:$0xff]
    %v564 = vld [vmem:[#allocation6 + $0x1008] sm:$0xff]
    %v565 = vld [vmem:[#allocation6 + $0x1010] sm:$0xff]
    %v566 = vld [vmem:[#allocation6 + $0x1018] sm:$0xff]
    %v567 = vld [vmem:[#allocation6 + $0x1020] sm:$0xff]
    %v568 = vld [vmem:[#allocation6 + $0x1028] sm:$0xff]
    %v569 = vld [vmem:[#allocation6 + $0x1030] sm:$0xff]
    %v570 = vld [vmem:[#allocation6 + $0x1038] sm:$0xff]
    %v571 = vld [vmem:[#allocation6 + $0x1040] sm:$0xff]
    %v572 = vld [vmem:[#allocation6 + $0x1048] sm:$0xff]
    %v573 = vld [vmem:[#allocation6 + $0x1050] sm:$0xff]
    %v574 = vld [vmem:[#allocation6 + $0x1058] sm:$0xff]
    %v575 = vld [vmem:[#allocation6 + $0x1060] sm:$0xff]
    %v576 = vld [vmem:[#allocation6 + $0x1068] sm:$0xff]
    %v577 = vld [vmem:[#allocation6 + $0x1070] sm:$0xff]
    %v578 = vld [vmem:[#allocation6 + $0x1078] sm:$0xff]
    %v579 = vld [vmem:[#allocation6 + $0x1080] sm:$0xff]
    %v580 = vld [vmem:[#allocation6 + $0x1088] sm:$0xff]
    %v581 = vld [vmem:[#allocation6 + $0x1090] sm:$0xff]
    %v582 = vld [vmem:[#allocation6 + $0x1098] sm:$0xff]
    %v583 = vld [vmem:[#allocation6 + $0x10a0] sm:$0xff]
    %v584 = vld [vmem:[#allocation6 + $0x10a8] sm:$0xff]
    %v585 = vld [vmem:[#allocation6 + $0x10b0] sm:$0xff]
    %v586 = vld [vmem:[#allocation6 + $0x10b8] sm:$0xff]
    %v587 = vld [vmem:[#allocation6 + $0x10c0] sm:$0xff]
    %v588 = vld [vmem:[#allocation6 + $0x10c8] sm:$0xff]
    %v589 = vld [vmem:[#allocation6 + $0x10d0] sm:$0xff]
    %v590 = vld [vmem:[#allocation6 + $0x10d8] sm:$0xff]
    %v591 = vld [vmem:[#allocation6 + $0x10e0] sm:$0xff]
    %v592 = vld [vmem:[#allocation6 + $0x10e8] sm:$0xff]
    %v593 = vld [vmem:[#allocation6 + $0x10f0] sm:$0xff]
    %v594 = vld [vmem:[#allocation6 + $0x10f8] sm:$0xff]
    %v595 = vld [vmem:[#allocation6 + $0x1100] sm:$0xff]
    %v596 = vld [vmem:[#allocation6 + $0x1108] sm:$0xff]
    %v597 = vld [vmem:[#allocation6 + $0x1110] sm:$0xff]
    %v598 = vld [vmem:[#allocation6 + $0x1118] sm:$0xff]
    %v599 = vld [vmem:[#allocation6 + $0x1120] sm:$0xff]
    %v600 = vld [vmem:[#allocation6 + $0x1128] sm:$0xff]
    %v601 = vld [vmem:[#allocation6 + $0x1130] sm:$0xff]
    %v602 = vld [vmem:[#allocation6 + $0x1138] sm:$0xff]
    %v603 = vld [vmem:[#allocation6 + $0x1140] sm:$0xff]
    %v604 = vld [vmem:[#allocation6 + $0x1148] sm:$0xff]
    %v605 = vld [vmem:[#allocation6 + $0x1150] sm:$0xff]
    %v606 = vld [vmem:[#allocation6 + $0x1158] sm:$0xff]
    %v607 = vld [vmem:[#allocation6 + $0x1160] sm:$0xff]
    %v608 = vld [vmem:[#allocation6 + $0x1168] sm:$0xff]
    %v609 = vld [vmem:[#allocation6 + $0x1170] sm:$0xff]
    %v610 = vld [vmem:[#allocation6 + $0x1178] sm:$0xff]
    %v611 = vld [vmem:[#allocation6 + $0x1180] sm:$0xff]
    %v612 = vld [vmem:[#allocation6 + $0x1188] sm:$0xff]
    %v613 = vld [vmem:[#allocation6 + $0x1190] sm:$0xff]
    %v614 = vld [vmem:[#allocation6 + $0x1198] sm:$0xff]
    %v615 = vld [vmem:[#allocation6 + $0x11a0] sm:$0xff]
    %v616 = vld [vmem:[#allocation6 + $0x11a8] sm:$0xff]
    %v617 = vld [vmem:[#allocation6 + $0x11b0] sm:$0xff]
    %v618 = vld [vmem:[#allocation6 + $0x11b8] sm:$0xff]
    %v619 = vld [vmem:[#allocation6 + $0x11c0] sm:$0xff]
    %v620 = vld [vmem:[#allocation6 + $0x11c8] sm:$0xff]
    %v621 = vld [vmem:[#allocation6 + $0x11d0] sm:$0xff]
    %v622 = vld [vmem:[#allocation6 + $0x11d8] sm:$0xff]
    %v623 = vld [vmem:[#allocation6 + $0x11e0] sm:$0xff]
    %v624 = vld [vmem:[#allocation6 + $0x11e8] sm:$0xff]
    %v625 = vld [vmem:[#allocation6 + $0x11f0] sm:$0xff]
    %v626 = vld [vmem:[#allocation6 + $0x11f8] sm:$0xff]
    %v627 = vld [vmem:[#allocation6 + $0x1200] sm:$0xff]
    %v628 = vld [vmem:[#allocation6 + $0x1208] sm:$0xff]
    %v629 = vld [vmem:[#allocation6 + $0x1210] sm:$0xff]
    %v630 = vld [vmem:[#allocation6 + $0x1218] sm:$0xff]
    %v631 = vld [vmem:[#allocation6 + $0x1220] sm:$0xff]
    %v632 = vld [vmem:[#allocation6 + $0x1228] sm:$0xff]
    %v633 = vld [vmem:[#allocation6 + $0x1230] sm:$0xff]
    %v634 = vld [vmem:[#allocation6 + $0x1238] sm:$0xff]
    %v635 = vld [vmem:[#allocation6 + $0x1240] sm:$0xff]
    %v636 = vld [vmem:[#allocation6 + $0x1248] sm:$0xff]
    %v637 = vld [vmem:[#allocation6 + $0x1250] sm:$0xff]
    %v638 = vld [vmem:[#allocation6 + $0x1258] sm:$0xff]
    %v639 = vld [vmem:[#allocation6 + $0x1260] sm:$0xff]
    %v640 = vld [vmem:[#allocation6 + $0x1268] sm:$0xff]
    %v641 = vld [vmem:[#allocation6 + $0x1270] sm:$0xff]
    %v642 = vld [vmem:[#allocation6 + $0x1278] sm:$0xff]
    %v643 = vld [vmem:[#allocation6 + $0x1280] sm:$0xff]
    %v644 = vld [vmem:[#allocation6 + $0x1288] sm:$0xff]
    %v645 = vld [vmem:[#allocation6 + $0x1290] sm:$0xff]
    %v646 = vld [vmem:[#allocation6 + $0x1298] sm:$0xff]
    %v647 = vld [vmem:[#allocation6 + $0x12a0] sm:$0xff]
    %v648 = vld [vmem:[#allocation6 + $0x12a8] sm:$0xff]
    %v649 = vld [vmem:[#allocation6 + $0x12b0] sm:$0xff]
    %v650 = vld [vmem:[#allocation6 + $0x12b8] sm:$0xff]
    %v651 = vld [vmem:[#allocation6 + $0x12c0] sm:$0xff]
    %v652 = vld [vmem:[#allocation6 + $0x12c8] sm:$0xff]
    %v653 = vld [vmem:[#allocation6 + $0x12d0] sm:$0xff]
    %v654 = vld [vmem:[#allocation6 + $0x12d8] sm:$0xff]
    %v655 = vld [vmem:[#allocation6 + $0x12e0] sm:$0xff]
    %v656 = vld [vmem:[#allocation6 + $0x12e8] sm:$0xff]
    %v657 = vld [vmem:[#allocation6 + $0x12f0] sm:$0xff]
    %v658 = vld [vmem:[#allocation6 + $0x12f8] sm:$0xff]
    %v659 = vld [vmem:[#allocation6 + $0x1300] sm:$0xff]
    %v660 = vld [vmem:[#allocation6 + $0x1308] sm:$0xff]
    %v661 = vld [vmem:[#allocation6 + $0x1310] sm:$0xff]
    %v662 = vld [vmem:[#allocation6 + $0x1318] sm:$0xff]
    %v663 = vld [vmem:[#allocation6 + $0x1320] sm:$0xff]
    %v664 = vld [vmem:[#allocation6 + $0x1328] sm:$0xff]
    %v665 = vld [vmem:[#allocation6 + $0x1330] sm:$0xff]
    %v666 = vld [vmem:[#allocation6 + $0x1338] sm:$0xff]
    %v667 = vld [vmem:[#allocation6 + $0x1340] sm:$0xff]
    %v668 = vld [vmem:[#allocation6 + $0x1348] sm:$0xff]
    %v669 = vld [vmem:[#allocation6 + $0x1350] sm:$0xff]
    %v670 = vld [vmem:[#allocation6 + $0x1358] sm:$0xff]
    %v671 = vld [vmem:[#allocation6 + $0x1360] sm:$0xff]
    %v672 = vld [vmem:[#allocation6 + $0x1368] sm:$0xff]
    %v673 = vld [vmem:[#allocation6 + $0x1370] sm:$0xff]
    %v674 = vld [vmem:[#allocation6 + $0x1378] sm:$0xff]
    %v675 = vld [vmem:[#allocation6 + $0x1380] sm:$0xff]
    %v676 = vld [vmem:[#allocation6 + $0x1388] sm:$0xff]
    %v677 = vld [vmem:[#allocation6 + $0x1390] sm:$0xff]
    %v678 = vld [vmem:[#allocation6 + $0x1398] sm:$0xff]
    %v679 = vld [vmem:[#allocation6 + $0x13a0] sm:$0xff]
    %v680 = vld [vmem:[#allocation6 + $0x13a8] sm:$0xff]
    %v681 = vld [vmem:[#allocation6 + $0x13b0] sm:$0xff]
    %v682 = vld [vmem:[#allocation6 + $0x13b8] sm:$0xff]
    %v683 = vld [vmem:[#allocation6 + $0x13c0] sm:$0xff]
    %v684 = vld [vmem:[#allocation6 + $0x13c8] sm:$0xff]
    %v685 = vld [vmem:[#allocation6 + $0x13d0] sm:$0xff]
    %v686 = vld [vmem:[#allocation6 + $0x13d8] sm:$0xff]
    %v687 = vld [vmem:[#allocation6 + $0x13e0] sm:$0xff]
    %v688 = vld [vmem:[#allocation6 + $0x13e8] sm:$0xff]
    %v689 = vld [vmem:[#allocation6 + $0x13f0] sm:$0xff]
    %v690 = vld [vmem:[#allocation6 + $0x13f8] sm:$0xff]
    %v691 = vld [vmem:[#allocation6 + $0x1400] sm:$0xff]
    %v692 = vld [vmem:[#allocation6 + $0x1408] sm:$0xff]
    %v693 = vld [vmem:[#allocation6 + $0x1410] sm:$0xff]
    %v694 = vld [vmem:[#allocation6 + $0x1418] sm:$0xff]
    %v695 = vld [vmem:[#allocation6 + $0x1420] sm:$0xff]
    %v696 = vld [vmem:[#allocation6 + $0x1428] sm:$0xff]
    %v697 = vld [vmem:[#allocation6 + $0x1430] sm:$0xff]
    %v698 = vld [vmem:[#allocation6 + $0x1438] sm:$0xff]
    %v699 = vld [vmem:[#allocation6 + $0x1440] sm:$0xff]
    %v700 = vld [vmem:[#allocation6 + $0x1448] sm:$0xff]
    %v701 = vld [vmem:[#allocation6 + $0x1450] sm:$0xff]
    %v702 = vld [vmem:[#allocation6 + $0x1458] sm:$0xff]
    %v703 = vld [vmem:[#allocation6 + $0x1460] sm:$0xff]
    %v704 = vld [vmem:[#allocation6 + $0x1468] sm:$0xff]
    %v705 = vld [vmem:[#allocation6 + $0x1470] sm:$0xff]
    %v706 = vld [vmem:[#allocation6 + $0x1478] sm:$0xff]
    %v707 = vld [vmem:[#allocation6 + $0x1480] sm:$0xff]
    %v708 = vld [vmem:[#allocation6 + $0x1488] sm:$0xff]
    %v709 = vld [vmem:[#allocation6 + $0x1490] sm:$0xff]
    %v710 = vld [vmem:[#allocation6 + $0x1498] sm:$0xff]
    %v711 = vld [vmem:[#allocation6 + $0x14a0] sm:$0xff]
    %v712 = vld [vmem:[#allocation6 + $0x14a8] sm:$0xff]
    %v713 = vld [vmem:[#allocation6 + $0x14b0] sm:$0xff]
    %v714 = vld [vmem:[#allocation6 + $0x14b8] sm:$0xff]
    %v715 = vld [vmem:[#allocation6 + $0x14c0] sm:$0xff]
    %v716 = vld [vmem:[#allocation6 + $0x14c8] sm:$0xff]
    %v717 = vld [vmem:[#allocation6 + $0x14d0] sm:$0xff]
    %v718 = vld [vmem:[#allocation6 + $0x14d8] sm:$0xff]
    %v719 = vld [vmem:[#allocation6 + $0x14e0] sm:$0xff]
    %v720 = vld [vmem:[#allocation6 + $0x14e8] sm:$0xff]
    %v721 = vld [vmem:[#allocation6 + $0x14f0] sm:$0xff]
    %v722 = vld [vmem:[#allocation6 + $0x14f8] sm:$0xff]
    %v723 = vld [vmem:[#allocation6 + $0x1500] sm:$0xff]
    %v724 = vld [vmem:[#allocation6 + $0x1508] sm:$0xff]
    %v725 = vld [vmem:[#allocation6 + $0x1510] sm:$0xff]
    %v726 = vld [vmem:[#allocation6 + $0x1518] sm:$0xff]
    %v727 = vld [vmem:[#allocation6 + $0x1520] sm:$0xff]
    %v728 = vld [vmem:[#allocation6 + $0x1528] sm:$0xff]
    %v729 = vld [vmem:[#allocation6 + $0x1530] sm:$0xff]
    %v730 = vld [vmem:[#allocation6 + $0x1538] sm:$0xff]
    %v731 = vld [vmem:[#allocation6 + $0x1540] sm:$0xff]
    %v732 = vld [vmem:[#allocation6 + $0x1548] sm:$0xff]
    %v733 = vld [vmem:[#allocation6 + $0x1550] sm:$0xff]
    %v734 = vld [vmem:[#allocation6 + $0x1558] sm:$0xff]
    %v735 = vld [vmem:[#allocation6 + $0x1560] sm:$0xff]
    %v736 = vld [vmem:[#allocation6 + $0x1568] sm:$0xff]
    %v737 = vld [vmem:[#allocation6 + $0x1570] sm:$0xff]
    %v738 = vld [vmem:[#allocation6 + $0x1578] sm:$0xff]
    %v739 = vld [vmem:[#allocation6 + $0x1580] sm:$0xff]
    %v740 = vld [vmem:[#allocation6 + $0x1588] sm:$0xff]
    %v741 = vld [vmem:[#allocation6 + $0x1590] sm:$0xff]
    %v742 = vld [vmem:[#allocation6 + $0x1598] sm:$0xff]
    %v743 = vld [vmem:[#allocation6 + $0x15a0] sm:$0xff]
    %v744 = vld [vmem:[#allocation6 + $0x15a8] sm:$0xff]
    %v745 = vld [vmem:[#allocation6 + $0x15b0] sm:$0xff]
    %v746 = vld [vmem:[#allocation6 + $0x15b8] sm:$0xff]
    %v747 = vld [vmem:[#allocation6 + $0x15c0] sm:$0xff]
    %v748 = vld [vmem:[#allocation6 + $0x15c8] sm:$0xff]
    %v749 = vld [vmem:[#allocation6 + $0x15d0] sm:$0xff]
    %v750 = vld [vmem:[#allocation6 + $0x15d8] sm:$0xff]
    %v751 = vld [vmem:[#allocation6 + $0x15e0] sm:$0xff]
    %v752 = vld [vmem:[#allocation6 + $0x15e8] sm:$0xff]
    %v753 = vld [vmem:[#allocation6 + $0x15f0] sm:$0xff]
    %v754 = vld [vmem:[#allocation6 + $0x15f8] sm:$0xff]
    %v755 = vld [vmem:[#allocation6 + $0x1600] sm:$0xff]
    %v756 = vld [vmem:[#allocation6 + $0x1608] sm:$0xff]
    %v757 = vld [vmem:[#allocation6 + $0x1610] sm:$0xff]
    %v758 = vld [vmem:[#allocation6 + $0x1618] sm:$0xff]
    %v759 = vld [vmem:[#allocation6 + $0x1620] sm:$0xff]
    %v760 = vld [vmem:[#allocation6 + $0x1628] sm:$0xff]
    %v761 = vld [vmem:[#allocation6 + $0x1630] sm:$0xff]
    %v762 = vld [vmem:[#allocation6 + $0x1638] sm:$0xff]
    %v763 = vld [vmem:[#allocation6 + $0x1640] sm:$0xff]
    %v764 = vld [vmem:[#allocation6 + $0x1648] sm:$0xff]
    %v765 = vld [vmem:[#allocation6 + $0x1650] sm:$0xff]
    %v766 = vld [vmem:[#allocation6 + $0x1658] sm:$0xff]
    %v767 = vld [vmem:[#allocation6 + $0x1660] sm:$0xff]
    %v768 = vld [vmem:[#allocation6 + $0x1668] sm:$0xff]
    %v769 = vld [vmem:[#allocation6 + $0x1670] sm:$0xff]
    %v770 = vld [vmem:[#allocation6 + $0x1678] sm:$0xff]
    %v771 = vld [vmem:[#allocation6 + $0x1680] sm:$0xff]
    %v772 = vld [vmem:[#allocation6 + $0x1688] sm:$0xff]
    %v773 = vld [vmem:[#allocation6 + $0x1690] sm:$0xff]
    %v774 = vld [vmem:[#allocation6 + $0x1698] sm:$0xff]
    %v775 = vld [vmem:[#allocation6 + $0x16a0] sm:$0xff]
    %v776 = vld [vmem:[#allocation6 + $0x16a8] sm:$0xff]
    %v777 = vld [vmem:[#allocation6 + $0x16b0] sm:$0xff]
    %v778 = vld [vmem:[#allocation6 + $0x16b8] sm:$0xff]
    %v779 = vld [vmem:[#allocation6 + $0x16c0] sm:$0xff]
    %v780 = vld [vmem:[#allocation6 + $0x16c8] sm:$0xff]
    %v781 = vld [vmem:[#allocation6 + $0x16d0] sm:$0xff]
    %v782 = vld [vmem:[#allocation6 + $0x16d8] sm:$0xff]
    %v783 = vld [vmem:[#allocation6 + $0x16e0] sm:$0xff]
    %v784 = vld [vmem:[#allocation6 + $0x16e8] sm:$0xff]
    %v785 = vld [vmem:[#allocation6 + $0x16f0] sm:$0xff]
    %v786 = vld [vmem:[#allocation6 + $0x16f8] sm:$0xff]
    %v787 = vld [vmem:[#allocation6 + $0x1700] sm:$0xff]
    %v788 = vld [vmem:[#allocation6 + $0x1708] sm:$0xff]
    %v789 = vld [vmem:[#allocation6 + $0x1710] sm:$0xff]
    %v790 = vld [vmem:[#allocation6 + $0x1718] sm:$0xff]
    %v791 = vld [vmem:[#allocation6 + $0x1720] sm:$0xff]
    %v792 = vld [vmem:[#allocation6 + $0x1728] sm:$0xff]
    %v793 = vld [vmem:[#allocation6 + $0x1730] sm:$0xff]
    %v794 = vld [vmem:[#allocation6 + $0x1738] sm:$0xff]
    %v795 = vld [vmem:[#allocation6 + $0x1740] sm:$0xff]
    %v796 = vld [vmem:[#allocation6 + $0x1748] sm:$0xff]
    %v797 = vld [vmem:[#allocation6 + $0x1750] sm:$0xff]
    %v798 = vld [vmem:[#allocation6 + $0x1758] sm:$0xff]
    %v799 = vld [vmem:[#allocation6 + $0x1760] sm:$0xff]
    %v800 = vld [vmem:[#allocation6 + $0x1768] sm:$0xff]
    %v801 = vld [vmem:[#allocation6 + $0x1770] sm:$0xff]
    %v802 = vld [vmem:[#allocation6 + $0x1778] sm:$0xff]
    %v803 = vld [vmem:[#allocation6 + $0x1780] sm:$0xff]
    %v804 = vld [vmem:[#allocation6 + $0x1788] sm:$0xff]
    %v805 = vld [vmem:[#allocation6 + $0x1790] sm:$0xff]
    %v806 = vld [vmem:[#allocation6 + $0x1798] sm:$0xff]
    %v807 = vld [vmem:[#allocation6 + $0x17a0] sm:$0xff]
    %v808 = vld [vmem:[#allocation6 + $0x17a8] sm:$0xff]
    %v809 = vld [vmem:[#allocation6 + $0x17b0] sm:$0xff]
    %v810 = vld [vmem:[#allocation6 + $0x17b8] sm:$0xff]
    %v811 = vld [vmem:[#allocation6 + $0x17c0] sm:$0xff]
    %v812 = vld [vmem:[#allocation6 + $0x17c8] sm:$0xff]
    %v813 = vld [vmem:[#allocation6 + $0x17d0] sm:$0xff]
    %v814 = vld [vmem:[#allocation6 + $0x17d8] sm:$0xff]
    %v815 = vld [vmem:[#allocation6 + $0x17e0] sm:$0xff]
    %v816 = vld [vmem:[#allocation6 + $0x17e8] sm:$0xff]
    %v817 = vld [vmem:[#allocation6 + $0x17f0] sm:$0xff]
    %v818 = vld [vmem:[#allocation6 + $0x17f8] sm:$0xff]
    %v819 = vld [vmem:[#allocation6 + $0x1800] sm:$0xff]
    %v820 = vld [vmem:[#allocation6 + $0x1808] sm:$0xff]
    %v821 = vld [vmem:[#allocation6 + $0x1810] sm:$0xff]
    %v822 = vld [vmem:[#allocation6 + $0x1818] sm:$0xff]
    %v823 = vld [vmem:[#allocation6 + $0x1820] sm:$0xff]
    %v824 = vld [vmem:[#allocation6 + $0x1828] sm:$0xff]
    %v825 = vld [vmem:[#allocation6 + $0x1830] sm:$0xff]
    %v826 = vld [vmem:[#allocation6 + $0x1838] sm:$0xff]
    %v827 = vld [vmem:[#allocation6 + $0x1840] sm:$0xff]
    %v828 = vld [vmem:[#allocation6 + $0x1848] sm:$0xff]
    %v829 = vld [vmem:[#allocation6 + $0x1850] sm:$0xff]
    %v830 = vld [vmem:[#allocation6 + $0x1858] sm:$0xff]
    %v831 = vld [vmem:[#allocation6 + $0x1860] sm:$0xff]
    %v832 = vld [vmem:[#allocation6 + $0x1868] sm:$0xff]
    %v833 = vld [vmem:[#allocation6 + $0x1870] sm:$0xff]
    %v834 = vld [vmem:[#allocation6 + $0x1878] sm:$0xff]
    %v835 = vld [vmem:[#allocation6 + $0x1880] sm:$0xff]
    %v836 = vld [vmem:[#allocation6 + $0x1888] sm:$0xff]
    %v837 = vld [vmem:[#allocation6 + $0x1890] sm:$0xff]
    %v838 = vld [vmem:[#allocation6 + $0x1898] sm:$0xff]
    %v839 = vld [vmem:[#allocation6 + $0x18a0] sm:$0xff]
    %v840 = vld [vmem:[#allocation6 + $0x18a8] sm:$0xff]
    %v841 = vld [vmem:[#allocation6 + $0x18b0] sm:$0xff]
    %v842 = vld [vmem:[#allocation6 + $0x18b8] sm:$0xff]
    %v843 = vld [vmem:[#allocation6 + $0x18c0] sm:$0xff]
    %v844 = vld [vmem:[#allocation6 + $0x18c8] sm:$0xff]
    %v845 = vld [vmem:[#allocation6 + $0x18d0] sm:$0xff]
    %v846 = vld [vmem:[#allocation6 + $0x18d8] sm:$0xff]
    %v847 = vld [vmem:[#allocation6 + $0x18e0] sm:$0xff]
    %v848 = vld [vmem:[#allocation6 + $0x18e8] sm:$0xff]
    %v849 = vld [vmem:[#allocation6 + $0x18f0] sm:$0xff]
    %v850 = vld [vmem:[#allocation6 + $0x18f8] sm:$0xff]
    %v851 = vld [vmem:[#allocation6 + $0x1900] sm:$0xff]
    %v852 = vld [vmem:[#allocation6 + $0x1908] sm:$0xff]
    %v853 = vld [vmem:[#allocation6 + $0x1910] sm:$0xff]
    %v854 = vld [vmem:[#allocation6 + $0x1918] sm:$0xff]
    %v855 = vld [vmem:[#allocation6 + $0x1920] sm:$0xff]
    %v856 = vld [vmem:[#allocation6 + $0x1928] sm:$0xff]
    %v857 = vld [vmem:[#allocation6 + $0x1930] sm:$0xff]
    %v858 = vld [vmem:[#allocation6 + $0x1938] sm:$0xff]
    %v859 = vld [vmem:[#allocation6 + $0x1940] sm:$0xff]
    %v860 = vld [vmem:[#allocation6 + $0x1948] sm:$0xff]
    %v861 = vld [vmem:[#allocation6 + $0x1950] sm:$0xff]
    %v862 = vld [vmem:[#allocation6 + $0x1958] sm:$0xff]
    %v863 = vld [vmem:[#allocation6 + $0x1960] sm:$0xff]
    %v864 = vld [vmem:[#allocation6 + $0x1968] sm:$0xff]
    %v865 = vld [vmem:[#allocation6 + $0x1970] sm:$0xff]
    %v866 = vld [vmem:[#allocation6 + $0x1978] sm:$0xff]
    %v867 = vld [vmem:[#allocation6 + $0x1980] sm:$0xff]
    %v868 = vld [vmem:[#allocation6 + $0x1988] sm:$0xff]
    %v869 = vld [vmem:[#allocation6 + $0x1990] sm:$0xff]
    %v870 = vld [vmem:[#allocation6 + $0x1998] sm:$0xff]
    %v871 = vld [vmem:[#allocation6 + $0x19a0] sm:$0xff]
    %v872 = vld [vmem:[#allocation6 + $0x19a8] sm:$0xff]
    %v873 = vld [vmem:[#allocation6 + $0x19b0] sm:$0xff]
    %v874 = vld [vmem:[#allocation6 + $0x19b8] sm:$0xff]
    %v875 = vld [vmem:[#allocation6 + $0x19c0] sm:$0xff]
    %v876 = vld [vmem:[#allocation6 + $0x19c8] sm:$0xff]
    %v877 = vld [vmem:[#allocation6 + $0x19d0] sm:$0xff]
    %v878 = vld [vmem:[#allocation6 + $0x19d8] sm:$0xff]
    %v879 = vld [vmem:[#allocation6 + $0x19e0] sm:$0xff]
    %v880 = vld [vmem:[#allocation6 + $0x19e8] sm:$0xff]
    %v881 = vld [vmem:[#allocation6 + $0x19f0] sm:$0xff]
    %v882 = vld [vmem:[#allocation6 + $0x19f8] sm:$0xff]
    %v883 = vld [vmem:[#allocation6 + $0x1a00] sm:$0xff]
    %v884 = vld [vmem:[#allocation6 + $0x1a08] sm:$0xff]
    %v885 = vld [vmem:[#allocation6 + $0x1a10] sm:$0xff]
    %v886 = vld [vmem:[#allocation6 + $0x1a18] sm:$0xff]
    %v887 = vld [vmem:[#allocation6 + $0x1a20] sm:$0xff]
    %v888 = vld [vmem:[#allocation6 + $0x1a28] sm:$0xff]
    %v889 = vld [vmem:[#allocation6 + $0x1a30] sm:$0xff]
    %v890 = vld [vmem:[#allocation6 + $0x1a38] sm:$0xff]
    %v891 = vld [vmem:[#allocation6 + $0x1a40] sm:$0xff]
    %v892 = vld [vmem:[#allocation6 + $0x1a48] sm:$0xff]
    %v893 = vld [vmem:[#allocation6 + $0x1a50] sm:$0xff]
    %v894 = vld [vmem:[#allocation6 + $0x1a58] sm:$0xff]
    %v895 = vld [vmem:[#allocation6 + $0x1a60] sm:$0xff]
    %v896 = vld [vmem:[#allocation6 + $0x1a68] sm:$0xff]
    %v897 = vld [vmem:[#allocation6 + $0x1a70] sm:$0xff]
    %v898 = vld [vmem:[#allocation6 + $0x1a78] sm:$0xff]
    %v899 = vld [vmem:[#allocation6 + $0x1a80] sm:$0xff]
    %v900 = vld [vmem:[#allocation6 + $0x1a88] sm:$0xff]
    %v901 = vld [vmem:[#allocation6 + $0x1a90] sm:$0xff]
    %v902 = vld [vmem:[#allocation6 + $0x1a98] sm:$0xff]
    %v903 = vld [vmem:[#allocation6 + $0x1aa0] sm:$0xff]
    %v904 = vld [vmem:[#allocation6 + $0x1aa8] sm:$0xff]
    %v905 = vld [vmem:[#allocation6 + $0x1ab0] sm:$0xff]
    %v906 = vld [vmem:[#allocation6 + $0x1ab8] sm:$0xff]
    %v907 = vld [vmem:[#allocation6 + $0x1ac0] sm:$0xff]
    %v908 = vld [vmem:[#allocation6 + $0x1ac8] sm:$0xff]
    %v909 = vld [vmem:[#allocation6 + $0x1ad0] sm:$0xff]
    %v910 = vld [vmem:[#allocation6 + $0x1ad8] sm:$0xff]
    %v911 = vld [vmem:[#allocation6 + $0x1ae0] sm:$0xff]
    %v912 = vld [vmem:[#allocation6 + $0x1ae8] sm:$0xff]
    %v913 = vld [vmem:[#allocation6 + $0x1af0] sm:$0xff]
    %v914 = vld [vmem:[#allocation6 + $0x1af8] sm:$0xff]
    %v915 = vld [vmem:[#allocation6 + $0x1b00] sm:$0xff]
    %v916 = vld [vmem:[#allocation6 + $0x1b08] sm:$0xff]
    %v917 = vld [vmem:[#allocation6 + $0x1b10] sm:$0xff]
    %v918 = vld [vmem:[#allocation6 + $0x1b18] sm:$0xff]
    %v919 = vld [vmem:[#allocation6 + $0x1b20] sm:$0xff]
    %v920 = vld [vmem:[#allocation6 + $0x1b28] sm:$0xff]
    %v921 = vld [vmem:[#allocation6 + $0x1b30] sm:$0xff]
    %v922 = vld [vmem:[#allocation6 + $0x1b38] sm:$0xff]
    %v923 = vld [vmem:[#allocation6 + $0x1b40] sm:$0xff]
    %v924 = vld [vmem:[#allocation6 + $0x1b48] sm:$0xff]
    %v925 = vld [vmem:[#allocation6 + $0x1b50] sm:$0xff]
    %v926 = vld [vmem:[#allocation6 + $0x1b58] sm:$0xff]
    %v927 = vld [vmem:[#allocation6 + $0x1b60] sm:$0xff]
    %v928 = vld [vmem:[#allocation6 + $0x1b68] sm:$0xff]
    %v929 = vld [vmem:[#allocation6 + $0x1b70] sm:$0xff]
    %v930 = vld [vmem:[#allocation6 + $0x1b78] sm:$0xff]
    %v931 = vld [vmem:[#allocation6 + $0x1b80] sm:$0xff]
    %v932 = vld [vmem:[#allocation6 + $0x1b88] sm:$0xff]
    %v933 = vld [vmem:[#allocation6 + $0x1b90] sm:$0xff]
    %v934 = vld [vmem:[#allocation6 + $0x1b98] sm:$0xff]
    %v935 = vld [vmem:[#allocation6 + $0x1ba0] sm:$0xff]
    %v936 = vld [vmem:[#allocation6 + $0x1ba8] sm:$0xff]
    %v937 = vld [vmem:[#allocation6 + $0x1bb0] sm:$0xff]
    %v938 = vld [vmem:[#allocation6 + $0x1bb8] sm:$0xff]
    %v939 = vld [vmem:[#allocation6 + $0x1bc0] sm:$0xff]
    %v940 = vld [vmem:[#allocation6 + $0x1bc8] sm:$0xff]
    %v941 = vld [vmem:[#allocation6 + $0x1bd0] sm:$0xff]
    %v942 = vld [vmem:[#allocation6 + $0x1bd8] sm:$0xff]
    %v943 = vld [vmem:[#allocation6 + $0x1be0] sm:$0xff]
    %v944 = vld [vmem:[#allocation6 + $0x1be8] sm:$0xff]
    %v945 = vld [vmem:[#allocation6 + $0x1bf0] sm:$0xff]
    %v946 = vld [vmem:[#allocation6 + $0x1bf8] sm:$0xff]
    %v947 = vld [vmem:[#allocation6 + $0x1c00] sm:$0xff]
    %v948 = vld [vmem:[#allocation6 + $0x1c08] sm:$0xff]
    %v949 = vld [vmem:[#allocation6 + $0x1c10] sm:$0xff]
    %v950 = vld [vmem:[#allocation6 + $0x1c18] sm:$0xff]
    %v951 = vld [vmem:[#allocation6 + $0x1c20] sm:$0xff]
    %v952 = vld [vmem:[#allocation6 + $0x1c28] sm:$0xff]
    %v953 = vld [vmem:[#allocation6 + $0x1c30] sm:$0xff]
    %v954 = vld [vmem:[#allocation6 + $0x1c38] sm:$0xff]
    %v955 = vld [vmem:[#allocation6 + $0x1c40] sm:$0xff]
    %v956 = vld [vmem:[#allocation6 + $0x1c48] sm:$0xff]
    %v957 = vld [vmem:[#allocation6 + $0x1c50] sm:$0xff]
    %v958 = vld [vmem:[#allocation6 + $0x1c58] sm:$0xff]
    %v959 = vld [vmem:[#allocation6 + $0x1c60] sm:$0xff]
    %v960 = vld [vmem:[#allocation6 + $0x1c68] sm:$0xff]
    %v961 = vld [vmem:[#allocation6 + $0x1c70] sm:$0xff]
    %v962 = vld [vmem:[#allocation6 + $0x1c78] sm:$0xff]
    %v963 = vld [vmem:[#allocation6 + $0x1c80] sm:$0xff]
    %v964 = vld [vmem:[#allocation6 + $0x1c88] sm:$0xff]
    %v965 = vld [vmem:[#allocation6 + $0x1c90] sm:$0xff]
    %v966 = vld [vmem:[#allocation6 + $0x1c98] sm:$0xff]
    %v967 = vld [vmem:[#allocation6 + $0x1ca0] sm:$0xff]
    %v968 = vld [vmem:[#allocation6 + $0x1ca8] sm:$0xff]
    %v969 = vld [vmem:[#allocation6 + $0x1cb0] sm:$0xff]
    %v970 = vld [vmem:[#allocation6 + $0x1cb8] sm:$0xff]
    %v971 = vld [vmem:[#allocation6 + $0x1cc0] sm:$0xff]
    %v972 = vld [vmem:[#allocation6 + $0x1cc8] sm:$0xff]
    %v973 = vld [vmem:[#allocation6 + $0x1cd0] sm:$0xff]
    %v974 = vld [vmem:[#allocation6 + $0x1cd8] sm:$0xff]
    %v975 = vld [vmem:[#allocation6 + $0x1ce0] sm:$0xff]
    %v976 = vld [vmem:[#allocation6 + $0x1ce8] sm:$0xff]
    %v977 = vld [vmem:[#allocation6 + $0x1cf0] sm:$0xff]
    %v978 = vld [vmem:[#allocation6 + $0x1cf8] sm:$0xff]
    %v979 = vld [vmem:[#allocation6 + $0x1d00] sm:$0xff]
    %v980 = vld [vmem:[#allocation6 + $0x1d08] sm:$0xff]
    %v981 = vld [vmem:[#allocation6 + $0x1d10] sm:$0xff]
    %v982 = vld [vmem:[#allocation6 + $0x1d18] sm:$0xff]
    %v983 = vld [vmem:[#allocation6 + $0x1d20] sm:$0xff]
    %v984 = vld [vmem:[#allocation6 + $0x1d28] sm:$0xff]
    %v985 = vld [vmem:[#allocation6 + $0x1d30] sm:$0xff]
    %v986 = vld [vmem:[#allocation6 + $0x1d38] sm:$0xff]
    %v987 = vld [vmem:[#allocation6 + $0x1d40] sm:$0xff]
    %v988 = vld [vmem:[#allocation6 + $0x1d48] sm:$0xff]
    %v989 = vld [vmem:[#allocation6 + $0x1d50] sm:$0xff]
    %v990 = vld [vmem:[#allocation6 + $0x1d58] sm:$0xff]
    %v991 = vld [vmem:[#allocation6 + $0x1d60] sm:$0xff]
    %v992 = vld [vmem:[#allocation6 + $0x1d68] sm:$0xff]
    %v993 = vld [vmem:[#allocation6 + $0x1d70] sm:$0xff]
    %v994 = vld [vmem:[#allocation6 + $0x1d78] sm:$0xff]
    %v995 = vld [vmem:[#allocation6 + $0x1d80] sm:$0xff]
    %v996 = vld [vmem:[#allocation6 + $0x1d88] sm:$0xff]
    %v997 = vld [vmem:[#allocation6 + $0x1d90] sm:$0xff]
    %v998 = vld [vmem:[#allocation6 + $0x1d98] sm:$0xff]
    %v999 = vld [vmem:[#allocation6 + $0x1da0] sm:$0xff]
    %v1000 = vld [vmem:[#allocation6 + $0x1da8] sm:$0xff]
    %v1001 = vld [vmem:[#allocation6 + $0x1db0] sm:$0xff]
    %v1002 = vld [vmem:[#allocation6 + $0x1db8] sm:$0xff]
    %v1003 = vld [vmem:[#allocation6 + $0x1dc0] sm:$0xff]
    %v1004 = vld [vmem:[#allocation6 + $0x1dc8] sm:$0xff]
    %v1005 = vld [vmem:[#allocation6 + $0x1dd0] sm:$0xff]
    %v1006 = vld [vmem:[#allocation6 + $0x1dd8] sm:$0xff]
    %v1007 = vld [vmem:[#allocation6 + $0x1de0] sm:$0xff]
    %v1008 = vld [vmem:[#allocation6 + $0x1de8] sm:$0xff]
    %v1009 = vld [vmem:[#allocation6 + $0x1df0] sm:$0xff]
    %v1010 = vld [vmem:[#allocation6 + $0x1df8] sm:$0xff]
    %v1011 = vld [vmem:[#allocation6 + $0x1e00] sm:$0xff]
    %v1012 = vld [vmem:[#allocation6 + $0x1e08] sm:$0xff]
    %v1013 = vld [vmem:[#allocation6 + $0x1e10] sm:$0xff]
    %v1014 = vld [vmem:[#allocation6 + $0x1e18] sm:$0xff]
    %v1015 = vld [vmem:[#allocation6 + $0x1e20] sm:$0xff]
    %v1016 = vld [vmem:[#allocation6 + $0x1e28] sm:$0xff]
    %v1017 = vld [vmem:[#allocation6 + $0x1e30] sm:$0xff]
    %v1018 = vld [vmem:[#allocation6 + $0x1e38] sm:$0xff]
    %v1019 = vld [vmem:[#allocation6 + $0x1e40] sm:$0xff]
    %v1020 = vld [vmem:[#allocation6 + $0x1e48] sm:$0xff]
    %v1021 = vld [vmem:[#allocation6 + $0x1e50] sm:$0xff]
    %v1022 = vld [vmem:[#allocation6 + $0x1e58] sm:$0xff]
    %v1023 = vld [vmem:[#allocation6 + $0x1e60] sm:$0xff]
    %v1024 = vld [vmem:[#allocation6 + $0x1e68] sm:$0xff]
    %v1025 = vld [vmem:[#allocation6 + $0x1e70] sm:$0xff]
    %v1026 = vld [vmem:[#allocation6 + $0x1e78] sm:$0xff]
    %v1027 = vld [vmem:[#allocation6 + $0x1e80] sm:$0xff]
    %v1028 = vld [vmem:[#allocation6 + $0x1e88] sm:$0xff]
    %v1029 = vld [vmem:[#allocation6 + $0x1e90] sm:$0xff]
    %v1030 = vld [vmem:[#allocation6 + $0x1e98] sm:$0xff]
    %v1031 = vld [vmem:[#allocation6 + $0x1ea0] sm:$0xff]
    %v1032 = vld [vmem:[#allocation6 + $0x1ea8] sm:$0xff]
    %v1033 = vld [vmem:[#allocation6 + $0x1eb0] sm:$0xff]
    %v1034 = vld [vmem:[#allocation6 + $0x1eb8] sm:$0xff]
    %v1035 = vld [vmem:[#allocation6 + $0x1ec0] sm:$0xff]
    %v1036 = vld [vmem:[#allocation6 + $0x1ec8] sm:$0xff]
    %v1037 = vld [vmem:[#allocation6 + $0x1ed0] sm:$0xff]
    %v1038 = vld [vmem:[#allocation6 + $0x1ed8] sm:$0xff]
    %v1039 = vld [vmem:[#allocation6 + $0x1ee0] sm:$0xff]
    %v1040 = vld [vmem:[#allocation6 + $0x1ee8] sm:$0xff]
    %v1041 = vld [vmem:[#allocation6 + $0x1ef0] sm:$0xff]
    %v1042 = vld [vmem:[#allocation6 + $0x1ef8] sm:$0xff]
    %v1043 = vld [vmem:[#allocation6 + $0x1f00] sm:$0xff]
    %v1044 = vld [vmem:[#allocation6 + $0x1f08] sm:$0xff]
    %v1045 = vld [vmem:[#allocation6 + $0x1f10] sm:$0xff]
    %v1046 = vld [vmem:[#allocation6 + $0x1f18] sm:$0xff]
    %v1047 = vld [vmem:[#allocation6 + $0x1f20] sm:$0xff]
    %v1048 = vld [vmem:[#allocation6 + $0x1f28] sm:$0xff]
    %v1049 = vld [vmem:[#allocation6 + $0x1f30] sm:$0xff]
    %v1050 = vld [vmem:[#allocation6 + $0x1f38] sm:$0xff]
    %v1051 = vld [vmem:[#allocation6 + $0x1f40] sm:$0xff]
    %v1052 = vld [vmem:[#allocation6 + $0x1f48] sm:$0xff]
    %v1053 = vld [vmem:[#allocation6 + $0x1f50] sm:$0xff]
    %v1054 = vld [vmem:[#allocation6 + $0x1f58] sm:$0xff]
    %v1055 = vld [vmem:[#allocation6 + $0x1f60] sm:$0xff]
    %v1056 = vld [vmem:[#allocation6 + $0x1f68] sm:$0xff]
    %v1057 = vld [vmem:[#allocation6 + $0x1f70] sm:$0xff]
    %v1058 = vld [vmem:[#allocation6 + $0x1f78] sm:$0xff]
    %v1059 = vld [vmem:[#allocation6 + $0x1f80] sm:$0xff]
    %v1060 = vld [vmem:[#allocation6 + $0x1f88] sm:$0xff]
    %v1061 = vld [vmem:[#allocation6 + $0x1f90] sm:$0xff]
    %v1062 = vld [vmem:[#allocation6 + $0x1f98] sm:$0xff]
    %v1063 = vld [vmem:[#allocation6 + $0x1fa0] sm:$0xff]
    %v1064 = vld [vmem:[#allocation6 + $0x1fa8] sm:$0xff]
    %v1065 = vld [vmem:[#allocation6 + $0x1fb0] sm:$0xff]
    %v1066 = vld [vmem:[#allocation6 + $0x1fb8] sm:$0xff]
    %v1067 = vld [vmem:[#allocation6 + $0x1fc0] sm:$0xff]
    %v1068 = vld [vmem:[#allocation6 + $0x1fc8] sm:$0xff]
    %v1069 = vld [vmem:[#allocation6 + $0x1fd0] sm:$0xff]
    %v1070 = vld [vmem:[#allocation6 + $0x1fd8] sm:$0xff]
    %v1071 = vld [vmem:[#allocation6 + $0x1fe0] sm:$0xff]
    %v1072 = vld [vmem:[#allocation6 + $0x1fe8] sm:$0xff]
    %v1073 = vld [vmem:[#allocation6 + $0x1ff0] sm:$0xff]
    %v1074 = vld [vmem:[#allocation6 + $0x1ff8] sm:$0xff]
    %v1075 = vld [vmem:[#allocation6 + $0x2000] sm:$0xff]
    %v1076 = vld [vmem:[#allocation6 + $0x2008] sm:$0xff]
    %v1077 = vld [vmem:[#allocation6 + $0x2010] sm:$0xff]
    %v1078 = vld [vmem:[#allocation6 + $0x2018] sm:$0xff]
    %v1079 = vld [vmem:[#allocation6 + $0x2020] sm:$0xff]
    %v1080 = vld [vmem:[#allocation6 + $0x2028] sm:$0xff]
    %v1081 = vld [vmem:[#allocation6 + $0x2030] sm:$0xff]
    %v1082 = vld [vmem:[#allocation6 + $0x2038] sm:$0xff]
    %v1083 = vld [vmem:[#allocation6 + $0x2040] sm:$0xff]
    %v1084 = vld [vmem:[#allocation6 + $0x2048] sm:$0xff]
    %v1085 = vld [vmem:[#allocation6 + $0x2050] sm:$0xff]
    %v1086 = vld [vmem:[#allocation6 + $0x2058] sm:$0xff]
    %v1087 = vld [vmem:[#allocation6 + $0x2060] sm:$0xff]
    %v1088 = vld [vmem:[#allocation6 + $0x2068] sm:$0xff]
    %v1089 = vld [vmem:[#allocation6 + $0x2070] sm:$0xff]
    %v1090 = vld [vmem:[#allocation6 + $0x2078] sm:$0xff]
    %v1091 = vld [vmem:[#allocation6 + $0x2080] sm:$0xff]
    %v1092 = vld [vmem:[#allocation6 + $0x2088] sm:$0xff]
    %v1093 = vld [vmem:[#allocation6 + $0x2090] sm:$0xff]
    %v1094 = vld [vmem:[#allocation6 + $0x2098] sm:$0xff]
    %v1095 = vld [vmem:[#allocation6 + $0x20a0] sm:$0xff]
    %v1096 = vld [vmem:[#allocation6 + $0x20a8] sm:$0xff]
    %v1097 = vld [vmem:[#allocation6 + $0x20b0] sm:$0xff]
    %v1098 = vld [vmem:[#allocation6 + $0x20b8] sm:$0xff]
    %v1099 = vld [vmem:[#allocation6 + $0x20c0] sm:$0xff]
    %v1100 = vld [vmem:[#allocation6 + $0x20c8] sm:$0xff]
    %v1101 = vld [vmem:[#allocation6 + $0x20d0] sm:$0xff]
    %v1102 = vld [vmem:[#allocation6 + $0x20d8] sm:$0xff]
    %v1103 = vld [vmem:[#allocation6 + $0x20e0] sm:$0xff]
    %v1104 = vld [vmem:[#allocation6 + $0x20e8] sm:$0xff]
    %v1105 = vld [vmem:[#allocation6 + $0x20f0] sm:$0xff]
    %v1106 = vld [vmem:[#allocation6 + $0x20f8] sm:$0xff]
    %v1107 = vld [vmem:[#allocation6 + $0x2100] sm:$0xff]
    %v1108 = vld [vmem:[#allocation6 + $0x2108] sm:$0xff]
    %v1109 = vld [vmem:[#allocation6 + $0x2110] sm:$0xff]
    %v1110 = vld [vmem:[#allocation6 + $0x2118] sm:$0xff]
    %v1111 = vld [vmem:[#allocation6 + $0x2120] sm:$0xff]
    %v1112 = vld [vmem:[#allocation6 + $0x2128] sm:$0xff]
    %v1113 = vld [vmem:[#allocation6 + $0x2130] sm:$0xff]
    %v1114 = vld [vmem:[#allocation6 + $0x2138] sm:$0xff]
    %v1115 = vld [vmem:[#allocation6 + $0x2140] sm:$0xff]
    %v1116 = vld [vmem:[#allocation6 + $0x2148] sm:$0xff]
    %v1117 = vld [vmem:[#allocation6 + $0x2150] sm:$0xff]
    %v1118 = vld [vmem:[#allocation6 + $0x2158] sm:$0xff]
    %v1119 = vld [vmem:[#allocation6 + $0x2160] sm:$0xff]
    %v1120 = vld [vmem:[#allocation6 + $0x2168] sm:$0xff]
    %v1121 = vld [vmem:[#allocation6 + $0x2170] sm:$0xff]
    %v1122 = vld [vmem:[#allocation6 + $0x2178] sm:$0xff]
    %v1123 = vld [vmem:[#allocation6 + $0x2180] sm:$0xff]
    %v1124 = vld [vmem:[#allocation6 + $0x2188] sm:$0xff]
    %v1125 = vld [vmem:[#allocation6 + $0x2190] sm:$0xff]
    %v1126 = vld [vmem:[#allocation6 + $0x2198] sm:$0xff]
    %v1127 = vld [vmem:[#allocation6 + $0x21a0] sm:$0xff]
    %v1128 = vld [vmem:[#allocation6 + $0x21a8] sm:$0xff]
    %v1129 = vld [vmem:[#allocation6 + $0x21b0] sm:$0xff]
    %v1130 = vld [vmem:[#allocation6 + $0x21b8] sm:$0xff]
    %v1131 = vld [vmem:[#allocation6 + $0x21c0] sm:$0xff]
    %v1132 = vld [vmem:[#allocation6 + $0x21c8] sm:$0xff]
    %v1133 = vld [vmem:[#allocation6 + $0x21d0] sm:$0xff]
    %v1134 = vld [vmem:[#allocation6 + $0x21d8] sm:$0xff]
    %v1135 = vld [vmem:[#allocation6 + $0x21e0] sm:$0xff]
    %v1136 = vld [vmem:[#allocation6 + $0x21e8] sm:$0xff]
    %v1137 = vld [vmem:[#allocation6 + $0x21f0] sm:$0xff]
    %v1138 = vld [vmem:[#allocation6 + $0x21f8] sm:$0xff]
    %v1139 = vld [vmem:[#allocation6 + $0x2200] sm:$0xff]
    %v1140 = vld [vmem:[#allocation6 + $0x2208] sm:$0xff]
    %v1141 = vld [vmem:[#allocation6 + $0x2210] sm:$0xff]
    %v1142 = vld [vmem:[#allocation6 + $0x2218] sm:$0xff]
    %v1143 = vld [vmem:[#allocation6 + $0x2220] sm:$0xff]
    %v1144 = vld [vmem:[#allocation6 + $0x2228] sm:$0xff]
    %v1145 = vld [vmem:[#allocation6 + $0x2230] sm:$0xff]
    %v1146 = vld [vmem:[#allocation6 + $0x2238] sm:$0xff]
    %v1147 = vld [vmem:[#allocation6 + $0x2240] sm:$0xff]
    %v1148 = vld [vmem:[#allocation6 + $0x2248] sm:$0xff]
    %v1149 = vld [vmem:[#allocation6 + $0x2250] sm:$0xff]
    %v1150 = vld [vmem:[#allocation6 + $0x2258] sm:$0xff]
    %v1151 = vld [vmem:[#allocation6 + $0x2260] sm:$0xff]
    %v1152 = vld [vmem:[#allocation6 + $0x2268] sm:$0xff]
    %v1153 = vld [vmem:[#allocation6 + $0x2270] sm:$0xff]
    %v1154 = vld [vmem:[#allocation6 + $0x2278] sm:$0xff]
    %v1155 = vld [vmem:[#allocation6 + $0x2280] sm:$0xff]
    %v1156 = vld [vmem:[#allocation6 + $0x2288] sm:$0xff]
    %v1157 = vld [vmem:[#allocation6 + $0x2290] sm:$0xff]
    %v1158 = vld [vmem:[#allocation6 + $0x2298] sm:$0xff]
    %v1159 = vld [vmem:[#allocation6 + $0x22a0] sm:$0xff]
    %v1160 = vld [vmem:[#allocation6 + $0x22a8] sm:$0xff]
    %v1161 = vld [vmem:[#allocation6 + $0x22b0] sm:$0xff]
    %v1162 = vld [vmem:[#allocation6 + $0x22b8] sm:$0xff]
    %v1163 = vld [vmem:[#allocation6 + $0x22c0] sm:$0xff]
    %v1164 = vld [vmem:[#allocation6 + $0x22c8] sm:$0xff]
    %v1165 = vld [vmem:[#allocation6 + $0x22d0] sm:$0xff]
    %v1166 = vld [vmem:[#allocation6 + $0x22d8] sm:$0xff]
    %v1167 = vld [vmem:[#allocation6 + $0x22e0] sm:$0xff]
    %v1168 = vld [vmem:[#allocation6 + $0x22e8] sm:$0xff]
    %v1169 = vld [vmem:[#allocation6 + $0x22f0] sm:$0xff]
    %v1170 = vld [vmem:[#allocation6 + $0x22f8] sm:$0xff]
    %v1171 = vld [vmem:[#allocation6 + $0x2300] sm:$0xff]
    %v1172 = vld [vmem:[#allocation6 + $0x2308] sm:$0xff]
    %v1173 = vld [vmem:[#allocation6 + $0x2310] sm:$0xff]
    %v1174 = vld [vmem:[#allocation6 + $0x2318] sm:$0xff]
    %v1175 = vld [vmem:[#allocation6 + $0x2320] sm:$0xff]
    %v1176 = vld [vmem:[#allocation6 + $0x2328] sm:$0xff]
    %v1177 = vld [vmem:[#allocation6 + $0x2330] sm:$0xff]
    %v1178 = vld [vmem:[#allocation6 + $0x2338] sm:$0xff]
    %v1179 = vld [vmem:[#allocation6 + $0x2340] sm:$0xff]
    %v1180 = vld [vmem:[#allocation6 + $0x2348] sm:$0xff]
    %v1181 = vld [vmem:[#allocation6 + $0x2350] sm:$0xff]
    %v1182 = vld [vmem:[#allocation6 + $0x2358] sm:$0xff]
    %v1183 = vld [vmem:[#allocation6 + $0x2360] sm:$0xff]
    %v1184 = vld [vmem:[#allocation6 + $0x2368] sm:$0xff]
    %v1185 = vld [vmem:[#allocation6 + $0x2370] sm:$0xff]
    %v1186 = vld [vmem:[#allocation6 + $0x2378] sm:$0xff]
    %v1187 = vld [vmem:[#allocation6 + $0x2380] sm:$0xff]
    %v1188 = vld [vmem:[#allocation6 + $0x2388] sm:$0xff]
    %v1189 = vld [vmem:[#allocation6 + $0x2390] sm:$0xff]
    %v1190 = vld [vmem:[#allocation6 + $0x2398] sm:$0xff]
    %v1191 = vld [vmem:[#allocation6 + $0x23a0] sm:$0xff]
    %v1192 = vld [vmem:[#allocation6 + $0x23a8] sm:$0xff]
    %v1193 = vld [vmem:[#allocation6 + $0x23b0] sm:$0xff]
    %v1194 = vld [vmem:[#allocation6 + $0x23b8] sm:$0xff]
    %v1195 = vld [vmem:[#allocation6 + $0x23c0] sm:$0xff]
    %v1196 = vld [vmem:[#allocation6 + $0x23c8] sm:$0xff]
    %v1197 = vld [vmem:[#allocation6 + $0x23d0] sm:$0xff]
    %v1198 = vld [vmem:[#allocation6 + $0x23d8] sm:$0xff]
    %v1199 = vld [vmem:[#allocation6 + $0x23e0] sm:$0xff]
    %v1200 = vld [vmem:[#allocation6 + $0x23e8] sm:$0xff]
    %v1201 = vld [vmem:[#allocation6 + $0x23f0] sm:$0xff]
    %v1202 = vld [vmem:[#allocation6 + $0x23f8] sm:$0xff]
    %v1203 = vld [vmem:[#allocation6 + $0x2400] sm:$0xff]
    %v1204 = vld [vmem:[#allocation6 + $0x2408] sm:$0xff]
    %v1205 = vld [vmem:[#allocation6 + $0x2410] sm:$0xff]
    %v1206 = vld [vmem:[#allocation6 + $0x2418] sm:$0xff]
    %v1207 = vld [vmem:[#allocation6 + $0x2420] sm:$0xff]
    %v1208 = vld [vmem:[#allocation6 + $0x2428] sm:$0xff]
    %v1209 = vld [vmem:[#allocation6 + $0x2430] sm:$0xff]
    %v1210 = vld [vmem:[#allocation6 + $0x2438] sm:$0xff]
    %v1211 = vld [vmem:[#allocation6 + $0x2440] sm:$0xff]
    %v1212 = vld [vmem:[#allocation6 + $0x2448] sm:$0xff]
    %v1213 = vld [vmem:[#allocation6 + $0x2450] sm:$0xff]
    %v1214 = vld [vmem:[#allocation6 + $0x2458] sm:$0xff]
    %v1215 = vld [vmem:[#allocation6 + $0x2460] sm:$0xff]
    %v1216 = vld [vmem:[#allocation6 + $0x2468] sm:$0xff]
    %v1217 = vld [vmem:[#allocation6 + $0x2470] sm:$0xff]
    %v1218 = vld [vmem:[#allocation6 + $0x2478] sm:$0xff]
    %v1219 = vld [vmem:[#allocation6 + $0x2480] sm:$0xff]
    %v1220 = vld [vmem:[#allocation6 + $0x2488] sm:$0xff]
    %v1221 = vld [vmem:[#allocation6 + $0x2490] sm:$0xff]
    %v1222 = vld [vmem:[#allocation6 + $0x2498] sm:$0xff]
    %v1223 = vld [vmem:[#allocation6 + $0x24a0] sm:$0xff]
    %v1224 = vld [vmem:[#allocation6 + $0x24a8] sm:$0xff]
    %v1225 = vld [vmem:[#allocation6 + $0x24b0] sm:$0xff]
    %v1226 = vld [vmem:[#allocation6 + $0x24b8] sm:$0xff]
    %v1227 = vld [vmem:[#allocation6 + $0x24c0] sm:$0xff]
    %v1228 = vld [vmem:[#allocation6 + $0x24c8] sm:$0xff]
    %v1229 = vld [vmem:[#allocation6 + $0x24d0] sm:$0xff]
    %v1230 = vld [vmem:[#allocation6 + $0x24d8] sm:$0xff]
    %v1231 = vld [vmem:[#allocation6 + $0x24e0] sm:$0xff]
    %v1232 = vld [vmem:[#allocation6 + $0x24e8] sm:$0xff]
    %v1233 = vld [vmem:[#allocation6 + $0x24f0] sm:$0xff]
    %v1234 = vld [vmem:[#allocation6 + $0x24f8] sm:$0xff]
    %v1235 = vld [vmem:[#allocation6 + $0x2500] sm:$0xff]
    %v1236 = vld [vmem:[#allocation6 + $0x2508] sm:$0xff]
    %v1237 = vld [vmem:[#allocation6 + $0x2510] sm:$0xff]
    %v1238 = vld [vmem:[#allocation6 + $0x2518] sm:$0xff]
    %v1239 = vld [vmem:[#allocation6 + $0x2520] sm:$0xff]
    %v1240 = vld [vmem:[#allocation6 + $0x2528] sm:$0xff]
    %v1241 = vld [vmem:[#allocation6 + $0x2530] sm:$0xff]
    %v1242 = vld [vmem:[#allocation6 + $0x2538] sm:$0xff]
    %v1243 = vld [vmem:[#allocation6 + $0x2540] sm:$0xff]
    %v1244 = vld [vmem:[#allocation6 + $0x2548] sm:$0xff]
    %v1245 = vld [vmem:[#allocation6 + $0x2550] sm:$0xff]
    %v1246 = vld [vmem:[#allocation6 + $0x2558] sm:$0xff]
    %v1247 = vld [vmem:[#allocation6 + $0x2560] sm:$0xff]
    %v1248 = vld [vmem:[#allocation6 + $0x2568] sm:$0xff]
    %v1249 = vld [vmem:[#allocation6 + $0x2570] sm:$0xff]
    %v1250 = vld [vmem:[#allocation6 + $0x2578] sm:$0xff]
    %v1251 = vld [vmem:[#allocation6 + $0x2580] sm:$0xff]
    %v1252 = vld [vmem:[#allocation6 + $0x2588] sm:$0xff]
    %v1253 = vld [vmem:[#allocation6 + $0x2590] sm:$0xff]
    %v1254 = vld [vmem:[#allocation6 + $0x2598] sm:$0xff]
    %v1255 = vld [vmem:[#allocation6 + $0x25a0] sm:$0xff]
    %v1256 = vld [vmem:[#allocation6 + $0x25a8] sm:$0xff]
    %v1257 = vld [vmem:[#allocation6 + $0x25b0] sm:$0xff]
    %v1258 = vld [vmem:[#allocation6 + $0x25b8] sm:$0xff]
    %v1259 = vld [vmem:[#allocation6 + $0x25c0] sm:$0xff]
    %v1260 = vld [vmem:[#allocation6 + $0x25c8] sm:$0xff]
    %v1261 = vld [vmem:[#allocation6 + $0x25d0] sm:$0xff]
    %v1262 = vld [vmem:[#allocation6 + $0x25d8] sm:$0xff]
    %v1263 = vld [vmem:[#allocation6 + $0x25e0] sm:$0xff]
    %v1264 = vld [vmem:[#allocation6 + $0x25e8] sm:$0xff]
    %v1265 = vld [vmem:[#allocation6 + $0x25f0] sm:$0xff]
    %v1266 = vld [vmem:[#allocation6 + $0x25f8] sm:$0xff]
    %v1267 = vld [vmem:[#allocation6 + $0x2600] sm:$0xff]
    %v1268 = vld [vmem:[#allocation6 + $0x2608] sm:$0xff]
    %v1269 = vld [vmem:[#allocation6 + $0x2610] sm:$0xff]
    %v1270 = vld [vmem:[#allocation6 + $0x2618] sm:$0xff]
    %v1271 = vld [vmem:[#allocation6 + $0x2620] sm:$0xff]
    %v1272 = vld [vmem:[#allocation6 + $0x2628] sm:$0xff]
    %v1273 = vld [vmem:[#allocation6 + $0x2630] sm:$0xff]
    %v1274 = vld [vmem:[#allocation6 + $0x2638] sm:$0xff]
    %v1275 = vld [vmem:[#allocation6 + $0x2640] sm:$0xff]
    %v1276 = vld [vmem:[#allocation6 + $0x2648] sm:$0xff]
    %v1277 = vld [vmem:[#allocation6 + $0x2650] sm:$0xff]
    %v1278 = vld [vmem:[#allocation6 + $0x2658] sm:$0xff]
    %v1279 = vld [vmem:[#allocation6 + $0x2660] sm:$0xff]
    %v1280 = vld [vmem:[#allocation6 + $0x2668] sm:$0xff]
    %v1281 = vld [vmem:[#allocation6 + $0x2670] sm:$0xff]
    %v1282 = vld [vmem:[#allocation6 + $0x2678] sm:$0xff]
    %v1283 = vld [vmem:[#allocation6 + $0x2680] sm:$0xff]
    %v1284 = vld [vmem:[#allocation6 + $0x2688] sm:$0xff]
    %v1285 = vld [vmem:[#allocation6 + $0x2690] sm:$0xff]
    %v1286 = vld [vmem:[#allocation6 + $0x2698] sm:$0xff]
    %v1287 = vld [vmem:[#allocation6 + $0x26a0] sm:$0xff]
    %v1288 = vld [vmem:[#allocation6 + $0x26a8] sm:$0xff]
    %v1289 = vld [vmem:[#allocation6 + $0x26b0] sm:$0xff]
    %v1290 = vld [vmem:[#allocation6 + $0x26b8] sm:$0xff]
    %v1291 = vld [vmem:[#allocation6 + $0x26c0] sm:$0xff]
    %v1292 = vld [vmem:[#allocation6 + $0x26c8] sm:$0xff]
    %v1293 = vld [vmem:[#allocation6 + $0x26d0] sm:$0xff]
    %v1294 = vld [vmem:[#allocation6 + $0x26d8] sm:$0xff]
    %v1295 = vld [vmem:[#allocation6 + $0x26e0] sm:$0xff]
    %v1296 = vld [vmem:[#allocation6 + $0x26e8] sm:$0xff]
    %v1297 = vld [vmem:[#allocation6 + $0x26f0] sm:$0xff]
    %v1298 = vld [vmem:[#allocation6 + $0x26f8] sm:$0xff]
    %v1299 = vld [vmem:[#allocation6 + $0x2700] sm:$0xff]
    %v1300 = vld [vmem:[#allocation6 + $0x2708] sm:$0xff]
    %v1301 = vld [vmem:[#allocation6 + $0x2710] sm:$0xff]
    %v1302 = vld [vmem:[#allocation6 + $0x2718] sm:$0xff]
    %v1303 = vld [vmem:[#allocation6 + $0x2720] sm:$0xff]
    %v1304 = vld [vmem:[#allocation6 + $0x2728] sm:$0xff]
    %v1305 = vld [vmem:[#allocation6 + $0x2730] sm:$0xff]
    %v1306 = vld [vmem:[#allocation6 + $0x2738] sm:$0xff]
    %v1307 = vld [vmem:[#allocation6 + $0x2740] sm:$0xff]
    %v1308 = vld [vmem:[#allocation6 + $0x2748] sm:$0xff]
    %v1309 = vld [vmem:[#allocation6 + $0x2750] sm:$0xff]
    %v1310 = vld [vmem:[#allocation6 + $0x2758] sm:$0xff]
    %v1311 = vld [vmem:[#allocation6 + $0x2760] sm:$0xff]
    %v1312 = vld [vmem:[#allocation6 + $0x2768] sm:$0xff]
    %v1313 = vld [vmem:[#allocation6 + $0x2770] sm:$0xff]
    %v1314 = vld [vmem:[#allocation6 + $0x2778] sm:$0xff]
    %v1315 = vld [vmem:[#allocation6 + $0x2780] sm:$0xff]
    %v1316 = vld [vmem:[#allocation6 + $0x2788] sm:$0xff]
    %v1317 = vld [vmem:[#allocation6 + $0x2790] sm:$0xff]
    %v1318 = vld [vmem:[#allocation6 + $0x2798] sm:$0xff]
    %v1319 = vld [vmem:[#allocation6 + $0x27a0] sm:$0xff]
    %v1320 = vld [vmem:[#allocation6 + $0x27a8] sm:$0xff]
    %v1321 = vld [vmem:[#allocation6 + $0x27b0] sm:$0xff]
    %v1322 = vld [vmem:[#allocation6 + $0x27b8] sm:$0xff]
    %v1323 = vld [vmem:[#allocation6 + $0x27c0] sm:$0xff]
    %v1324 = vld [vmem:[#allocation6 + $0x27c8] sm:$0xff]
    %v1325 = vld [vmem:[#allocation6 + $0x27d0] sm:$0xff]
    %v1326 = vld [vmem:[#allocation6 + $0x27d8] sm:$0xff]
    %v1327 = vld [vmem:[#allocation6 + $0x27e0] sm:$0xff]
    %v1328 = vld [vmem:[#allocation6 + $0x27e8] sm:$0xff]
    %v1329 = vld [vmem:[#allocation6 + $0x27f0] sm:$0xff]
    %v1330 = vld [vmem:[#allocation6 + $0x27f8] sm:$0xff]
    %v1331 = vld [vmem:[#allocation6 + $0x2800] sm:$0xff]
    %v1332 = vld [vmem:[#allocation6 + $0x2808] sm:$0xff]
    %v1333 = vld [vmem:[#allocation6 + $0x2810] sm:$0xff]
    %v1334 = vld [vmem:[#allocation6 + $0x2818] sm:$0xff]
    %v1335 = vld [vmem:[#allocation6 + $0x2820] sm:$0xff]
    %v1336 = vld [vmem:[#allocation6 + $0x2828] sm:$0xff]
    %v1337 = vld [vmem:[#allocation6 + $0x2830] sm:$0xff]
    %v1338 = vld [vmem:[#allocation6 + $0x2838] sm:$0xff]
    %v1339 = vld [vmem:[#allocation6 + $0x2840] sm:$0xff]
    %v1340 = vld [vmem:[#allocation6 + $0x2848] sm:$0xff]
    %v1341 = vld [vmem:[#allocation6 + $0x2850] sm:$0xff]
    %v1342 = vld [vmem:[#allocation6 + $0x2858] sm:$0xff]
    %v1343 = vld [vmem:[#allocation6 + $0x2860] sm:$0xff]
    %v1344 = vld [vmem:[#allocation6 + $0x2868] sm:$0xff]
    %v1345 = vld [vmem:[#allocation6 + $0x2870] sm:$0xff]
    %v1346 = vld [vmem:[#allocation6 + $0x2878] sm:$0xff]
    %v1347 = vld [vmem:[#allocation6 + $0x2880] sm:$0xff]
    %v1348 = vld [vmem:[#allocation6 + $0x2888] sm:$0xff]
    %v1349 = vld [vmem:[#allocation6 + $0x2890] sm:$0xff]
    %v1350 = vld [vmem:[#allocation6 + $0x2898] sm:$0xff]
    %v1351 = vld [vmem:[#allocation6 + $0x28a0] sm:$0xff]
    %v1352 = vld [vmem:[#allocation6 + $0x28a8] sm:$0xff]
    %v1353 = vld [vmem:[#allocation6 + $0x28b0] sm:$0xff]
    %v1354 = vld [vmem:[#allocation6 + $0x28b8] sm:$0xff]
    %v1355 = vld [vmem:[#allocation6 + $0x28c0] sm:$0xff]
    %v1356 = vld [vmem:[#allocation6 + $0x28c8] sm:$0xff]
    %v1357 = vld [vmem:[#allocation6 + $0x28d0] sm:$0xff]
    %v1358 = vld [vmem:[#allocation6 + $0x28d8] sm:$0xff]
    %v1359 = vld [vmem:[#allocation6 + $0x28e0] sm:$0xff]
    %v1360 = vld [vmem:[#allocation6 + $0x28e8] sm:$0xff]
    %v1361 = vld [vmem:[#allocation6 + $0x28f0] sm:$0xff]
    %v1362 = vld [vmem:[#allocation6 + $0x28f8] sm:$0xff]
    %v1363 = vld [vmem:[#allocation6 + $0x2900] sm:$0xff]
    %v1364 = vld [vmem:[#allocation6 + $0x2908] sm:$0xff]
    %v1365 = vld [vmem:[#allocation6 + $0x2910] sm:$0xff]
    %v1366 = vld [vmem:[#allocation6 + $0x2918] sm:$0xff]
    %v1367 = vld [vmem:[#allocation6 + $0x2920] sm:$0xff]
    %v1368 = vld [vmem:[#allocation6 + $0x2928] sm:$0xff]
    %v1369 = vld [vmem:[#allocation6 + $0x2930] sm:$0xff]
    %v1370 = vld [vmem:[#allocation6 + $0x2938] sm:$0xff]
    %v1371 = vld [vmem:[#allocation6 + $0x2940] sm:$0xff]
    %v1372 = vld [vmem:[#allocation6 + $0x2948] sm:$0xff]
    %v1373 = vld [vmem:[#allocation6 + $0x2950] sm:$0xff]
    %v1374 = vld [vmem:[#allocation6 + $0x2958] sm:$0xff]
    %v1375 = vld [vmem:[#allocation6 + $0x2960] sm:$0xff]
    %v1376 = vld [vmem:[#allocation6 + $0x2968] sm:$0xff]
    %v1377 = vld [vmem:[#allocation6 + $0x2970] sm:$0xff]
    %v1378 = vld [vmem:[#allocation6 + $0x2978] sm:$0xff]
    %v1379 = vld [vmem:[#allocation6 + $0x2980] sm:$0xff]
    %v1380 = vld [vmem:[#allocation6 + $0x2988] sm:$0xff]
    %v1381 = vld [vmem:[#allocation6 + $0x2990] sm:$0xff]
    %v1382 = vld [vmem:[#allocation6 + $0x2998] sm:$0xff]
    %v1383 = vld [vmem:[#allocation6 + $0x29a0] sm:$0xff]
    %v1384 = vld [vmem:[#allocation6 + $0x29a8] sm:$0xff]
    %v1385 = vld [vmem:[#allocation6 + $0x29b0] sm:$0xff]
    %v1386 = vld [vmem:[#allocation6 + $0x29b8] sm:$0xff]
    %v1387 = vld [vmem:[#allocation6 + $0x29c0] sm:$0xff]
    %v1388 = vld [vmem:[#allocation6 + $0x29c8] sm:$0xff]
    %v1389 = vld [vmem:[#allocation6 + $0x29d0] sm:$0xff]
    %v1390 = vld [vmem:[#allocation6 + $0x29d8] sm:$0xff]
    %v1391 = vld [vmem:[#allocation6 + $0x29e0] sm:$0xff]
    %v1392 = vld [vmem:[#allocation6 + $0x29e8] sm:$0xff]
    %v1393 = vld [vmem:[#allocation6 + $0x29f0] sm:$0xff]
    %v1394 = vld [vmem:[#allocation6 + $0x29f8] sm:$0xff]
    %v1395 = vld [vmem:[#allocation6 + $0x2a00] sm:$0xff]
    %v1396 = vld [vmem:[#allocation6 + $0x2a08] sm:$0xff]
    %v1397 = vld [vmem:[#allocation6 + $0x2a10] sm:$0xff]
    %v1398 = vld [vmem:[#allocation6 + $0x2a18] sm:$0xff]
    %v1399 = vld [vmem:[#allocation6 + $0x2a20] sm:$0xff]
    %v1400 = vld [vmem:[#allocation6 + $0x2a28] sm:$0xff]
    %v1401 = vld [vmem:[#allocation6 + $0x2a30] sm:$0xff]
    %v1402 = vld [vmem:[#allocation6 + $0x2a38] sm:$0xff]
    %v1403 = vld [vmem:[#allocation6 + $0x2a40] sm:$0xff]
    %v1404 = vld [vmem:[#allocation6 + $0x2a48] sm:$0xff]
    %v1405 = vld [vmem:[#allocation6 + $0x2a50] sm:$0xff]
    %v1406 = vld [vmem:[#allocation6 + $0x2a58] sm:$0xff]
    %v1407 = vld [vmem:[#allocation6 + $0x2a60] sm:$0xff]
    %v1408 = vld [vmem:[#allocation6 + $0x2a68] sm:$0xff]
    %v1409 = vld [vmem:[#allocation6 + $0x2a70] sm:$0xff]
    %v1410 = vld [vmem:[#allocation6 + $0x2a78] sm:$0xff]
    %v1411 = vld [vmem:[#allocation6 + $0x2a80] sm:$0xff]
    %v1412 = vld [vmem:[#allocation6 + $0x2a88] sm:$0xff]
    %v1413 = vld [vmem:[#allocation6 + $0x2a90] sm:$0xff]
    %v1414 = vld [vmem:[#allocation6 + $0x2a98] sm:$0xff]
    %v1415 = vld [vmem:[#allocation6 + $0x2aa0] sm:$0xff]
    %v1416 = vld [vmem:[#allocation6 + $0x2aa8] sm:$0xff]
    %v1417 = vld [vmem:[#allocation6 + $0x2ab0] sm:$0xff]
    %v1418 = vld [vmem:[#allocation6 + $0x2ab8] sm:$0xff]
    %v1419 = vld [vmem:[#allocation6 + $0x2ac0] sm:$0xff]
    %v1420 = vld [vmem:[#allocation6 + $0x2ac8] sm:$0xff]
    %v1421 = vld [vmem:[#allocation6 + $0x2ad0] sm:$0xff]
    %v1422 = vld [vmem:[#allocation6 + $0x2ad8] sm:$0xff]
    %v1423 = vld [vmem:[#allocation6 + $0x2ae0] sm:$0xff]
    %v1424 = vld [vmem:[#allocation6 + $0x2ae8] sm:$0xff]
    %v1425 = vld [vmem:[#allocation6 + $0x2af0] sm:$0xff]
    %v1426 = vld [vmem:[#allocation6 + $0x2af8] sm:$0xff]
    %v1427 = vld [vmem:[#allocation6 + $0x2b00] sm:$0xff]
    %v1428 = vld [vmem:[#allocation6 + $0x2b08] sm:$0xff]
    %v1429 = vld [vmem:[#allocation6 + $0x2b10] sm:$0xff]
    %v1430 = vld [vmem:[#allocation6 + $0x2b18] sm:$0xff]
    %v1431 = vld [vmem:[#allocation6 + $0x2b20] sm:$0xff]
    %v1432 = vld [vmem:[#allocation6 + $0x2b28] sm:$0xff]
    %v1433 = vld [vmem:[#allocation6 + $0x2b30] sm:$0xff]
    %v1434 = vld [vmem:[#allocation6 + $0x2b38] sm:$0xff]
    %v1435 = vld [vmem:[#allocation6 + $0x2b40] sm:$0xff]
    %v1436 = vld [vmem:[#allocation6 + $0x2b48] sm:$0xff]
    %v1437 = vld [vmem:[#allocation6 + $0x2b50] sm:$0xff]
    %v1438 = vld [vmem:[#allocation6 + $0x2b58] sm:$0xff]
    %v1439 = vld [vmem:[#allocation6 + $0x2b60] sm:$0xff]
    %v1440 = vld [vmem:[#allocation6 + $0x2b68] sm:$0xff]
    %v1441 = vld [vmem:[#allocation6 + $0x2b70] sm:$0xff]
    %v1442 = vld [vmem:[#allocation6 + $0x2b78] sm:$0xff]
    %v1443 = vld [vmem:[#allocation6 + $0x2b80] sm:$0xff]
    %v1444 = vld [vmem:[#allocation6 + $0x2b88] sm:$0xff]
    %v1445 = vld [vmem:[#allocation6 + $0x2b90] sm:$0xff]
    %v1446 = vld [vmem:[#allocation6 + $0x2b98] sm:$0xff]
    %v1447 = vld [vmem:[#allocation6 + $0x2ba0] sm:$0xff]
    %v1448 = vld [vmem:[#allocation6 + $0x2ba8] sm:$0xff]
    %v1449 = vld [vmem:[#allocation6 + $0x2bb0] sm:$0xff]
    %v1450 = vld [vmem:[#allocation6 + $0x2bb8] sm:$0xff]
    %v1451 = vld [vmem:[#allocation6 + $0x2bc0] sm:$0xff]
    %v1452 = vld [vmem:[#allocation6 + $0x2bc8] sm:$0xff]
    %v1453 = vld [vmem:[#allocation6 + $0x2bd0] sm:$0xff]
    %v1454 = vld [vmem:[#allocation6 + $0x2bd8] sm:$0xff]
    %v1455 = vld [vmem:[#allocation6 + $0x2be0] sm:$0xff]
    %v1456 = vld [vmem:[#allocation6 + $0x2be8] sm:$0xff]
    %v1457 = vld [vmem:[#allocation6 + $0x2bf0] sm:$0xff]
    %v1458 = vld [vmem:[#allocation6 + $0x2bf8] sm:$0xff]
    %v1459 = vld [vmem:[#allocation6 + $0x2c00] sm:$0xff]
    %v1460 = vld [vmem:[#allocation6 + $0x2c08] sm:$0xff]
    %v1461 = vld [vmem:[#allocation6 + $0x2c10] sm:$0xff]
    %v1462 = vld [vmem:[#allocation6 + $0x2c18] sm:$0xff]
    %v1463 = vld [vmem:[#allocation6 + $0x2c20] sm:$0xff]
    %v1464 = vld [vmem:[#allocation6 + $0x2c28] sm:$0xff]
    %v1465 = vld [vmem:[#allocation6 + $0x2c30] sm:$0xff]
    %v1466 = vld [vmem:[#allocation6 + $0x2c38] sm:$0xff]
    %v1467 = vld [vmem:[#allocation6 + $0x2c40] sm:$0xff]
    %v1468 = vld [vmem:[#allocation6 + $0x2c48] sm:$0xff]
    %v1469 = vld [vmem:[#allocation6 + $0x2c50] sm:$0xff]
    %v1470 = vld [vmem:[#allocation6 + $0x2c58] sm:$0xff]
    %v1471 = vld [vmem:[#allocation6 + $0x2c60] sm:$0xff]
    %v1472 = vld [vmem:[#allocation6 + $0x2c68] sm:$0xff]
    %v1473 = vld [vmem:[#allocation6 + $0x2c70] sm:$0xff]
    %v1474 = vld [vmem:[#allocation6 + $0x2c78] sm:$0xff]
    %v1475 = vld [vmem:[#allocation6 + $0x2c80] sm:$0xff]
    %v1476 = vld [vmem:[#allocation6 + $0x2c88] sm:$0xff]
    %v1477 = vld [vmem:[#allocation6 + $0x2c90] sm:$0xff]
    %v1478 = vld [vmem:[#allocation6 + $0x2c98] sm:$0xff]
    %v1479 = vld [vmem:[#allocation6 + $0x2ca0] sm:$0xff]
    %v1480 = vld [vmem:[#allocation6 + $0x2ca8] sm:$0xff]
    %v1481 = vld [vmem:[#allocation6 + $0x2cb0] sm:$0xff]
    %v1482 = vld [vmem:[#allocation6 + $0x2cb8] sm:$0xff]
    %v1483 = vld [vmem:[#allocation6 + $0x2cc0] sm:$0xff]
    %v1484 = vld [vmem:[#allocation6 + $0x2cc8] sm:$0xff]
    %v1485 = vld [vmem:[#allocation6 + $0x2cd0] sm:$0xff]
    %v1486 = vld [vmem:[#allocation6 + $0x2cd8] sm:$0xff]
    %v1487 = vld [vmem:[#allocation6 + $0x2ce0] sm:$0xff]
    %v1488 = vld [vmem:[#allocation6 + $0x2ce8] sm:$0xff]
    %v1489 = vld [vmem:[#allocation6 + $0x2cf0] sm:$0xff]
    %v1490 = vld [vmem:[#allocation6 + $0x2cf8] sm:$0xff]
    %v1491 = vld [vmem:[#allocation6 + $0x2d00] sm:$0xff]
    %v1492 = vld [vmem:[#allocation6 + $0x2d08] sm:$0xff]
    %v1493 = vld [vmem:[#allocation6 + $0x2d10] sm:$0xff]
    %v1494 = vld [vmem:[#allocation6 + $0x2d18] sm:$0xff]
    %v1495 = vld [vmem:[#allocation6 + $0x2d20] sm:$0xff]
    %v1496 = vld [vmem:[#allocation6 + $0x2d28] sm:$0xff]
    %v1497 = vld [vmem:[#allocation6 + $0x2d30] sm:$0xff]
    %v1498 = vld [vmem:[#allocation6 + $0x2d38] sm:$0xff]
    %v1499 = vld [vmem:[#allocation6 + $0x2d40] sm:$0xff]
    %v1500 = vld [vmem:[#allocation6 + $0x2d48] sm:$0xff]
    %v1501 = vld [vmem:[#allocation6 + $0x2d50] sm:$0xff]
    %v1502 = vld [vmem:[#allocation6 + $0x2d58] sm:$0xff]
    %v1503 = vld [vmem:[#allocation6 + $0x2d60] sm:$0xff]
    %v1504 = vld [vmem:[#allocation6 + $0x2d68] sm:$0xff]
    %v1505 = vld [vmem:[#allocation6 + $0x2d70] sm:$0xff]
    %v1506 = vld [vmem:[#allocation6 + $0x2d78] sm:$0xff]
    %v1507 = vld [vmem:[#allocation6 + $0x2d80] sm:$0xff]
    %v1508 = vld [vmem:[#allocation6 + $0x2d88] sm:$0xff]
    %v1509 = vld [vmem:[#allocation6 + $0x2d90] sm:$0xff]
    %v1510 = vld [vmem:[#allocation6 + $0x2d98] sm:$0xff]
    %v1511 = vld [vmem:[#allocation6 + $0x2da0] sm:$0xff]
    %v1512 = vld [vmem:[#allocation6 + $0x2da8] sm:$0xff]
    %v1513 = vld [vmem:[#allocation6 + $0x2db0] sm:$0xff]
    %v1514 = vld [vmem:[#allocation6 + $0x2db8] sm:$0xff]
    %v1515 = vld [vmem:[#allocation6 + $0x2dc0] sm:$0xff]
    %v1516 = vld [vmem:[#allocation6 + $0x2dc8] sm:$0xff]
    %v1517 = vld [vmem:[#allocation6 + $0x2dd0] sm:$0xff]
    %v1518 = vld [vmem:[#allocation6 + $0x2dd8] sm:$0xff]
    %v1519 = vld [vmem:[#allocation6 + $0x2de0] sm:$0xff]
    %v1520 = vld [vmem:[#allocation6 + $0x2de8] sm:$0xff]
    %v1521 = vld [vmem:[#allocation6 + $0x2df0] sm:$0xff]
    %v1522 = vld [vmem:[#allocation6 + $0x2df8] sm:$0xff]
    %v1523 = vld [vmem:[#allocation6 + $0x2e00] sm:$0xff]
    %v1524 = vld [vmem:[#allocation6 + $0x2e08] sm:$0xff]
    %v1525 = vld [vmem:[#allocation6 + $0x2e10] sm:$0xff]
    %v1526 = vld [vmem:[#allocation6 + $0x2e18] sm:$0xff]
    %v1527 = vld [vmem:[#allocation6 + $0x2e20] sm:$0xff]
    %v1528 = vld [vmem:[#allocation6 + $0x2e28] sm:$0xff]
    %v1529 = vld [vmem:[#allocation6 + $0x2e30] sm:$0xff]
    %v1530 = vld [vmem:[#allocation6 + $0x2e38] sm:$0xff]
    %v1531 = vld [vmem:[#allocation6 + $0x2e40] sm:$0xff]
    %v1532 = vld [vmem:[#allocation6 + $0x2e48] sm:$0xff]
    %v1533 = vld [vmem:[#allocation6 + $0x2e50] sm:$0xff]
    %v1534 = vld [vmem:[#allocation6 + $0x2e58] sm:$0xff]
    %v1535 = vld [vmem:[#allocation6 + $0x2e60] sm:$0xff]
    %v1536 = vld [vmem:[#allocation6 + $0x2e68] sm:$0xff]
    %v1537 = vld [vmem:[#allocation6 + $0x2e70] sm:$0xff]
    %v1538 = vld [vmem:[#allocation6 + $0x2e78] sm:$0xff]
    %v1539 = vld [vmem:[#allocation6 + $0x2e80] sm:$0xff]
    %v1540 = vld [vmem:[#allocation6 + $0x2e88] sm:$0xff]
    %v1541 = vld [vmem:[#allocation6 + $0x2e90] sm:$0xff]
    %v1542 = vld [vmem:[#allocation6 + $0x2e98] sm:$0xff]
    %v1543 = vld [vmem:[#allocation6 + $0x2ea0] sm:$0xff]
    %v1544 = vld [vmem:[#allocation6 + $0x2ea8] sm:$0xff]
    %v1545 = vld [vmem:[#allocation6 + $0x2eb0] sm:$0xff]
    %v1546 = vld [vmem:[#allocation6 + $0x2eb8] sm:$0xff]
    %v1547 = vld [vmem:[#allocation6 + $0x2ec0] sm:$0xff]
    %v1548 = vld [vmem:[#allocation6 + $0x2ec8] sm:$0xff]
    %v1549 = vld [vmem:[#allocation6 + $0x2ed0] sm:$0xff]
    %v1550 = vld [vmem:[#allocation6 + $0x2ed8] sm:$0xff]
    %v1551 = vld [vmem:[#allocation6 + $0x2ee0] sm:$0xff]
    %v1552 = vld [vmem:[#allocation6 + $0x2ee8] sm:$0xff]
    %v1553 = vld [vmem:[#allocation6 + $0x2ef0] sm:$0xff]
    %v1554 = vld [vmem:[#allocation6 + $0x2ef8] sm:$0xff]
    %v1555 = vld [vmem:[#allocation6 + $0x2f00] sm:$0xff]
    %v1556 = vld [vmem:[#allocation6 + $0x2f08] sm:$0xff]
    %v1557 = vld [vmem:[#allocation6 + $0x2f10] sm:$0xff]
    %v1558 = vld [vmem:[#allocation6 + $0x2f18] sm:$0xff]
    %v1559 = vld [vmem:[#allocation6 + $0x2f20] sm:$0xff]
    %v1560 = vld [vmem:[#allocation6 + $0x2f28] sm:$0xff]
    %v1561 = vld [vmem:[#allocation6 + $0x2f30] sm:$0xff]
    %v1562 = vld [vmem:[#allocation6 + $0x2f38] sm:$0xff]
    %v1563 = vld [vmem:[#allocation6 + $0x2f40] sm:$0xff]
    %v1564 = vld [vmem:[#allocation6 + $0x2f48] sm:$0xff]
    %v1565 = vld [vmem:[#allocation6 + $0x2f50] sm:$0xff]
    %v1566 = vld [vmem:[#allocation6 + $0x2f58] sm:$0xff]
    %v1567 = vld [vmem:[#allocation6 + $0x2f60] sm:$0xff]
    %v1568 = vld [vmem:[#allocation6 + $0x2f68] sm:$0xff]
    %v1569 = vld [vmem:[#allocation6 + $0x2f70] sm:$0xff]
    %v1570 = vld [vmem:[#allocation6 + $0x2f78] sm:$0xff]
    %v1571 = vld [vmem:[#allocation6 + $0x2f80] sm:$0xff]
    %v1572 = vld [vmem:[#allocation6 + $0x2f88] sm:$0xff]
    %v1573 = vld [vmem:[#allocation6 + $0x2f90] sm:$0xff]
    %v1574 = vld [vmem:[#allocation6 + $0x2f98] sm:$0xff]
    %v1575 = vld [vmem:[#allocation6 + $0x2fa0] sm:$0xff]
    %v1576 = vld [vmem:[#allocation6 + $0x2fa8] sm:$0xff]
    %v1577 = vld [vmem:[#allocation6 + $0x2fb0] sm:$0xff]
    %v1578 = vld [vmem:[#allocation6 + $0x2fb8] sm:$0xff]
    %v1579 = vld [vmem:[#allocation6 + $0x2fc0] sm:$0xff]
    %v1580 = vld [vmem:[#allocation6 + $0x2fc8] sm:$0xff]
    %v1581 = vld [vmem:[#allocation6 + $0x2fd0] sm:$0xff]
    %v1582 = vld [vmem:[#allocation6 + $0x2fd8] sm:$0xff]
    %v1583 = vld [vmem:[#allocation6 + $0x2fe0] sm:$0xff]
    %v1584 = vld [vmem:[#allocation6 + $0x2fe8] sm:$0xff]
    %v1585 = vld [vmem:[#allocation6 + $0x2ff0] sm:$0xff]
    %v1586 = vld [vmem:[#allocation6 + $0x2ff8] sm:$0xff]
    %v1587 = vld [vmem:[#allocation6 + $0x3000] sm:$0xff]
    %v1588 = vld [vmem:[#allocation6 + $0x3008] sm:$0xff]
    %v1589 = vld [vmem:[#allocation6 + $0x3010] sm:$0xff]
    %v1590 = vld [vmem:[#allocation6 + $0x3018] sm:$0xff]
    %v1591 = vld [vmem:[#allocation6 + $0x3020] sm:$0xff]
    %v1592 = vld [vmem:[#allocation6 + $0x3028] sm:$0xff]
    %v1593 = vld [vmem:[#allocation6 + $0x3030] sm:$0xff]
    %v1594 = vld [vmem:[#allocation6 + $0x3038] sm:$0xff]
    %v1595 = vld [vmem:[#allocation6 + $0x3040] sm:$0xff]
    %v1596 = vld [vmem:[#allocation6 + $0x3048] sm:$0xff]
    %v1597 = vld [vmem:[#allocation6 + $0x3050] sm:$0xff]
    %v1598 = vld [vmem:[#allocation6 + $0x3058] sm:$0xff]
    %v1599 = vld [vmem:[#allocation6 + $0x3060] sm:$0xff]
    %v1600 = vld [vmem:[#allocation6 + $0x3068] sm:$0xff]
    %v1601 = vld [vmem:[#allocation6 + $0x3070] sm:$0xff]
    %v1602 = vld [vmem:[#allocation6 + $0x3078] sm:$0xff]
    %v1603 = vld [vmem:[#allocation6 + $0x3080] sm:$0xff]
    %v1604 = vld [vmem:[#allocation6 + $0x3088] sm:$0xff]
    %v1605 = vld [vmem:[#allocation6 + $0x3090] sm:$0xff]
    %v1606 = vld [vmem:[#allocation6 + $0x3098] sm:$0xff]
    %v1607 = vld [vmem:[#allocation6 + $0x30a0] sm:$0xff]
    %v1608 = vld [vmem:[#allocation6 + $0x30a8] sm:$0xff]
    %v1609 = vld [vmem:[#allocation6 + $0x30b0] sm:$0xff]
    %v1610 = vld [vmem:[#allocation6 + $0x30b8] sm:$0xff]
    %v1611 = vld [vmem:[#allocation6 + $0x30c0] sm:$0xff]
    %v1612 = vld [vmem:[#allocation6 + $0x30c8] sm:$0xff]
    %v1613 = vld [vmem:[#allocation6 + $0x30d0] sm:$0xff]
    %v1614 = vld [vmem:[#allocation6 + $0x30d8] sm:$0xff]
    %v1615 = vld [vmem:[#allocation6 + $0x30e0] sm:$0xff]
    %v1616 = vld [vmem:[#allocation6 + $0x30e8] sm:$0xff]
    %v1617 = vld [vmem:[#allocation6 + $0x30f0] sm:$0xff]
    %v1618 = vld [vmem:[#allocation6 + $0x30f8] sm:$0xff]
    %v1619 = vld [vmem:[#allocation6 + $0x3100] sm:$0xff]
    %v1620 = vld [vmem:[#allocation6 + $0x3108] sm:$0xff]
    %v1621 = vld [vmem:[#allocation6 + $0x3110] sm:$0xff]
    %v1622 = vld [vmem:[#allocation6 + $0x3118] sm:$0xff]
    %v1623 = vld [vmem:[#allocation6 + $0x3120] sm:$0xff]
    %v1624 = vld [vmem:[#allocation6 + $0x3128] sm:$0xff]
    %v1625 = vld [vmem:[#allocation6 + $0x3130] sm:$0xff]
    %v1626 = vld [vmem:[#allocation6 + $0x3138] sm:$0xff]
    %v1627 = vld [vmem:[#allocation6 + $0x3140] sm:$0xff]
    %v1628 = vld [vmem:[#allocation6 + $0x3148] sm:$0xff]
    %v1629 = vld [vmem:[#allocation6 + $0x3150] sm:$0xff]
    %v1630 = vld [vmem:[#allocation6 + $0x3158] sm:$0xff]
    %v1631 = vld [vmem:[#allocation6 + $0x3160] sm:$0xff]
    %v1632 = vld [vmem:[#allocation6 + $0x3168] sm:$0xff]
    %v1633 = vld [vmem:[#allocation6 + $0x3170] sm:$0xff]
    %v1634 = vld [vmem:[#allocation6 + $0x3178] sm:$0xff]
    %v1635 = vld [vmem:[#allocation6 + $0x3180] sm:$0xff]
    %v1636 = vld [vmem:[#allocation6 + $0x3188] sm:$0xff]
    %v1637 = vld [vmem:[#allocation6 + $0x3190] sm:$0xff]
    %v1638 = vld [vmem:[#allocation6 + $0x3198] sm:$0xff]
    %v1639 = vld [vmem:[#allocation6 + $0x31a0] sm:$0xff]
    %v1640 = vld [vmem:[#allocation6 + $0x31a8] sm:$0xff]
    %v1641 = vld [vmem:[#allocation6 + $0x31b0] sm:$0xff]
    %v1642 = vld [vmem:[#allocation6 + $0x31b8] sm:$0xff]
    %v1643 = vld [vmem:[#allocation6 + $0x31c0] sm:$0xff]
    %v1644 = vld [vmem:[#allocation6 + $0x31c8] sm:$0xff]
    %v1645 = vld [vmem:[#allocation6 + $0x31d0] sm:$0xff]
    %v1646 = vld [vmem:[#allocation6 + $0x31d8] sm:$0xff]
    %v1647 = vld [vmem:[#allocation6 + $0x31e0] sm:$0xff]
    %v1648 = vld [vmem:[#allocation6 + $0x31e8] sm:$0xff]
    %v1649 = vld [vmem:[#allocation6 + $0x31f0] sm:$0xff]
    %v1650 = vld [vmem:[#allocation6 + $0x31f8] sm:$0xff]
    %v1651 = vld [vmem:[#allocation6 + $0x3200] sm:$0xff]
    %v1652 = vld [vmem:[#allocation6 + $0x3208] sm:$0xff]
    %v1653 = vld [vmem:[#allocation6 + $0x3210] sm:$0xff]
    %v1654 = vld [vmem:[#allocation6 + $0x3218] sm:$0xff]
    %v1655 = vld [vmem:[#allocation6 + $0x3220] sm:$0xff]
    %v1656 = vld [vmem:[#allocation6 + $0x3228] sm:$0xff]
    %v1657 = vld [vmem:[#allocation6 + $0x3230] sm:$0xff]
    %v1658 = vld [vmem:[#allocation6 + $0x3238] sm:$0xff]
    %v1659 = vld [vmem:[#allocation6 + $0x3240] sm:$0xff]
    %v1660 = vld [vmem:[#allocation6 + $0x3248] sm:$0xff]
    %v1661 = vld [vmem:[#allocation6 + $0x3250] sm:$0xff]
    %v1662 = vld [vmem:[#allocation6 + $0x3258] sm:$0xff]
    %v1663 = vld [vmem:[#allocation6 + $0x3260] sm:$0xff]
    %v1664 = vld [vmem:[#allocation6 + $0x3268] sm:$0xff]
    %v1665 = vld [vmem:[#allocation6 + $0x3270] sm:$0xff]
    %v1666 = vld [vmem:[#allocation6 + $0x3278] sm:$0xff]
    %v1667 = vld [vmem:[#allocation6 + $0x3280] sm:$0xff]
    %v1668 = vld [vmem:[#allocation6 + $0x3288] sm:$0xff]
    %v1669 = vld [vmem:[#allocation6 + $0x3290] sm:$0xff]
    %v1670 = vld [vmem:[#allocation6 + $0x3298] sm:$0xff]
    %v1671 = vld [vmem:[#allocation6 + $0x32a0] sm:$0xff]
    %v1672 = vld [vmem:[#allocation6 + $0x32a8] sm:$0xff]
    %v1673 = vld [vmem:[#allocation6 + $0x32b0] sm:$0xff]
    %v1674 = vld [vmem:[#allocation6 + $0x32b8] sm:$0xff]
    %v1675 = vld [vmem:[#allocation6 + $0x32c0] sm:$0xff]
    %v1676 = vld [vmem:[#allocation6 + $0x32c8] sm:$0xff]
    %v1677 = vld [vmem:[#allocation6 + $0x32d0] sm:$0xff]
    %v1678 = vld [vmem:[#allocation6 + $0x32d8] sm:$0xff]
    %v1679 = vld [vmem:[#allocation6 + $0x32e0] sm:$0xff]
    %v1680 = vld [vmem:[#allocation6 + $0x32e8] sm:$0xff]
    %v1681 = vld [vmem:[#allocation6 + $0x32f0] sm:$0xff]
    %v1682 = vld [vmem:[#allocation6 + $0x32f8] sm:$0xff]
    %v1683 = vld [vmem:[#allocation6 + $0x3300] sm:$0xff]
    %v1684 = vld [vmem:[#allocation6 + $0x3308] sm:$0xff]
    %v1685 = vld [vmem:[#allocation6 + $0x3310] sm:$0xff]
    %v1686 = vld [vmem:[#allocation6 + $0x3318] sm:$0xff]
    %v1687 = vld [vmem:[#allocation6 + $0x3320] sm:$0xff]
    %v1688 = vld [vmem:[#allocation6 + $0x3328] sm:$0xff]
    %v1689 = vld [vmem:[#allocation6 + $0x3330] sm:$0xff]
    %v1690 = vld [vmem:[#allocation6 + $0x3338] sm:$0xff]
    %v1691 = vld [vmem:[#allocation6 + $0x3340] sm:$0xff]
    %v1692 = vld [vmem:[#allocation6 + $0x3348] sm:$0xff]
    %v1693 = vld [vmem:[#allocation6 + $0x3350] sm:$0xff]
    %v1694 = vld [vmem:[#allocation6 + $0x3358] sm:$0xff]
    %v1695 = vld [vmem:[#allocation6 + $0x3360] sm:$0xff]
    %v1696 = vld [vmem:[#allocation6 + $0x3368] sm:$0xff]
    %v1697 = vld [vmem:[#allocation6 + $0x3370] sm:$0xff]
    %v1698 = vld [vmem:[#allocation6 + $0x3378] sm:$0xff]
    %v1699 = vld [vmem:[#allocation6 + $0x3380] sm:$0xff]
    %v1700 = vld [vmem:[#allocation6 + $0x3388] sm:$0xff]
    %v1701 = vld [vmem:[#allocation6 + $0x3390] sm:$0xff]
    %v1702 = vld [vmem:[#allocation6 + $0x3398] sm:$0xff]
    %v1703 = vld [vmem:[#allocation6 + $0x33a0] sm:$0xff]
    %v1704 = vld [vmem:[#allocation6 + $0x33a8] sm:$0xff]
    %v1705 = vld [vmem:[#allocation6 + $0x33b0] sm:$0xff]
    %v1706 = vld [vmem:[#allocation6 + $0x33b8] sm:$0xff]
    %v1707 = vld [vmem:[#allocation6 + $0x33c0] sm:$0xff]
    %v1708 = vld [vmem:[#allocation6 + $0x33c8] sm:$0xff]
    %v1709 = vld [vmem:[#allocation6 + $0x33d0] sm:$0xff]
    %v1710 = vld [vmem:[#allocation6 + $0x33d8] sm:$0xff]
    %v1711 = vld [vmem:[#allocation6 + $0x33e0] sm:$0xff]
    %v1712 = vld [vmem:[#allocation6 + $0x33e8] sm:$0xff]
    %v1713 = vld [vmem:[#allocation6 + $0x33f0] sm:$0xff]
    %v1714 = vld [vmem:[#allocation6 + $0x33f8] sm:$0xff]
    %v1715 = vld [vmem:[#allocation6 + $0x3400] sm:$0xff]
    %v1716 = vld [vmem:[#allocation6 + $0x3408] sm:$0xff]
    %v1717 = vld [vmem:[#allocation6 + $0x3410] sm:$0xff]
    %v1718 = vld [vmem:[#allocation6 + $0x3418] sm:$0xff]
    %v1719 = vld [vmem:[#allocation6 + $0x3420] sm:$0xff]
    %v1720 = vld [vmem:[#allocation6 + $0x3428] sm:$0xff]
    %v1721 = vld [vmem:[#allocation6 + $0x3430] sm:$0xff]
    %v1722 = vld [vmem:[#allocation6 + $0x3438] sm:$0xff]
    %v1723 = vld [vmem:[#allocation6 + $0x3440] sm:$0xff]
    %v1724 = vld [vmem:[#allocation6 + $0x3448] sm:$0xff]
    %v1725 = vld [vmem:[#allocation6 + $0x3450] sm:$0xff]
    %v1726 = vld [vmem:[#allocation6 + $0x3458] sm:$0xff]
    %v1727 = vld [vmem:[#allocation6 + $0x3460] sm:$0xff]
    %v1728 = vld [vmem:[#allocation6 + $0x3468] sm:$0xff]
    %v1729 = vld [vmem:[#allocation6 + $0x3470] sm:$0xff]
    %v1730 = vld [vmem:[#allocation6 + $0x3478] sm:$0xff]
    %v1731 = vld [vmem:[#allocation6 + $0x3480] sm:$0xff]
    %v1732 = vld [vmem:[#allocation6 + $0x3488] sm:$0xff]
    %v1733 = vld [vmem:[#allocation6 + $0x3490] sm:$0xff]
    %v1734 = vld [vmem:[#allocation6 + $0x3498] sm:$0xff]
    %v1735 = vld [vmem:[#allocation6 + $0x34a0] sm:$0xff]
    %v1736 = vld [vmem:[#allocation6 + $0x34a8] sm:$0xff]
    %v1737 = vld [vmem:[#allocation6 + $0x34b0] sm:$0xff]
    %v1738 = vld [vmem:[#allocation6 + $0x34b8] sm:$0xff]
    %v1739 = vld [vmem:[#allocation6 + $0x34c0] sm:$0xff]
    %v1740 = vld [vmem:[#allocation6 + $0x34c8] sm:$0xff]
    %v1741 = vld [vmem:[#allocation6 + $0x34d0] sm:$0xff]
    %v1742 = vld [vmem:[#allocation6 + $0x34d8] sm:$0xff]
    %v1743 = vld [vmem:[#allocation6 + $0x34e0] sm:$0xff]
    %v1744 = vld [vmem:[#allocation6 + $0x34e8] sm:$0xff]
    %v1745 = vld [vmem:[#allocation6 + $0x34f0] sm:$0xff]
    %v1746 = vld [vmem:[#allocation6 + $0x34f8] sm:$0xff]
    %v1747 = vld [vmem:[#allocation6 + $0x3500] sm:$0xff]
    %v1748 = vld [vmem:[#allocation6 + $0x3508] sm:$0xff]
    %v1749 = vld [vmem:[#allocation6 + $0x3510] sm:$0xff]
    %v1750 = vld [vmem:[#allocation6 + $0x3518] sm:$0xff]
    %v1751 = vld [vmem:[#allocation6 + $0x3520] sm:$0x7f]
    %v1752 = vld [vmem:[#allocation6 + $0x3528] sm:$0x7f]
    %v1753 = vld [vmem:[#allocation6 + $0x3530] sm:$0x7f]
    %v1754 = vld [vmem:[#allocation6 + $0x3538] sm:$0x7f]
    %v1755 = vld [vmem:[#allocation6 + $0x3540] sm:$0x7f]
    %v1756 = vld [vmem:[#allocation6 + $0x3548] sm:$0x7f]
    %v1757 = vld [vmem:[#allocation6 + $0x3550] sm:$0x7f]
    %v1758 = vld [vmem:[#allocation6 + $0x3558] sm:$0x7f]
    %v1759 = vld [vmem:[#allocation6 + $0x3560] sm:$0x7f]
    %v1760 = vld [vmem:[#allocation6 + $0x3568] sm:$0x7f]
    %v1761 = vld [vmem:[#allocation6 + $0x3570] sm:$0x7f]
    %v1762 = vld [vmem:[#allocation6 + $0x3578] sm:$0x7f]
    %v1763 = vld [vmem:[#allocation6 + $0x3580] sm:$0x7f]
    %v1764 = vld [vmem:[#allocation6 + $0x3588] sm:$0x7f]
    %v1765 = vld [vmem:[#allocation6 + $0x3590] sm:$0x7f]
    %v1766 = vld [vmem:[#allocation6 + $0x3598] sm:$0x7f]
    %v1767 = vld [vmem:[#allocation6 + $0x35a0] sm:$0x7f]
    %v1768 = vld [vmem:[#allocation6 + $0x35a8] sm:$0x7f]
    %v1769 = vld [vmem:[#allocation6 + $0x35b0] sm:$0x7f]
    %v1770 = vld [vmem:[#allocation6 + $0x35b8] sm:$0x7f]
    %v1771 = vld [vmem:[#allocation6 + $0x35c0] sm:$0x7f]
    %v1772 = vld [vmem:[#allocation6 + $0x35c8] sm:$0x7f]
    %v1773 = vld [vmem:[#allocation6 + $0x35d0] sm:$0x7f]
    %v1774 = vld [vmem:[#allocation6 + $0x35d8] sm:$0x7f]
    %v1775 = vld [vmem:[#allocation6 + $0x35e0] sm:$0x7f]
    %v1776 = vld [vmem:[%s2] sm:$0xff]
    %v1777 = vld [vmem:[%s2 + $0x8] sm:$0xff]
    %v1778 = vld [vmem:[%s2 + $0x10] sm:$0xff]
    %v1779 = vld [vmem:[%s2 + $0x18] sm:$0x1]
    %v1784 = vlaneseq
    %v1785 = vshrl.u32 %v1784, 7
    %v1786 = vsub.s32 0, %v1785
    %v1787 = vrot.slane %v1776, %v1786
    %v1788 = vlaneseq
    %v1789 = vshrl.u32 %v1788, 7
    %v1790 = vsub.s32 1, %v1789
    %v1791 = vrot.slane %v1776, %v1790
    %v1792 = vlaneseq
    %v1793 = vshrl.u32 %v1792, 7
    %v1794 = vsub.s32 2, %v1793
    %v1795 = vrot.slane %v1776, %v1794
    %v1796 = vlaneseq
    %v1797 = vshrl.u32 %v1796, 7
    %v1798 = vsub.s32 3, %v1797
    %v1799 = vrot.slane %v1776, %v1798
    %v1800 = vlaneseq
    %v1801 = vshrl.u32 %v1800, 7
    %v1802 = vsub.s32 4, %v1801
    %v1803 = vrot.slane %v1776, %v1802
    %v1804 = vlaneseq
    %v1805 = vshrl.u32 %v1804, 7
    %v1806 = vsub.s32 5, %v1805
    %v1807 = vrot.slane %v1776, %v1806
    %v1808 = vlaneseq
    %v1809 = vshrl.u32 %v1808, 7
    %v1810 = vsub.s32 6, %v1809
    %v1811 = vrot.slane %v1776, %v1810
    %v1812 = vlaneseq
    %v1813 = vshrl.u32 %v1812, 7
    %v1814 = vsub.s32 7, %v1813
    %v1815 = vrot.slane %v1776, %v1814
    %v1816 = vlaneseq
    %v1817 = vshrl.u32 %v1816, 7
    %v1818 = vsub.s32 0, %v1817
    %v1819 = vrot.slane %v1777, %v1818
    %v1820 = vlaneseq
    %v1821 = vshrl.u32 %v1820, 7
    %v1822 = vsub.s32 1, %v1821
    %v1823 = vrot.slane %v1777, %v1822
    %v1824 = vlaneseq
    %v1825 = vshrl.u32 %v1824, 7
    %v1826 = vsub.s32 2, %v1825
    %v1827 = vrot.slane %v1777, %v1826
    %v1828 = vlaneseq
    %v1829 = vshrl.u32 %v1828, 7
    %v1830 = vsub.s32 3, %v1829
    %v1831 = vrot.slane %v1777, %v1830
    %v1832 = vlaneseq
    %v1833 = vshrl.u32 %v1832, 7
    %v1834 = vsub.s32 4, %v1833
    %v1835 = vrot.slane %v1777, %v1834
    %v1836 = vlaneseq
    %v1837 = vshrl.u32 %v1836, 7
    %v1838 = vsub.s32 5, %v1837
    %v1839 = vrot.slane %v1777, %v1838
    %v1840 = vlaneseq
    %v1841 = vshrl.u32 %v1840, 7
    %v1842 = vsub.s32 6, %v1841
    %v1843 = vrot.slane %v1777, %v1842
    %v1844 = vlaneseq
    %v1845 = vshrl.u32 %v1844, 7
    %v1846 = vsub.s32 7, %v1845
    %v1847 = vrot.slane %v1777, %v1846
    %v1848 = vlaneseq
    %v1849 = vshrl.u32 %v1848, 7
    %v1850 = vsub.s32 0, %v1849
    %v1851 = vrot.slane %v1778, %v1850
    %v1852 = vlaneseq
    %v1853 = vshrl.u32 %v1852, 7
    %v1854 = vsub.s32 1, %v1853
    %v1855 = vrot.slane %v1778, %v1854
    %v1856 = vlaneseq
    %v1857 = vshrl.u32 %v1856, 7
    %v1858 = vsub.s32 2, %v1857
    %v1859 = vrot.slane %v1778, %v1858
    %v1860 = vlaneseq
    %v1861 = vshrl.u32 %v1860, 7
    %v1862 = vsub.s32 3, %v1861
    %v1863 = vrot.slane %v1778, %v1862
    %v1864 = vlaneseq
    %v1865 = vshrl.u32 %v1864, 7
    %v1866 = vsub.s32 4, %v1865
    %v1867 = vrot.slane %v1778, %v1866
    %v1868 = vlaneseq
    %v1869 = vshrl.u32 %v1868, 7
    %v1870 = vsub.s32 5, %v1869
    %v1871 = vrot.slane %v1778, %v1870
    %v1872 = vlaneseq
    %v1873 = vshrl.u32 %v1872, 7
    %v1874 = vsub.s32 6, %v1873
    %v1875 = vrot.slane %v1778, %v1874
    %v1876 = vlaneseq
    %v1877 = vshrl.u32 %v1876, 7
    %v1878 = vsub.s32 7, %v1877
    %v1879 = vrot.slane %v1778, %v1878
    %v1880 = vlaneseq
    %v1881 = vshrl.u32 %v1880, 7
    %v1882 = vsub.s32 0, %v1881
    %v1883 = vrot.slane %v1779, %v1882
    %v1911 = vcombine.high %v49, %v49
    %v1913 = vunpack.c.l.s4 1983009808
    %v1914 = vunpack.c.0.s8 %v1913
    %v1915 = vlaneseq
    %v1916 = vshrl.u32 %v1915, 7
    %v1917 = vsub.s32 %v1914, %v1916
    %v1918 = vrot.slane %v49, %v1917
    %v1920 = vunpack.c.l.s4 1983009808
    %v1921 = vunpack.c.0.s8 %v1920
    %v1922 = vlaneseq
    %v1923 = vshrl.u32 %v1922, 7
    %v1924 = vsub.s32 %v1921, %v1923
    %v1925 = vrot.slane %v1911, %v1924
    %v1926 = vcombine.high %v1918, %v1918
    %v1927 = vcombine.high %v1925, %v1925
    %v1929 = vunpack.c.l.s4 1983009808
    %v1930 = vunpack.c.0.s8 %v1929
    %v1931 = vlaneseq
    %v1932 = vshrl.u32 %v1931, 7
    %v1933 = vsub.s32 %v1930, %v1932
    %v1934 = vrot.slane %v50, %v1933
    %vm1939 = vcmask 318464
    %v1940 = vsel %vm1939, %v1934, 0
    %vm1942 = vcmask 1046528
    %v1944 = vsel %vm1942, %v1751, 0
    %v1947 = vsel %vm1942, %v1752, 0
    %v1950 = vsel %vm1942, %v1753, 0
    %v1953 = vsel %vm1942, %v1754, 0
    %v1956 = vsel %vm1942, %v1755, 0
    %v1959 = vsel %vm1942, %v1756, 0
    %v1962 = vsel %vm1942, %v1757, 0
    %v1965 = vsel %vm1942, %v1758, 0
    %v1968 = vsel %vm1942, %v1759, 0
    %v1971 = vsel %vm1942, %v1760, 0
    %v1974 = vsel %vm1942, %v1761, 0
    %v1977 = vsel %vm1942, %v1762, 0
    %v1980 = vsel %vm1942, %v1763, 0
    %v1983 = vsel %vm1942, %v1764, 0
    %v1986 = vsel %vm1942, %v1765, 0
    %v1989 = vsel %vm1942, %v1766, 0
    %v1992 = vsel %vm1942, %v1767, 0
    %v1995 = vsel %vm1942, %v1768, 0
    %v1998 = vsel %vm1942, %v1769, 0
    %v2001 = vsel %vm1942, %v1770, 0
    %v2004 = vsel %vm1942, %v1771, 0
    %v2007 = vsel %vm1942, %v1772, 0
    %v2010 = vsel %vm1942, %v1773, 0
    %v2013 = vsel %vm1942, %v1774, 0
    %v2016 = vsel %vm1942, %v1775, 0
    %2018 = vmatprep.subr.mxu0 %v427
    %2019 = vmatpush1.msra.mxu0 %v426
    %2020 = vmatprep.subr.mxu0 %v402
    %2021 = vmatpush1.msra.mxu0 %v401
    %2022 = vmatprep.subr.mxu0 %v377
    %2023 = vmatpush1.msra.mxu0 %v376
    %2024 = vmatprep.subr.mxu0 %v352
    %2025 = vmatpush1.msra.mxu0 %v351
    %2026 = vmatprep.subr.mxu0 %v327
    %2027 = vmatpush1.msra.mxu0 %v326
    %2028 = vmatprep.subr.mxu0 %v302
    %2029 = vmatpush1.msra.mxu0 %v301
    %2030 = vmatprep.subr.mxu0 %v277
    %2031 = vmatpush1.msra.mxu0 %v276
    %2032 = vmatprep.subr.mxu0 %v252
    %2033 = vmatpush1.msra.mxu0 %v251
    %2034 = vmatprep.subr.mxu0 %v227
    %2035 = vmatpush1.msra.mxu0 %v226
    %2036 = vmatprep.subr.mxu0 %v202
    %2037 = vmatpush1.msra.mxu0 %v201
    %2038 = vmatprep.subr.mxu0 %v177
    %2039 = vmatpush1.msra.mxu0 %v176
    %2040 = vmatprep.subr.mxu0 %v152
    %2041 = vmatpush1.msra.mxu0 %v151
    %2042 = vmatprep.subr.mxu0 %v127
    %2043 = vmatpush1.msra.mxu0 %v126
    %2044 = vmatprep.subr.mxu0 %v102
    %2045 = vmatpush1.msra.mxu0 %v101
    %2046 = vmatprep.subr.mxu0 %v77
    %2047 = vmatpush1.msra.mxu0 %v76
    %2048 = vmatprep.subr.mxu0 %v52
    %2049 = vmatpush1.msra.mxu0 %v51
    %2050 = vmatprep.subr.mxu0 %v827
    %2051 = vmatpush2.msra.mxu0 %v826
    %2052 = vmatprep.subr.mxu0 %v802
    %2053 = vmatpush2.msra.mxu0 %v801
    %2054 = vmatprep.subr.mxu0 %v777
    %2055 = vmatpush2.msra.mxu0 %v776
    %2056 = vmatprep.subr.mxu0 %v752
    %2057 = vmatpush2.msra.mxu0 %v751
    %2058 = vmatprep.subr.mxu0 %v727
    %2059 = vmatpush2.msra.mxu0 %v726
    %2060 = vmatprep.subr.mxu0 %v702
    %2061 = vmatpush2.msra.mxu0 %v701
    %2062 = vmatprep.subr.mxu0 %v677
    %2063 = vmatpush2.msra.mxu0 %v676
    %2064 = vmatprep.subr.mxu0 %v652
    %2065 = vmatpush2.msra.mxu0 %v651
    %2066 = vmatprep.subr.mxu0 %v627
    %2067 = vmatpush2.msra.mxu0 %v626
    %2068 = vmatprep.subr.mxu0 %v602
    %2069 = vmatpush2.msra.mxu0 %v601
    %2070 = vmatprep.subr.mxu0 %v577
    %2071 = vmatpush2.msra.mxu0 %v576
    %2072 = vmatprep.subr.mxu0 %v552
    %2073 = vmatpush2.msra.mxu0 %v551
    %2074 = vmatprep.subr.mxu0 %v527
    %2075 = vmatpush2.msra.mxu0 %v526
    %2076 = vmatprep.subr.mxu0 %v502
    %2077 = vmatpush2.msra.mxu0 %v501
    %2078 = vmatprep.subr.mxu0 %v477
    %2079 = vmatpush2.msra.mxu0 %v476
    %2080 = vmatprep.subr.mxu0 %v452
    %2081 = vmatpush2.msra.mxu0 %v451
    %2082 = vmatprep.mubr.f32.mxu0 %v1926
    %2083 = vmatmul.mubr.f32.gmra.mxu0 %v1918
    %v2084 = vpop.f32.mrf.mxu0
    %v2085 = vadd.f32 %v1787, %v2084
    %v2086 = vpop.f32.mrf.mxu0
    %v2087 = vadd.f32 %v1791, %v2086
    %2088 = vdwg.mxu0
    %2089 = vmatprep.subr.mxu0 %v1227
    %2090 = vmatpush1.msra.mxu0 %v1226
    %2091 = vmatprep.subr.mxu0 %v1202
    %2092 = vmatpush1.msra.mxu0 %v1201
    %2093 = vmatprep.subr.mxu0 %v1177
    %2094 = vmatpush1.msra.mxu0 %v1176
    %2095 = vmatprep.subr.mxu0 %v1152
    %2096 = vmatpush1.msra.mxu0 %v1151
    %2097 = vmatprep.subr.mxu0 %v1127
    %2098 = vmatpush1.msra.mxu0 %v1126
    %2099 = vmatprep.subr.mxu0 %v1102
    %2100 = vmatpush1.msra.mxu0 %v1101
    %2101 = vmatprep.subr.mxu0 %v1077
    %2102 = vmatpush1.msra.mxu0 %v1076
    %2103 = vmatprep.subr.mxu0 %v1052
    %2104 = vmatpush1.msra.mxu0 %v1051
    %2105 = vmatprep.subr.mxu0 %v1027
    %2106 = vmatpush1.msra.mxu0 %v1026
    %2107 = vmatprep.subr.mxu0 %v1002
    %2108 = vmatpush1.msra.mxu0 %v1001
    %2109 = vmatprep.subr.mxu0 %v977
    %2110 = vmatpush1.msra.mxu0 %v976
    %2111 = vmatprep.subr.mxu0 %v952
    %2112 = vmatpush1.msra.mxu0 %v951
    %2113 = vmatprep.subr.mxu0 %v927
    %2114 = vmatpush1.msra.mxu0 %v926
    %2115 = vmatprep.subr.mxu0 %v902
    %2116 = vmatpush1.msra.mxu0 %v901
    %2117 = vmatprep.subr.mxu0 %v877
    %2118 = vmatpush1.msra.mxu0 %v876
    %2119 = vmatprep.subr.mxu0 %v852
    %2120 = vmatpush1.msra.mxu0 %v851
    %2121 = vmatprep.subr.mxu0 %v1627
    %2122 = vmatpush2.msra.mxu0 %v1626
    %2123 = vmatprep.subr.mxu0 %v1602
    %2124 = vmatpush2.msra.mxu0 %v1601
    %2125 = vmatprep.subr.mxu0 %v1577
    %2126 = vmatpush2.msra.mxu0 %v1576
    %2127 = vmatprep.subr.mxu0 %v1552
    %2128 = vmatpush2.msra.mxu0 %v1551
    %2129 = vmatprep.subr.mxu0 %v1527
    %2130 = vmatpush2.msra.mxu0 %v1526
    %2131 = vmatprep.subr.mxu0 %v1502
    %2132 = vmatpush2.msra.mxu0 %v1501
    %2133 = vmatprep.subr.mxu0 %v1477
    %2134 = vmatpush2.msra.mxu0 %v1476
    %2135 = vmatprep.subr.mxu0 %v1452
    %2136 = vmatpush2.msra.mxu0 %v1451
    %2137 = vmatprep.subr.mxu0 %v1427
    %2138 = vmatpush2.msra.mxu0 %v1426
    %2139 = vmatprep.subr.mxu0 %v1402
    %2140 = vmatpush2.msra.mxu0 %v1401
    %2141 = vmatprep.subr.mxu0 %v1377
    %2142 = vmatpush2.msra.mxu0 %v1376
    %2143 = vmatprep.subr.mxu0 %v1352
    %2144 = vmatpush2.msra.mxu0 %v1351
    %2145 = vmatprep.subr.mxu0 %v1327
    %2146 = vmatpush2.msra.mxu0 %v1326
    %2147 = vmatprep.subr.mxu0 %v1302
    %2148 = vmatpush2.msra.mxu0 %v1301
    %2149 = vmatprep.subr.mxu0 %v1277
    %2150 = vmatpush2.msra.mxu0 %v1276
    %2151 = vmatprep.subr.mxu0 %v1252
    %2152 = vmatpush2.msra.mxu0 %v1251
    %2153 = vmatprep.mubr.f32.mxu0 %v1927
    %2154 = vmatmul.mubr.f32.gmra.mxu0 %v1925
    %v2155 = vpop.f32.mrf.mxu0
    %v2156 = vadd.f32 %v2085, %v2155
    %v2157 = vpop.f32.mrf.mxu0
    %v2158 = vadd.f32 %v2087, %v2157
    %2159 = vdwg.mxu0
    %2160 = vmatprep.subr.mxu0 0.0
    %2161 = vmatpush1.msra.mxu0 0.0
    %2162 = vmatprep.subr.mxu0 0.0
    %2163 = vmatpush1.msra.mxu0 0.0
    %2164 = vmatprep.subr.mxu0 0.0
    %2165 = vmatpush1.msra.mxu0 0.0
    %2166 = vmatprep.subr.mxu0 0.0
    %2167 = vmatpush1.msra.mxu0 0.0
    %2168 = vmatprep.subr.mxu0 0.0
    %2169 = vmatpush1.msra.mxu0 0.0
    %2170 = vmatprep.subr.mxu0 0.0
    %2171 = vmatpush1.msra.mxu0 0.0
    %2172 = vmatprep.subr.mxu0 0.0
    %2173 = vmatpush1.msra.mxu0 0.0
    %2174 = vmatprep.subr.mxu0 0.0
    %2175 = vmatpush1.msra.mxu0 0.0
    %2176 = vmatprep.subr.mxu0 0.0
    %2177 = vmatpush1.msra.mxu0 0.0
    %2178 = vmatprep.subr.mxu0 0.0
    %2179 = vmatpush1.msra.mxu0 0.0
    %2180 = vmatprep.subr.mxu0 0.0
    %2181 = vmatpush1.msra.mxu0 0.0
    %2182 = vmatprep.subr.mxu0 %v1947
    %2183 = vmatpush1.msra.mxu0 %v1944
    %2184 = vmatprep.subr.mxu0 %v1727
    %2185 = vmatpush1.msra.mxu0 %v1726
    %2186 = vmatprep.subr.mxu0 %v1702
    %2187 = vmatpush1.msra.mxu0 %v1701
    %2188 = vmatprep.subr.mxu0 %v1677
    %2189 = vmatpush1.msra.mxu0 %v1676
    %2190 = vmatprep.subr.mxu0 %v1652
    %2191 = vmatpush1.msra.mxu0 %v1651
    %2192 = vmatprep.subr.mxu0 0.0
    %2193 = vmatpush2.msra.mxu0 0.0
    %2194 = vmatprep.subr.mxu0 0.0
    %2195 = vmatpush2.msra.mxu0 0.0
    %2196 = vmatprep.subr.mxu0 0.0
    %2197 = vmatpush2.msra.mxu0 0.0
    %2198 = vmatprep.subr.mxu0 0.0
    %2199 = vmatpush2.msra.mxu0 0.0
    %2200 = vmatprep.subr.mxu0 0.0
    %2201 = vmatpush2.msra.mxu0 0.0
    %2202 = vmatprep.subr.mxu0 0.0
    %2203 = vmatpush2.msra.mxu0 0.0
    %2204 = vmatprep.subr.mxu0 0.0
    %2205 = vmatpush2.msra.mxu0 0.0
    %2206 = vmatprep.subr.mxu0 0.0
    %2207 = vmatpush2.msra.mxu0 0.0
    %2208 = vmatprep.subr.mxu0 0.0
    %2209 = vmatpush2.msra.mxu0 0.0
    %2210 = vmatprep.subr.mxu0 0.0
    %2211 = vmatpush2.msra.mxu0 0.0
    %2212 = vmatprep.subr.mxu0 0.0
    %2213 = vmatpush2.msra.mxu0 0.0
    %2214 = vmatprep.subr.mxu0 0.0
    %2215 = vmatpush2.msra.mxu0 0.0
    %2216 = vmatprep.subr.mxu0 0.0
    %2217 = vmatpush2.msra.mxu0 0.0
    %2218 = vmatprep.subr.mxu0 0.0
    %2219 = vmatpush2.msra.mxu0 0.0
    %2220 = vmatprep.subr.mxu0 0.0
    %2221 = vmatpush2.msra.mxu0 0.0
    %2222 = vmatprep.subr.mxu0 0.0
    %2223 = vmatpush2.msra.mxu0 0.0
    %2224 = vmatprep.mubr.f32.mxu0 0.0
    %2225 = vmatmul.mubr.f32.gmra.mxu0 %v1940
    %v2226 = vpop.f32.mrf.mxu0
    %v2227 = vadd.f32 %v2156, %v2226
    %v2228 = vpop.f32.mrf.mxu0
    %v2229 = vadd.f32 %v2158, %v2228
    %2230 = vdwg.mxu0
    %2231 = vmatprep.subr.mxu0 %v429
    %2232 = vmatpush1.msra.mxu0 %v428
    %2233 = vmatprep.subr.mxu0 %v404
    %2234 = vmatpush1.msra.mxu0 %v403
    %2235 = vmatprep.subr.mxu0 %v379
    %2236 = vmatpush1.msra.mxu0 %v378
    %2237 = vmatprep.subr.mxu0 %v354
    %2238 = vmatpush1.msra.mxu0 %v353
    %2239 = vmatprep.subr.mxu0 %v329
    %2240 = vmatpush1.msra.mxu0 %v328
    %2241 = vmatprep.subr.mxu0 %v304
    %2242 = vmatpush1.msra.mxu0 %v303
    %2243 = vmatprep.subr.mxu0 %v279
    %2244 = vmatpush1.msra.mxu0 %v278
    %2245 = vmatprep.subr.mxu0 %v254
    %2246 = vmatpush1.msra.mxu0 %v253
    %2247 = vmatprep.subr.mxu0 %v229
    %2248 = vmatpush1.msra.mxu0 %v228
    %2249 = vmatprep.subr.mxu0 %v204
    %2250 = vmatpush1.msra.mxu0 %v203
    %2251 = vmatprep.subr.mxu0 %v179
    %2252 = vmatpush1.msra.mxu0 %v178
    %2253 = vmatprep.subr.mxu0 %v154
    %2254 = vmatpush1.msra.mxu0 %v153
    %2255 = vmatprep.subr.mxu0 %v129
    %2256 = vmatpush1.msra.mxu0 %v128
    %2257 = vmatprep.subr.mxu0 %v104
    %2258 = vmatpush1.msra.mxu0 %v103
    %2259 = vmatprep.subr.mxu0 %v79
    %2260 = vmatpush1.msra.mxu0 %v78
    %2261 = vmatprep.subr.mxu0 %v54
    %2262 = vmatpush1.msra.mxu0 %v53
    %2263 = vmatprep.subr.mxu0 %v829
    %2264 = vmatpush2.msra.mxu0 %v828
    %2265 = vmatprep.subr.mxu0 %v804
    %2266 = vmatpush2.msra.mxu0 %v803
    %2267 = vmatprep.subr.mxu0 %v779
    %2268 = vmatpush2.msra.mxu0 %v778
    %2269 = vmatprep.subr.mxu0 %v754
    %2270 = vmatpush2.msra.mxu0 %v753
    %2271 = vmatprep.subr.mxu0 %v729
    %2272 = vmatpush2.msra.mxu0 %v728
    %2273 = vmatprep.subr.mxu0 %v704
    %2274 = vmatpush2.msra.mxu0 %v703
    %2275 = vmatprep.subr.mxu0 %v679
    %2276 = vmatpush2.msra.mxu0 %v678
    %2277 = vmatprep.subr.mxu0 %v654
    %2278 = vmatpush2.msra.mxu0 %v653
    %2279 = vmatprep.subr.mxu0 %v629
    %2280 = vmatpush2.msra.mxu0 %v628
    %2281 = vmatprep.subr.mxu0 %v604
    %2282 = vmatpush2.msra.mxu0 %v603
    %2283 = vmatprep.subr.mxu0 %v579
    %2284 = vmatpush2.msra.mxu0 %v578
    %2285 = vmatprep.subr.mxu0 %v554
    %2286 = vmatpush2.msra.mxu0 %v553
    %2287 = vmatprep.subr.mxu0 %v529
    %2288 = vmatpush2.msra.mxu0 %v528
    %2289 = vmatprep.subr.mxu0 %v504
    %2290 = vmatpush2.msra.mxu0 %v503
    %2291 = vmatprep.subr.mxu0 %v479
    %2292 = vmatpush2.msra.mxu0 %v478
    %2293 = vmatprep.subr.mxu0 %v454
    %2294 = vmatpush2.msra.mxu0 %v453
    %2295 = vmatprep.mubr.f32.mxu0 %v1926
    %2296 = vmatmul.mubr.f32.gmra.mxu0 %v1918
    %v2297 = vpop.f32.mrf.mxu0
    %v2298 = vadd.f32 %v1795, %v2297
    %v2299 = vpop.f32.mrf.mxu0
    %v2300 = vadd.f32 %v1799, %v2299
    %2301 = vdwg.mxu0
    %2302 = vmatprep.subr.mxu0 %v1229
    %2303 = vmatpush1.msra.mxu0 %v1228
    %2304 = vmatprep.subr.mxu0 %v1204
    %2305 = vmatpush1.msra.mxu0 %v1203
    %2306 = vmatprep.subr.mxu0 %v1179
    %2307 = vmatpush1.msra.mxu0 %v1178
    %2308 = vmatprep.subr.mxu0 %v1154
    %2309 = vmatpush1.msra.mxu0 %v1153
    %2310 = vmatprep.subr.mxu0 %v1129
    %2311 = vmatpush1.msra.mxu0 %v1128
    %2312 = vmatprep.subr.mxu0 %v1104
    %2313 = vmatpush1.msra.mxu0 %v1103
    %2314 = vmatprep.subr.mxu0 %v1079
    %2315 = vmatpush1.msra.mxu0 %v1078
    %2316 = vmatprep.subr.mxu0 %v1054
    %2317 = vmatpush1.msra.mxu0 %v1053
    %2318 = vmatprep.subr.mxu0 %v1029
    %2319 = vmatpush1.msra.mxu0 %v1028
    %2320 = vmatprep.subr.mxu0 %v1004
    %2321 = vmatpush1.msra.mxu0 %v1003
    %2322 = vmatprep.subr.mxu0 %v979
    %2323 = vmatpush1.msra.mxu0 %v978
    %2324 = vmatprep.subr.mxu0 %v954
    %2325 = vmatpush1.msra.mxu0 %v953
    %2326 = vmatprep.subr.mxu0 %v929
    %2327 = vmatpush1.msra.mxu0 %v928
    %2328 = vmatprep.subr.mxu0 %v904
    %2329 = vmatpush1.msra.mxu0 %v903
    %2330 = vmatprep.subr.mxu0 %v879
    %2331 = vmatpush1.msra.mxu0 %v878
    %2332 = vmatprep.subr.mxu0 %v854
    %2333 = vmatpush1.msra.mxu0 %v853
    %2334 = vmatprep.subr.mxu0 %v1629
    %2335 = vmatpush2.msra.mxu0 %v1628
    %2336 = vmatprep.subr.mxu0 %v1604
    %2337 = vmatpush2.msra.mxu0 %v1603
    %2338 = vmatprep.subr.mxu0 %v1579
    %2339 = vmatpush2.msra.mxu0 %v1578
    %2340 = vmatprep.subr.mxu0 %v1554
    %2341 = vmatpush2.msra.mxu0 %v1553
    %2342 = vmatprep.subr.mxu0 %v1529
    %2343 = vmatpush2.msra.mxu0 %v1528
    %2344 = vmatprep.subr.mxu0 %v1504
    %2345 = vmatpush2.msra.mxu0 %v1503
    %2346 = vmatprep.subr.mxu0 %v1479
    %2347 = vmatpush2.msra.mxu0 %v1478
    %2348 = vmatprep.subr.mxu0 %v1454
    %2349 = vmatpush2.msra.mxu0 %v1453
    %2350 = vmatprep.subr.mxu0 %v1429
    %2351 = vmatpush2.msra.mxu0 %v1428
    %2352 = vmatprep.subr.mxu0 %v1404
    %2353 = vmatpush2.msra.mxu0 %v1403
    %2354 = vmatprep.subr.mxu0 %v1379
    %2355 = vmatpush2.msra.mxu0 %v1378
    %2356 = vmatprep.subr.mxu0 %v1354
    %2357 = vmatpush2.msra.mxu0 %v1353
    %2358 = vmatprep.subr.mxu0 %v1329
    %2359 = vmatpush2.msra.mxu0 %v1328
    %2360 = vmatprep.subr.mxu0 %v1304
    %2361 = vmatpush2.msra.mxu0 %v1303
    %2362 = vmatprep.subr.mxu0 %v1279
    %2363 = vmatpush2.msra.mxu0 %v1278
    %2364 = vmatprep.subr.mxu0 %v1254
    %2365 = vmatpush2.msra.mxu0 %v1253
    %2366 = vmatprep.mubr.f32.mxu0 %v1927
    %2367 = vmatmul.mubr.f32.gmra.mxu0 %v1925
    %v2368 = vpop.f32.mrf.mxu0
    %v2369 = vadd.f32 %v2298, %v2368
    %v2370 = vpop.f32.mrf.mxu0
    %v2371 = vadd.f32 %v2300, %v2370
    %2372 = vdwg.mxu0
    %2373 = vmatprep.subr.mxu0 0.0
    %2374 = vmatpush1.msra.mxu0 0.0
    %2375 = vmatprep.subr.mxu0 0.0
    %2376 = vmatpush1.msra.mxu0 0.0
    %2377 = vmatprep.subr.mxu0 0.0
    %2378 = vmatpush1.msra.mxu0 0.0
    %2379 = vmatprep.subr.mxu0 0.0
    %2380 = vmatpush1.msra.mxu0 0.0
    %2381 = vmatprep.subr.mxu0 0.0
    %2382 = vmatpush1.msra.mxu0 0.0
    %2383 = vmatprep.subr.mxu0 0.0
    %2384 = vmatpush1.msra.mxu0 0.0
    %2385 = vmatprep.subr.mxu0 0.0
    %2386 = vmatpush1.msra.mxu0 0.0
    %2387 = vmatprep.subr.mxu0 0.0
    %2388 = vmatpush1.msra.mxu0 0.0
    %2389 = vmatprep.subr.mxu0 0.0
    %2390 = vmatpush1.msra.mxu0 0.0
    %2391 = vmatprep.subr.mxu0 0.0
    %2392 = vmatpush1.msra.mxu0 0.0
    %2393 = vmatprep.subr.mxu0 0.0
    %2394 = vmatpush1.msra.mxu0 0.0
    %2395 = vmatprep.subr.mxu0 %v1953
    %2396 = vmatpush1.msra.mxu0 %v1950
    %2397 = vmatprep.subr.mxu0 %v1729
    %2398 = vmatpush1.msra.mxu0 %v1728
    %2399 = vmatprep.subr.mxu0 %v1704
    %2400 = vmatpush1.msra.mxu0 %v1703
    %2401 = vmatprep.subr.mxu0 %v1679
    %2402 = vmatpush1.msra.mxu0 %v1678
    %2403 = vmatprep.subr.mxu0 %v1654
    %2404 = vmatpush1.msra.mxu0 %v1653
    %2405 = vmatprep.subr.mxu0 0.0
    %2406 = vmatpush2.msra.mxu0 0.0
    %2407 = vmatprep.subr.mxu0 0.0
    %2408 = vmatpush2.msra.mxu0 0.0
    %2409 = vmatprep.subr.mxu0 0.0
    %2410 = vmatpush2.msra.mxu0 0.0
    %2411 = vmatprep.subr.mxu0 0.0
    %2412 = vmatpush2.msra.mxu0 0.0
    %2413 = vmatprep.subr.mxu0 0.0
    %2414 = vmatpush2.msra.mxu0 0.0
    %2415 = vmatprep.subr.mxu0 0.0
    %2416 = vmatpush2.msra.mxu0 0.0
    %2417 = vmatprep.subr.mxu0 0.0
    %2418 = vmatpush2.msra.mxu0 0.0
    %2419 = vmatprep.subr.mxu0 0.0
    %2420 = vmatpush2.msra.mxu0 0.0
    %2421 = vmatprep.subr.mxu0 0.0
    %2422 = vmatpush2.msra.mxu0 0.0
    %2423 = vmatprep.subr.mxu0 0.0
    %2424 = vmatpush2.msra.mxu0 0.0
    %2425 = vmatprep.subr.mxu0 0.0
    %2426 = vmatpush2.msra.mxu0 0.0
    %2427 = vmatprep.subr.mxu0 0.0
    %2428 = vmatpush2.msra.mxu0 0.0
    %2429 = vmatprep.subr.mxu0 0.0
    %2430 = vmatpush2.msra.mxu0 0.0
    %2431 = vmatprep.subr.mxu0 0.0
    %2432 = vmatpush2.msra.mxu0 0.0
    %2433 = vmatprep.subr.mxu0 0.0
    %2434 = vmatpush2.msra.mxu0 0.0
    %2435 = vmatprep.subr.mxu0 0.0
    %2436 = vmatpush2.msra.mxu0 0.0
    %2437 = vmatprep.mubr.f32.mxu0 0.0
    %2438 = vmatmul.mubr.f32.gmra.mxu0 %v1940
    %v2439 = vpop.f32.mrf.mxu0
    %v2440 = vadd.f32 %v2369, %v2439
    %v2441 = vpop.f32.mrf.mxu0
    %v2442 = vadd.f32 %v2371, %v2441
    %2443 = vdwg.mxu0
    %2444 = vmatprep.subr.mxu0 %v431
    %2445 = vmatpush1.msra.mxu0 %v430
    %2446 = vmatprep.subr.mxu0 %v406
    %2447 = vmatpush1.msra.mxu0 %v405
    %2448 = vmatprep.subr.mxu0 %v381
    %2449 = vmatpush1.msra.mxu0 %v380
    %2450 = vmatprep.subr.mxu0 %v356
    %2451 = vmatpush1.msra.mxu0 %v355
    %2452 = vmatprep.subr.mxu0 %v331
    %2453 = vmatpush1.msra.mxu0 %v330
    %2454 = vmatprep.subr.mxu0 %v306
    %2455 = vmatpush1.msra.mxu0 %v305
    %2456 = vmatprep.subr.mxu0 %v281
    %2457 = vmatpush1.msra.mxu0 %v280
    %2458 = vmatprep.subr.mxu0 %v256
    %2459 = vmatpush1.msra.mxu0 %v255
    %2460 = vmatprep.subr.mxu0 %v231
    %2461 = vmatpush1.msra.mxu0 %v230
    %2462 = vmatprep.subr.mxu0 %v206
    %2463 = vmatpush1.msra.mxu0 %v205
    %2464 = vmatprep.subr.mxu0 %v181
    %2465 = vmatpush1.msra.mxu0 %v180
    %2466 = vmatprep.subr.mxu0 %v156
    %2467 = vmatpush1.msra.mxu0 %v155
    %2468 = vmatprep.subr.mxu0 %v131
    %2469 = vmatpush1.msra.mxu0 %v130
    %2470 = vmatprep.subr.mxu0 %v106
    %2471 = vmatpush1.msra.mxu0 %v105
    %2472 = vmatprep.subr.mxu0 %v81
    %2473 = vmatpush1.msra.mxu0 %v80
    %2474 = vmatprep.subr.mxu0 %v56
    %2475 = vmatpush1.msra.mxu0 %v55
    %2476 = vmatprep.subr.mxu0 %v831
    %2477 = vmatpush2.msra.mxu0 %v830
    %2478 = vmatprep.subr.mxu0 %v806
    %2479 = vmatpush2.msra.mxu0 %v805
    %2480 = vmatprep.subr.mxu0 %v781
    %2481 = vmatpush2.msra.mxu0 %v780
    %2482 = vmatprep.subr.mxu0 %v756
    %2483 = vmatpush2.msra.mxu0 %v755
    %2484 = vmatprep.subr.mxu0 %v731
    %2485 = vmatpush2.msra.mxu0 %v730
    %2486 = vmatprep.subr.mxu0 %v706
    %2487 = vmatpush2.msra.mxu0 %v705
    %2488 = vmatprep.subr.mxu0 %v681
    %2489 = vmatpush2.msra.mxu0 %v680
    %2490 = vmatprep.subr.mxu0 %v656
    %2491 = vmatpush2.msra.mxu0 %v655
    %2492 = vmatprep.subr.mxu0 %v631
    %2493 = vmatpush2.msra.mxu0 %v630
    %2494 = vmatprep.subr.mxu0 %v606
    %2495 = vmatpush2.msra.mxu0 %v605
    %2496 = vmatprep.subr.mxu0 %v581
    %2497 = vmatpush2.msra.mxu0 %v580
    %2498 = vmatprep.subr.mxu0 %v556
    %2499 = vmatpush2.msra.mxu0 %v555
    %2500 = vmatprep.subr.mxu0 %v531
    %2501 = vmatpush2.msra.mxu0 %v530
    %2502 = vmatprep.subr.mxu0 %v506
    %2503 = vmatpush2.msra.mxu0 %v505
    %2504 = vmatprep.subr.mxu0 %v481
    %2505 = vmatpush2.msra.mxu0 %v480
    %2506 = vmatprep.subr.mxu0 %v456
    %2507 = vmatpush2.msra.mxu0 %v455
    %2508 = vmatprep.mubr.f32.mxu0 %v1926
    %2509 = vmatmul.mubr.f32.gmra.mxu0 %v1918
    %v2510 = vpop.f32.mrf.mxu0
    %v2511 = vadd.f32 %v1803, %v2510
    %v2512 = vpop.f32.mrf.mxu0
    %v2513 = vadd.f32 %v1807, %v2512
    %2514 = vdwg.mxu0
    %2515 = vmatprep.subr.mxu0 %v1231
    %2516 = vmatpush1.msra.mxu0 %v1230
    %2517 = vmatprep.subr.mxu0 %v1206
    %2518 = vmatpush1.msra.mxu0 %v1205
    %2519 = vmatprep.subr.mxu0 %v1181
    %2520 = vmatpush1.msra.mxu0 %v1180
    %2521 = vmatprep.subr.mxu0 %v1156
    %2522 = vmatpush1.msra.mxu0 %v1155
    %2523 = vmatprep.subr.mxu0 %v1131
    %2524 = vmatpush1.msra.mxu0 %v1130
    %2525 = vmatprep.subr.mxu0 %v1106
    %2526 = vmatpush1.msra.mxu0 %v1105
    %2527 = vmatprep.subr.mxu0 %v1081
    %2528 = vmatpush1.msra.mxu0 %v1080
    %2529 = vmatprep.subr.mxu0 %v1056
    %2530 = vmatpush1.msra.mxu0 %v1055
    %2531 = vmatprep.subr.mxu0 %v1031
    %2532 = vmatpush1.msra.mxu0 %v1030
    %2533 = vmatprep.subr.mxu0 %v1006
    %2534 = vmatpush1.msra.mxu0 %v1005
    %2535 = vmatprep.subr.mxu0 %v981
    %2536 = vmatpush1.msra.mxu0 %v980
    %2537 = vmatprep.subr.mxu0 %v956
    %2538 = vmatpush1.msra.mxu0 %v955
    %2539 = vmatprep.subr.mxu0 %v931
    %2540 = vmatpush1.msra.mxu0 %v930
    %2541 = vmatprep.subr.mxu0 %v906
    %2542 = vmatpush1.msra.mxu0 %v905
    %2543 = vmatprep.subr.mxu0 %v881
    %2544 = vmatpush1.msra.mxu0 %v880
    %2545 = vmatprep.subr.mxu0 %v856
    %2546 = vmatpush1.msra.mxu0 %v855
    %2547 = vmatprep.subr.mxu0 %v1631
    %2548 = vmatpush2.msra.mxu0 %v1630
    %2549 = vmatprep.subr.mxu0 %v1606
    %2550 = vmatpush2.msra.mxu0 %v1605
    %2551 = vmatprep.subr.mxu0 %v1581
    %2552 = vmatpush2.msra.mxu0 %v1580
    %2553 = vmatprep.subr.mxu0 %v1556
    %2554 = vmatpush2.msra.mxu0 %v1555
    %2555 = vmatprep.subr.mxu0 %v1531
    %2556 = vmatpush2.msra.mxu0 %v1530
    %2557 = vmatprep.subr.mxu0 %v1506
    %2558 = vmatpush2.msra.mxu0 %v1505
    %2559 = vmatprep.subr.mxu0 %v1481
    %2560 = vmatpush2.msra.mxu0 %v1480
    %2561 = vmatprep.subr.mxu0 %v1456
    %2562 = vmatpush2.msra.mxu0 %v1455
    %2563 = vmatprep.subr.mxu0 %v1431
    %2564 = vmatpush2.msra.mxu0 %v1430
    %2565 = vmatprep.subr.mxu0 %v1406
    %2566 = vmatpush2.msra.mxu0 %v1405
    %2567 = vmatprep.subr.mxu0 %v1381
    %2568 = vmatpush2.msra.mxu0 %v1380
    %2569 = vmatprep.subr.mxu0 %v1356
    %2570 = vmatpush2.msra.mxu0 %v1355
    %2571 = vmatprep.subr.mxu0 %v1331
    %2572 = vmatpush2.msra.mxu0 %v1330
    %2573 = vmatprep.subr.mxu0 %v1306
    %2574 = vmatpush2.msra.mxu0 %v1305
    %2575 = vmatprep.subr.mxu0 %v1281
    %2576 = vmatpush2.msra.mxu0 %v1280
    %2577 = vmatprep.subr.mxu0 %v1256
    %2578 = vmatpush2.msra.mxu0 %v1255
    %2579 = vmatprep.mubr.f32.mxu0 %v1927
    %2580 = vmatmul.mubr.f32.gmra.mxu0 %v1925
    %v2581 = vpop.f32.mrf.mxu0
    %v2582 = vadd.f32 %v2511, %v2581
    %v2583 = vpop.f32.mrf.mxu0
    %v2584 = vadd.f32 %v2513, %v2583
    %2585 = vdwg.mxu0
    %2586 = vmatprep.subr.mxu0 0.0
    %2587 = vmatpush1.msra.mxu0 0.0
    %2588 = vmatprep.subr.mxu0 0.0
    %2589 = vmatpush1.msra.mxu0 0.0
    %2590 = vmatprep.subr.mxu0 0.0
    %2591 = vmatpush1.msra.mxu0 0.0
    %2592 = vmatprep.subr.mxu0 0.0
    %2593 = vmatpush1.msra.mxu0 0.0
    %2594 = vmatprep.subr.mxu0 0.0
    %2595 = vmatpush1.msra.mxu0 0.0
    %2596 = vmatprep.subr.mxu0 0.0
    %2597 = vmatpush1.msra.mxu0 0.0
    %2598 = vmatprep.subr.mxu0 0.0
    %2599 = vmatpush1.msra.mxu0 0.0
    %2600 = vmatprep.subr.mxu0 0.0
    %2601 = vmatpush1.msra.mxu0 0.0
    %2602 = vmatprep.subr.mxu0 0.0
    %2603 = vmatpush1.msra.mxu0 0.0
    %2604 = vmatprep.subr.mxu0 0.0
    %2605 = vmatpush1.msra.mxu0 0.0
    %2606 = vmatprep.subr.mxu0 0.0
    %2607 = vmatpush1.msra.mxu0 0.0
    %2608 = vmatprep.subr.mxu0 %v1959
    %2609 = vmatpush1.msra.mxu0 %v1956
    %2610 = vmatprep.subr.mxu0 %v1731
    %2611 = vmatpush1.msra.mxu0 %v1730
    %2612 = vmatprep.subr.mxu0 %v1706
    %2613 = vmatpush1.msra.mxu0 %v1705
    %2614 = vmatprep.subr.mxu0 %v1681
    %2615 = vmatpush1.msra.mxu0 %v1680
    %2616 = vmatprep.subr.mxu0 %v1656
    %2617 = vmatpush1.msra.mxu0 %v1655
    %2618 = vmatprep.subr.mxu0 0.0
    %2619 = vmatpush2.msra.mxu0 0.0
    %2620 = vmatprep.subr.mxu0 0.0
    %2621 = vmatpush2.msra.mxu0 0.0
    %2622 = vmatprep.subr.mxu0 0.0
    %2623 = vmatpush2.msra.mxu0 0.0
    %2624 = vmatprep.subr.mxu0 0.0
    %2625 = vmatpush2.msra.mxu0 0.0
    %2626 = vmatprep.subr.mxu0 0.0
    %2627 = vmatpush2.msra.mxu0 0.0
    %2628 = vmatprep.subr.mxu0 0.0
    %2629 = vmatpush2.msra.mxu0 0.0
    %2630 = vmatprep.subr.mxu0 0.0
    %2631 = vmatpush2.msra.mxu0 0.0
    %2632 = vmatprep.subr.mxu0 0.0
    %2633 = vmatpush2.msra.mxu0 0.0
    %2634 = vmatprep.subr.mxu0 0.0
    %2635 = vmatpush2.msra.mxu0 0.0
    %2636 = vmatprep.subr.mxu0 0.0
    %2637 = vmatpush2.msra.mxu0 0.0
    %2638 = vmatprep.subr.mxu0 0.0
    %2639 = vmatpush2.msra.mxu0 0.0
    %2640 = vmatprep.subr.mxu0 0.0
    %2641 = vmatpush2.msra.mxu0 0.0
    %2642 = vmatprep.subr.mxu0 0.0
    %2643 = vmatpush2.msra.mxu0 0.0
    %2644 = vmatprep.subr.mxu0 0.0
    %2645 = vmatpush2.msra.mxu0 0.0
    %2646 = vmatprep.subr.mxu0 0.0
    %2647 = vmatpush2.msra.mxu0 0.0
    %2648 = vmatprep.subr.mxu0 0.0
    %2649 = vmatpush2.msra.mxu0 0.0
    %2650 = vmatprep.mubr.f32.mxu0 0.0
    %2651 = vmatmul.mubr.f32.gmra.mxu0 %v1940
    %v2652 = vpop.f32.mrf.mxu0
    %v2653 = vadd.f32 %v2582, %v2652
    %v2654 = vpop.f32.mrf.mxu0
    %v2655 = vadd.f32 %v2584, %v2654
    %2656 = vdwg.mxu0
    %2657 = vmatprep.subr.mxu0 %v433
    %2658 = vmatpush1.msra.mxu0 %v432
    %2659 = vmatprep.subr.mxu0 %v408
    %2660 = vmatpush1.msra.mxu0 %v407
    %2661 = vmatprep.subr.mxu0 %v383
    %2662 = vmatpush1.msra.mxu0 %v382
    %2663 = vmatprep.subr.mxu0 %v358
    %2664 = vmatpush1.msra.mxu0 %v357
    %2665 = vmatprep.subr.mxu0 %v333
    %2666 = vmatpush1.msra.mxu0 %v332
    %2667 = vmatprep.subr.mxu0 %v308
    %2668 = vmatpush1.msra.mxu0 %v307
    %2669 = vmatprep.subr.mxu0 %v283
    %2670 = vmatpush1.msra.mxu0 %v282
    %2671 = vmatprep.subr.mxu0 %v258
    %2672 = vmatpush1.msra.mxu0 %v257
    %2673 = vmatprep.subr.mxu0 %v233
    %2674 = vmatpush1.msra.mxu0 %v232
    %2675 = vmatprep.subr.mxu0 %v208
    %2676 = vmatpush1.msra.mxu0 %v207
    %2677 = vmatprep.subr.mxu0 %v183
    %2678 = vmatpush1.msra.mxu0 %v182
    %2679 = vmatprep.subr.mxu0 %v158
    %2680 = vmatpush1.msra.mxu0 %v157
    %2681 = vmatprep.subr.mxu0 %v133
    %2682 = vmatpush1.msra.mxu0 %v132
    %2683 = vmatprep.subr.mxu0 %v108
    %2684 = vmatpush1.msra.mxu0 %v107
    %2685 = vmatprep.subr.mxu0 %v83
    %2686 = vmatpush1.msra.mxu0 %v82
    %2687 = vmatprep.subr.mxu0 %v58
    %2688 = vmatpush1.msra.mxu0 %v57
    %2689 = vmatprep.subr.mxu0 %v833
    %2690 = vmatpush2.msra.mxu0 %v832
    %2691 = vmatprep.subr.mxu0 %v808
    %2692 = vmatpush2.msra.mxu0 %v807
    %2693 = vmatprep.subr.mxu0 %v783
    %2694 = vmatpush2.msra.mxu0 %v782
    %2695 = vmatprep.subr.mxu0 %v758
    %2696 = vmatpush2.msra.mxu0 %v757
    %2697 = vmatprep.subr.mxu0 %v733
    %2698 = vmatpush2.msra.mxu0 %v732
    %2699 = vmatprep.subr.mxu0 %v708
    %2700 = vmatpush2.msra.mxu0 %v707
    %2701 = vmatprep.subr.mxu0 %v683
    %2702 = vmatpush2.msra.mxu0 %v682
    %2703 = vmatprep.subr.mxu0 %v658
    %2704 = vmatpush2.msra.mxu0 %v657
    %2705 = vmatprep.subr.mxu0 %v633
    %2706 = vmatpush2.msra.mxu0 %v632
    %2707 = vmatprep.subr.mxu0 %v608
    %2708 = vmatpush2.msra.mxu0 %v607
    %2709 = vmatprep.subr.mxu0 %v583
    %2710 = vmatpush2.msra.mxu0 %v582
    %2711 = vmatprep.subr.mxu0 %v558
    %2712 = vmatpush2.msra.mxu0 %v557
    %2713 = vmatprep.subr.mxu0 %v533
    %2714 = vmatpush2.msra.mxu0 %v532
    %2715 = vmatprep.subr.mxu0 %v508
    %2716 = vmatpush2.msra.mxu0 %v507
    %2717 = vmatprep.subr.mxu0 %v483
    %2718 = vmatpush2.msra.mxu0 %v482
    %2719 = vmatprep.subr.mxu0 %v458
    %2720 = vmatpush2.msra.mxu0 %v457
    %2721 = vmatprep.mubr.f32.mxu0 %v1926
    %2722 = vmatmul.mubr.f32.gmra.mxu0 %v1918
    %v2723 = vpop.f32.mrf.mxu0
    %v2724 = vadd.f32 %v1811, %v2723
    %v2725 = vpop.f32.mrf.mxu0
    %v2726 = vadd.f32 %v1815, %v2725
    %2727 = vdwg.mxu0
    %2728 = vmatprep.subr.mxu0 %v1233
    %2729 = vmatpush1.msra.mxu0 %v1232
    %2730 = vmatprep.subr.mxu0 %v1208
    %2731 = vmatpush1.msra.mxu0 %v1207
    %2732 = vmatprep.subr.mxu0 %v1183
    %2733 = vmatpush1.msra.mxu0 %v1182
    %2734 = vmatprep.subr.mxu0 %v1158
    %2735 = vmatpush1.msra.mxu0 %v1157
    %2736 = vmatprep.subr.mxu0 %v1133
    %2737 = vmatpush1.msra.mxu0 %v1132
    %2738 = vmatprep.subr.mxu0 %v1108
    %2739 = vmatpush1.msra.mxu0 %v1107
    %2740 = vmatprep.subr.mxu0 %v1083
    %2741 = vmatpush1.msra.mxu0 %v1082
    %2742 = vmatprep.subr.mxu0 %v1058
    %2743 = vmatpush1.msra.mxu0 %v1057
    %2744 = vmatprep.subr.mxu0 %v1033
    %2745 = vmatpush1.msra.mxu0 %v1032
    %2746 = vmatprep.subr.mxu0 %v1008
    %2747 = vmatpush1.msra.mxu0 %v1007
    %2748 = vmatprep.subr.mxu0 %v983
    %2749 = vmatpush1.msra.mxu0 %v982
    %2750 = vmatprep.subr.mxu0 %v958
    %2751 = vmatpush1.msra.mxu0 %v957
    %2752 = vmatprep.subr.mxu0 %v933
    %2753 = vmatpush1.msra.mxu0 %v932
    %2754 = vmatprep.subr.mxu0 %v908
    %2755 = vmatpush1.msra.mxu0 %v907
    %2756 = vmatprep.subr.mxu0 %v883
    %2757 = vmatpush1.msra.mxu0 %v882
    %2758 = vmatprep.subr.mxu0 %v858
    %2759 = vmatpush1.msra.mxu0 %v857
    %2760 = vmatprep.subr.mxu0 %v1633
    %2761 = vmatpush2.msra.mxu0 %v1632
    %2762 = vmatprep.subr.mxu0 %v1608
    %2763 = vmatpush2.msra.mxu0 %v1607
    %2764 = vmatprep.subr.mxu0 %v1583
    %2765 = vmatpush2.msra.mxu0 %v1582
    %2766 = vmatprep.subr.mxu0 %v1558
    %2767 = vmatpush2.msra.mxu0 %v1557
    %2768 = vmatprep.subr.mxu0 %v1533
    %2769 = vmatpush2.msra.mxu0 %v1532
    %2770 = vmatprep.subr.mxu0 %v1508
    %2771 = vmatpush2.msra.mxu0 %v1507
    %2772 = vmatprep.subr.mxu0 %v1483
    %2773 = vmatpush2.msra.mxu0 %v1482
    %2774 = vmatprep.subr.mxu0 %v1458
    %2775 = vmatpush2.msra.mxu0 %v1457
    %2776 = vmatprep.subr.mxu0 %v1433
    %2777 = vmatpush2.msra.mxu0 %v1432
    %2778 = vmatprep.subr.mxu0 %v1408
    %2779 = vmatpush2.msra.mxu0 %v1407
    %2780 = vmatprep.subr.mxu0 %v1383
    %2781 = vmatpush2.msra.mxu0 %v1382
    %2782 = vmatprep.subr.mxu0 %v1358
    %2783 = vmatpush2.msra.mxu0 %v1357
    %2784 = vmatprep.subr.mxu0 %v1333
    %2785 = vmatpush2.msra.mxu0 %v1332
    %2786 = vmatprep.subr.mxu0 %v1308
    %2787 = vmatpush2.msra.mxu0 %v1307
    %2788 = vmatprep.subr.mxu0 %v1283
    %2789 = vmatpush2.msra.mxu0 %v1282
    %2790 = vmatprep.subr.mxu0 %v1258
    %2791 = vmatpush2.msra.mxu0 %v1257
    %2792 = vmatprep.mubr.f32.mxu0 %v1927
    %2793 = vmatmul.mubr.f32.gmra.mxu0 %v1925
    %v2794 = vpop.f32.mrf.mxu0
    %v2795 = vadd.f32 %v2724, %v2794
    %v2796 = vpop.f32.mrf.mxu0
    %v2797 = vadd.f32 %v2726, %v2796
    %2798 = vdwg.mxu0
    %2799 = vmatprep.subr.mxu0 0.0
    %2800 = vmatpush1.msra.mxu0 0.0
    %2801 = vmatprep.subr.mxu0 0.0
    %2802 = vmatpush1.msra.mxu0 0.0
    %2803 = vmatprep.subr.mxu0 0.0
    %2804 = vmatpush1.msra.mxu0 0.0
    %2805 = vmatprep.subr.mxu0 0.0
    %2806 = vmatpush1.msra.mxu0 0.0
    %2807 = vmatprep.subr.mxu0 0.0
    %2808 = vmatpush1.msra.mxu0 0.0
    %2809 = vmatprep.subr.mxu0 0.0
    %2810 = vmatpush1.msra.mxu0 0.0
    %2811 = vmatprep.subr.mxu0 0.0
    %2812 = vmatpush1.msra.mxu0 0.0
    %2813 = vmatprep.subr.mxu0 0.0
    %2814 = vmatpush1.msra.mxu0 0.0
    %2815 = vmatprep.subr.mxu0 0.0
    %2816 = vmatpush1.msra.mxu0 0.0
    %2817 = vmatprep.subr.mxu0 0.0
    %2818 = vmatpush1.msra.mxu0 0.0
    %2819 = vmatprep.subr.mxu0 0.0
    %2820 = vmatpush1.msra.mxu0 0.0
    %2821 = vmatprep.subr.mxu0 %v1965
    %2822 = vmatpush1.msra.mxu0 %v1962
    %2823 = vmatprep.subr.mxu0 %v1733
    %2824 = vmatpush1.msra.mxu0 %v1732
    %2825 = vmatprep.subr.mxu0 %v1708
    %2826 = vmatpush1.msra.mxu0 %v1707
    %2827 = vmatprep.subr.mxu0 %v1683
    %2828 = vmatpush1.msra.mxu0 %v1682
    %2829 = vmatprep.subr.mxu0 %v1658
    %2830 = vmatpush1.msra.mxu0 %v1657
    %2831 = vmatprep.subr.mxu0 0.0
    %2832 = vmatpush2.msra.mxu0 0.0
    %2833 = vmatprep.subr.mxu0 0.0
    %2834 = vmatpush2.msra.mxu0 0.0
    %2835 = vmatprep.subr.mxu0 0.0
    %2836 = vmatpush2.msra.mxu0 0.0
    %2837 = vmatprep.subr.mxu0 0.0
    %2838 = vmatpush2.msra.mxu0 0.0
    %2839 = vmatprep.subr.mxu0 0.0
    %2840 = vmatpush2.msra.mxu0 0.0
    %2841 = vmatprep.subr.mxu0 0.0
    %2842 = vmatpush2.msra.mxu0 0.0
    %2843 = vmatprep.subr.mxu0 0.0
    %2844 = vmatpush2.msra.mxu0 0.0
    %2845 = vmatprep.subr.mxu0 0.0
    %2846 = vmatpush2.msra.mxu0 0.0
    %2847 = vmatprep.subr.mxu0 0.0
    %2848 = vmatpush2.msra.mxu0 0.0
    %2849 = vmatprep.subr.mxu0 0.0
    %2850 = vmatpush2.msra.mxu0 0.0
    %2851 = vmatprep.subr.mxu0 0.0
    %2852 = vmatpush2.msra.mxu0 0.0
    %2853 = vmatprep.subr.mxu0 0.0
    %2854 = vmatpush2.msra.mxu0 0.0
    %2855 = vmatprep.subr.mxu0 0.0
    %2856 = vmatpush2.msra.mxu0 0.0
    %2857 = vmatprep.subr.mxu0 0.0
    %2858 = vmatpush2.msra.mxu0 0.0
    %2859 = vmatprep.subr.mxu0 0.0
    %2860 = vmatpush2.msra.mxu0 0.0
    %2861 = vmatprep.subr.mxu0 0.0
    %2862 = vmatpush2.msra.mxu0 0.0
    %2863 = vmatprep.mubr.f32.mxu0 0.0
    %2864 = vmatmul.mubr.f32.gmra.mxu0 %v1940
    %v2865 = vpop.f32.mrf.mxu0
    %v2866 = vadd.f32 %v2795, %v2865
    %v2867 = vpop.f32.mrf.mxu0
    %v2868 = vadd.f32 %v2797, %v2867
    %2869 = vdwg.mxu0
    %2870 = vmatprep.subr.mxu0 %v435
    %2871 = vmatpush1.msra.mxu0 %v434
    %2872 = vmatprep.subr.mxu0 %v410
    %2873 = vmatpush1.msra.mxu0 %v409
    %2874 = vmatprep.subr.mxu0 %v385
    %2875 = vmatpush1.msra.mxu0 %v384
    %2876 = vmatprep.subr.mxu0 %v360
    %2877 = vmatpush1.msra.mxu0 %v359
    %2878 = vmatprep.subr.mxu0 %v335
    %2879 = vmatpush1.msra.mxu0 %v334
    %2880 = vmatprep.subr.mxu0 %v310
    %2881 = vmatpush1.msra.mxu0 %v309
    %2882 = vmatprep.subr.mxu0 %v285
    %2883 = vmatpush1.msra.mxu0 %v284
    %2884 = vmatprep.subr.mxu0 %v260
    %2885 = vmatpush1.msra.mxu0 %v259
    %2886 = vmatprep.subr.mxu0 %v235
    %2887 = vmatpush1.msra.mxu0 %v234
    %2888 = vmatprep.subr.mxu0 %v210
    %2889 = vmatpush1.msra.mxu0 %v209
    %2890 = vmatprep.subr.mxu0 %v185
    %2891 = vmatpush1.msra.mxu0 %v184
    %2892 = vmatprep.subr.mxu0 %v160
    %2893 = vmatpush1.msra.mxu0 %v159
    %2894 = vmatprep.subr.mxu0 %v135
    %2895 = vmatpush1.msra.mxu0 %v134
    %2896 = vmatprep.subr.mxu0 %v110
    %2897 = vmatpush1.msra.mxu0 %v109
    %2898 = vmatprep.subr.mxu0 %v85
    %2899 = vmatpush1.msra.mxu0 %v84
    %2900 = vmatprep.subr.mxu0 %v60
    %2901 = vmatpush1.msra.mxu0 %v59
    %2902 = vmatprep.subr.mxu0 %v835
    %2903 = vmatpush2.msra.mxu0 %v834
    %2904 = vmatprep.subr.mxu0 %v810
    %2905 = vmatpush2.msra.mxu0 %v809
    %2906 = vmatprep.subr.mxu0 %v785
    %2907 = vmatpush2.msra.mxu0 %v784
    %2908 = vmatprep.subr.mxu0 %v760
    %2909 = vmatpush2.msra.mxu0 %v759
    %2910 = vmatprep.subr.mxu0 %v735
    %2911 = vmatpush2.msra.mxu0 %v734
    %2912 = vmatprep.subr.mxu0 %v710
    %2913 = vmatpush2.msra.mxu0 %v709
    %2914 = vmatprep.subr.mxu0 %v685
    %2915 = vmatpush2.msra.mxu0 %v684
    %2916 = vmatprep.subr.mxu0 %v660
    %2917 = vmatpush2.msra.mxu0 %v659
    %2918 = vmatprep.subr.mxu0 %v635
    %2919 = vmatpush2.msra.mxu0 %v634
    %2920 = vmatprep.subr.mxu0 %v610
    %2921 = vmatpush2.msra.mxu0 %v609
    %2922 = vmatprep.subr.mxu0 %v585
    %2923 = vmatpush2.msra.mxu0 %v584
    %2924 = vmatprep.subr.mxu0 %v560
    %2925 = vmatpush2.msra.mxu0 %v559
    %2926 = vmatprep.subr.mxu0 %v535
    %2927 = vmatpush2.msra.mxu0 %v534
    %2928 = vmatprep.subr.mxu0 %v510
    %2929 = vmatpush2.msra.mxu0 %v509
    %2930 = vmatprep.subr.mxu0 %v485
    %2931 = vmatpush2.msra.mxu0 %v484
    %2932 = vmatprep.subr.mxu0 %v460
    %2933 = vmatpush2.msra.mxu0 %v459
    %2934 = vmatprep.mubr.f32.mxu0 %v1926
    %2935 = vmatmul.mubr.f32.gmra.mxu0 %v1918
    %v2936 = vpop.f32.mrf.mxu0
    %v2937 = vadd.f32 %v1819, %v2936
    %v2938 = vpop.f32.mrf.mxu0
    %v2939 = vadd.f32 %v1823, %v2938
    %2940 = vdwg.mxu0
    %2941 = vmatprep.subr.mxu0 %v1235
    %2942 = vmatpush1.msra.mxu0 %v1234
    %2943 = vmatprep.subr.mxu0 %v1210
    %2944 = vmatpush1.msra.mxu0 %v1209
    %2945 = vmatprep.subr.mxu0 %v1185
    %2946 = vmatpush1.msra.mxu0 %v1184
    %2947 = vmatprep.subr.mxu0 %v1160
    %2948 = vmatpush1.msra.mxu0 %v1159
    %2949 = vmatprep.subr.mxu0 %v1135
    %2950 = vmatpush1.msra.mxu0 %v1134
    %2951 = vmatprep.subr.mxu0 %v1110
    %2952 = vmatpush1.msra.mxu0 %v1109
    %2953 = vmatprep.subr.mxu0 %v1085
    %2954 = vmatpush1.msra.mxu0 %v1084
    %2955 = vmatprep.subr.mxu0 %v1060
    %2956 = vmatpush1.msra.mxu0 %v1059
    %2957 = vmatprep.subr.mxu0 %v1035
    %2958 = vmatpush1.msra.mxu0 %v1034
    %2959 = vmatprep.subr.mxu0 %v1010
    %2960 = vmatpush1.msra.mxu0 %v1009
    %2961 = vmatprep.subr.mxu0 %v985
    %2962 = vmatpush1.msra.mxu0 %v984
    %2963 = vmatprep.subr.mxu0 %v960
    %2964 = vmatpush1.msra.mxu0 %v959
    %2965 = vmatprep.subr.mxu0 %v935
    %2966 = vmatpush1.msra.mxu0 %v934
    %2967 = vmatprep.subr.mxu0 %v910
    %2968 = vmatpush1.msra.mxu0 %v909
    %2969 = vmatprep.subr.mxu0 %v885
    %2970 = vmatpush1.msra.mxu0 %v884
    %2971 = vmatprep.subr.mxu0 %v860
    %2972 = vmatpush1.msra.mxu0 %v859
    %2973 = vmatprep.subr.mxu0 %v1635
    %2974 = vmatpush2.msra.mxu0 %v1634
    %2975 = vmatprep.subr.mxu0 %v1610
    %2976 = vmatpush2.msra.mxu0 %v1609
    %2977 = vmatprep.subr.mxu0 %v1585
    %2978 = vmatpush2.msra.mxu0 %v1584
    %2979 = vmatprep.subr.mxu0 %v1560
    %2980 = vmatpush2.msra.mxu0 %v1559
    %2981 = vmatprep.subr.mxu0 %v1535
    %2982 = vmatpush2.msra.mxu0 %v1534
    %2983 = vmatprep.subr.mxu0 %v1510
    %2984 = vmatpush2.msra.mxu0 %v1509
    %2985 = vmatprep.subr.mxu0 %v1485
    %2986 = vmatpush2.msra.mxu0 %v1484
    %2987 = vmatprep.subr.mxu0 %v1460
    %2988 = vmatpush2.msra.mxu0 %v1459
    %2989 = vmatprep.subr.mxu0 %v1435
    %2990 = vmatpush2.msra.mxu0 %v1434
    %2991 = vmatprep.subr.mxu0 %v1410
    %2992 = vmatpush2.msra.mxu0 %v1409
    %2993 = vmatprep.subr.mxu0 %v1385
    %2994 = vmatpush2.msra.mxu0 %v1384
    %2995 = vmatprep.subr.mxu0 %v1360
    %2996 = vmatpush2.msra.mxu0 %v1359
    %2997 = vmatprep.subr.mxu0 %v1335
    %2998 = vmatpush2.msra.mxu0 %v1334
    %2999 = vmatprep.subr.mxu0 %v1310
    %3000 = vmatpush2.msra.mxu0 %v1309
    %3001 = vmatprep.subr.mxu0 %v1285
    %3002 = vmatpush2.msra.mxu0 %v1284
    %3003 = vmatprep.subr.mxu0 %v1260
    %3004 = vmatpush2.msra.mxu0 %v1259
    %3005 = vmatprep.mubr.f32.mxu0 %v1927
    %3006 = vmatmul.mubr.f32.gmra.mxu0 %v1925
    %v3007 = vpop.f32.mrf.mxu0
    %v3008 = vadd.f32 %v2937, %v3007
    %v3009 = vpop.f32.mrf.mxu0
    %v3010 = vadd.f32 %v2939, %v3009
    %3011 = vdwg.mxu0
    %3012 = vmatprep.subr.mxu0 0.0
    %3013 = vmatpush1.msra.mxu0 0.0
    %3014 = vmatprep.subr.mxu0 0.0
    %3015 = vmatpush1.msra.mxu0 0.0
    %3016 = vmatprep.subr.mxu0 0.0
    %3017 = vmatpush1.msra.mxu0 0.0
    %3018 = vmatprep.subr.mxu0 0.0
    %3019 = vmatpush1.msra.mxu0 0.0
    %3020 = vmatprep.subr.mxu0 0.0
    %3021 = vmatpush1.msra.mxu0 0.0
    %3022 = vmatprep.subr.mxu0 0.0
    %3023 = vmatpush1.msra.mxu0 0.0
    %3024 = vmatprep.subr.mxu0 0.0
    %3025 = vmatpush1.msra.mxu0 0.0
    %3026 = vmatprep.subr.mxu0 0.0
    %3027 = vmatpush1.msra.mxu0 0.0
    %3028 = vmatprep.subr.mxu0 0.0
    %3029 = vmatpush1.msra.mxu0 0.0
    %3030 = vmatprep.subr.mxu0 0.0
    %3031 = vmatpush1.msra.mxu0 0.0
    %3032 = vmatprep.subr.mxu0 0.0
    %3033 = vmatpush1.msra.mxu0 0.0
    %3034 = vmatprep.subr.mxu0 %v1971
    %3035 = vmatpush1.msra.mxu0 %v1968
    %3036 = vmatprep.subr.mxu0 %v1735
    %3037 = vmatpush1.msra.mxu0 %v1734
    %3038 = vmatprep.subr.mxu0 %v1710
    %3039 = vmatpush1.msra.mxu0 %v1709
    %3040 = vmatprep.subr.mxu0 %v1685
    %3041 = vmatpush1.msra.mxu0 %v1684
    %3042 = vmatprep.subr.mxu0 %v1660
    %3043 = vmatpush1.msra.mxu0 %v1659
    %3044 = vmatprep.subr.mxu0 0.0
    %3045 = vmatpush2.msra.mxu0 0.0
    %3046 = vmatprep.subr.mxu0 0.0
    %3047 = vmatpush2.msra.mxu0 0.0
    %3048 = vmatprep.subr.mxu0 0.0
    %3049 = vmatpush2.msra.mxu0 0.0
    %3050 = vmatprep.subr.mxu0 0.0
    %3051 = vmatpush2.msra.mxu0 0.0
    %3052 = vmatprep.subr.mxu0 0.0
    %3053 = vmatpush2.msra.mxu0 0.0
    %3054 = vmatprep.subr.mxu0 0.0
    %3055 = vmatpush2.msra.mxu0 0.0
    %3056 = vmatprep.subr.mxu0 0.0
    %3057 = vmatpush2.msra.mxu0 0.0
    %3058 = vmatprep.subr.mxu0 0.0
    %3059 = vmatpush2.msra.mxu0 0.0
    %3060 = vmatprep.subr.mxu0 0.0
    %3061 = vmatpush2.msra.mxu0 0.0
    %3062 = vmatprep.subr.mxu0 0.0
    %3063 = vmatpush2.msra.mxu0 0.0
    %3064 = vmatprep.subr.mxu0 0.0
    %3065 = vmatpush2.msra.mxu0 0.0
    %3066 = vmatprep.subr.mxu0 0.0
    %3067 = vmatpush2.msra.mxu0 0.0
    %3068 = vmatprep.subr.mxu0 0.0
    %3069 = vmatpush2.msra.mxu0 0.0
    %3070 = vmatprep.subr.mxu0 0.0
    %3071 = vmatpush2.msra.mxu0 0.0
    %3072 = vmatprep.subr.mxu0 0.0
    %3073 = vmatpush2.msra.mxu0 0.0
    %3074 = vmatprep.subr.mxu0 0.0
    %3075 = vmatpush2.msra.mxu0 0.0
    %3076 = vmatprep.mubr.f32.mxu0 0.0
    %3077 = vmatmul.mubr.f32.gmra.mxu0 %v1940
    %v3078 = vpop.f32.mrf.mxu0
    %v3079 = vadd.f32 %v3008, %v3078
    %v3080 = vpop.f32.mrf.mxu0
    %v3081 = vadd.f32 %v3010, %v3080
    %3082 = vdwg.mxu0
    %3083 = vmatprep.subr.mxu0 %v437
    %3084 = vmatpush1.msra.mxu0 %v436
    %3085 = vmatprep.subr.mxu0 %v412
    %3086 = vmatpush1.msra.mxu0 %v411
    %3087 = vmatprep.subr.mxu0 %v387
    %3088 = vmatpush1.msra.mxu0 %v386
    %3089 = vmatprep.subr.mxu0 %v362
    %3090 = vmatpush1.msra.mxu0 %v361
    %3091 = vmatprep.subr.mxu0 %v337
    %3092 = vmatpush1.msra.mxu0 %v336
    %3093 = vmatprep.subr.mxu0 %v312
    %3094 = vmatpush1.msra.mxu0 %v311
    %3095 = vmatprep.subr.mxu0 %v287
    %3096 = vmatpush1.msra.mxu0 %v286
    %3097 = vmatprep.subr.mxu0 %v262
    %3098 = vmatpush1.msra.mxu0 %v261
    %3099 = vmatprep.subr.mxu0 %v237
    %3100 = vmatpush1.msra.mxu0 %v236
    %3101 = vmatprep.subr.mxu0 %v212
    %3102 = vmatpush1.msra.mxu0 %v211
    %3103 = vmatprep.subr.mxu0 %v187
    %3104 = vmatpush1.msra.mxu0 %v186
    %3105 = vmatprep.subr.mxu0 %v162
    %3106 = vmatpush1.msra.mxu0 %v161
    %3107 = vmatprep.subr.mxu0 %v137
    %3108 = vmatpush1.msra.mxu0 %v136
    %3109 = vmatprep.subr.mxu0 %v112
    %3110 = vmatpush1.msra.mxu0 %v111
    %3111 = vmatprep.subr.mxu0 %v87
    %3112 = vmatpush1.msra.mxu0 %v86
    %3113 = vmatprep.subr.mxu0 %v62
    %3114 = vmatpush1.msra.mxu0 %v61
    %3115 = vmatprep.subr.mxu0 %v837
    %3116 = vmatpush2.msra.mxu0 %v836
    %3117 = vmatprep.subr.mxu0 %v812
    %3118 = vmatpush2.msra.mxu0 %v811
    %3119 = vmatprep.subr.mxu0 %v787
    %3120 = vmatpush2.msra.mxu0 %v786
    %3121 = vmatprep.subr.mxu0 %v762
    %3122 = vmatpush2.msra.mxu0 %v761
    %3123 = vmatprep.subr.mxu0 %v737
    %3124 = vmatpush2.msra.mxu0 %v736
    %3125 = vmatprep.subr.mxu0 %v712
    %3126 = vmatpush2.msra.mxu0 %v711
    %3127 = vmatprep.subr.mxu0 %v687
    %3128 = vmatpush2.msra.mxu0 %v686
    %3129 = vmatprep.subr.mxu0 %v662
    %3130 = vmatpush2.msra.mxu0 %v661
    %3131 = vmatprep.subr.mxu0 %v637
    %3132 = vmatpush2.msra.mxu0 %v636
    %3133 = vmatprep.subr.mxu0 %v612
    %3134 = vmatpush2.msra.mxu0 %v611
    %3135 = vmatprep.subr.mxu0 %v587
    %3136 = vmatpush2.msra.mxu0 %v586
    %3137 = vmatprep.subr.mxu0 %v562
    %3138 = vmatpush2.msra.mxu0 %v561
    %3139 = vmatprep.subr.mxu0 %v537
    %3140 = vmatpush2.msra.mxu0 %v536
    %3141 = vmatprep.subr.mxu0 %v512
    %3142 = vmatpush2.msra.mxu0 %v511
    %3143 = vmatprep.subr.mxu0 %v487
    %3144 = vmatpush2.msra.mxu0 %v486
    %3145 = vmatprep.subr.mxu0 %v462
    %3146 = vmatpush2.msra.mxu0 %v461
    %3147 = vmatprep.mubr.f32.mxu0 %v1926
    %3148 = vmatmul.mubr.f32.gmra.mxu0 %v1918
    %v3149 = vpop.f32.mrf.mxu0
    %v3150 = vadd.f32 %v1827, %v3149
    %v3151 = vpop.f32.mrf.mxu0
    %v3152 = vadd.f32 %v1831, %v3151
    %3153 = vdwg.mxu0
    %3154 = vmatprep.subr.mxu0 %v1237
    %3155 = vmatpush1.msra.mxu0 %v1236
    %3156 = vmatprep.subr.mxu0 %v1212
    %3157 = vmatpush1.msra.mxu0 %v1211
    %3158 = vmatprep.subr.mxu0 %v1187
    %3159 = vmatpush1.msra.mxu0 %v1186
    %3160 = vmatprep.subr.mxu0 %v1162
    %3161 = vmatpush1.msra.mxu0 %v1161
    %3162 = vmatprep.subr.mxu0 %v1137
    %3163 = vmatpush1.msra.mxu0 %v1136
    %3164 = vmatprep.subr.mxu0 %v1112
    %3165 = vmatpush1.msra.mxu0 %v1111
    %3166 = vmatprep.subr.mxu0 %v1087
    %3167 = vmatpush1.msra.mxu0 %v1086
    %3168 = vmatprep.subr.mxu0 %v1062
    %3169 = vmatpush1.msra.mxu0 %v1061
    %3170 = vmatprep.subr.mxu0 %v1037
    %3171 = vmatpush1.msra.mxu0 %v1036
    %3172 = vmatprep.subr.mxu0 %v1012
    %3173 = vmatpush1.msra.mxu0 %v1011
    %3174 = vmatprep.subr.mxu0 %v987
    %3175 = vmatpush1.msra.mxu0 %v986
    %3176 = vmatprep.subr.mxu0 %v962
    %3177 = vmatpush1.msra.mxu0 %v961
    %3178 = vmatprep.subr.mxu0 %v937
    %3179 = vmatpush1.msra.mxu0 %v936
    %3180 = vmatprep.subr.mxu0 %v912
    %3181 = vmatpush1.msra.mxu0 %v911
    %3182 = vmatprep.subr.mxu0 %v887
    %3183 = vmatpush1.msra.mxu0 %v886
    %3184 = vmatprep.subr.mxu0 %v862
    %3185 = vmatpush1.msra.mxu0 %v861
    %3186 = vmatprep.subr.mxu0 %v1637
    %3187 = vmatpush2.msra.mxu0 %v1636
    %3188 = vmatprep.subr.mxu0 %v1612
    %3189 = vmatpush2.msra.mxu0 %v1611
    %3190 = vmatprep.subr.mxu0 %v1587
    %3191 = vmatpush2.msra.mxu0 %v1586
    %3192 = vmatprep.subr.mxu0 %v1562
    %3193 = vmatpush2.msra.mxu0 %v1561
    %3194 = vmatprep.subr.mxu0 %v1537
    %3195 = vmatpush2.msra.mxu0 %v1536
    %3196 = vmatprep.subr.mxu0 %v1512
    %3197 = vmatpush2.msra.mxu0 %v1511
    %3198 = vmatprep.subr.mxu0 %v1487
    %3199 = vmatpush2.msra.mxu0 %v1486
    %3200 = vmatprep.subr.mxu0 %v1462
    %3201 = vmatpush2.msra.mxu0 %v1461
    %3202 = vmatprep.subr.mxu0 %v1437
    %3203 = vmatpush2.msra.mxu0 %v1436
    %3204 = vmatprep.subr.mxu0 %v1412
    %3205 = vmatpush2.msra.mxu0 %v1411
    %3206 = vmatprep.subr.mxu0 %v1387
    %3207 = vmatpush2.msra.mxu0 %v1386
    %3208 = vmatprep.subr.mxu0 %v1362
    %3209 = vmatpush2.msra.mxu0 %v1361
    %3210 = vmatprep.subr.mxu0 %v1337
    %3211 = vmatpush2.msra.mxu0 %v1336
    %3212 = vmatprep.subr.mxu0 %v1312
    %3213 = vmatpush2.msra.mxu0 %v1311
    %3214 = vmatprep.subr.mxu0 %v1287
    %3215 = vmatpush2.msra.mxu0 %v1286
    %3216 = vmatprep.subr.mxu0 %v1262
    %3217 = vmatpush2.msra.mxu0 %v1261
    %3218 = vmatprep.mubr.f32.mxu0 %v1927
    %3219 = vmatmul.mubr.f32.gmra.mxu0 %v1925
    %v3220 = vpop.f32.mrf.mxu0
    %v3221 = vadd.f32 %v3150, %v3220
    %v3222 = vpop.f32.mrf.mxu0
    %v3223 = vadd.f32 %v3152, %v3222
    %3224 = vdwg.mxu0
    %3225 = vmatprep.subr.mxu0 0.0
    %3226 = vmatpush1.msra.mxu0 0.0
    %3227 = vmatprep.subr.mxu0 0.0
    %3228 = vmatpush1.msra.mxu0 0.0
    %3229 = vmatprep.subr.mxu0 0.0
    %3230 = vmatpush1.msra.mxu0 0.0
    %3231 = vmatprep.subr.mxu0 0.0
    %3232 = vmatpush1.msra.mxu0 0.0
    %3233 = vmatprep.subr.mxu0 0.0
    %3234 = vmatpush1.msra.mxu0 0.0
    %3235 = vmatprep.subr.mxu0 0.0
    %3236 = vmatpush1.msra.mxu0 0.0
    %3237 = vmatprep.subr.mxu0 0.0
    %3238 = vmatpush1.msra.mxu0 0.0
    %3239 = vmatprep.subr.mxu0 0.0
    %3240 = vmatpush1.msra.mxu0 0.0
    %3241 = vmatprep.subr.mxu0 0.0
    %3242 = vmatpush1.msra.mxu0 0.0
    %3243 = vmatprep.subr.mxu0 0.0
    %3244 = vmatpush1.msra.mxu0 0.0
    %3245 = vmatprep.subr.mxu0 0.0
    %3246 = vmatpush1.msra.mxu0 0.0
    %3247 = vmatprep.subr.mxu0 %v1977
    %3248 = vmatpush1.msra.mxu0 %v1974
    %3249 = vmatprep.subr.mxu0 %v1737
    %3250 = vmatpush1.msra.mxu0 %v1736
    %3251 = vmatprep.subr.mxu0 %v1712
    %3252 = vmatpush1.msra.mxu0 %v1711
    %3253 = vmatprep.subr.mxu0 %v1687
    %3254 = vmatpush1.msra.mxu0 %v1686
    %3255 = vmatprep.subr.mxu0 %v1662
    %3256 = vmatpush1.msra.mxu0 %v1661
    %3257 = vmatprep.subr.mxu0 0.0
    %3258 = vmatpush2.msra.mxu0 0.0
    %3259 = vmatprep.subr.mxu0 0.0
    %3260 = vmatpush2.msra.mxu0 0.0
    %3261 = vmatprep.subr.mxu0 0.0
    %3262 = vmatpush2.msra.mxu0 0.0
    %3263 = vmatprep.subr.mxu0 0.0
    %3264 = vmatpush2.msra.mxu0 0.0
    %3265 = vmatprep.subr.mxu0 0.0
    %3266 = vmatpush2.msra.mxu0 0.0
    %3267 = vmatprep.subr.mxu0 0.0
    %3268 = vmatpush2.msra.mxu0 0.0
    %3269 = vmatprep.subr.mxu0 0.0
    %3270 = vmatpush2.msra.mxu0 0.0
    %3271 = vmatprep.subr.mxu0 0.0
    %3272 = vmatpush2.msra.mxu0 0.0
    %3273 = vmatprep.subr.mxu0 0.0
    %3274 = vmatpush2.msra.mxu0 0.0
    %3275 = vmatprep.subr.mxu0 0.0
    %3276 = vmatpush2.msra.mxu0 0.0
    %3277 = vmatprep.subr.mxu0 0.0
    %3278 = vmatpush2.msra.mxu0 0.0
    %3279 = vmatprep.subr.mxu0 0.0
    %3280 = vmatpush2.msra.mxu0 0.0
    %3281 = vmatprep.subr.mxu0 0.0
    %3282 = vmatpush2.msra.mxu0 0.0
    %3283 = vmatprep.subr.mxu0 0.0
    %3284 = vmatpush2.msra.mxu0 0.0
    %3285 = vmatprep.subr.mxu0 0.0
    %3286 = vmatpush2.msra.mxu0 0.0
    %3287 = vmatprep.subr.mxu0 0.0
    %3288 = vmatpush2.msra.mxu0 0.0
    %3289 = vmatprep.mubr.f32.mxu0 0.0
    %3290 = vmatmul.mubr.f32.gmra.mxu0 %v1940
    %v3291 = vpop.f32.mrf.mxu0
    %v3292 = vadd.f32 %v3221, %v3291
    %v3293 = vpop.f32.mrf.mxu0
    %v3294 = vadd.f32 %v3223, %v3293
    %3295 = vdwg.mxu0
    %3296 = vmatprep.subr.mxu0 %v439
    %3297 = vmatpush1.msra.mxu0 %v438
    %3298 = vmatprep.subr.mxu0 %v414
    %3299 = vmatpush1.msra.mxu0 %v413
    %3300 = vmatprep.subr.mxu0 %v389
    %3301 = vmatpush1.msra.mxu0 %v388
    %3302 = vmatprep.subr.mxu0 %v364
    %3303 = vmatpush1.msra.mxu0 %v363
    %3304 = vmatprep.subr.mxu0 %v339
    %3305 = vmatpush1.msra.mxu0 %v338
    %3306 = vmatprep.subr.mxu0 %v314
    %3307 = vmatpush1.msra.mxu0 %v313
    %3308 = vmatprep.subr.mxu0 %v289
    %3309 = vmatpush1.msra.mxu0 %v288
    %3310 = vmatprep.subr.mxu0 %v264
    %3311 = vmatpush1.msra.mxu0 %v263
    %3312 = vmatprep.subr.mxu0 %v239
    %3313 = vmatpush1.msra.mxu0 %v238
    %3314 = vmatprep.subr.mxu0 %v214
    %3315 = vmatpush1.msra.mxu0 %v213
    %3316 = vmatprep.subr.mxu0 %v189
    %3317 = vmatpush1.msra.mxu0 %v188
    %3318 = vmatprep.subr.mxu0 %v164
    %3319 = vmatpush1.msra.mxu0 %v163
    %3320 = vmatprep.subr.mxu0 %v139
    %3321 = vmatpush1.msra.mxu0 %v138
    %3322 = vmatprep.subr.mxu0 %v114
    %3323 = vmatpush1.msra.mxu0 %v113
    %3324 = vmatprep.subr.mxu0 %v89
    %3325 = vmatpush1.msra.mxu0 %v88
    %3326 = vmatprep.subr.mxu0 %v64
    %3327 = vmatpush1.msra.mxu0 %v63
    %3328 = vmatprep.subr.mxu0 %v839
    %3329 = vmatpush2.msra.mxu0 %v838
    %3330 = vmatprep.subr.mxu0 %v814
    %3331 = vmatpush2.msra.mxu0 %v813
    %3332 = vmatprep.subr.mxu0 %v789
    %3333 = vmatpush2.msra.mxu0 %v788
    %3334 = vmatprep.subr.mxu0 %v764
    %3335 = vmatpush2.msra.mxu0 %v763
    %3336 = vmatprep.subr.mxu0 %v739
    %3337 = vmatpush2.msra.mxu0 %v738
    %3338 = vmatprep.subr.mxu0 %v714
    %3339 = vmatpush2.msra.mxu0 %v713
    %3340 = vmatprep.subr.mxu0 %v689
    %3341 = vmatpush2.msra.mxu0 %v688
    %3342 = vmatprep.subr.mxu0 %v664
    %3343 = vmatpush2.msra.mxu0 %v663
    %3344 = vmatprep.subr.mxu0 %v639
    %3345 = vmatpush2.msra.mxu0 %v638
    %3346 = vmatprep.subr.mxu0 %v614
    %3347 = vmatpush2.msra.mxu0 %v613
    %3348 = vmatprep.subr.mxu0 %v589
    %3349 = vmatpush2.msra.mxu0 %v588
    %3350 = vmatprep.subr.mxu0 %v564
    %3351 = vmatpush2.msra.mxu0 %v563
    %3352 = vmatprep.subr.mxu0 %v539
    %3353 = vmatpush2.msra.mxu0 %v538
    %3354 = vmatprep.subr.mxu0 %v514
    %3355 = vmatpush2.msra.mxu0 %v513
    %3356 = vmatprep.subr.mxu0 %v489
    %3357 = vmatpush2.msra.mxu0 %v488
    %3358 = vmatprep.subr.mxu0 %v464
    %3359 = vmatpush2.msra.mxu0 %v463
    %3360 = vmatprep.mubr.f32.mxu0 %v1926
    %3361 = vmatmul.mubr.f32.gmra.mxu0 %v1918
    %v3362 = vpop.f32.mrf.mxu0
    %v3363 = vadd.f32 %v1835, %v3362
    %v3364 = vpop.f32.mrf.mxu0
    %v3365 = vadd.f32 %v1839, %v3364
    %3366 = vdwg.mxu0
    %3367 = vmatprep.subr.mxu0 %v1239
    %3368 = vmatpush1.msra.mxu0 %v1238
    %3369 = vmatprep.subr.mxu0 %v1214
    %3370 = vmatpush1.msra.mxu0 %v1213
    %3371 = vmatprep.subr.mxu0 %v1189
    %3372 = vmatpush1.msra.mxu0 %v1188
    %3373 = vmatprep.subr.mxu0 %v1164
    %3374 = vmatpush1.msra.mxu0 %v1163
    %3375 = vmatprep.subr.mxu0 %v1139
    %3376 = vmatpush1.msra.mxu0 %v1138
    %3377 = vmatprep.subr.mxu0 %v1114
    %3378 = vmatpush1.msra.mxu0 %v1113
    %3379 = vmatprep.subr.mxu0 %v1089
    %3380 = vmatpush1.msra.mxu0 %v1088
    %3381 = vmatprep.subr.mxu0 %v1064
    %3382 = vmatpush1.msra.mxu0 %v1063
    %3383 = vmatprep.subr.mxu0 %v1039
    %3384 = vmatpush1.msra.mxu0 %v1038
    %3385 = vmatprep.subr.mxu0 %v1014
    %3386 = vmatpush1.msra.mxu0 %v1013
    %3387 = vmatprep.subr.mxu0 %v989
    %3388 = vmatpush1.msra.mxu0 %v988
    %3389 = vmatprep.subr.mxu0 %v964
    %3390 = vmatpush1.msra.mxu0 %v963
    %3391 = vmatprep.subr.mxu0 %v939
    %3392 = vmatpush1.msra.mxu0 %v938
    %3393 = vmatprep.subr.mxu0 %v914
    %3394 = vmatpush1.msra.mxu0 %v913
    %3395 = vmatprep.subr.mxu0 %v889
    %3396 = vmatpush1.msra.mxu0 %v888
    %3397 = vmatprep.subr.mxu0 %v864
    %3398 = vmatpush1.msra.mxu0 %v863
    %3399 = vmatprep.subr.mxu0 %v1639
    %3400 = vmatpush2.msra.mxu0 %v1638
    %3401 = vmatprep.subr.mxu0 %v1614
    %3402 = vmatpush2.msra.mxu0 %v1613
    %3403 = vmatprep.subr.mxu0 %v1589
    %3404 = vmatpush2.msra.mxu0 %v1588
    %3405 = vmatprep.subr.mxu0 %v1564
    %3406 = vmatpush2.msra.mxu0 %v1563
    %3407 = vmatprep.subr.mxu0 %v1539
    %3408 = vmatpush2.msra.mxu0 %v1538
    %3409 = vmatprep.subr.mxu0 %v1514
    %3410 = vmatpush2.msra.mxu0 %v1513
    %3411 = vmatprep.subr.mxu0 %v1489
    %3412 = vmatpush2.msra.mxu0 %v1488
    %3413 = vmatprep.subr.mxu0 %v1464
    %3414 = vmatpush2.msra.mxu0 %v1463
    %3415 = vmatprep.subr.mxu0 %v1439
    %3416 = vmatpush2.msra.mxu0 %v1438
    %3417 = vmatprep.subr.mxu0 %v1414
    %3418 = vmatpush2.msra.mxu0 %v1413
    %3419 = vmatprep.subr.mxu0 %v1389
    %3420 = vmatpush2.msra.mxu0 %v1388
    %3421 = vmatprep.subr.mxu0 %v1364
    %3422 = vmatpush2.msra.mxu0 %v1363
    %3423 = vmatprep.subr.mxu0 %v1339
    %3424 = vmatpush2.msra.mxu0 %v1338
    %3425 = vmatprep.subr.mxu0 %v1314
    %3426 = vmatpush2.msra.mxu0 %v1313
    %3427 = vmatprep.subr.mxu0 %v1289
    %3428 = vmatpush2.msra.mxu0 %v1288
    %3429 = vmatprep.subr.mxu0 %v1264
    %3430 = vmatpush2.msra.mxu0 %v1263
    %3431 = vmatprep.mubr.f32.mxu0 %v1927
    %3432 = vmatmul.mubr.f32.gmra.mxu0 %v1925
    %v3433 = vpop.f32.mrf.mxu0
    %v3434 = vadd.f32 %v3363, %v3433
    %v3435 = vpop.f32.mrf.mxu0
    %v3436 = vadd.f32 %v3365, %v3435
    %3437 = vdwg.mxu0
    %3438 = vmatprep.subr.mxu0 0.0
    %3439 = vmatpush1.msra.mxu0 0.0
    %3440 = vmatprep.subr.mxu0 0.0
    %3441 = vmatpush1.msra.mxu0 0.0
    %3442 = vmatprep.subr.mxu0 0.0
    %3443 = vmatpush1.msra.mxu0 0.0
    %3444 = vmatprep.subr.mxu0 0.0
    %3445 = vmatpush1.msra.mxu0 0.0
    %3446 = vmatprep.subr.mxu0 0.0
    %3447 = vmatpush1.msra.mxu0 0.0
    %3448 = vmatprep.subr.mxu0 0.0
    %3449 = vmatpush1.msra.mxu0 0.0
    %3450 = vmatprep.subr.mxu0 0.0
    %3451 = vmatpush1.msra.mxu0 0.0
    %3452 = vmatprep.subr.mxu0 0.0
    %3453 = vmatpush1.msra.mxu0 0.0
    %3454 = vmatprep.subr.mxu0 0.0
    %3455 = vmatpush1.msra.mxu0 0.0
    %3456 = vmatprep.subr.mxu0 0.0
    %3457 = vmatpush1.msra.mxu0 0.0
    %3458 = vmatprep.subr.mxu0 0.0
    %3459 = vmatpush1.msra.mxu0 0.0
    %3460 = vmatprep.subr.mxu0 %v1983
    %3461 = vmatpush1.msra.mxu0 %v1980
    %3462 = vmatprep.subr.mxu0 %v1739
    %3463 = vmatpush1.msra.mxu0 %v1738
    %3464 = vmatprep.subr.mxu0 %v1714
    %3465 = vmatpush1.msra.mxu0 %v1713
    %3466 = vmatprep.subr.mxu0 %v1689
    %3467 = vmatpush1.msra.mxu0 %v1688
    %3468 = vmatprep.subr.mxu0 %v1664
    %3469 = vmatpush1.msra.mxu0 %v1663
    %3470 = vmatprep.subr.mxu0 0.0
    %3471 = vmatpush2.msra.mxu0 0.0
    %3472 = vmatprep.subr.mxu0 0.0
    %3473 = vmatpush2.msra.mxu0 0.0
    %3474 = vmatprep.subr.mxu0 0.0
    %3475 = vmatpush2.msra.mxu0 0.0
    %3476 = vmatprep.subr.mxu0 0.0
    %3477 = vmatpush2.msra.mxu0 0.0
    %3478 = vmatprep.subr.mxu0 0.0
    %3479 = vmatpush2.msra.mxu0 0.0
    %3480 = vmatprep.subr.mxu0 0.0
    %3481 = vmatpush2.msra.mxu0 0.0
    %3482 = vmatprep.subr.mxu0 0.0
    %3483 = vmatpush2.msra.mxu0 0.0
    %3484 = vmatprep.subr.mxu0 0.0
    %3485 = vmatpush2.msra.mxu0 0.0
    %3486 = vmatprep.subr.mxu0 0.0
    %3487 = vmatpush2.msra.mxu0 0.0
    %3488 = vmatprep.subr.mxu0 0.0
    %3489 = vmatpush2.msra.mxu0 0.0
    %3490 = vmatprep.subr.mxu0 0.0
    %3491 = vmatpush2.msra.mxu0 0.0
    %3492 = vmatprep.subr.mxu0 0.0
    %3493 = vmatpush2.msra.mxu0 0.0
    %3494 = vmatprep.subr.mxu0 0.0
    %3495 = vmatpush2.msra.mxu0 0.0
    %3496 = vmatprep.subr.mxu0 0.0
    %3497 = vmatpush2.msra.mxu0 0.0
    %3498 = vmatprep.subr.mxu0 0.0
    %3499 = vmatpush2.msra.mxu0 0.0
    %3500 = vmatprep.subr.mxu0 0.0
    %3501 = vmatpush2.msra.mxu0 0.0
    %3502 = vmatprep.mubr.f32.mxu0 0.0
    %3503 = vmatmul.mubr.f32.gmra.mxu0 %v1940
    %v3504 = vpop.f32.mrf.mxu0
    %v3505 = vadd.f32 %v3434, %v3504
    %v3506 = vpop.f32.mrf.mxu0
    %v3507 = vadd.f32 %v3436, %v3506
    %3508 = vdwg.mxu0
    %3509 = vmatprep.subr.mxu0 %v441
    %3510 = vmatpush1.msra.mxu0 %v440
    %3511 = vmatprep.subr.mxu0 %v416
    %3512 = vmatpush1.msra.mxu0 %v415
    %3513 = vmatprep.subr.mxu0 %v391
    %3514 = vmatpush1.msra.mxu0 %v390
    %3515 = vmatprep.subr.mxu0 %v366
    %3516 = vmatpush1.msra.mxu0 %v365
    %3517 = vmatprep.subr.mxu0 %v341
    %3518 = vmatpush1.msra.mxu0 %v340
    %3519 = vmatprep.subr.mxu0 %v316
    %3520 = vmatpush1.msra.mxu0 %v315
    %3521 = vmatprep.subr.mxu0 %v291
    %3522 = vmatpush1.msra.mxu0 %v290
    %3523 = vmatprep.subr.mxu0 %v266
    %3524 = vmatpush1.msra.mxu0 %v265
    %3525 = vmatprep.subr.mxu0 %v241
    %3526 = vmatpush1.msra.mxu0 %v240
    %3527 = vmatprep.subr.mxu0 %v216
    %3528 = vmatpush1.msra.mxu0 %v215
    %3529 = vmatprep.subr.mxu0 %v191
    %3530 = vmatpush1.msra.mxu0 %v190
    %3531 = vmatprep.subr.mxu0 %v166
    %3532 = vmatpush1.msra.mxu0 %v165
    %3533 = vmatprep.subr.mxu0 %v141
    %3534 = vmatpush1.msra.mxu0 %v140
    %3535 = vmatprep.subr.mxu0 %v116
    %3536 = vmatpush1.msra.mxu0 %v115
    %3537 = vmatprep.subr.mxu0 %v91
    %3538 = vmatpush1.msra.mxu0 %v90
    %3539 = vmatprep.subr.mxu0 %v66
    %3540 = vmatpush1.msra.mxu0 %v65
    %3541 = vmatprep.subr.mxu0 %v841
    %3542 = vmatpush2.msra.mxu0 %v840
    %3543 = vmatprep.subr.mxu0 %v816
    %3544 = vmatpush2.msra.mxu0 %v815
    %3545 = vmatprep.subr.mxu0 %v791
    %3546 = vmatpush2.msra.mxu0 %v790
    %3547 = vmatprep.subr.mxu0 %v766
    %3548 = vmatpush2.msra.mxu0 %v765
    %3549 = vmatprep.subr.mxu0 %v741
    %3550 = vmatpush2.msra.mxu0 %v740
    %3551 = vmatprep.subr.mxu0 %v716
    %3552 = vmatpush2.msra.mxu0 %v715
    %3553 = vmatprep.subr.mxu0 %v691
    %3554 = vmatpush2.msra.mxu0 %v690
    %3555 = vmatprep.subr.mxu0 %v666
    %3556 = vmatpush2.msra.mxu0 %v665
    %3557 = vmatprep.subr.mxu0 %v641
    %3558 = vmatpush2.msra.mxu0 %v640
    %3559 = vmatprep.subr.mxu0 %v616
    %3560 = vmatpush2.msra.mxu0 %v615
    %3561 = vmatprep.subr.mxu0 %v591
    %3562 = vmatpush2.msra.mxu0 %v590
    %3563 = vmatprep.subr.mxu0 %v566
    %3564 = vmatpush2.msra.mxu0 %v565
    %3565 = vmatprep.subr.mxu0 %v541
    %3566 = vmatpush2.msra.mxu0 %v540
    %3567 = vmatprep.subr.mxu0 %v516
    %3568 = vmatpush2.msra.mxu0 %v515
    %3569 = vmatprep.subr.mxu0 %v491
    %3570 = vmatpush2.msra.mxu0 %v490
    %3571 = vmatprep.subr.mxu0 %v466
    %3572 = vmatpush2.msra.mxu0 %v465
    %3573 = vmatprep.mubr.f32.mxu0 %v1926
    %3574 = vmatmul.mubr.f32.gmra.mxu0 %v1918
    %v3575 = vpop.f32.mrf.mxu0
    %v3576 = vadd.f32 %v1843, %v3575
    %v3577 = vpop.f32.mrf.mxu0
    %v3578 = vadd.f32 %v1847, %v3577
    %3579 = vdwg.mxu0
    %3580 = vmatprep.subr.mxu0 %v1241
    %3581 = vmatpush1.msra.mxu0 %v1240
    %3582 = vmatprep.subr.mxu0 %v1216
    %3583 = vmatpush1.msra.mxu0 %v1215
    %3584 = vmatprep.subr.mxu0 %v1191
    %3585 = vmatpush1.msra.mxu0 %v1190
    %3586 = vmatprep.subr.mxu0 %v1166
    %3587 = vmatpush1.msra.mxu0 %v1165
    %3588 = vmatprep.subr.mxu0 %v1141
    %3589 = vmatpush1.msra.mxu0 %v1140
    %3590 = vmatprep.subr.mxu0 %v1116
    %3591 = vmatpush1.msra.mxu0 %v1115
    %3592 = vmatprep.subr.mxu0 %v1091
    %3593 = vmatpush1.msra.mxu0 %v1090
    %3594 = vmatprep.subr.mxu0 %v1066
    %3595 = vmatpush1.msra.mxu0 %v1065
    %3596 = vmatprep.subr.mxu0 %v1041
    %3597 = vmatpush1.msra.mxu0 %v1040
    %3598 = vmatprep.subr.mxu0 %v1016
    %3599 = vmatpush1.msra.mxu0 %v1015
    %3600 = vmatprep.subr.mxu0 %v991
    %3601 = vmatpush1.msra.mxu0 %v990
    %3602 = vmatprep.subr.mxu0 %v966
    %3603 = vmatpush1.msra.mxu0 %v965
    %3604 = vmatprep.subr.mxu0 %v941
    %3605 = vmatpush1.msra.mxu0 %v940
    %3606 = vmatprep.subr.mxu0 %v916
    %3607 = vmatpush1.msra.mxu0 %v915
    %3608 = vmatprep.subr.mxu0 %v891
    %3609 = vmatpush1.msra.mxu0 %v890
    %3610 = vmatprep.subr.mxu0 %v866
    %3611 = vmatpush1.msra.mxu0 %v865
    %3612 = vmatprep.subr.mxu0 %v1641
    %3613 = vmatpush2.msra.mxu0 %v1640
    %3614 = vmatprep.subr.mxu0 %v1616
    %3615 = vmatpush2.msra.mxu0 %v1615
    %3616 = vmatprep.subr.mxu0 %v1591
    %3617 = vmatpush2.msra.mxu0 %v1590
    %3618 = vmatprep.subr.mxu0 %v1566
    %3619 = vmatpush2.msra.mxu0 %v1565
    %3620 = vmatprep.subr.mxu0 %v1541
    %3621 = vmatpush2.msra.mxu0 %v1540
    %3622 = vmatprep.subr.mxu0 %v1516
    %3623 = vmatpush2.msra.mxu0 %v1515
    %3624 = vmatprep.subr.mxu0 %v1491
    %3625 = vmatpush2.msra.mxu0 %v1490
    %3626 = vmatprep.subr.mxu0 %v1466
    %3627 = vmatpush2.msra.mxu0 %v1465
    %3628 = vmatprep.subr.mxu0 %v1441
    %3629 = vmatpush2.msra.mxu0 %v1440
    %3630 = vmatprep.subr.mxu0 %v1416
    %3631 = vmatpush2.msra.mxu0 %v1415
    %3632 = vmatprep.subr.mxu0 %v1391
    %3633 = vmatpush2.msra.mxu0 %v1390
    %3634 = vmatprep.subr.mxu0 %v1366
    %3635 = vmatpush2.msra.mxu0 %v1365
    %3636 = vmatprep.subr.mxu0 %v1341
    %3637 = vmatpush2.msra.mxu0 %v1340
    %3638 = vmatprep.subr.mxu0 %v1316
    %3639 = vmatpush2.msra.mxu0 %v1315
    %3640 = vmatprep.subr.mxu0 %v1291
    %3641 = vmatpush2.msra.mxu0 %v1290
    %3642 = vmatprep.subr.mxu0 %v1266
    %3643 = vmatpush2.msra.mxu0 %v1265
    %3644 = vmatprep.mubr.f32.mxu0 %v1927
    %3645 = vmatmul.mubr.f32.gmra.mxu0 %v1925
    %v3646 = vpop.f32.mrf.mxu0
    %v3647 = vadd.f32 %v3576, %v3646
    %v3648 = vpop.f32.mrf.mxu0
    %v3649 = vadd.f32 %v3578, %v3648
    %3650 = vdwg.mxu0
    %3651 = vmatprep.subr.mxu0 0.0
    %3652 = vmatpush1.msra.mxu0 0.0
    %3653 = vmatprep.subr.mxu0 0.0
    %3654 = vmatpush1.msra.mxu0 0.0
    %3655 = vmatprep.subr.mxu0 0.0
    %3656 = vmatpush1.msra.mxu0 0.0
    %3657 = vmatprep.subr.mxu0 0.0
    %3658 = vmatpush1.msra.mxu0 0.0
    %3659 = vmatprep.subr.mxu0 0.0
    %3660 = vmatpush1.msra.mxu0 0.0
    %3661 = vmatprep.subr.mxu0 0.0
    %3662 = vmatpush1.msra.mxu0 0.0
    %3663 = vmatprep.subr.mxu0 0.0
    %3664 = vmatpush1.msra.mxu0 0.0
    %3665 = vmatprep.subr.mxu0 0.0
    %3666 = vmatpush1.msra.mxu0 0.0
    %3667 = vmatprep.subr.mxu0 0.0
    %3668 = vmatpush1.msra.mxu0 0.0
    %3669 = vmatprep.subr.mxu0 0.0
    %3670 = vmatpush1.msra.mxu0 0.0
    %3671 = vmatprep.subr.mxu0 0.0
    %3672 = vmatpush1.msra.mxu0 0.0
    %3673 = vmatprep.subr.mxu0 %v1989
    %3674 = vmatpush1.msra.mxu0 %v1986
    %3675 = vmatprep.subr.mxu0 %v1741
    %3676 = vmatpush1.msra.mxu0 %v1740
    %3677 = vmatprep.subr.mxu0 %v1716
    %3678 = vmatpush1.msra.mxu0 %v1715
    %3679 = vmatprep.subr.mxu0 %v1691
    %3680 = vmatpush1.msra.mxu0 %v1690
    %3681 = vmatprep.subr.mxu0 %v1666
    %3682 = vmatpush1.msra.mxu0 %v1665
    %3683 = vmatprep.subr.mxu0 0.0
    %3684 = vmatpush2.msra.mxu0 0.0
    %3685 = vmatprep.subr.mxu0 0.0
    %3686 = vmatpush2.msra.mxu0 0.0
    %3687 = vmatprep.subr.mxu0 0.0
    %3688 = vmatpush2.msra.mxu0 0.0
    %3689 = vmatprep.subr.mxu0 0.0
    %3690 = vmatpush2.msra.mxu0 0.0
    %3691 = vmatprep.subr.mxu0 0.0
    %3692 = vmatpush2.msra.mxu0 0.0
    %3693 = vmatprep.subr.mxu0 0.0
    %3694 = vmatpush2.msra.mxu0 0.0
    %3695 = vmatprep.subr.mxu0 0.0
    %3696 = vmatpush2.msra.mxu0 0.0
    %3697 = vmatprep.subr.mxu0 0.0
    %3698 = vmatpush2.msra.mxu0 0.0
    %3699 = vmatprep.subr.mxu0 0.0
    %3700 = vmatpush2.msra.mxu0 0.0
    %3701 = vmatprep.subr.mxu0 0.0
    %3702 = vmatpush2.msra.mxu0 0.0
    %3703 = vmatprep.subr.mxu0 0.0
    %3704 = vmatpush2.msra.mxu0 0.0
    %3705 = vmatprep.subr.mxu0 0.0
    %3706 = vmatpush2.msra.mxu0 0.0
    %3707 = vmatprep.subr.mxu0 0.0
    %3708 = vmatpush2.msra.mxu0 0.0
    %3709 = vmatprep.subr.mxu0 0.0
    %3710 = vmatpush2.msra.mxu0 0.0
    %3711 = vmatprep.subr.mxu0 0.0
    %3712 = vmatpush2.msra.mxu0 0.0
    %3713 = vmatprep.subr.mxu0 0.0
    %3714 = vmatpush2.msra.mxu0 0.0
    %3715 = vmatprep.mubr.f32.mxu0 0.0
    %3716 = vmatmul.mubr.f32.gmra.mxu0 %v1940
    %v3717 = vpop.f32.mrf.mxu0
    %v3718 = vadd.f32 %v3647, %v3717
    %v3719 = vpop.f32.mrf.mxu0
    %v3720 = vadd.f32 %v3649, %v3719
    %3721 = vdwg.mxu0
    %3722 = vmatprep.subr.mxu0 %v443
    %3723 = vmatpush1.msra.mxu0 %v442
    %3724 = vmatprep.subr.mxu0 %v418
    %3725 = vmatpush1.msra.mxu0 %v417
    %3726 = vmatprep.subr.mxu0 %v393
    %3727 = vmatpush1.msra.mxu0 %v392
    %3728 = vmatprep.subr.mxu0 %v368
    %3729 = vmatpush1.msra.mxu0 %v367
    %3730 = vmatprep.subr.mxu0 %v343
    %3731 = vmatpush1.msra.mxu0 %v342
    %3732 = vmatprep.subr.mxu0 %v318
    %3733 = vmatpush1.msra.mxu0 %v317
    %3734 = vmatprep.subr.mxu0 %v293
    %3735 = vmatpush1.msra.mxu0 %v292
    %3736 = vmatprep.subr.mxu0 %v268
    %3737 = vmatpush1.msra.mxu0 %v267
    %3738 = vmatprep.subr.mxu0 %v243
    %3739 = vmatpush1.msra.mxu0 %v242
    %3740 = vmatprep.subr.mxu0 %v218
    %3741 = vmatpush1.msra.mxu0 %v217
    %3742 = vmatprep.subr.mxu0 %v193
    %3743 = vmatpush1.msra.mxu0 %v192
    %3744 = vmatprep.subr.mxu0 %v168
    %3745 = vmatpush1.msra.mxu0 %v167
    %3746 = vmatprep.subr.mxu0 %v143
    %3747 = vmatpush1.msra.mxu0 %v142
    %3748 = vmatprep.subr.mxu0 %v118
    %3749 = vmatpush1.msra.mxu0 %v117
    %3750 = vmatprep.subr.mxu0 %v93
    %3751 = vmatpush1.msra.mxu0 %v92
    %3752 = vmatprep.subr.mxu0 %v68
    %3753 = vmatpush1.msra.mxu0 %v67
    %3754 = vmatprep.subr.mxu0 %v843
    %3755 = vmatpush2.msra.mxu0 %v842
    %3756 = vmatprep.subr.mxu0 %v818
    %3757 = vmatpush2.msra.mxu0 %v817
    %3758 = vmatprep.subr.mxu0 %v793
    %3759 = vmatpush2.msra.mxu0 %v792
    %3760 = vmatprep.subr.mxu0 %v768
    %3761 = vmatpush2.msra.mxu0 %v767
    %3762 = vmatprep.subr.mxu0 %v743
    %3763 = vmatpush2.msra.mxu0 %v742
    %3764 = vmatprep.subr.mxu0 %v718
    %3765 = vmatpush2.msra.mxu0 %v717
    %3766 = vmatprep.subr.mxu0 %v693
    %3767 = vmatpush2.msra.mxu0 %v692
    %3768 = vmatprep.subr.mxu0 %v668
    %3769 = vmatpush2.msra.mxu0 %v667
    %3770 = vmatprep.subr.mxu0 %v643
    %3771 = vmatpush2.msra.mxu0 %v642
    %3772 = vmatprep.subr.mxu0 %v618
    %3773 = vmatpush2.msra.mxu0 %v617
    %3774 = vmatprep.subr.mxu0 %v593
    %3775 = vmatpush2.msra.mxu0 %v592
    %3776 = vmatprep.subr.mxu0 %v568
    %3777 = vmatpush2.msra.mxu0 %v567
    %3778 = vmatprep.subr.mxu0 %v543
    %3779 = vmatpush2.msra.mxu0 %v542
    %3780 = vmatprep.subr.mxu0 %v518
    %3781 = vmatpush2.msra.mxu0 %v517
    %3782 = vmatprep.subr.mxu0 %v493
    %3783 = vmatpush2.msra.mxu0 %v492
    %3784 = vmatprep.subr.mxu0 %v468
    %3785 = vmatpush2.msra.mxu0 %v467
    %3786 = vmatprep.mubr.f32.mxu0 %v1926
    %3787 = vmatmul.mubr.f32.gmra.mxu0 %v1918
    %v3788 = vpop.f32.mrf.mxu0
    %v3789 = vadd.f32 %v1851, %v3788
    %v3790 = vpop.f32.mrf.mxu0
    %v3791 = vadd.f32 %v1855, %v3790
    %3792 = vdwg.mxu0
    %3793 = vmatprep.subr.mxu0 %v1243
    %3794 = vmatpush1.msra.mxu0 %v1242
    %3795 = vmatprep.subr.mxu0 %v1218
    %3796 = vmatpush1.msra.mxu0 %v1217
    %3797 = vmatprep.subr.mxu0 %v1193
    %3798 = vmatpush1.msra.mxu0 %v1192
    %3799 = vmatprep.subr.mxu0 %v1168
    %3800 = vmatpush1.msra.mxu0 %v1167
    %3801 = vmatprep.subr.mxu0 %v1143
    %3802 = vmatpush1.msra.mxu0 %v1142
    %3803 = vmatprep.subr.mxu0 %v1118
    %3804 = vmatpush1.msra.mxu0 %v1117
    %3805 = vmatprep.subr.mxu0 %v1093
    %3806 = vmatpush1.msra.mxu0 %v1092
    %3807 = vmatprep.subr.mxu0 %v1068
    %3808 = vmatpush1.msra.mxu0 %v1067
    %3809 = vmatprep.subr.mxu0 %v1043
    %3810 = vmatpush1.msra.mxu0 %v1042
    %3811 = vmatprep.subr.mxu0 %v1018
    %3812 = vmatpush1.msra.mxu0 %v1017
    %3813 = vmatprep.subr.mxu0 %v993
    %3814 = vmatpush1.msra.mxu0 %v992
    %3815 = vmatprep.subr.mxu0 %v968
    %3816 = vmatpush1.msra.mxu0 %v967
    %3817 = vmatprep.subr.mxu0 %v943
    %3818 = vmatpush1.msra.mxu0 %v942
    %3819 = vmatprep.subr.mxu0 %v918
    %3820 = vmatpush1.msra.mxu0 %v917
    %3821 = vmatprep.subr.mxu0 %v893
    %3822 = vmatpush1.msra.mxu0 %v892
    %3823 = vmatprep.subr.mxu0 %v868
    %3824 = vmatpush1.msra.mxu0 %v867
    %3825 = vmatprep.subr.mxu0 %v1643
    %3826 = vmatpush2.msra.mxu0 %v1642
    %3827 = vmatprep.subr.mxu0 %v1618
    %3828 = vmatpush2.msra.mxu0 %v1617
    %3829 = vmatprep.subr.mxu0 %v1593
    %3830 = vmatpush2.msra.mxu0 %v1592
    %3831 = vmatprep.subr.mxu0 %v1568
    %3832 = vmatpush2.msra.mxu0 %v1567
    %3833 = vmatprep.subr.mxu0 %v1543
    %3834 = vmatpush2.msra.mxu0 %v1542
    %3835 = vmatprep.subr.mxu0 %v1518
    %3836 = vmatpush2.msra.mxu0 %v1517
    %3837 = vmatprep.subr.mxu0 %v1493
    %3838 = vmatpush2.msra.mxu0 %v1492
    %3839 = vmatprep.subr.mxu0 %v1468
    %3840 = vmatpush2.msra.mxu0 %v1467
    %3841 = vmatprep.subr.mxu0 %v1443
    %3842 = vmatpush2.msra.mxu0 %v1442
    %3843 = vmatprep.subr.mxu0 %v1418
    %3844 = vmatpush2.msra.mxu0 %v1417
    %3845 = vmatprep.subr.mxu0 %v1393
    %3846 = vmatpush2.msra.mxu0 %v1392
    %3847 = vmatprep.subr.mxu0 %v1368
    %3848 = vmatpush2.msra.mxu0 %v1367
    %3849 = vmatprep.subr.mxu0 %v1343
    %3850 = vmatpush2.msra.mxu0 %v1342
    %3851 = vmatprep.subr.mxu0 %v1318
    %3852 = vmatpush2.msra.mxu0 %v1317
    %3853 = vmatprep.subr.mxu0 %v1293
    %3854 = vmatpush2.msra.mxu0 %v1292
    %3855 = vmatprep.subr.mxu0 %v1268
    %3856 = vmatpush2.msra.mxu0 %v1267
    %3857 = vmatprep.mubr.f32.mxu0 %v1927
    %3858 = vmatmul.mubr.f32.gmra.mxu0 %v1925
    %v3859 = vpop.f32.mrf.mxu0
    %v3860 = vadd.f32 %v3789, %v3859
    %v3861 = vpop.f32.mrf.mxu0
    %v3862 = vadd.f32 %v3791, %v3861
    %3863 = vdwg.mxu0
    %3864 = vmatprep.subr.mxu0 0.0
    %3865 = vmatpush1.msra.mxu0 0.0
    %3866 = vmatprep.subr.mxu0 0.0
    %3867 = vmatpush1.msra.mxu0 0.0
    %3868 = vmatprep.subr.mxu0 0.0
    %3869 = vmatpush1.msra.mxu0 0.0
    %3870 = vmatprep.subr.mxu0 0.0
    %3871 = vmatpush1.msra.mxu0 0.0
    %3872 = vmatprep.subr.mxu0 0.0
    %3873 = vmatpush1.msra.mxu0 0.0
    %3874 = vmatprep.subr.mxu0 0.0
    %3875 = vmatpush1.msra.mxu0 0.0
    %3876 = vmatprep.subr.mxu0 0.0
    %3877 = vmatpush1.msra.mxu0 0.0
    %3878 = vmatprep.subr.mxu0 0.0
    %3879 = vmatpush1.msra.mxu0 0.0
    %3880 = vmatprep.subr.mxu0 0.0
    %3881 = vmatpush1.msra.mxu0 0.0
    %3882 = vmatprep.subr.mxu0 0.0
    %3883 = vmatpush1.msra.mxu0 0.0
    %3884 = vmatprep.subr.mxu0 0.0
    %3885 = vmatpush1.msra.mxu0 0.0
    %3886 = vmatprep.subr.mxu0 %v1995
    %3887 = vmatpush1.msra.mxu0 %v1992
    %3888 = vmatprep.subr.mxu0 %v1743
    %3889 = vmatpush1.msra.mxu0 %v1742
    %3890 = vmatprep.subr.mxu0 %v1718
    %3891 = vmatpush1.msra.mxu0 %v1717
    %3892 = vmatprep.subr.mxu0 %v1693
    %3893 = vmatpush1.msra.mxu0 %v1692
    %3894 = vmatprep.subr.mxu0 %v1668
    %3895 = vmatpush1.msra.mxu0 %v1667
    %3896 = vmatprep.subr.mxu0 0.0
    %3897 = vmatpush2.msra.mxu0 0.0
    %3898 = vmatprep.subr.mxu0 0.0
    %3899 = vmatpush2.msra.mxu0 0.0
    %3900 = vmatprep.subr.mxu0 0.0
    %3901 = vmatpush2.msra.mxu0 0.0
    %3902 = vmatprep.subr.mxu0 0.0
    %3903 = vmatpush2.msra.mxu0 0.0
    %3904 = vmatprep.subr.mxu0 0.0
    %3905 = vmatpush2.msra.mxu0 0.0
    %3906 = vmatprep.subr.mxu0 0.0
    %3907 = vmatpush2.msra.mxu0 0.0
    %3908 = vmatprep.subr.mxu0 0.0
    %3909 = vmatpush2.msra.mxu0 0.0
    %3910 = vmatprep.subr.mxu0 0.0
    %3911 = vmatpush2.msra.mxu0 0.0
    %3912 = vmatprep.subr.mxu0 0.0
    %3913 = vmatpush2.msra.mxu0 0.0
    %3914 = vmatprep.subr.mxu0 0.0
    %3915 = vmatpush2.msra.mxu0 0.0
    %3916 = vmatprep.subr.mxu0 0.0
    %3917 = vmatpush2.msra.mxu0 0.0
    %3918 = vmatprep.subr.mxu0 0.0
    %3919 = vmatpush2.msra.mxu0 0.0
    %3920 = vmatprep.subr.mxu0 0.0
    %3921 = vmatpush2.msra.mxu0 0.0
    %3922 = vmatprep.subr.mxu0 0.0
    %3923 = vmatpush2.msra.mxu0 0.0
    %3924 = vmatprep.subr.mxu0 0.0
    %3925 = vmatpush2.msra.mxu0 0.0
    %3926 = vmatprep.subr.mxu0 0.0
    %3927 = vmatpush2.msra.mxu0 0.0
    %3928 = vmatprep.mubr.f32.mxu0 0.0
    %3929 = vmatmul.mubr.f32.gmra.mxu0 %v1940
    %v3930 = vpop.f32.mrf.mxu0
    %v3931 = vadd.f32 %v3860, %v3930
    %v3932 = vpop.f32.mrf.mxu0
    %v3933 = vadd.f32 %v3862, %v3932
    %3934 = vdwg.mxu0
    %3935 = vmatprep.subr.mxu0 %v445
    %3936 = vmatpush1.msra.mxu0 %v444
    %3937 = vmatprep.subr.mxu0 %v420
    %3938 = vmatpush1.msra.mxu0 %v419
    %3939 = vmatprep.subr.mxu0 %v395
    %3940 = vmatpush1.msra.mxu0 %v394
    %3941 = vmatprep.subr.mxu0 %v370
    %3942 = vmatpush1.msra.mxu0 %v369
    %3943 = vmatprep.subr.mxu0 %v345
    %3944 = vmatpush1.msra.mxu0 %v344
    %3945 = vmatprep.subr.mxu0 %v320
    %3946 = vmatpush1.msra.mxu0 %v319
    %3947 = vmatprep.subr.mxu0 %v295
    %3948 = vmatpush1.msra.mxu0 %v294
    %3949 = vmatprep.subr.mxu0 %v270
    %3950 = vmatpush1.msra.mxu0 %v269
    %3951 = vmatprep.subr.mxu0 %v245
    %3952 = vmatpush1.msra.mxu0 %v244
    %3953 = vmatprep.subr.mxu0 %v220
    %3954 = vmatpush1.msra.mxu0 %v219
    %3955 = vmatprep.subr.mxu0 %v195
    %3956 = vmatpush1.msra.mxu0 %v194
    %3957 = vmatprep.subr.mxu0 %v170
    %3958 = vmatpush1.msra.mxu0 %v169
    %3959 = vmatprep.subr.mxu0 %v145
    %3960 = vmatpush1.msra.mxu0 %v144
    %3961 = vmatprep.subr.mxu0 %v120
    %3962 = vmatpush1.msra.mxu0 %v119
    %3963 = vmatprep.subr.mxu0 %v95
    %3964 = vmatpush1.msra.mxu0 %v94
    %3965 = vmatprep.subr.mxu0 %v70
    %3966 = vmatpush1.msra.mxu0 %v69
    %3967 = vmatprep.subr.mxu0 %v845
    %3968 = vmatpush2.msra.mxu0 %v844
    %3969 = vmatprep.subr.mxu0 %v820
    %3970 = vmatpush2.msra.mxu0 %v819
    %3971 = vmatprep.subr.mxu0 %v795
    %3972 = vmatpush2.msra.mxu0 %v794
    %3973 = vmatprep.subr.mxu0 %v770
    %3974 = vmatpush2.msra.mxu0 %v769
    %3975 = vmatprep.subr.mxu0 %v745
    %3976 = vmatpush2.msra.mxu0 %v744
    %3977 = vmatprep.subr.mxu0 %v720
    %3978 = vmatpush2.msra.mxu0 %v719
    %3979 = vmatprep.subr.mxu0 %v695
    %3980 = vmatpush2.msra.mxu0 %v694
    %3981 = vmatprep.subr.mxu0 %v670
    %3982 = vmatpush2.msra.mxu0 %v669
    %3983 = vmatprep.subr.mxu0 %v645
    %3984 = vmatpush2.msra.mxu0 %v644
    %3985 = vmatprep.subr.mxu0 %v620
    %3986 = vmatpush2.msra.mxu0 %v619
    %3987 = vmatprep.subr.mxu0 %v595
    %3988 = vmatpush2.msra.mxu0 %v594
    %3989 = vmatprep.subr.mxu0 %v570
    %3990 = vmatpush2.msra.mxu0 %v569
    %3991 = vmatprep.subr.mxu0 %v545
    %3992 = vmatpush2.msra.mxu0 %v544
    %3993 = vmatprep.subr.mxu0 %v520
    %3994 = vmatpush2.msra.mxu0 %v519
    %3995 = vmatprep.subr.mxu0 %v495
    %3996 = vmatpush2.msra.mxu0 %v494
    %3997 = vmatprep.subr.mxu0 %v470
    %3998 = vmatpush2.msra.mxu0 %v469
    %3999 = vmatprep.mubr.f32.mxu0 %v1926
    %4000 = vmatmul.mubr.f32.gmra.mxu0 %v1918
    %v4001 = vpop.f32.mrf.mxu0
    %v4002 = vadd.f32 %v1859, %v4001
    %v4003 = vpop.f32.mrf.mxu0
    %v4004 = vadd.f32 %v1863, %v4003
    %4005 = vdwg.mxu0
    %4006 = vmatprep.subr.mxu0 %v1245
    %4007 = vmatpush1.msra.mxu0 %v1244
    %4008 = vmatprep.subr.mxu0 %v1220
    %4009 = vmatpush1.msra.mxu0 %v1219
    %4010 = vmatprep.subr.mxu0 %v1195
    %4011 = vmatpush1.msra.mxu0 %v1194
    %4012 = vmatprep.subr.mxu0 %v1170
    %4013 = vmatpush1.msra.mxu0 %v1169
    %4014 = vmatprep.subr.mxu0 %v1145
    %4015 = vmatpush1.msra.mxu0 %v1144
    %4016 = vmatprep.subr.mxu0 %v1120
    %4017 = vmatpush1.msra.mxu0 %v1119
    %4018 = vmatprep.subr.mxu0 %v1095
    %4019 = vmatpush1.msra.mxu0 %v1094
    %4020 = vmatprep.subr.mxu0 %v1070
    %4021 = vmatpush1.msra.mxu0 %v1069
    %4022 = vmatprep.subr.mxu0 %v1045
    %4023 = vmatpush1.msra.mxu0 %v1044
    %4024 = vmatprep.subr.mxu0 %v1020
    %4025 = vmatpush1.msra.mxu0 %v1019
    %4026 = vmatprep.subr.mxu0 %v995
    %4027 = vmatpush1.msra.mxu0 %v994
    %4028 = vmatprep.subr.mxu0 %v970
    %4029 = vmatpush1.msra.mxu0 %v969
    %4030 = vmatprep.subr.mxu0 %v945
    %4031 = vmatpush1.msra.mxu0 %v944
    %4032 = vmatprep.subr.mxu0 %v920
    %4033 = vmatpush1.msra.mxu0 %v919
    %4034 = vmatprep.subr.mxu0 %v895
    %4035 = vmatpush1.msra.mxu0 %v894
    %4036 = vmatprep.subr.mxu0 %v870
    %4037 = vmatpush1.msra.mxu0 %v869
    %4038 = vmatprep.subr.mxu0 %v1645
    %4039 = vmatpush2.msra.mxu0 %v1644
    %4040 = vmatprep.subr.mxu0 %v1620
    %4041 = vmatpush2.msra.mxu0 %v1619
    %4042 = vmatprep.subr.mxu0 %v1595
    %4043 = vmatpush2.msra.mxu0 %v1594
    %4044 = vmatprep.subr.mxu0 %v1570
    %4045 = vmatpush2.msra.mxu0 %v1569
    %4046 = vmatprep.subr.mxu0 %v1545
    %4047 = vmatpush2.msra.mxu0 %v1544
    %4048 = vmatprep.subr.mxu0 %v1520
    %4049 = vmatpush2.msra.mxu0 %v1519
    %4050 = vmatprep.subr.mxu0 %v1495
    %4051 = vmatpush2.msra.mxu0 %v1494
    %4052 = vmatprep.subr.mxu0 %v1470
    %4053 = vmatpush2.msra.mxu0 %v1469
    %4054 = vmatprep.subr.mxu0 %v1445
    %4055 = vmatpush2.msra.mxu0 %v1444
    %4056 = vmatprep.subr.mxu0 %v1420
    %4057 = vmatpush2.msra.mxu0 %v1419
    %4058 = vmatprep.subr.mxu0 %v1395
    %4059 = vmatpush2.msra.mxu0 %v1394
    %4060 = vmatprep.subr.mxu0 %v1370
    %4061 = vmatpush2.msra.mxu0 %v1369
    %4062 = vmatprep.subr.mxu0 %v1345
    %4063 = vmatpush2.msra.mxu0 %v1344
    %4064 = vmatprep.subr.mxu0 %v1320
    %4065 = vmatpush2.msra.mxu0 %v1319
    %4066 = vmatprep.subr.mxu0 %v1295
    %4067 = vmatpush2.msra.mxu0 %v1294
    %4068 = vmatprep.subr.mxu0 %v1270
    %4069 = vmatpush2.msra.mxu0 %v1269
    %4070 = vmatprep.mubr.f32.mxu0 %v1927
    %4071 = vmatmul.mubr.f32.gmra.mxu0 %v1925
    %v4072 = vpop.f32.mrf.mxu0
    %v4073 = vadd.f32 %v4002, %v4072
    %v4074 = vpop.f32.mrf.mxu0
    %v4075 = vadd.f32 %v4004, %v4074
    %4076 = vdwg.mxu0
    %4077 = vmatprep.subr.mxu0 0.0
    %4078 = vmatpush1.msra.mxu0 0.0
    %4079 = vmatprep.subr.mxu0 0.0
    %4080 = vmatpush1.msra.mxu0 0.0
    %4081 = vmatprep.subr.mxu0 0.0
    %4082 = vmatpush1.msra.mxu0 0.0
    %4083 = vmatprep.subr.mxu0 0.0
    %4084 = vmatpush1.msra.mxu0 0.0
    %4085 = vmatprep.subr.mxu0 0.0
    %4086 = vmatpush1.msra.mxu0 0.0
    %4087 = vmatprep.subr.mxu0 0.0
    %4088 = vmatpush1.msra.mxu0 0.0
    %4089 = vmatprep.subr.mxu0 0.0
    %4090 = vmatpush1.msra.mxu0 0.0
    %4091 = vmatprep.subr.mxu0 0.0
    %4092 = vmatpush1.msra.mxu0 0.0
    %4093 = vmatprep.subr.mxu0 0.0
    %4094 = vmatpush1.msra.mxu0 0.0
    %4095 = vmatprep.subr.mxu0 0.0
    %4096 = vmatpush1.msra.mxu0 0.0
    %4097 = vmatprep.subr.mxu0 0.0
    %4098 = vmatpush1.msra.mxu0 0.0
    %4099 = vmatprep.subr.mxu0 %v2001
    %4100 = vmatpush1.msra.mxu0 %v1998
    %4101 = vmatprep.subr.mxu0 %v1745
    %4102 = vmatpush1.msra.mxu0 %v1744
    %4103 = vmatprep.subr.mxu0 %v1720
    %4104 = vmatpush1.msra.mxu0 %v1719
    %4105 = vmatprep.subr.mxu0 %v1695
    %4106 = vmatpush1.msra.mxu0 %v1694
    %4107 = vmatprep.subr.mxu0 %v1670
    %4108 = vmatpush1.msra.mxu0 %v1669
    %4109 = vmatprep.subr.mxu0 0.0
    %4110 = vmatpush2.msra.mxu0 0.0
    %4111 = vmatprep.subr.mxu0 0.0
    %4112 = vmatpush2.msra.mxu0 0.0
    %4113 = vmatprep.subr.mxu0 0.0
    %4114 = vmatpush2.msra.mxu0 0.0
    %4115 = vmatprep.subr.mxu0 0.0
    %4116 = vmatpush2.msra.mxu0 0.0
    %4117 = vmatprep.subr.mxu0 0.0
    %4118 = vmatpush2.msra.mxu0 0.0
    %4119 = vmatprep.subr.mxu0 0.0
    %4120 = vmatpush2.msra.mxu0 0.0
    %4121 = vmatprep.subr.mxu0 0.0
    %4122 = vmatpush2.msra.mxu0 0.0
    %4123 = vmatprep.subr.mxu0 0.0
    %4124 = vmatpush2.msra.mxu0 0.0
    %4125 = vmatprep.subr.mxu0 0.0
    %4126 = vmatpush2.msra.mxu0 0.0
    %4127 = vmatprep.subr.mxu0 0.0
    %4128 = vmatpush2.msra.mxu0 0.0
    %4129 = vmatprep.subr.mxu0 0.0
    %4130 = vmatpush2.msra.mxu0 0.0
    %4131 = vmatprep.subr.mxu0 0.0
    %4132 = vmatpush2.msra.mxu0 0.0
    %4133 = vmatprep.subr.mxu0 0.0
    %4134 = vmatpush2.msra.mxu0 0.0
    %4135 = vmatprep.subr.mxu0 0.0
    %4136 = vmatpush2.msra.mxu0 0.0
    %4137 = vmatprep.subr.mxu0 0.0
    %4138 = vmatpush2.msra.mxu0 0.0
    %4139 = vmatprep.subr.mxu0 0.0
    %4140 = vmatpush2.msra.mxu0 0.0
    %4141 = vmatprep.mubr.f32.mxu0 0.0
    %4142 = vmatmul.mubr.f32.gmra.mxu0 %v1940
    %v4143 = vpop.f32.mrf.mxu0
    %v4144 = vadd.f32 %v4073, %v4143
    %v4145 = vpop.f32.mrf.mxu0
    %v4146 = vadd.f32 %v4075, %v4145
    %4147 = vdwg.mxu0
    %4148 = vmatprep.subr.mxu0 %v447
    %4149 = vmatpush1.msra.mxu0 %v446
    %4150 = vmatprep.subr.mxu0 %v422
    %4151 = vmatpush1.msra.mxu0 %v421
    %4152 = vmatprep.subr.mxu0 %v397
    %4153 = vmatpush1.msra.mxu0 %v396
    %4154 = vmatprep.subr.mxu0 %v372
    %4155 = vmatpush1.msra.mxu0 %v371
    %4156 = vmatprep.subr.mxu0 %v347
    %4157 = vmatpush1.msra.mxu0 %v346
    %4158 = vmatprep.subr.mxu0 %v322
    %4159 = vmatpush1.msra.mxu0 %v321
    %4160 = vmatprep.subr.mxu0 %v297
    %4161 = vmatpush1.msra.mxu0 %v296
    %4162 = vmatprep.subr.mxu0 %v272
    %4163 = vmatpush1.msra.mxu0 %v271
    %4164 = vmatprep.subr.mxu0 %v247
    %4165 = vmatpush1.msra.mxu0 %v246
    %4166 = vmatprep.subr.mxu0 %v222
    %4167 = vmatpush1.msra.mxu0 %v221
    %4168 = vmatprep.subr.mxu0 %v197
    %4169 = vmatpush1.msra.mxu0 %v196
    %4170 = vmatprep.subr.mxu0 %v172
    %4171 = vmatpush1.msra.mxu0 %v171
    %4172 = vmatprep.subr.mxu0 %v147
    %4173 = vmatpush1.msra.mxu0 %v146
    %4174 = vmatprep.subr.mxu0 %v122
    %4175 = vmatpush1.msra.mxu0 %v121
    %4176 = vmatprep.subr.mxu0 %v97
    %4177 = vmatpush1.msra.mxu0 %v96
    %4178 = vmatprep.subr.mxu0 %v72
    %4179 = vmatpush1.msra.mxu0 %v71
    %4180 = vmatprep.subr.mxu0 %v847
    %4181 = vmatpush2.msra.mxu0 %v846
    %4182 = vmatprep.subr.mxu0 %v822
    %4183 = vmatpush2.msra.mxu0 %v821
    %4184 = vmatprep.subr.mxu0 %v797
    %4185 = vmatpush2.msra.mxu0 %v796
    %4186 = vmatprep.subr.mxu0 %v772
    %4187 = vmatpush2.msra.mxu0 %v771
    %4188 = vmatprep.subr.mxu0 %v747
    %4189 = vmatpush2.msra.mxu0 %v746
    %4190 = vmatprep.subr.mxu0 %v722
    %4191 = vmatpush2.msra.mxu0 %v721
    %4192 = vmatprep.subr.mxu0 %v697
    %4193 = vmatpush2.msra.mxu0 %v696
    %4194 = vmatprep.subr.mxu0 %v672
    %4195 = vmatpush2.msra.mxu0 %v671
    %4196 = vmatprep.subr.mxu0 %v647
    %4197 = vmatpush2.msra.mxu0 %v646
    %4198 = vmatprep.subr.mxu0 %v622
    %4199 = vmatpush2.msra.mxu0 %v621
    %4200 = vmatprep.subr.mxu0 %v597
    %4201 = vmatpush2.msra.mxu0 %v596
    %4202 = vmatprep.subr.mxu0 %v572
    %4203 = vmatpush2.msra.mxu0 %v571
    %4204 = vmatprep.subr.mxu0 %v547
    %4205 = vmatpush2.msra.mxu0 %v546
    %4206 = vmatprep.subr.mxu0 %v522
    %4207 = vmatpush2.msra.mxu0 %v521
    %4208 = vmatprep.subr.mxu0 %v497
    %4209 = vmatpush2.msra.mxu0 %v496
    %4210 = vmatprep.subr.mxu0 %v472
    %4211 = vmatpush2.msra.mxu0 %v471
    %4212 = vmatprep.mubr.f32.mxu0 %v1926
    %4213 = vmatmul.mubr.f32.gmra.mxu0 %v1918
    %v4214 = vpop.f32.mrf.mxu0
    %v4215 = vadd.f32 %v1867, %v4214
    %v4216 = vpop.f32.mrf.mxu0
    %v4217 = vadd.f32 %v1871, %v4216
    %4218 = vdwg.mxu0
    %4219 = vmatprep.subr.mxu0 %v1247
    %4220 = vmatpush1.msra.mxu0 %v1246
    %4221 = vmatprep.subr.mxu0 %v1222
    %4222 = vmatpush1.msra.mxu0 %v1221
    %4223 = vmatprep.subr.mxu0 %v1197
    %4224 = vmatpush1.msra.mxu0 %v1196
    %4225 = vmatprep.subr.mxu0 %v1172
    %4226 = vmatpush1.msra.mxu0 %v1171
    %4227 = vmatprep.subr.mxu0 %v1147
    %4228 = vmatpush1.msra.mxu0 %v1146
    %4229 = vmatprep.subr.mxu0 %v1122
    %4230 = vmatpush1.msra.mxu0 %v1121
    %4231 = vmatprep.subr.mxu0 %v1097
    %4232 = vmatpush1.msra.mxu0 %v1096
    %4233 = vmatprep.subr.mxu0 %v1072
    %4234 = vmatpush1.msra.mxu0 %v1071
    %4235 = vmatprep.subr.mxu0 %v1047
    %4236 = vmatpush1.msra.mxu0 %v1046
    %4237 = vmatprep.subr.mxu0 %v1022
    %4238 = vmatpush1.msra.mxu0 %v1021
    %4239 = vmatprep.subr.mxu0 %v997
    %4240 = vmatpush1.msra.mxu0 %v996
    %4241 = vmatprep.subr.mxu0 %v972
    %4242 = vmatpush1.msra.mxu0 %v971
    %4243 = vmatprep.subr.mxu0 %v947
    %4244 = vmatpush1.msra.mxu0 %v946
    %4245 = vmatprep.subr.mxu0 %v922
    %4246 = vmatpush1.msra.mxu0 %v921
    %4247 = vmatprep.subr.mxu0 %v897
    %4248 = vmatpush1.msra.mxu0 %v896
    %4249 = vmatprep.subr.mxu0 %v872
    %4250 = vmatpush1.msra.mxu0 %v871
    %4251 = vmatprep.subr.mxu0 %v1647
    %4252 = vmatpush2.msra.mxu0 %v1646
    %4253 = vmatprep.subr.mxu0 %v1622
    %4254 = vmatpush2.msra.mxu0 %v1621
    %4255 = vmatprep.subr.mxu0 %v1597
    %4256 = vmatpush2.msra.mxu0 %v1596
    %4257 = vmatprep.subr.mxu0 %v1572
    %4258 = vmatpush2.msra.mxu0 %v1571
    %4259 = vmatprep.subr.mxu0 %v1547
    %4260 = vmatpush2.msra.mxu0 %v1546
    %4261 = vmatprep.subr.mxu0 %v1522
    %4262 = vmatpush2.msra.mxu0 %v1521
    %4263 = vmatprep.subr.mxu0 %v1497
    %4264 = vmatpush2.msra.mxu0 %v1496
    %4265 = vmatprep.subr.mxu0 %v1472
    %4266 = vmatpush2.msra.mxu0 %v1471
    %4267 = vmatprep.subr.mxu0 %v1447
    %4268 = vmatpush2.msra.mxu0 %v1446
    %4269 = vmatprep.subr.mxu0 %v1422
    %4270 = vmatpush2.msra.mxu0 %v1421
    %4271 = vmatprep.subr.mxu0 %v1397
    %4272 = vmatpush2.msra.mxu0 %v1396
    %4273 = vmatprep.subr.mxu0 %v1372
    %4274 = vmatpush2.msra.mxu0 %v1371
    %4275 = vmatprep.subr.mxu0 %v1347
    %4276 = vmatpush2.msra.mxu0 %v1346
    %4277 = vmatprep.subr.mxu0 %v1322
    %4278 = vmatpush2.msra.mxu0 %v1321
    %4279 = vmatprep.subr.mxu0 %v1297
    %4280 = vmatpush2.msra.mxu0 %v1296
    %4281 = vmatprep.subr.mxu0 %v1272
    %4282 = vmatpush2.msra.mxu0 %v1271
    %4283 = vmatprep.mubr.f32.mxu0 %v1927
    %4284 = vmatmul.mubr.f32.gmra.mxu0 %v1925
    %v4285 = vpop.f32.mrf.mxu0
    %v4286 = vadd.f32 %v4215, %v4285
    %v4287 = vpop.f32.mrf.mxu0
    %v4288 = vadd.f32 %v4217, %v4287
    %4289 = vdwg.mxu0
    %4290 = vmatprep.subr.mxu0 0.0
    %4291 = vmatpush1.msra.mxu0 0.0
    %4292 = vmatprep.subr.mxu0 0.0
    %4293 = vmatpush1.msra.mxu0 0.0
    %4294 = vmatprep.subr.mxu0 0.0
    %4295 = vmatpush1.msra.mxu0 0.0
    %4296 = vmatprep.subr.mxu0 0.0
    %4297 = vmatpush1.msra.mxu0 0.0
    %4298 = vmatprep.subr.mxu0 0.0
    %4299 = vmatpush1.msra.mxu0 0.0
    %4300 = vmatprep.subr.mxu0 0.0
    %4301 = vmatpush1.msra.mxu0 0.0
    %4302 = vmatprep.subr.mxu0 0.0
    %4303 = vmatpush1.msra.mxu0 0.0
    %4304 = vmatprep.subr.mxu0 0.0
    %4305 = vmatpush1.msra.mxu0 0.0
    %4306 = vmatprep.subr.mxu0 0.0
    %4307 = vmatpush1.msra.mxu0 0.0
    %4308 = vmatprep.subr.mxu0 0.0
    %4309 = vmatpush1.msra.mxu0 0.0
    %4310 = vmatprep.subr.mxu0 0.0
    %4311 = vmatpush1.msra.mxu0 0.0
    %4312 = vmatprep.subr.mxu0 %v2007
    %4313 = vmatpush1.msra.mxu0 %v2004
    %4314 = vmatprep.subr.mxu0 %v1747
    %4315 = vmatpush1.msra.mxu0 %v1746
    %4316 = vmatprep.subr.mxu0 %v1722
    %4317 = vmatpush1.msra.mxu0 %v1721
    %4318 = vmatprep.subr.mxu0 %v1697
    %4319 = vmatpush1.msra.mxu0 %v1696
    %4320 = vmatprep.subr.mxu0 %v1672
    %4321 = vmatpush1.msra.mxu0 %v1671
    %4322 = vmatprep.subr.mxu0 0.0
    %4323 = vmatpush2.msra.mxu0 0.0
    %4324 = vmatprep.subr.mxu0 0.0
    %4325 = vmatpush2.msra.mxu0 0.0
    %4326 = vmatprep.subr.mxu0 0.0
    %4327 = vmatpush2.msra.mxu0 0.0
    %4328 = vmatprep.subr.mxu0 0.0
    %4329 = vmatpush2.msra.mxu0 0.0
    %4330 = vmatprep.subr.mxu0 0.0
    %4331 = vmatpush2.msra.mxu0 0.0
    %4332 = vmatprep.subr.mxu0 0.0
    %4333 = vmatpush2.msra.mxu0 0.0
    %4334 = vmatprep.subr.mxu0 0.0
    %4335 = vmatpush2.msra.mxu0 0.0
    %4336 = vmatprep.subr.mxu0 0.0
    %4337 = vmatpush2.msra.mxu0 0.0
    %4338 = vmatprep.subr.mxu0 0.0
    %4339 = vmatpush2.msra.mxu0 0.0
    %4340 = vmatprep.subr.mxu0 0.0
    %4341 = vmatpush2.msra.mxu0 0.0
    %4342 = vmatprep.subr.mxu0 0.0
    %4343 = vmatpush2.msra.mxu0 0.0
    %4344 = vmatprep.subr.mxu0 0.0
    %4345 = vmatpush2.msra.mxu0 0.0
    %4346 = vmatprep.subr.mxu0 0.0
    %4347 = vmatpush2.msra.mxu0 0.0
    %4348 = vmatprep.subr.mxu0 0.0
    %4349 = vmatpush2.msra.mxu0 0.0
    %4350 = vmatprep.subr.mxu0 0.0
    %4351 = vmatpush2.msra.mxu0 0.0
    %4352 = vmatprep.subr.mxu0 0.0
    %4353 = vmatpush2.msra.mxu0 0.0
    %4354 = vmatprep.mubr.f32.mxu0 0.0
    %4355 = vmatmul.mubr.f32.gmra.mxu0 %v1940
    %v4356 = vpop.f32.mrf.mxu0
    %v4357 = vadd.f32 %v4286, %v4356
    %v4358 = vpop.f32.mrf.mxu0
    %v4359 = vadd.f32 %v4288, %v4358
    %4360 = vdwg.mxu0
    %4361 = vmatprep.subr.mxu0 %v449
    %4362 = vmatpush1.msra.mxu0 %v448
    %4363 = vmatprep.subr.mxu0 %v424
    %4364 = vmatpush1.msra.mxu0 %v423
    %4365 = vmatprep.subr.mxu0 %v399
    %4366 = vmatpush1.msra.mxu0 %v398
    %4367 = vmatprep.subr.mxu0 %v374
    %4368 = vmatpush1.msra.mxu0 %v373
    %4369 = vmatprep.subr.mxu0 %v349
    %4370 = vmatpush1.msra.mxu0 %v348
    %4371 = vmatprep.subr.mxu0 %v324
    %4372 = vmatpush1.msra.mxu0 %v323
    %4373 = vmatprep.subr.mxu0 %v299
    %4374 = vmatpush1.msra.mxu0 %v298
    %4375 = vmatprep.subr.mxu0 %v274
    %4376 = vmatpush1.msra.mxu0 %v273
    %4377 = vmatprep.subr.mxu0 %v249
    %4378 = vmatpush1.msra.mxu0 %v248
    %4379 = vmatprep.subr.mxu0 %v224
    %4380 = vmatpush1.msra.mxu0 %v223
    %4381 = vmatprep.subr.mxu0 %v199
    %4382 = vmatpush1.msra.mxu0 %v198
    %4383 = vmatprep.subr.mxu0 %v174
    %4384 = vmatpush1.msra.mxu0 %v173
    %4385 = vmatprep.subr.mxu0 %v149
    %4386 = vmatpush1.msra.mxu0 %v148
    %4387 = vmatprep.subr.mxu0 %v124
    %4388 = vmatpush1.msra.mxu0 %v123
    %4389 = vmatprep.subr.mxu0 %v99
    %4390 = vmatpush1.msra.mxu0 %v98
    %4391 = vmatprep.subr.mxu0 %v74
    %4392 = vmatpush1.msra.mxu0 %v73
    %4393 = vmatprep.subr.mxu0 %v849
    %4394 = vmatpush2.msra.mxu0 %v848
    %4395 = vmatprep.subr.mxu0 %v824
    %4396 = vmatpush2.msra.mxu0 %v823
    %4397 = vmatprep.subr.mxu0 %v799
    %4398 = vmatpush2.msra.mxu0 %v798
    %4399 = vmatprep.subr.mxu0 %v774
    %4400 = vmatpush2.msra.mxu0 %v773
    %4401 = vmatprep.subr.mxu0 %v749
    %4402 = vmatpush2.msra.mxu0 %v748
    %4403 = vmatprep.subr.mxu0 %v724
    %4404 = vmatpush2.msra.mxu0 %v723
    %4405 = vmatprep.subr.mxu0 %v699
    %4406 = vmatpush2.msra.mxu0 %v698
    %4407 = vmatprep.subr.mxu0 %v674
    %4408 = vmatpush2.msra.mxu0 %v673
    %4409 = vmatprep.subr.mxu0 %v649
    %4410 = vmatpush2.msra.mxu0 %v648
    %4411 = vmatprep.subr.mxu0 %v624
    %4412 = vmatpush2.msra.mxu0 %v623
    %4413 = vmatprep.subr.mxu0 %v599
    %4414 = vmatpush2.msra.mxu0 %v598
    %4415 = vmatprep.subr.mxu0 %v574
    %4416 = vmatpush2.msra.mxu0 %v573
    %4417 = vmatprep.subr.mxu0 %v549
    %4418 = vmatpush2.msra.mxu0 %v548
    %4419 = vmatprep.subr.mxu0 %v524
    %4420 = vmatpush2.msra.mxu0 %v523
    %4421 = vmatprep.subr.mxu0 %v499
    %4422 = vmatpush2.msra.mxu0 %v498
    %4423 = vmatprep.subr.mxu0 %v474
    %4424 = vmatpush2.msra.mxu0 %v473
    %4425 = vmatprep.mubr.f32.mxu0 %v1926
    %4426 = vmatmul.mubr.f32.gmra.mxu0 %v1918
    %v4427 = vpop.f32.mrf.mxu0
    %v4428 = vadd.f32 %v1875, %v4427
    %v4429 = vpop.f32.mrf.mxu0
    %v4430 = vadd.f32 %v1879, %v4429
    %4431 = vdwg.mxu0
    %4432 = vmatprep.subr.mxu0 %v1249
    %4433 = vmatpush1.msra.mxu0 %v1248
    %4434 = vmatprep.subr.mxu0 %v1224
    %4435 = vmatpush1.msra.mxu0 %v1223
    %4436 = vmatprep.subr.mxu0 %v1199
    %4437 = vmatpush1.msra.mxu0 %v1198
    %4438 = vmatprep.subr.mxu0 %v1174
    %4439 = vmatpush1.msra.mxu0 %v1173
    %4440 = vmatprep.subr.mxu0 %v1149
    %4441 = vmatpush1.msra.mxu0 %v1148
    %4442 = vmatprep.subr.mxu0 %v1124
    %4443 = vmatpush1.msra.mxu0 %v1123
    %4444 = vmatprep.subr.mxu0 %v1099
    %4445 = vmatpush1.msra.mxu0 %v1098
    %4446 = vmatprep.subr.mxu0 %v1074
    %4447 = vmatpush1.msra.mxu0 %v1073
    %4448 = vmatprep.subr.mxu0 %v1049
    %4449 = vmatpush1.msra.mxu0 %v1048
    %4450 = vmatprep.subr.mxu0 %v1024
    %4451 = vmatpush1.msra.mxu0 %v1023
    %4452 = vmatprep.subr.mxu0 %v999
    %4453 = vmatpush1.msra.mxu0 %v998
    %4454 = vmatprep.subr.mxu0 %v974
    %4455 = vmatpush1.msra.mxu0 %v973
    %4456 = vmatprep.subr.mxu0 %v949
    %4457 = vmatpush1.msra.mxu0 %v948
    %4458 = vmatprep.subr.mxu0 %v924
    %4459 = vmatpush1.msra.mxu0 %v923
    %4460 = vmatprep.subr.mxu0 %v899
    %4461 = vmatpush1.msra.mxu0 %v898
    %4462 = vmatprep.subr.mxu0 %v874
    %4463 = vmatpush1.msra.mxu0 %v873
    %4464 = vmatprep.subr.mxu0 %v1649
    %4465 = vmatpush2.msra.mxu0 %v1648
    %4466 = vmatprep.subr.mxu0 %v1624
    %4467 = vmatpush2.msra.mxu0 %v1623
    %4468 = vmatprep.subr.mxu0 %v1599
    %4469 = vmatpush2.msra.mxu0 %v1598
    %4470 = vmatprep.subr.mxu0 %v1574
    %4471 = vmatpush2.msra.mxu0 %v1573
    %4472 = vmatprep.subr.mxu0 %v1549
    %4473 = vmatpush2.msra.mxu0 %v1548
    %4474 = vmatprep.subr.mxu0 %v1524
    %4475 = vmatpush2.msra.mxu0 %v1523
    %4476 = vmatprep.subr.mxu0 %v1499
    %4477 = vmatpush2.msra.mxu0 %v1498
    %4478 = vmatprep.subr.mxu0 %v1474
    %4479 = vmatpush2.msra.mxu0 %v1473
    %4480 = vmatprep.subr.mxu0 %v1449
    %4481 = vmatpush2.msra.mxu0 %v1448
    %4482 = vmatprep.subr.mxu0 %v1424
    %4483 = vmatpush2.msra.mxu0 %v1423
    %4484 = vmatprep.subr.mxu0 %v1399
    %4485 = vmatpush2.msra.mxu0 %v1398
    %4486 = vmatprep.subr.mxu0 %v1374
    %4487 = vmatpush2.msra.mxu0 %v1373
    %4488 = vmatprep.subr.mxu0 %v1349
    %4489 = vmatpush2.msra.mxu0 %v1348
    %4490 = vmatprep.subr.mxu0 %v1324
    %4491 = vmatpush2.msra.mxu0 %v1323
    %4492 = vmatprep.subr.mxu0 %v1299
    %4493 = vmatpush2.msra.mxu0 %v1298
    %4494 = vmatprep.subr.mxu0 %v1274
    %4495 = vmatpush2.msra.mxu0 %v1273
    %4496 = vmatprep.mubr.f32.mxu0 %v1927
    %4497 = vmatmul.mubr.f32.gmra.mxu0 %v1925
    %v4498 = vpop.f32.mrf.mxu0
    %v4499 = vadd.f32 %v4428, %v4498
    %v4500 = vpop.f32.mrf.mxu0
    %v4501 = vadd.f32 %v4430, %v4500
    %4502 = vdwg.mxu0
    %4503 = vmatprep.subr.mxu0 0.0
    %4504 = vmatpush1.msra.mxu0 0.0
    %4505 = vmatprep.subr.mxu0 0.0
    %4506 = vmatpush1.msra.mxu0 0.0
    %4507 = vmatprep.subr.mxu0 0.0
    %4508 = vmatpush1.msra.mxu0 0.0
    %4509 = vmatprep.subr.mxu0 0.0
    %4510 = vmatpush1.msra.mxu0 0.0
    %4511 = vmatprep.subr.mxu0 0.0
    %4512 = vmatpush1.msra.mxu0 0.0
    %4513 = vmatprep.subr.mxu0 0.0
    %4514 = vmatpush1.msra.mxu0 0.0
    %4515 = vmatprep.subr.mxu0 0.0
    %4516 = vmatpush1.msra.mxu0 0.0
    %4517 = vmatprep.subr.mxu0 0.0
    %4518 = vmatpush1.msra.mxu0 0.0
    %4519 = vmatprep.subr.mxu0 0.0
    %4520 = vmatpush1.msra.mxu0 0.0
    %4521 = vmatprep.subr.mxu0 0.0
    %4522 = vmatpush1.msra.mxu0 0.0
    %4523 = vmatprep.subr.mxu0 0.0
    %4524 = vmatpush1.msra.mxu0 0.0
    %4525 = vmatprep.subr.mxu0 %v2013
    %4526 = vmatpush1.msra.mxu0 %v2010
    %4527 = vmatprep.subr.mxu0 %v1749
    %4528 = vmatpush1.msra.mxu0 %v1748
    %4529 = vmatprep.subr.mxu0 %v1724
    %4530 = vmatpush1.msra.mxu0 %v1723
    %4531 = vmatprep.subr.mxu0 %v1699
    %4532 = vmatpush1.msra.mxu0 %v1698
    %4533 = vmatprep.subr.mxu0 %v1674
    %4534 = vmatpush1.msra.mxu0 %v1673
    %4535 = vmatprep.subr.mxu0 0.0
    %4536 = vmatpush2.msra.mxu0 0.0
    %4537 = vmatprep.subr.mxu0 0.0
    %4538 = vmatpush2.msra.mxu0 0.0
    %4539 = vmatprep.subr.mxu0 0.0
    %4540 = vmatpush2.msra.mxu0 0.0
    %4541 = vmatprep.subr.mxu0 0.0
    %4542 = vmatpush2.msra.mxu0 0.0
    %4543 = vmatprep.subr.mxu0 0.0
    %4544 = vmatpush2.msra.mxu0 0.0
    %4545 = vmatprep.subr.mxu0 0.0
    %4546 = vmatpush2.msra.mxu0 0.0
    %4547 = vmatprep.subr.mxu0 0.0
    %4548 = vmatpush2.msra.mxu0 0.0
    %4549 = vmatprep.subr.mxu0 0.0
    %4550 = vmatpush2.msra.mxu0 0.0
    %4551 = vmatprep.subr.mxu0 0.0
    %4552 = vmatpush2.msra.mxu0 0.0
    %4553 = vmatprep.subr.mxu0 0.0
    %4554 = vmatpush2.msra.mxu0 0.0
    %4555 = vmatprep.subr.mxu0 0.0
    %4556 = vmatpush2.msra.mxu0 0.0
    %4557 = vmatprep.subr.mxu0 0.0
    %4558 = vmatpush2.msra.mxu0 0.0
    %4559 = vmatprep.subr.mxu0 0.0
    %4560 = vmatpush2.msra.mxu0 0.0
    %4561 = vmatprep.subr.mxu0 0.0
    %4562 = vmatpush2.msra.mxu0 0.0
    %4563 = vmatprep.subr.mxu0 0.0
    %4564 = vmatpush2.msra.mxu0 0.0
    %4565 = vmatprep.subr.mxu0 0.0
    %4566 = vmatpush2.msra.mxu0 0.0
    %4567 = vmatprep.mubr.f32.mxu0 0.0
    %4568 = vmatmul.mubr.f32.gmra.mxu0 %v1940
    %v4569 = vpop.f32.mrf.mxu0
    %v4570 = vadd.f32 %v4499, %v4569
    %v4571 = vpop.f32.mrf.mxu0
    %v4572 = vadd.f32 %v4501, %v4571
    %4573 = vdwg.mxu0
    %4574 = vmatprep.subr.mxu0 0.0
    %4575 = vmatpush1.msra.mxu0 %v450
    %4576 = vmatprep.subr.mxu0 0.0
    %4577 = vmatpush1.msra.mxu0 %v425
    %4578 = vmatprep.subr.mxu0 0.0
    %4579 = vmatpush1.msra.mxu0 %v400
    %4580 = vmatprep.subr.mxu0 0.0
    %4581 = vmatpush1.msra.mxu0 %v375
    %4582 = vmatprep.subr.mxu0 0.0
    %4583 = vmatpush1.msra.mxu0 %v350
    %4584 = vmatprep.subr.mxu0 0.0
    %4585 = vmatpush1.msra.mxu0 %v325
    %4586 = vmatprep.subr.mxu0 0.0
    %4587 = vmatpush1.msra.mxu0 %v300
    %4588 = vmatprep.subr.mxu0 0.0
    %4589 = vmatpush1.msra.mxu0 %v275
    %4590 = vmatprep.subr.mxu0 0.0
    %4591 = vmatpush1.msra.mxu0 %v250
    %4592 = vmatprep.subr.mxu0 0.0
    %4593 = vmatpush1.msra.mxu0 %v225
    %4594 = vmatprep.subr.mxu0 0.0
    %4595 = vmatpush1.msra.mxu0 %v200
    %4596 = vmatprep.subr.mxu0 0.0
    %4597 = vmatpush1.msra.mxu0 %v175
    %4598 = vmatprep.subr.mxu0 0.0
    %4599 = vmatpush1.msra.mxu0 %v150
    %4600 = vmatprep.subr.mxu0 0.0
    %4601 = vmatpush1.msra.mxu0 %v125
    %4602 = vmatprep.subr.mxu0 0.0
    %4603 = vmatpush1.msra.mxu0 %v100
    %4604 = vmatprep.subr.mxu0 0.0
    %4605 = vmatpush1.msra.mxu0 %v75
    %4606 = vmatprep.subr.mxu0 0.0
    %4607 = vmatpush2.msra.mxu0 %v850
    %4608 = vmatprep.subr.mxu0 0.0
    %4609 = vmatpush2.msra.mxu0 %v825
    %4610 = vmatprep.subr.mxu0 0.0
    %4611 = vmatpush2.msra.mxu0 %v800
    %4612 = vmatprep.subr.mxu0 0.0
    %4613 = vmatpush2.msra.mxu0 %v775
    %4614 = vmatprep.subr.mxu0 0.0
    %4615 = vmatpush2.msra.mxu0 %v750
    %4616 = vmatprep.subr.mxu0 0.0
    %4617 = vmatpush2.msra.mxu0 %v725
    %4618 = vmatprep.subr.mxu0 0.0
    %4619 = vmatpush2.msra.mxu0 %v700
    %4620 = vmatprep.subr.mxu0 0.0
    %4621 = vmatpush2.msra.mxu0 %v675
    %4622 = vmatprep.subr.mxu0 0.0
    %4623 = vmatpush2.msra.mxu0 %v650
    %4624 = vmatprep.subr.mxu0 0.0
    %4625 = vmatpush2.msra.mxu0 %v625
    %4626 = vmatprep.subr.mxu0 0.0
    %4627 = vmatpush2.msra.mxu0 %v600
    %4628 = vmatprep.subr.mxu0 0.0
    %4629 = vmatpush2.msra.mxu0 %v575
    %4630 = vmatprep.subr.mxu0 0.0
    %4631 = vmatpush2.msra.mxu0 %v550
    %4632 = vmatprep.subr.mxu0 0.0
    %4633 = vmatpush2.msra.mxu0 %v525
    %4634 = vmatprep.subr.mxu0 0.0
    %4635 = vmatpush2.msra.mxu0 %v500
    %4636 = vmatprep.subr.mxu0 0.0
    %4637 = vmatpush2.msra.mxu0 %v475
    %4638 = vmatprep.mubr.f32.mxu0 %v1926
    %4639 = vmatmul.mubr.f32.gmra.mxu0 %v1918
    %v4640 = vpop.f32.mrf.mxu0
    %v4641 = vadd.f32 %v1883, %v4640
    %v4642 = vpop.f32.mrf.mxu0
    %4643 = vdwg.mxu0
    %4644 = vmatprep.subr.mxu0 0.0
    %4645 = vmatpush1.msra.mxu0 %v1250
    %4646 = vmatprep.subr.mxu0 0.0
    %4647 = vmatpush1.msra.mxu0 %v1225
    %4648 = vmatprep.subr.mxu0 0.0
    %4649 = vmatpush1.msra.mxu0 %v1200
    %4650 = vmatprep.subr.mxu0 0.0
    %4651 = vmatpush1.msra.mxu0 %v1175
    %4652 = vmatprep.subr.mxu0 0.0
    %4653 = vmatpush1.msra.mxu0 %v1150
    %4654 = vmatprep.subr.mxu0 0.0
    %4655 = vmatpush1.msra.mxu0 %v1125
    %4656 = vmatprep.subr.mxu0 0.0
    %4657 = vmatpush1.msra.mxu0 %v1100
    %4658 = vmatprep.subr.mxu0 0.0
    %4659 = vmatpush1.msra.mxu0 %v1075
    %4660 = vmatprep.subr.mxu0 0.0
    %4661 = vmatpush1.msra.mxu0 %v1050
    %4662 = vmatprep.subr.mxu0 0.0
    %4663 = vmatpush1.msra.mxu0 %v1025
    %4664 = vmatprep.subr.mxu0 0.0
    %4665 = vmatpush1.msra.mxu0 %v1000
    %4666 = vmatprep.subr.mxu0 0.0
    %4667 = vmatpush1.msra.mxu0 %v975
    %4668 = vmatprep.subr.mxu0 0.0
    %4669 = vmatpush1.msra.mxu0 %v950
    %4670 = vmatprep.subr.mxu0 0.0
    %4671 = vmatpush1.msra.mxu0 %v925
    %4672 = vmatprep.subr.mxu0 0.0
    %4673 = vmatpush1.msra.mxu0 %v900
    %4674 = vmatprep.subr.mxu0 0.0
    %4675 = vmatpush1.msra.mxu0 %v875
    %4676 = vmatprep.subr.mxu0 0.0
    %4677 = vmatpush2.msra.mxu0 %v1650
    %4678 = vmatprep.subr.mxu0 0.0
    %4679 = vmatpush2.msra.mxu0 %v1625
    %4680 = vmatprep.subr.mxu0 0.0
    %4681 = vmatpush2.msra.mxu0 %v1600
    %4682 = vmatprep.subr.mxu0 0.0
    %4683 = vmatpush2.msra.mxu0 %v1575
    %4684 = vmatprep.subr.mxu0 0.0
    %4685 = vmatpush2.msra.mxu0 %v1550
    %4686 = vmatprep.subr.mxu0 0.0
    %4687 = vmatpush2.msra.mxu0 %v1525
    %4688 = vmatprep.subr.mxu0 0.0
    %4689 = vmatpush2.msra.mxu0 %v1500
    %4690 = vmatprep.subr.mxu0 0.0
    %4691 = vmatpush2.msra.mxu0 %v1475
    %4692 = vmatprep.subr.mxu0 0.0
    %4693 = vmatpush2.msra.mxu0 %v1450
    %4694 = vmatprep.subr.mxu0 0.0
    %4695 = vmatpush2.msra.mxu0 %v1425
    %4696 = vmatprep.subr.mxu0 0.0
    %4697 = vmatpush2.msra.mxu0 %v1400
    %4698 = vmatprep.subr.mxu0 0.0
    %4699 = vmatpush2.msra.mxu0 %v1375
    %4700 = vmatprep.subr.mxu0 0.0
    %4701 = vmatpush2.msra.mxu0 %v1350
    %4702 = vmatprep.subr.mxu0 0.0
    %4703 = vmatpush2.msra.mxu0 %v1325
    %4704 = vmatprep.subr.mxu0 0.0
    %4705 = vmatpush2.msra.mxu0 %v1300
    %4706 = vmatprep.subr.mxu0 0.0
    %4707 = vmatpush2.msra.mxu0 %v1275
    %4708 = vmatprep.mubr.f32.mxu0 %v1927
    %4709 = vmatmul.mubr.f32.gmra.mxu0 %v1925
    %v4710 = vpop.f32.mrf.mxu0
    %v4711 = vadd.f32 %v4641, %v4710
    %v4712 = vpop.f32.mrf.mxu0
    %4713 = vdwg.mxu0
    %4714 = vmatprep.subr.mxu0 0.0
    %4715 = vmatpush1.msra.mxu0 0.0
    %4716 = vmatprep.subr.mxu0 0.0
    %4717 = vmatpush1.msra.mxu0 0.0
    %4718 = vmatprep.subr.mxu0 0.0
    %4719 = vmatpush1.msra.mxu0 0.0
    %4720 = vmatprep.subr.mxu0 0.0
    %4721 = vmatpush1.msra.mxu0 0.0
    %4722 = vmatprep.subr.mxu0 0.0
    %4723 = vmatpush1.msra.mxu0 0.0
    %4724 = vmatprep.subr.mxu0 0.0
    %4725 = vmatpush1.msra.mxu0 0.0
    %4726 = vmatprep.subr.mxu0 0.0
    %4727 = vmatpush1.msra.mxu0 0.0
    %4728 = vmatprep.subr.mxu0 0.0
    %4729 = vmatpush1.msra.mxu0 0.0
    %4730 = vmatprep.subr.mxu0 0.0
    %4731 = vmatpush1.msra.mxu0 0.0
    %4732 = vmatprep.subr.mxu0 0.0
    %4733 = vmatpush1.msra.mxu0 0.0
    %4734 = vmatprep.subr.mxu0 0.0
    %4735 = vmatpush1.msra.mxu0 0.0
    %4736 = vmatprep.subr.mxu0 0.0
    %4737 = vmatpush1.msra.mxu0 %v2016
    %4738 = vmatprep.subr.mxu0 0.0
    %4739 = vmatpush1.msra.mxu0 %v1750
    %4740 = vmatprep.subr.mxu0 0.0
    %4741 = vmatpush1.msra.mxu0 %v1725
    %4742 = vmatprep.subr.mxu0 0.0
    %4743 = vmatpush1.msra.mxu0 %v1700
    %4744 = vmatprep.subr.mxu0 0.0
    %4745 = vmatpush1.msra.mxu0 %v1675
    %4746 = vmatprep.subr.mxu0 0.0
    %4747 = vmatpush2.msra.mxu0 0.0
    %4748 = vmatprep.subr.mxu0 0.0
    %4749 = vmatpush2.msra.mxu0 0.0
    %4750 = vmatprep.subr.mxu0 0.0
    %4751 = vmatpush2.msra.mxu0 0.0
    %4752 = vmatprep.subr.mxu0 0.0
    %4753 = vmatpush2.msra.mxu0 0.0
    %4754 = vmatprep.subr.mxu0 0.0
    %4755 = vmatpush2.msra.mxu0 0.0
    %4756 = vmatprep.subr.mxu0 0.0
    %4757 = vmatpush2.msra.mxu0 0.0
    %4758 = vmatprep.subr.mxu0 0.0
    %4759 = vmatpush2.msra.mxu0 0.0
    %4760 = vmatprep.subr.mxu0 0.0
    %4761 = vmatpush2.msra.mxu0 0.0
    %4762 = vmatprep.subr.mxu0 0.0
    %4763 = vmatpush2.msra.mxu0 0.0
    %4764 = vmatprep.subr.mxu0 0.0
    %4765 = vmatpush2.msra.mxu0 0.0
    %4766 = vmatprep.subr.mxu0 0.0
    %4767 = vmatpush2.msra.mxu0 0.0
    %4768 = vmatprep.subr.mxu0 0.0
    %4769 = vmatpush2.msra.mxu0 0.0
    %4770 = vmatprep.subr.mxu0 0.0
    %4771 = vmatpush2.msra.mxu0 0.0
    %4772 = vmatprep.subr.mxu0 0.0
    %4773 = vmatpush2.msra.mxu0 0.0
    %4774 = vmatprep.subr.mxu0 0.0
    %4775 = vmatpush2.msra.mxu0 0.0
    %4776 = vmatprep.subr.mxu0 0.0
    %4777 = vmatpush2.msra.mxu0 0.0
    %4778 = vmatprep.mubr.f32.mxu0 0.0
    %4779 = vmatmul.mubr.f32.gmra.mxu0 %v1940
    %v4780 = vpop.f32.mrf.mxu0
    %v4781 = vadd.f32 %v4711, %v4780
    %v4782 = vpop.f32.mrf.mxu0
    %4783 = vdwg.mxu0
    %4784 = vst [vmem:[#allocation2] sm:$0xff] 0.0
    %4785 = vst [vmem:[#allocation2 + $0x8] sm:$0xff] 0.0
    %4786 = vst [vmem:[#allocation2 + $0x10] sm:$0xff] 0.0
    %v4787 = vlaneseq
    %vm4788 = vcmp.ge.s32.totalorder %v4787, 0
    %vm4789 = vcmp.lt.s32.totalorder %v4787, 320
    %vm4790 = vmand %vm4788, %vm4789
    %4791 = vst.msk [vmem:[#allocation2 + $0x18] sm:$0x7] %vm4790, 0.0
    %4792 = vst [vmem:[#allocation2 + $0x1b] sm:$0xff] 0.0
    %4793 = vst [vmem:[#allocation2 + $0x23] sm:$0xff] 0.0
    %4794 = vst [vmem:[#allocation2 + $0x2b] sm:$0xff] 0.0
    %4795 = vst.msk [vmem:[#allocation2 + $0x33] sm:$0x7] %vm4790, 0.0
    %4796 = vst [vmem:[#allocation3] sm:$0xff] 0.0
    %4797 = vst [vmem:[#allocation3 + $0x8] sm:$0xff] 0.0
    %4798 = vst [vmem:[#allocation3 + $0x10] sm:$0xff] 0.0
    %4799 = vst [vmem:[#allocation3 + $0x18] sm:$0xff] 0.0
    %4800 = vst [vmem:[#allocation3 + $0x20] sm:$0xff] 0.0
    %4801 = vst [vmem:[#allocation3 + $0x28] sm:$0xff] 0.0
    %4802 = vst [vmem:[#allocation3 + $0x30] sm:$0xff] 0.0
    %4803 = vst [vmem:[#allocation3 + $0x38] sm:$0xff] 0.0
    %4804 = vst [vmem:[#allocation3 + $0x40] sm:$0xff] 0.0
    %4805 = vst [vmem:[#allocation3 + $0x48] sm:$0xff] 0.0
    %4806 = vst [vmem:[#allocation3 + $0x50] sm:$0xff] 0.0
    %4807 = vst [vmem:[#allocation3 + $0x58] sm:$0xff] 0.0
    %4808 = vst [vmem:[#allocation3 + $0x60] sm:$0xff] 0.0
    %4809 = vst [vmem:[#allocation3 + $0x68] sm:$0xff] 0.0
    %4810 = vst [vmem:[#allocation3 + $0x70] sm:$0xff] 0.0
    %4811 = vst [vmem:[#allocation3 + $0x78] sm:$0xff] 0.0
    %4812 = vst [vmem:[#allocation3 + $0x80] sm:$0xff] 0.0
    %4813 = vst [vmem:[#allocation3 + $0x88] sm:$0xff] 0.0
    %4814 = vst [vmem:[#allocation3 + $0x90] sm:$0xff] 0.0
    %4815 = vst [vmem:[#allocation3 + $0x98] sm:$0xff] 0.0
    %4816 = vst [vmem:[#allocation3 + $0xa0] sm:$0xff] 0.0
    %4817 = vst [vmem:[#allocation3 + $0xa8] sm:$0xff] 0.0
    %4818 = vst [vmem:[#allocation3 + $0xb0] sm:$0xff] 0.0
    %4819 = vst [vmem:[#allocation3 + $0xb8] sm:$0xff] 0.0
    %vm4820 = vcmask 523264
    %4821 = vst.msk [vmem:[#allocation3 + $0xc0] sm:$0xff] %vm4820, 0.0
    %4822 = vst [vmem:[#allocation3 + $0xc8] sm:$0xff] 0.0
    %4823 = vst [vmem:[#allocation3 + $0xd0] sm:$0xff] 0.0
    %4824 = vst [vmem:[#allocation3 + $0xd8] sm:$0xff] 0.0
    %4825 = vst [vmem:[#allocation3 + $0xe0] sm:$0xff] 0.0
    %4826 = vst [vmem:[#allocation3 + $0xe8] sm:$0xff] 0.0
    %4827 = vst [vmem:[#allocation3 + $0xf0] sm:$0xff] 0.0
    %4828 = vst [vmem:[#allocation3 + $0xf8] sm:$0xff] 0.0
    %4829 = vst [vmem:[#allocation3 + $0x100] sm:$0xff] 0.0
    %4830 = vst [vmem:[#allocation3 + $0x108] sm:$0xff] 0.0
    %4831 = vst [vmem:[#allocation3 + $0x110] sm:$0xff] 0.0
    %4832 = vst [vmem:[#allocation3 + $0x118] sm:$0xff] 0.0
    %4833 = vst [vmem:[#allocation3 + $0x120] sm:$0xff] 0.0
    %4834 = vst [vmem:[#allocation3 + $0x128] sm:$0xff] 0.0
    %4835 = vst [vmem:[#allocation3 + $0x130] sm:$0xff] 0.0
    %4836 = vst [vmem:[#allocation3 + $0x138] sm:$0xff] 0.0
    %4837 = vst [vmem:[#allocation3 + $0x140] sm:$0xff] 0.0
    %4838 = vst [vmem:[#allocation3 + $0x148] sm:$0xff] 0.0
    %4839 = vst [vmem:[#allocation3 + $0x150] sm:$0xff] 0.0
    %4840 = vst [vmem:[#allocation3 + $0x158] sm:$0xff] 0.0
    %4841 = vst [vmem:[#allocation3 + $0x160] sm:$0xff] 0.0
    %4842 = vst [vmem:[#allocation3 + $0x168] sm:$0xff] 0.0
    %4843 = vst [vmem:[#allocation3 + $0x170] sm:$0xff] 0.0
    %4844 = vst [vmem:[#allocation3 + $0x178] sm:$0xff] 0.0
    %4845 = vst [vmem:[#allocation3 + $0x180] sm:$0xff] 0.0
    %4846 = vst.msk [vmem:[#allocation3 + $0x188] sm:$0xff] %vm4820, 0.0
    %v4872 = vcombine.low %v2227, %v2229
    %v4873 = vcombine.low %v2440, %v2442
    %v4874 = vcombine.low %v2653, %v2655
    %v4875 = vcombine.low %v2866, %v2868
    %v4877 = vunpack.c.l.s4 1966171168
    %v4878 = vunpack.c.0.s8 %v4877
    %v4879 = vlaneseq
    %v4880 = vshrl.u32 %v4879, 7
    %v4881 = vsub.s32 %v4878, %v4880
    %v4882 = vrot.slane %v4872, %v4881
    %v4884 = vunpack.c.l.s4 1966171168
    %v4885 = vunpack.c.0.s8 %v4884
    %v4886 = vlaneseq
    %v4887 = vshrl.u32 %v4886, 7
    %v4888 = vsub.s32 %v4885, %v4887
    %v4889 = vrot.slane %v4873, %v4888
    %v4891 = vunpack.c.l.s4 1966171168
    %v4892 = vunpack.c.0.s8 %v4891
    %v4893 = vlaneseq
    %v4894 = vshrl.u32 %v4893, 7
    %v4895 = vsub.s32 %v4892, %v4894
    %v4896 = vrot.slane %v4874, %v4895
    %v4898 = vunpack.c.l.s4 1966171168
    %v4899 = vunpack.c.0.s8 %v4898
    %v4900 = vlaneseq
    %v4901 = vshrl.u32 %v4900, 7
    %v4902 = vsub.s32 %v4899, %v4901
    %v4903 = vrot.slane %v4875, %v4902
    %v4904 = vcombine.low %v4882, %v4889
    %v4905 = vcombine.low %v4896, %v4903
    %v4907 = vunpack.c.l.s4 1966171168
    %v4908 = vunpack.c.0.s8 %v4907
    %v4909 = vlaneseq
    %v4910 = vshrl.u32 %v4909, 7
    %v4911 = vsub.s32 %v4908, %v4910
    %v4912 = vrot.slane %v4904, %v4911
    %v4914 = vunpack.c.l.s4 1966171168
    %v4915 = vunpack.c.0.s8 %v4914
    %v4916 = vlaneseq
    %v4917 = vshrl.u32 %v4916, 7
    %v4918 = vsub.s32 %v4915, %v4917
    %v4919 = vrot.slane %v4905, %v4918
    %v4920 = vcombine.low %v4912, %v4919
    %v4921 = vcombine.low %v3079, %v3081
    %v4922 = vcombine.low %v3292, %v3294
    %v4923 = vcombine.low %v3505, %v3507
    %v4924 = vcombine.low %v3718, %v3720
    %v4926 = vunpack.c.l.s4 1966171168
    %v4927 = vunpack.c.0.s8 %v4926
    %v4928 = vlaneseq
    %v4929 = vshrl.u32 %v4928, 7
    %v4930 = vsub.s32 %v4927, %v4929
    %v4931 = vrot.slane %v4921, %v4930
    %v4933 = vunpack.c.l.s4 1966171168
    %v4934 = vunpack.c.0.s8 %v4933
    %v4935 = vlaneseq
    %v4936 = vshrl.u32 %v4935, 7
    %v4937 = vsub.s32 %v4934, %v4936
    %v4938 = vrot.slane %v4922, %v4937
    %v4940 = vunpack.c.l.s4 1966171168
    %v4941 = vunpack.c.0.s8 %v4940
    %v4942 = vlaneseq
    %v4943 = vshrl.u32 %v4942, 7
    %v4944 = vsub.s32 %v4941, %v4943
    %v4945 = vrot.slane %v4923, %v4944
    %v4947 = vunpack.c.l.s4 1966171168
    %v4948 = vunpack.c.0.s8 %v4947
    %v4949 = vlaneseq
    %v4950 = vshrl.u32 %v4949, 7
    %v4951 = vsub.s32 %v4948, %v4950
    %v4952 = vrot.slane %v4924, %v4951
    %v4953 = vcombine.low %v4931, %v4938
    %v4954 = vcombine.low %v4945, %v4952
    %v4956 = vunpack.c.l.s4 1966171168
    %v4957 = vunpack.c.0.s8 %v4956
    %v4958 = vlaneseq
    %v4959 = vshrl.u32 %v4958, 7
    %v4960 = vsub.s32 %v4957, %v4959
    %v4961 = vrot.slane %v4953, %v4960
    %v4963 = vunpack.c.l.s4 1966171168
    %v4964 = vunpack.c.0.s8 %v4963
    %v4965 = vlaneseq
    %v4966 = vshrl.u32 %v4965, 7
    %v4967 = vsub.s32 %v4964, %v4966
    %v4968 = vrot.slane %v4954, %v4967
    %v4969 = vcombine.low %v4961, %v4968
    %v4970 = vcombine.low %v3931, %v3933
    %v4971 = vcombine.low %v4144, %v4146
    %v4972 = vcombine.low %v4357, %v4359
    %v4973 = vcombine.low %v4570, %v4572
    %v4975 = vunpack.c.l.s4 1966171168
    %v4976 = vunpack.c.0.s8 %v4975
    %v4977 = vlaneseq
    %v4978 = vshrl.u32 %v4977, 7
    %v4979 = vsub.s32 %v4976, %v4978
    %v4980 = vrot.slane %v4970, %v4979
    %v4982 = vunpack.c.l.s4 1966171168
    %v4983 = vunpack.c.0.s8 %v4982
    %v4984 = vlaneseq
    %v4985 = vshrl.u32 %v4984, 7
    %v4986 = vsub.s32 %v4983, %v4985
    %v4987 = vrot.slane %v4971, %v4986
    %v4989 = vunpack.c.l.s4 1966171168
    %v4990 = vunpack.c.0.s8 %v4989
    %v4991 = vlaneseq
    %v4992 = vshrl.u32 %v4991, 7
    %v4993 = vsub.s32 %v4990, %v4992
    %v4994 = vrot.slane %v4972, %v4993
    %v4996 = vunpack.c.l.s4 1966171168
    %v4997 = vunpack.c.0.s8 %v4996
    %v4998 = vlaneseq
    %v4999 = vshrl.u32 %v4998, 7
    %v5000 = vsub.s32 %v4997, %v4999
    %v5001 = vrot.slane %v4973, %v5000
    %v5002 = vcombine.low %v4980, %v4987
    %v5003 = vcombine.low %v4994, %v5001
    %v5005 = vunpack.c.l.s4 1966171168
    %v5006 = vunpack.c.0.s8 %v5005
    %v5007 = vlaneseq
    %v5008 = vshrl.u32 %v5007, 7
    %v5009 = vsub.s32 %v5006, %v5008
    %v5010 = vrot.slane %v5002, %v5009
    %v5012 = vunpack.c.l.s4 1966171168
    %v5013 = vunpack.c.0.s8 %v5012
    %v5014 = vlaneseq
    %v5015 = vshrl.u32 %v5014, 7
    %v5016 = vsub.s32 %v5013, %v5015
    %v5017 = vrot.slane %v5003, %v5016
    %v5018 = vcombine.low %v5010, %v5017
    %v5020 = vunpack.c.l.s4 1966171168
    %v5021 = vunpack.c.0.s8 %v5020
    %v5022 = vlaneseq
    %v5023 = vshrl.u32 %v5022, 7
    %v5024 = vsub.s32 %v5021, %v5023
    %v5025 = vrot.slane %v4781, %v5024
    %v5027 = vunpack.c.l.s4 1966171168
    %v5028 = vunpack.c.0.s8 %v5027
    %v5029 = vlaneseq
    %v5030 = vshrl.u32 %v5029, 7
    %v5031 = vsub.s32 %v5028, %v5030
    %v5032 = vrot.slane %v5025, %v5031
    %5037 = vst [vmem:[#allocation2 + $0x1] sm:$0xff] %v4920
    %5038 = vst [vmem:[#allocation2 + $0x9] sm:$0xff] %v4969
    %5039 = vst [vmem:[#allocation2 + $0x11] sm:$0xff] %v5018
    %vm5040 = vcmp.lt.s32.totalorder %v4787, 64
    %vm5041 = vmand %vm4788, %vm5040
    %5042 = vst.msk [vmem:[#allocation2 + $0x19] sm:$0x1] %vm5041, %v5032
    %v5043 = vcombine.high %v4882, %v4889
    %v5044 = vcombine.high %v4896, %v4903
    %v5046 = vunpack.c.l.s4 1966171168
    %v5047 = vunpack.c.0.s8 %v5046
    %v5048 = vlaneseq
    %v5049 = vshrl.u32 %v5048, 7
    %v5050 = vsub.s32 %v5047, %v5049
    %v5051 = vrot.slane %v5043, %v5050
    %v5053 = vunpack.c.l.s4 1966171168
    %v5054 = vunpack.c.0.s8 %v5053
    %v5055 = vlaneseq
    %v5056 = vshrl.u32 %v5055, 7
    %v5057 = vsub.s32 %v5054, %v5056
    %v5058 = vrot.slane %v5044, %v5057
    %v5059 = vcombine.low %v5051, %v5058
    %v5060 = vcombine.high %v4931, %v4938
    %v5061 = vcombine.high %v4945, %v4952
    %v5063 = vunpack.c.l.s4 1966171168
    %v5064 = vunpack.c.0.s8 %v5063
    %v5065 = vlaneseq
    %v5066 = vshrl.u32 %v5065, 7
    %v5067 = vsub.s32 %v5064, %v5066
    %v5068 = vrot.slane %v5060, %v5067
    %v5070 = vunpack.c.l.s4 1966171168
    %v5071 = vunpack.c.0.s8 %v5070
    %v5072 = vlaneseq
    %v5073 = vshrl.u32 %v5072, 7
    %v5074 = vsub.s32 %v5071, %v5073
    %v5075 = vrot.slane %v5061, %v5074
    %v5076 = vcombine.low %v5068, %v5075
    %v5077 = vcombine.high %v4980, %v4987
    %v5078 = vcombine.high %v4994, %v5001
    %v5080 = vunpack.c.l.s4 1966171168
    %v5081 = vunpack.c.0.s8 %v5080
    %v5082 = vlaneseq
    %v5083 = vshrl.u32 %v5082, 7
    %v5084 = vsub.s32 %v5081, %v5083
    %v5085 = vrot.slane %v5077, %v5084
    %v5087 = vunpack.c.l.s4 1966171168
    %v5088 = vunpack.c.0.s8 %v5087
    %v5089 = vlaneseq
    %v5090 = vshrl.u32 %v5089, 7
    %v5091 = vsub.s32 %v5088, %v5090
    %v5092 = vrot.slane %v5078, %v5091
    %v5093 = vcombine.low %v5085, %v5092
    %v5094 = vcombine.high %v5025, %v5025
    %v5096 = vunpack.c.l.s4 1966171168
    %v5097 = vunpack.c.0.s8 %v5096
    %v5098 = vlaneseq
    %v5099 = vshrl.u32 %v5098, 7
    %v5100 = vsub.s32 %v5097, %v5099
    %v5101 = vrot.slane %v5094, %v5100
    %s5106 = scalar_lea.vmem [#allocation2], 27
    %5107 = vst [vmem:[%s5106 + $0x1] sm:$0xff] %v5059
    %5108 = vst [vmem:[%s5106 + $0x9] sm:$0xff] %v5076
    %5109 = vst [vmem:[%s5106 + $0x11] sm:$0xff] %v5093
    %5110 = vst.msk [vmem:[%s5106 + $0x19] sm:$0x1] %vm5041, %v5101
    %v5111 = vld [vmem:[#allocation2] sm:$0xff]
    %v5112 = vld [vmem:[#allocation2 + $0x8] sm:$0xff]
    %v5113 = vld [vmem:[#allocation2 + $0x10] sm:$0xff]
    %v5114 = vld [vmem:[#allocation2 + $0x18] sm:$0x3]
    %v5115 = vld [vmem:[%s5] ss:$2 sm:$0xff]
    %s5116 = scalar_lea.vmem %s5, 16
    %v5117 = vld [vmem:[%s5116] ss:$2 sm:$0xff]
    %s5118 = scalar_lea.vmem %s5, 32
    %v5119 = vld [vmem:[%s5118] ss:$2 sm:$0xff]
    %s5120 = scalar_lea.vmem %s5, 48
    %v5121 = vld [vmem:[%s5120] ss:$2 sm:$0x1]
    %5126 = vrot.lane.b32.xlu0 %v5115, 71
    %v5127 = vpop.permute.xlu0 %5126
    %5128 = vrot.lane.b32.xlu0 %v5117, 71
    %v5129 = vpop.permute.xlu0 %5128
    %5130 = vrot.lane.b32.xlu0 %v5119, 71
    %v5131 = vpop.permute.xlu0 %5130
    %5132 = vrot.lane.b32.xlu0 %v5121, 71
    %v5133 = vpop.permute.xlu0 %5132
    %v5134 = vrot.slane %v5127, 7
    %v5135 = vrot.slane %v5129, 7
    %v5136 = vrot.slane %v5131, 7
    %v5137 = vrot.slane %v5133, 7
    %vm5138 = vcmask 580608
    %v5139 = vsel %vm5138, %v5134, %v5127
    %vm5140 = vcmask 1040384
    %v5141 = vsel %vm5140, %v5134, %v5135
    %v5142 = vsel %vm5138, %v5141, %v5129
    %v5143 = vsel %vm5140, %v5135, %v5136
    %v5144 = vsel %vm5138, %v5143, %v5131
    %v5145 = vsel %vm5140, %v5136, %v5137
    %v5146 = vsel %vm5138, %v5145, %v5133
    %v5151 = vmul.f32 %v5111, %v5139
    %v5152 = vmul.f32 %v5112, %v5142
    %v5153 = vmul.f32 %v5113, %v5144
    %v5154 = vmul.f32 %v5114, %v5146
    %5159 = vrot.lane.b32.xlu0 %v5151, 57
    %v5160 = vpop.permute.xlu0 %5159
    %5161 = vrot.lane.b32.xlu0 %v5152, 57
    %v5162 = vpop.permute.xlu0 %5161
    %5163 = vrot.lane.b32.xlu0 %v5153, 57
    %v5164 = vpop.permute.xlu0 %5163
    %5165 = vrot.lane.b32.xlu0 %v5154, 57
    %v5166 = vpop.permute.xlu0 %5165
    %v5167 = vrot.slane %v5160, 1
    %v5168 = vrot.slane %v5162, 1
    %v5169 = vrot.slane %v5164, 1
    %v5170 = vrot.slane %v5166, 1
    %v5171 = vsel %vm1942, %v5167, %v5168
    %vm5172 = vcmask 465920
    %v5173 = vsel %vm5172, %v5160, %v5171
    %v5174 = vsel %vm1942, %v5168, %v5169
    %v5175 = vsel %vm5172, %v5162, %v5174
    %v5176 = vsel %vm1942, %v5169, %v5170
    %v5177 = vsel %vm5172, %v5164, %v5176
    %v5178 = vsel %vm5172, %v5166, %v5170
    %5183 = vst [vmem:[#allocation3] ss:$8 sm:$0xf] %v5173
    %5184 = vst [vmem:[#allocation3] ss:$8 sm:$0xf0] %v5173
    %s5185 = scalar_lea.vmem [#allocation3], 64
    %5186 = vst [vmem:[%s5185] ss:$8 sm:$0xf] %v5175
    %5187 = vst [vmem:[%s5185] ss:$8 sm:$0xf0] %v5175
    %s5188 = scalar_lea.vmem [#allocation3], 128
    %5189 = vst [vmem:[%s5188] ss:$8 sm:$0xf] %v5177
    %5190 = vst [vmem:[%s5188] ss:$8 sm:$0xf0] %v5177
    %s5191 = scalar_lea.vmem [#allocation3], 192
    %5192 = vst.msk [vmem:[%s5191] ss:$8 sm:$0x1] %vm5041, %v5178
    %5193 = vst.msk [vmem:[%s5191] ss:$8 sm:$0x0] %vm5041, %v5178
    %v5194 = vld [vmem:[#allocation2] sm:$0xff]
    %v5195 = vld [vmem:[#allocation2 + $0x8] sm:$0xff]
    %v5196 = vld [vmem:[#allocation2 + $0x10] sm:$0xff]
    %v5197 = vld [vmem:[#allocation2 + $0x18] sm:$0x3]
    %5202 = vrot.lane.b32.xlu0 %v5194, 56
    %v5203 = vpop.permute.xlu0 %5202
    %5204 = vrot.lane.b32.xlu0 %v5195, 56
    %v5205 = vpop.permute.xlu0 %5204
    %5206 = vrot.lane.b32.xlu0 %v5196, 56
    %v5207 = vpop.permute.xlu0 %5206
    %5208 = vrot.lane.b32.xlu0 %v5197, 56
    %v5209 = vpop.permute.xlu0 %5208
    %v5210 = vrot.slane %v5203, 1
    %v5211 = vrot.slane %v5205, 1
    %v5212 = vrot.slane %v5207, 1
    %v5213 = vrot.slane %v5209, 1
    %v5214 = vsel %vm1942, %v5210, %v5211
    %vm5215 = vcmask 457728
    %v5216 = vsel %vm5215, %v5203, %v5214
    %v5217 = vsel %vm1942, %v5211, %v5212
    %v5218 = vsel %vm5215, %v5205, %v5217
    %v5219 = vsel %vm1942, %v5212, %v5213
    %v5220 = vsel %vm5215, %v5207, %v5219
    %v5221 = vsel %vm5215, %v5209, %v5213
    %s5226 = scalar_lea.vmem [#allocation3], 1
    %5227 = vst [vmem:[%s5226] ss:$8 sm:$0xf] %v5216
    %5228 = vst [vmem:[%s5226] ss:$8 sm:$0xf0] %v5216
    %s5229 = scalar_lea.vmem [#allocation3], 65
    %5230 = vst [vmem:[%s5229] ss:$8 sm:$0xf] %v5218
    %5231 = vst [vmem:[%s5229] ss:$8 sm:$0xf0] %v5218
    %s5232 = scalar_lea.vmem [#allocation3], 129
    %5233 = vst [vmem:[%s5232] ss:$8 sm:$0xf] %v5220
    %5234 = vst [vmem:[%s5232] ss:$8 sm:$0xf0] %v5220
    %s5235 = scalar_lea.vmem [#allocation3], 193
    %5236 = vst.msk [vmem:[%s5235] ss:$8 sm:$0x1] %vm5041, %v5221
    %5237 = vst.msk [vmem:[%s5235] ss:$8 sm:$0x0] %vm5041, %v5221
    %v5238 = vld [vmem:[#allocation2] sm:$0xff]
    %v5239 = vld [vmem:[#allocation2 + $0x8] sm:$0xff]
    %v5240 = vld [vmem:[#allocation2 + $0x10] sm:$0xff]
    %v5241 = vld [vmem:[#allocation2 + $0x18] sm:$0x3]
    %s5242 = scalar_lea.vmem %s5, 1
    %v5243 = vld [vmem:[%s5242] ss:$2 sm:$0xff]
    %s5244 = scalar_lea.vmem %s5, 17
    %v5245 = vld [vmem:[%s5244] ss:$2 sm:$0xff]
    %s5246 = scalar_lea.vmem %s5, 33
    %v5247 = vld [vmem:[%s5246] ss:$2 sm:$0xff]
    %s5248 = scalar_lea.vmem %s5, 49
    %v5249 = vld [vmem:[%s5248] ss:$2 sm:$0x1]
    %5254 = vrot.lane.b32.xlu0 %v5243, 73
    %v5255 = vpop.permute.xlu0 %5254
    %5256 = vrot.lane.b32.xlu0 %v5245, 73
    %v5257 = vpop.permute.xlu0 %5256
    %5258 = vrot.lane.b32.xlu0 %v5247, 73
    %v5259 = vpop.permute.xlu0 %5258
    %5260 = vrot.lane.b32.xlu0 %v5249, 73
    %v5261 = vpop.permute.xlu0 %5260
    %v5262 = vrot.slane %v5255, 7
    %v5263 = vrot.slane %v5257, 7
    %v5264 = vrot.slane %v5259, 7
    %v5265 = vrot.slane %v5261, 7
    %vm5266 = vcmask 596992
    %v5267 = vsel %vm5266, %v5262, %v5255
    %v5268 = vsel %vm5140, %v5262, %v5263
    %v5269 = vsel %vm5266, %v5268, %v5257
    %v5270 = vsel %vm5140, %v5263, %v5264
    %v5271 = vsel %vm5266, %v5270, %v5259
    %v5272 = vsel %vm5140, %v5264, %v5265
    %v5273 = vsel %vm5266, %v5272, %v5261
    %v5278 = vmul.f32 %v5238, %v5267
    %v5279 = vmul.f32 %v5239, %v5269
    %v5280 = vmul.f32 %v5240, %v5271
    %v5281 = vmul.f32 %v5241, %v5273
    %5286 = vrot.lane.b32.xlu0 %v5278, 55
    %v5287 = vpop.permute.xlu0 %5286
    %5288 = vrot.lane.b32.xlu0 %v5279, 55
    %v5289 = vpop.permute.xlu0 %5288
    %5290 = vrot.lane.b32.xlu0 %v5280, 55
    %v5291 = vpop.permute.xlu0 %5290
    %5292 = vrot.lane.b32.xlu0 %v5281, 55
    %v5293 = vpop.permute.xlu0 %5292
    %v5294 = vrot.slane %v5287, 1
    %v5295 = vrot.slane %v5289, 1
    %v5296 = vrot.slane %v5291, 1
    %v5297 = vrot.slane %v5293, 1
    %v5298 = vsel %vm1942, %v5294, %v5295
    %vm5299 = vcmask 449536
    %v5300 = vsel %vm5299, %v5287, %v5298
    %v5301 = vsel %vm1942, %v5295, %v5296
    %v5302 = vsel %vm5299, %v5289, %v5301
    %v5303 = vsel %vm1942, %v5296, %v5297
    %v5304 = vsel %vm5299, %v5291, %v5303
    %v5305 = vsel %vm5299, %v5293, %v5297
    %s5310 = scalar_lea.vmem [#allocation3], 2
    %5311 = vst [vmem:[%s5310] ss:$8 sm:$0xf] %v5300
    %5312 = vst [vmem:[%s5310] ss:$8 sm:$0xf0] %v5300
    %s5313 = scalar_lea.vmem [#allocation3], 66
    %5314 = vst [vmem:[%s5313] ss:$8 sm:$0xf] %v5302
    %5315 = vst [vmem:[%s5313] ss:$8 sm:$0xf0] %v5302
    %s5316 = scalar_lea.vmem [#allocation3], 130
    %5317 = vst [vmem:[%s5316] ss:$8 sm:$0xf] %v5304
    %5318 = vst [vmem:[%s5316] ss:$8 sm:$0xf0] %v5304
    %s5319 = scalar_lea.vmem [#allocation3], 194
    %5320 = vst.msk [vmem:[%s5319] ss:$8 sm:$0x1] %vm5041, %v5305
    %5321 = vst.msk [vmem:[%s5319] ss:$8 sm:$0x0] %vm5041, %v5305
    %v5322 = vld [vmem:[#allocation2] sm:$0xff]
    %v5323 = vld [vmem:[#allocation2 + $0x8] sm:$0xff]
    %v5324 = vld [vmem:[#allocation2 + $0x10] sm:$0xff]
    %v5325 = vld [vmem:[#allocation2 + $0x18] sm:$0x3]
    %v5326 = vld [vmem:[%s5] ss:$2 sm:$0xff]
    %v5327 = vld [vmem:[%s5116] ss:$2 sm:$0xff]
    %v5328 = vld [vmem:[%s5118] ss:$2 sm:$0xff]
    %v5329 = vld [vmem:[%s5120] ss:$2 sm:$0x1]
    %5334 = vrot.lane.b32.xlu0 %v5326, 127
    %v5335 = vpop.permute.xlu0 %5334
    %5336 = vrot.lane.b32.xlu0 %v5327, 127
    %v5337 = vpop.permute.xlu0 %5336
    %5338 = vrot.lane.b32.xlu0 %v5328, 127
    %v5339 = vpop.permute.xlu0 %5338
    %5340 = vrot.lane.b32.xlu0 %v5329, 127
    %v5341 = vpop.permute.xlu0 %5340
    %v5342 = vrot.slane %v5335, 7
    %v5343 = vrot.slane %v5337, 7
    %v5344 = vrot.slane %v5339, 7
    %v5345 = vrot.slane %v5341, 7
    %vm5346 = vcmask 1039360
    %v5347 = vsel %vm5346, %v5342, %v5335
    %v5348 = vsel %vm5140, %v5342, %v5343
    %v5349 = vsel %vm5346, %v5348, %v5337
    %v5350 = vsel %vm5140, %v5343, %v5344
    %v5351 = vsel %vm5346, %v5350, %v5339
    %v5352 = vsel %vm5140, %v5344, %v5345
    %v5353 = vsel %vm5346, %v5352, %v5341
    %v5358 = vmul.f32 %v5322, %v5347
    %v5359 = vmul.f32 %v5323, %v5349
    %v5360 = vmul.f32 %v5324, %v5351
    %v5361 = vmul.f32 %v5325, %v5353
    %5366 = vrot.lane.b32.xlu0 %v5358, 1
    %v5367 = vpop.permute.xlu0 %5366
    %5368 = vrot.lane.b32.xlu0 %v5359, 1
    %v5369 = vpop.permute.xlu0 %5368
    %5370 = vrot.lane.b32.xlu0 %v5360, 1
    %v5371 = vpop.permute.xlu0 %5370
    %5372 = vrot.lane.b32.xlu0 %v5361, 1
    %v5373 = vpop.permute.xlu0 %5372
    %v5374 = vrot.slane %v5367, 1
    %v5375 = vrot.slane %v5369, 1
    %v5376 = vrot.slane %v5371, 1
    %v5377 = vrot.slane %v5373, 1
    %v5378 = vsel %vm1942, %v5374, %v5375
    %vm5379 = vcmask 7168
    %v5380 = vsel %vm5379, %v5367, %v5378
    %v5381 = vsel %vm1942, %v5375, %v5376
    %v5382 = vsel %vm5379, %v5369, %v5381
    %v5383 = vsel %vm1942, %v5376, %v5377
    %v5384 = vsel %vm5379, %v5371, %v5383
    %v5385 = vsel %vm5379, %v5373, %v5377
    %s5390 = scalar_lea.vmem [#allocation3], 3
    %5391 = vst [vmem:[%s5390] ss:$8 sm:$0xf] %v5380
    %5392 = vst [vmem:[%s5390] ss:$8 sm:$0xf0] %v5380
    %s5393 = scalar_lea.vmem [#allocation3], 67
    %5394 = vst [vmem:[%s5393] ss:$8 sm:$0xf] %v5382
    %5395 = vst [vmem:[%s5393] ss:$8 sm:$0xf0] %v5382
    %s5396 = scalar_lea.vmem [#allocation3], 131
    %5397 = vst [vmem:[%s5396] ss:$8 sm:$0xf] %v5384
    %5398 = vst [vmem:[%s5396] ss:$8 sm:$0xf0] %v5384
    %s5399 = scalar_lea.vmem [#allocation3], 195
    %5400 = vst.msk [vmem:[%s5399] ss:$8 sm:$0x1] %vm5041, %v5385
    %5401 = vst.msk [vmem:[%s5399] ss:$8 sm:$0x0] %vm5041, %v5385
    %v5402 = vld [vmem:[#allocation2 + $0x1] sm:$0xff]
    %v5403 = vld [vmem:[#allocation2 + $0x9] sm:$0xff]
    %v5404 = vld [vmem:[#allocation2 + $0x11] sm:$0xff]
    %v5405 = vld [vmem:[#allocation2 + $0x19] sm:$0x1]
    %s5406 = scalar_lea.vmem [#allocation3], 4
    %5407 = vst [vmem:[%s5406] ss:$8 sm:$0xf] %v5402
    %5408 = vst [vmem:[%s5406] ss:$8 sm:$0xf0] %v5402
    %s5409 = scalar_lea.vmem [#allocation3], 68
    %5410 = vst [vmem:[%s5409] ss:$8 sm:$0xf] %v5403
    %5411 = vst [vmem:[%s5409] ss:$8 sm:$0xf0] %v5403
    %s5412 = scalar_lea.vmem [#allocation3], 132
    %5413 = vst [vmem:[%s5412] ss:$8 sm:$0xf] %v5404
    %5414 = vst [vmem:[%s5412] ss:$8 sm:$0xf0] %v5404
    %s5415 = scalar_lea.vmem [#allocation3], 196
    %5416 = vst.msk [vmem:[%s5415] ss:$8 sm:$0x1] %vm5041, %v5405
    %5417 = vst.msk [vmem:[%s5415] ss:$8 sm:$0x0] %vm5041, %v5405
    %v5418 = vld [vmem:[#allocation2 + $0x1] sm:$0xff]
    %v5419 = vld [vmem:[#allocation2 + $0x9] sm:$0xff]
    %v5420 = vld [vmem:[#allocation2 + $0x11] sm:$0xff]
    %v5421 = vld [vmem:[#allocation2 + $0x19] sm:$0x1]
    %v5422 = vld [vmem:[%s5242] ss:$2 sm:$0xff]
    %v5423 = vld [vmem:[%s5244] ss:$2 sm:$0xff]
    %v5424 = vld [vmem:[%s5246] ss:$2 sm:$0xff]
    %v5425 = vld [vmem:[%s5248] ss:$2 sm:$0x1]
    %5430 = vrot.lane.b32.xlu0 %v5422, 1
    %v5431 = vpop.permute.xlu0 %5430
    %5432 = vrot.lane.b32.xlu0 %v5423, 1
    %v5433 = vpop.permute.xlu0 %5432
    %5434 = vrot.lane.b32.xlu0 %v5424, 1
    %v5435 = vpop.permute.xlu0 %5434
    %5436 = vrot.lane.b32.xlu0 %v5425, 1
    %v5437 = vpop.permute.xlu0 %5436
    %v5438 = vrot.slane %v5431, 7
    %v5439 = vrot.slane %v5433, 7
    %v5440 = vrot.slane %v5435, 7
    %v5441 = vsel %vm5379, %v5438, %v5431
    %v5442 = vsel %vm5140, %v5438, %v5439
    %v5443 = vsel %vm5379, %v5442, %v5433
    %v5444 = vsel %vm5140, %v5439, %v5440
    %v5445 = vsel %vm5379, %v5444, %v5435
    %v5446 = vsel %vm5379, %v5440, %v5437
    %v5451 = vmul.f32 %v5418, %v5441
    %v5452 = vmul.f32 %v5419, %v5443
    %v5453 = vmul.f32 %v5420, %v5445
    %v5454 = vmul.f32 %v5421, %v5446
    %5459 = vrot.lane.b32.xlu0 %v5451, 127
    %v5460 = vpop.permute.xlu0 %5459
    %5461 = vrot.lane.b32.xlu0 %v5452, 127
    %v5462 = vpop.permute.xlu0 %5461
    %5463 = vrot.lane.b32.xlu0 %v5453, 127
    %v5464 = vpop.permute.xlu0 %5463
    %5465 = vrot.lane.b32.xlu0 %v5454, 127
    %v5466 = vpop.permute.xlu0 %5465
    %v5467 = vrot.slane %v5460, 1
    %v5468 = vrot.slane %v5462, 1
    %v5469 = vrot.slane %v5464, 1
    %v5470 = vrot.slane %v5466, 1
    %v5471 = vsel %vm1942, %v5467, %v5468
    %v5472 = vsel %vm5346, %v5460, %v5471
    %v5473 = vsel %vm1942, %v5468, %v5469
    %v5474 = vsel %vm5346, %v5462, %v5473
    %v5475 = vsel %vm1942, %v5469, %v5470
    %v5476 = vsel %vm5346, %v5464, %v5475
    %s5481 = scalar_lea.vmem [#allocation3], 5
    %5482 = vst [vmem:[%s5481] ss:$8 sm:$0xf] %v5472
    %5483 = vst [vmem:[%s5481] ss:$8 sm:$0xf0] %v5472
    %s5484 = scalar_lea.vmem [#allocation3], 69
    %5485 = vst [vmem:[%s5484] ss:$8 sm:$0xf] %v5474
    %5486 = vst [vmem:[%s5484] ss:$8 sm:$0xf0] %v5474
    %s5487 = scalar_lea.vmem [#allocation3], 133
    %5488 = vst [vmem:[%s5487] ss:$8 sm:$0xf] %v5476
    %5489 = vst [vmem:[%s5487] ss:$8 sm:$0xf0] %v5476
    %s5490 = scalar_lea.vmem [#allocation3], 197
    %5491 = vst.msk [vmem:[%s5490] ss:$8 sm:$0x1] %vm5041, %v5466
    %5492 = vst.msk [vmem:[%s5490] ss:$8 sm:$0x0] %vm5041, %v5466
    %v5493 = vld [vmem:[#allocation2 + $0x1] sm:$0xff]
    %v5494 = vld [vmem:[#allocation2 + $0x9] sm:$0xff]
    %v5495 = vld [vmem:[#allocation2 + $0x11] sm:$0xff]
    %v5496 = vld [vmem:[#allocation2 + $0x19] sm:$0x1]
    %v5497 = vld [vmem:[%s5] ss:$2 sm:$0xff]
    %v5498 = vld [vmem:[%s5116] ss:$2 sm:$0xff]
    %v5499 = vld [vmem:[%s5118] ss:$2 sm:$0xff]
    %v5500 = vld [vmem:[%s5120] ss:$2 sm:$0x1]
    %5505 = vrot.lane.b32.xlu0 %v5497, 55
    %v5506 = vpop.permute.xlu0 %5505
    %5507 = vrot.lane.b32.xlu0 %v5498, 55
    %v5508 = vpop.permute.xlu0 %5507
    %5509 = vrot.lane.b32.xlu0 %v5499, 55
    %v5510 = vpop.permute.xlu0 %5509
    %5511 = vrot.lane.b32.xlu0 %v5500, 55
    %v5512 = vpop.permute.xlu0 %5511
    %v5513 = vrot.slane %v5506, 7
    %v5514 = vrot.slane %v5508, 7
    %v5515 = vrot.slane %v5510, 7
    %v5516 = vsel %vm5299, %v5513, %v5506
    %v5517 = vsel %vm5140, %v5513, %v5514
    %v5518 = vsel %vm5299, %v5517, %v5508
    %v5519 = vsel %vm5140, %v5514, %v5515
    %v5520 = vsel %vm5299, %v5519, %v5510
    %v5521 = vsel %vm5299, %v5515, %v5512
    %v5526 = vmul.f32 %v5493, %v5516
    %v5527 = vmul.f32 %v5494, %v5518
    %v5528 = vmul.f32 %v5495, %v5520
    %v5529 = vmul.f32 %v5496, %v5521
    %5534 = vrot.lane.b32.xlu0 %v5526, 73
    %v5535 = vpop.permute.xlu0 %5534
    %5536 = vrot.lane.b32.xlu0 %v5527, 73
    %v5537 = vpop.permute.xlu0 %5536
    %5538 = vrot.lane.b32.xlu0 %v5528, 73
    %v5539 = vpop.permute.xlu0 %5538
    %5540 = vrot.lane.b32.xlu0 %v5529, 73
    %v5541 = vpop.permute.xlu0 %5540
    %v5542 = vrot.slane %v5535, 1
    %v5543 = vrot.slane %v5537, 1
    %v5544 = vrot.slane %v5539, 1
    %v5545 = vrot.slane %v5541, 1
    %v5546 = vsel %vm1942, %v5542, %v5543
    %v5547 = vsel %vm5266, %v5535, %v5546
    %v5548 = vsel %vm1942, %v5543, %v5544
    %v5549 = vsel %vm5266, %v5537, %v5548
    %v5550 = vsel %vm1942, %v5544, %v5545
    %v5551 = vsel %vm5266, %v5539, %v5550
    %s5556 = scalar_lea.vmem [#allocation3], 6
    %5557 = vst [vmem:[%s5556] ss:$8 sm:$0xf] %v5547
    %5558 = vst [vmem:[%s5556] ss:$8 sm:$0xf0] %v5547
    %s5559 = scalar_lea.vmem [#allocation3], 70
    %5560 = vst [vmem:[%s5559] ss:$8 sm:$0xf] %v5549
    %5561 = vst [vmem:[%s5559] ss:$8 sm:$0xf0] %v5549
    %s5562 = scalar_lea.vmem [#allocation3], 134
    %5563 = vst [vmem:[%s5562] ss:$8 sm:$0xf] %v5551
    %5564 = vst [vmem:[%s5562] ss:$8 sm:$0xf0] %v5551
    %s5565 = scalar_lea.vmem [#allocation3], 198
    %5566 = vst.msk [vmem:[%s5565] ss:$8 sm:$0x1] %vm5041, %v5541
    %5567 = vst.msk [vmem:[%s5565] ss:$8 sm:$0x0] %vm5041, %v5541
    %v5568 = vld [vmem:[#allocation2 + $0x1] sm:$0xff]
    %v5569 = vld [vmem:[#allocation2 + $0x9] sm:$0xff]
    %v5570 = vld [vmem:[#allocation2 + $0x11] sm:$0xff]
    %v5571 = vld [vmem:[#allocation2 + $0x19] sm:$0x1]
    %5576 = vrot.lane.b32.xlu0 %v5568, 72
    %v5577 = vpop.permute.xlu0 %5576
    %5578 = vrot.lane.b32.xlu0 %v5569, 72
    %v5579 = vpop.permute.xlu0 %5578
    %5580 = vrot.lane.b32.xlu0 %v5570, 72
    %v5581 = vpop.permute.xlu0 %5580
    %5582 = vrot.lane.b32.xlu0 %v5571, 72
    %v5583 = vpop.permute.xlu0 %5582
    %v5584 = vrot.slane %v5577, 1
    %v5585 = vrot.slane %v5579, 1
    %v5586 = vrot.slane %v5581, 1
    %v5587 = vrot.slane %v5583, 1
    %v5588 = vsel %vm1942, %v5584, %v5585
    %vm5589 = vcmask 588800
    %v5590 = vsel %vm5589, %v5577, %v5588
    %v5591 = vsel %vm1942, %v5585, %v5586
    %v5592 = vsel %vm5589, %v5579, %v5591
    %v5593 = vsel %vm1942, %v5586, %v5587
    %v5594 = vsel %vm5589, %v5581, %v5593
    %s5599 = scalar_lea.vmem [#allocation3], 7
    %5600 = vst [vmem:[%s5599] ss:$8 sm:$0xf] %v5590
    %5601 = vst [vmem:[%s5599] ss:$8 sm:$0xf0] %v5590
    %s5602 = scalar_lea.vmem [#allocation3], 71
    %5603 = vst [vmem:[%s5602] ss:$8 sm:$0xf] %v5592
    %5604 = vst [vmem:[%s5602] ss:$8 sm:$0xf0] %v5592
    %s5605 = scalar_lea.vmem [#allocation3], 135
    %5606 = vst [vmem:[%s5605] ss:$8 sm:$0xf] %v5594
    %5607 = vst [vmem:[%s5605] ss:$8 sm:$0xf0] %v5594
    %s5608 = scalar_lea.vmem [#allocation3], 199
    %5609 = vst.msk [vmem:[%s5608] ss:$8 sm:$0x1] %vm5041, %v5583
    %5610 = vst.msk [vmem:[%s5608] ss:$8 sm:$0x0] %vm5041, %v5583
    %v5611 = vld [vmem:[#allocation2 + $0x1] sm:$0xff]
    %v5612 = vld [vmem:[#allocation2 + $0x9] sm:$0xff]
    %v5613 = vld [vmem:[#allocation2 + $0x11] sm:$0xff]
    %v5614 = vld [vmem:[#allocation2 + $0x19] sm:$0x1]
    %v5615 = vld [vmem:[%s5242] ss:$2 sm:$0xff]
    %v5616 = vld [vmem:[%s5244] ss:$2 sm:$0xff]
    %v5617 = vld [vmem:[%s5246] ss:$2 sm:$0xff]
    %v5618 = vld [vmem:[%s5248] ss:$2 sm:$0x1]
    %5623 = vrot.lane.b32.xlu0 %v5615, 57
    %v5624 = vpop.permute.xlu0 %5623
    %5625 = vrot.lane.b32.xlu0 %v5616, 57
    %v5626 = vpop.permute.xlu0 %5625
    %5627 = vrot.lane.b32.xlu0 %v5617, 57
    %v5628 = vpop.permute.xlu0 %5627
    %5629 = vrot.lane.b32.xlu0 %v5618, 57
    %v5630 = vpop.permute.xlu0 %5629
    %v5631 = vrot.slane %v5624, 7
    %v5632 = vrot.slane %v5626, 7
    %v5633 = vrot.slane %v5628, 7
    %v5634 = vsel %vm5172, %v5631, %v5624
    %v5635 = vsel %vm5140, %v5631, %v5632
    %v5636 = vsel %vm5172, %v5635, %v5626
    %v5637 = vsel %vm5140, %v5632, %v5633
    %v5638 = vsel %vm5172, %v5637, %v5628
    %v5639 = vsel %vm5172, %v5633, %v5630
    %v5644 = vmul.f32 %v5611, %v5634
    %v5645 = vmul.f32 %v5612, %v5636
    %v5646 = vmul.f32 %v5613, %v5638
    %v5647 = vmul.f32 %v5614, %v5639
    %5652 = vrot.lane.b32.xlu0 %v5644, 71
    %v5653 = vpop.permute.xlu0 %5652
    %5654 = vrot.lane.b32.xlu0 %v5645, 71
    %v5655 = vpop.permute.xlu0 %5654
    %5656 = vrot.lane.b32.xlu0 %v5646, 71
    %v5657 = vpop.permute.xlu0 %5656
    %5658 = vrot.lane.b32.xlu0 %v5647, 71
    %v5659 = vpop.permute.xlu0 %5658
    %v5660 = vrot.slane %v5653, 1
    %v5661 = vrot.slane %v5655, 1
    %v5662 = vrot.slane %v5657, 1
    %v5663 = vrot.slane %v5659, 1
    %v5664 = vsel %vm1942, %v5660, %v5661
    %v5665 = vsel %vm5138, %v5653, %v5664
    %v5666 = vsel %vm1942, %v5661, %v5662
    %v5667 = vsel %vm5138, %v5655, %v5666
    %v5668 = vsel %vm1942, %v5662, %v5663
    %v5669 = vsel %vm5138, %v5657, %v5668
    %s5674 = scalar_lea.vmem [#allocation3], 200
    %5675 = vst [vmem:[%s5674] ss:$8 sm:$0xf] %v5665
    %5676 = vst [vmem:[%s5674] ss:$8 sm:$0xf0] %v5665
    %s5677 = scalar_lea.vmem [#allocation3], 264
    %5678 = vst [vmem:[%s5677] ss:$8 sm:$0xf] %v5667
    %5679 = vst [vmem:[%s5677] ss:$8 sm:$0xf0] %v5667
    %s5680 = scalar_lea.vmem [#allocation3], 328
    %5681 = vst [vmem:[%s5680] ss:$8 sm:$0xf] %v5669
    %5682 = vst [vmem:[%s5680] ss:$8 sm:$0xf0] %v5669
    %s5683 = scalar_lea.vmem [#allocation3], 392
    %5684 = vst.msk [vmem:[%s5683] ss:$8 sm:$0x1] %vm5041, %v5659
    %5685 = vst.msk [vmem:[%s5683] ss:$8 sm:$0x0] %vm5041, %v5659
    %v5686 = vld [vmem:[%s3] sm:$0xff]
    %v5687 = vld [vmem:[%s3 + $0x8] sm:$0xff]
    %v5688 = vld [vmem:[%s3 + $0x10] sm:$0xff]
    %v5689 = vld [vmem:[#allocation3] sm:$0xff]
    %v5690 = vld [vmem:[#allocation3 + $0x8] sm:$0xff]
    %v5691 = vld [vmem:[#allocation3 + $0x10] sm:$0xff]
    %v5692 = vld [vmem:[#allocation3 + $0x18] sm:$0xff]
    %v5693 = vld [vmem:[#allocation3 + $0x20] sm:$0xff]
    %v5694 = vld [vmem:[#allocation3 + $0x28] sm:$0xff]
    %v5695 = vld [vmem:[#allocation3 + $0x30] sm:$0xff]
    %v5696 = vld [vmem:[#allocation3 + $0x38] sm:$0xff]
    %v5697 = vld [vmem:[#allocation3 + $0x40] sm:$0xff]
    %v5698 = vld [vmem:[#allocation3 + $0x48] sm:$0xff]
    %v5699 = vld [vmem:[#allocation3 + $0x50] sm:$0xff]
    %v5700 = vld [vmem:[#allocation3 + $0x58] sm:$0xff]
    %v5701 = vld [vmem:[#allocation3 + $0x60] sm:$0xff]
    %v5702 = vld [vmem:[#allocation3 + $0x68] sm:$0xff]
    %v5703 = vld [vmem:[#allocation3 + $0x70] sm:$0xff]
    %v5704 = vld [vmem:[#allocation3 + $0x78] sm:$0xff]
    %v5705 = vld [vmem:[#allocation3 + $0x80] sm:$0xff]
    %v5706 = vld [vmem:[#allocation3 + $0x88] sm:$0xff]
    %v5707 = vld [vmem:[#allocation3 + $0x90] sm:$0xff]
    %v5708 = vld [vmem:[#allocation3 + $0x98] sm:$0xff]
    %v5709 = vld [vmem:[#allocation3 + $0xa0] sm:$0xff]
    %v5710 = vld [vmem:[#allocation3 + $0xa8] sm:$0xff]
    %v5711 = vld [vmem:[#allocation3 + $0xb0] sm:$0xff]
    %v5712 = vld [vmem:[#allocation3 + $0xb8] sm:$0xff]
    %v5713 = vld [vmem:[#allocation3 + $0xc0] sm:$0xff]
    %v5714 = vld [vmem:[#allocation3 + $0xc8] sm:$0xff]
    %v5715 = vld [vmem:[#allocation3 + $0xd0] sm:$0xff]
    %v5716 = vld [vmem:[#allocation3 + $0xd8] sm:$0xff]
    %v5717 = vld [vmem:[#allocation3 + $0xe0] sm:$0xff]
    %v5718 = vld [vmem:[#allocation3 + $0xe8] sm:$0xff]
    %v5719 = vld [vmem:[#allocation3 + $0xf0] sm:$0xff]
    %v5720 = vld [vmem:[#allocation3 + $0xf8] sm:$0xff]
    %v5721 = vld [vmem:[#allocation3 + $0x100] sm:$0xff]
    %v5722 = vld [vmem:[#allocation3 + $0x108] sm:$0xff]
    %v5723 = vld [vmem:[#allocation3 + $0x110] sm:$0xff]
    %v5724 = vld [vmem:[#allocation3 + $0x118] sm:$0xff]
    %v5725 = vld [vmem:[#allocation3 + $0x120] sm:$0xff]
    %v5726 = vld [vmem:[#allocation3 + $0x128] sm:$0xff]
    %v5727 = vld [vmem:[#allocation3 + $0x130] sm:$0xff]
    %v5728 = vld [vmem:[#allocation3 + $0x138] sm:$0xff]
    %v5729 = vld [vmem:[#allocation3 + $0x140] sm:$0xff]
    %v5730 = vld [vmem:[#allocation3 + $0x148] sm:$0xff]
    %v5731 = vld [vmem:[#allocation3 + $0x150] sm:$0xff]
    %v5732 = vld [vmem:[#allocation3 + $0x158] sm:$0xff]
    %v5733 = vld [vmem:[#allocation3 + $0x160] sm:$0xff]
    %v5734 = vld [vmem:[#allocation3 + $0x168] sm:$0xff]
    %v5735 = vld [vmem:[#allocation3 + $0x170] sm:$0xff]
    %v5736 = vld [vmem:[#allocation3 + $0x178] sm:$0xff]
    %v5737 = vld [vmem:[#allocation3 + $0x180] sm:$0xff]
    %v5738 = vld [vmem:[#allocation3 + $0x188] sm:$0xff]
    %v5739 = vld [vmem:[%s4] sm:$0xff]
    %v5740 = vld [vmem:[%s4 + $0x8] sm:$0xff]
    %v5741 = vld [vmem:[%s4 + $0x10] sm:$0xff]
    %5743 = vset.pattern.permute.xlu0 0
    %5744 = vperm.xlu0 %5743, %v5739
    %v5745 = vpop.permute.xlu0 %5744
    %5748 = vset.pattern.permute.xlu0 0
    %5749 = vperm.xlu0 %5748, %v5740
    %v5750 = vpop.permute.xlu0 %5749
    %5753 = vset.pattern.permute.xlu0 0
    %5754 = vperm.xlu0 %5753, %v5741
    %v5755 = vpop.permute.xlu0 %5754
    %vm5757 = vcmask 130048
    %v5759 = vsel %vm5757, %v5686, 0
    %v5762 = vsel %vm5757, %v5687, 0
    %v5765 = vsel %vm5757, %v5688, 0
    %5767 = vmatprep.subr.mxu0 0.0
    %5768 = vmatpush1.msra.mxu0 0.0
    %5769 = vmatprep.subr.mxu0 0.0
    %5770 = vmatpush1.msra.mxu0 0.0
    %5771 = vmatprep.subr.mxu0 0.0
    %5772 = vmatpush1.msra.mxu0 0.0
    %5773 = vmatprep.subr.mxu0 0.0
    %5774 = vmatpush1.msra.mxu0 0.0
    %5775 = vmatprep.subr.mxu0 0.0
    %5776 = vmatpush1.msra.mxu0 0.0
    %5777 = vmatprep.subr.mxu0 0.0
    %5778 = vmatpush1.msra.mxu0 0.0
    %5779 = vmatprep.subr.mxu0 0.0
    %5780 = vmatpush1.msra.mxu0 0.0
    %5781 = vmatprep.subr.mxu0 0.0
    %5782 = vmatpush1.msra.mxu0 0.0
    %5783 = vmatprep.subr.mxu0 0.0
    %5784 = vmatpush1.msra.mxu0 0.0
    %5785 = vmatprep.subr.mxu0 0.0
    %5786 = vmatpush1.msra.mxu0 0.0
    %5787 = vmatprep.subr.mxu0 0.0
    %5788 = vmatpush1.msra.mxu0 0.0
    %5789 = vmatprep.subr.mxu0 0.0
    %5790 = vmatpush1.msra.mxu0 0.0
    %5791 = vmatprep.subr.mxu0 0.0
    %5792 = vmatpush1.msra.mxu0 0.0
    %5793 = vmatprep.subr.mxu0 0.0
    %5794 = vmatpush1.msra.mxu0 0.0
    %5795 = vmatprep.subr.mxu0 %v5715
    %5796 = vmatpush1.msra.mxu0 %v5714
    %5797 = vmatprep.subr.mxu0 %v5690
    %5798 = vmatpush1.msra.mxu0 %v5689
    %5799 = vmatprep.subr.mxu0 0.0
    %5800 = vmatpush2.msra.mxu0 0.0
    %5801 = vmatprep.subr.mxu0 0.0
    %5802 = vmatpush2.msra.mxu0 0.0
    %5803 = vmatprep.subr.mxu0 0.0
    %5804 = vmatpush2.msra.mxu0 0.0
    %5805 = vmatprep.subr.mxu0 0.0
    %5806 = vmatpush2.msra.mxu0 0.0
    %5807 = vmatprep.subr.mxu0 0.0
    %5808 = vmatpush2.msra.mxu0 0.0
    %5809 = vmatprep.subr.mxu0 0.0
    %5810 = vmatpush2.msra.mxu0 0.0
    %5811 = vmatprep.subr.mxu0 0.0
    %5812 = vmatpush2.msra.mxu0 0.0
    %5813 = vmatprep.subr.mxu0 0.0
    %5814 = vmatpush2.msra.mxu0 0.0
    %5815 = vmatprep.subr.mxu0 0.0
    %5816 = vmatpush2.msra.mxu0 0.0
    %5817 = vmatprep.subr.mxu0 0.0
    %5818 = vmatpush2.msra.mxu0 0.0
    %5819 = vmatprep.subr.mxu0 0.0
    %5820 = vmatpush2.msra.mxu0 0.0
    %5821 = vmatprep.subr.mxu0 0.0
    %5822 = vmatpush2.msra.mxu0 0.0
    %5823 = vmatprep.subr.mxu0 0.0
    %5824 = vmatpush2.msra.mxu0 0.0
    %5825 = vmatprep.subr.mxu0 0.0
    %5826 = vmatpush2.msra.mxu0 0.0
    %5827 = vmatprep.subr.mxu0 0.0
    %5828 = vmatpush2.msra.mxu0 0.0
    %5829 = vmatprep.subr.mxu0 0.0
    %5830 = vmatpush2.msra.mxu0 0.0
    %5831 = vmatprep.mubr.f32.mxu0 0.0
    %5832 = vmatmul.mubr.f32.gmra.mxu0 %v5759
    %v5833 = vpop.f32.mrf.mxu0
    %v5834 = vadd.f32 %v5745, %v5833
    %v5835 = vpop.f32.mrf.mxu0
    %v5836 = vadd.f32 %v5745, %v5835
    %5837 = vmatprep.mubr.f32.mxu0 0.0
    %5838 = vmatmul.mubr.f32.gmra.mxu0 %v5762
    %v5839 = vpop.f32.mrf.mxu0
    %v5840 = vadd.f32 %v5750, %v5839
    %v5841 = vpop.f32.mrf.mxu0
    %v5842 = vadd.f32 %v5750, %v5841
    %5843 = vmatprep.mubr.f32.mxu0 0.0
    %5844 = vmatmul.mubr.f32.gmra.mxu0 %v5765
    %v5845 = vpop.f32.mrf.mxu0
    %v5846 = vadd.f32 %v5755, %v5845
    %v5847 = vpop.f32.mrf.mxu0
    %v5848 = vadd.f32 %v5755, %v5847
    %5849 = vdwg.mxu0
    %5850 = vmatprep.subr.mxu0 0.0
    %5851 = vmatpush1.msra.mxu0 0.0
    %5852 = vmatprep.subr.mxu0 0.0
    %5853 = vmatpush1.msra.mxu0 0.0
    %5854 = vmatprep.subr.mxu0 0.0
    %5855 = vmatpush1.msra.mxu0 0.0
    %5856 = vmatprep.subr.mxu0 0.0
    %5857 = vmatpush1.msra.mxu0 0.0
    %5858 = vmatprep.subr.mxu0 0.0
    %5859 = vmatpush1.msra.mxu0 0.0
    %5860 = vmatprep.subr.mxu0 0.0
    %5861 = vmatpush1.msra.mxu0 0.0
    %5862 = vmatprep.subr.mxu0 0.0
    %5863 = vmatpush1.msra.mxu0 0.0
    %5864 = vmatprep.subr.mxu0 0.0
    %5865 = vmatpush1.msra.mxu0 0.0
    %5866 = vmatprep.subr.mxu0 0.0
    %5867 = vmatpush1.msra.mxu0 0.0
    %5868 = vmatprep.subr.mxu0 0.0
    %5869 = vmatpush1.msra.mxu0 0.0
    %5870 = vmatprep.subr.mxu0 0.0
    %5871 = vmatpush1.msra.mxu0 0.0
    %5872 = vmatprep.subr.mxu0 0.0
    %5873 = vmatpush1.msra.mxu0 0.0
    %5874 = vmatprep.subr.mxu0 0.0
    %5875 = vmatpush1.msra.mxu0 0.0
    %5876 = vmatprep.subr.mxu0 0.0
    %5877 = vmatpush1.msra.mxu0 0.0
    %5878 = vmatprep.subr.mxu0 %v5717
    %5879 = vmatpush1.msra.mxu0 %v5716
    %5880 = vmatprep.subr.mxu0 %v5692
    %5881 = vmatpush1.msra.mxu0 %v5691
    %5882 = vmatprep.subr.mxu0 0.0
    %5883 = vmatpush2.msra.mxu0 0.0
    %5884 = vmatprep.subr.mxu0 0.0
    %5885 = vmatpush2.msra.mxu0 0.0
    %5886 = vmatprep.subr.mxu0 0.0
    %5887 = vmatpush2.msra.mxu0 0.0
    %5888 = vmatprep.subr.mxu0 0.0
    %5889 = vmatpush2.msra.mxu0 0.0
    %5890 = vmatprep.subr.mxu0 0.0
    %5891 = vmatpush2.msra.mxu0 0.0
    %5892 = vmatprep.subr.mxu0 0.0
    %5893 = vmatpush2.msra.mxu0 0.0
    %5894 = vmatprep.subr.mxu0 0.0
    %5895 = vmatpush2.msra.mxu0 0.0
    %5896 = vmatprep.subr.mxu0 0.0
    %5897 = vmatpush2.msra.mxu0 0.0
    %5898 = vmatprep.subr.mxu0 0.0
    %5899 = vmatpush2.msra.mxu0 0.0
    %5900 = vmatprep.subr.mxu0 0.0
    %5901 = vmatpush2.msra.mxu0 0.0
    %5902 = vmatprep.subr.mxu0 0.0
    %5903 = vmatpush2.msra.mxu0 0.0
    %5904 = vmatprep.subr.mxu0 0.0
    %5905 = vmatpush2.msra.mxu0 0.0
    %5906 = vmatprep.subr.mxu0 0.0
    %5907 = vmatpush2.msra.mxu0 0.0
    %5908 = vmatprep.subr.mxu0 0.0
    %5909 = vmatpush2.msra.mxu0 0.0
    %5910 = vmatprep.subr.mxu0 0.0
    %5911 = vmatpush2.msra.mxu0 0.0
    %5912 = vmatprep.subr.mxu0 0.0
    %5913 = vmatpush2.msra.mxu0 0.0
    %5914 = vmatprep.mubr.f32.mxu0 0.0
    %5915 = vmatmul.mubr.f32.gmra.mxu0 %v5759
    %v5916 = vpop.f32.mrf.mxu0
    %v5917 = vadd.f32 %v5745, %v5916
    %v5918 = vpop.f32.mrf.mxu0
    %v5919 = vadd.f32 %v5745, %v5918
    %5920 = vmatprep.mubr.f32.mxu0 0.0
    %5921 = vmatmul.mubr.f32.gmra.mxu0 %v5762
    %v5922 = vpop.f32.mrf.mxu0
    %v5923 = vadd.f32 %v5750, %v5922
    %v5924 = vpop.f32.mrf.mxu0
    %v5925 = vadd.f32 %v5750, %v5924
    %5926 = vmatprep.mubr.f32.mxu0 0.0
    %5927 = vmatmul.mubr.f32.gmra.mxu0 %v5765
    %v5928 = vpop.f32.mrf.mxu0
    %v5929 = vadd.f32 %v5755, %v5928
    %v5930 = vpop.f32.mrf.mxu0
    %v5931 = vadd.f32 %v5755, %v5930
    %5932 = vdwg.mxu0
    %5933 = vmatprep.subr.mxu0 0.0
    %5934 = vmatpush1.msra.mxu0 0.0
    %5935 = vmatprep.subr.mxu0 0.0
    %5936 = vmatpush1.msra.mxu0 0.0
    %5937 = vmatprep.subr.mxu0 0.0
    %5938 = vmatpush1.msra.mxu0 0.0
    %5939 = vmatprep.subr.mxu0 0.0
    %5940 = vmatpush1.msra.mxu0 0.0
    %5941 = vmatprep.subr.mxu0 0.0
    %5942 = vmatpush1.msra.mxu0 0.0
    %5943 = vmatprep.subr.mxu0 0.0
    %5944 = vmatpush1.msra.mxu0 0.0
    %5945 = vmatprep.subr.mxu0 0.0
    %5946 = vmatpush1.msra.mxu0 0.0
    %5947 = vmatprep.subr.mxu0 0.0
    %5948 = vmatpush1.msra.mxu0 0.0
    %5949 = vmatprep.subr.mxu0 0.0
    %5950 = vmatpush1.msra.mxu0 0.0
    %5951 = vmatprep.subr.mxu0 0.0
    %5952 = vmatpush1.msra.mxu0 0.0
    %5953 = vmatprep.subr.mxu0 0.0
    %5954 = vmatpush1.msra.mxu0 0.0
    %5955 = vmatprep.subr.mxu0 0.0
    %5956 = vmatpush1.msra.mxu0 0.0
    %5957 = vmatprep.subr.mxu0 0.0
    %5958 = vmatpush1.msra.mxu0 0.0
    %5959 = vmatprep.subr.mxu0 0.0
    %5960 = vmatpush1.msra.mxu0 0.0
    %5961 = vmatprep.subr.mxu0 %v5719
    %5962 = vmatpush1.msra.mxu0 %v5718
    %5963 = vmatprep.subr.mxu0 %v5694
    %5964 = vmatpush1.msra.mxu0 %v5693
    %5965 = vmatprep.subr.mxu0 0.0
    %5966 = vmatpush2.msra.mxu0 0.0
    %5967 = vmatprep.subr.mxu0 0.0
    %5968 = vmatpush2.msra.mxu0 0.0
    %5969 = vmatprep.subr.mxu0 0.0
    %5970 = vmatpush2.msra.mxu0 0.0
    %5971 = vmatprep.subr.mxu0 0.0
    %5972 = vmatpush2.msra.mxu0 0.0
    %5973 = vmatprep.subr.mxu0 0.0
    %5974 = vmatpush2.msra.mxu0 0.0
    %5975 = vmatprep.subr.mxu0 0.0
    %5976 = vmatpush2.msra.mxu0 0.0
    %5977 = vmatprep.subr.mxu0 0.0
    %5978 = vmatpush2.msra.mxu0 0.0
    %5979 = vmatprep.subr.mxu0 0.0
    %5980 = vmatpush2.msra.mxu0 0.0
    %5981 = vmatprep.subr.mxu0 0.0
    %5982 = vmatpush2.msra.mxu0 0.0
    %5983 = vmatprep.subr.mxu0 0.0
    %5984 = vmatpush2.msra.mxu0 0.0
    %5985 = vmatprep.subr.mxu0 0.0
    %5986 = vmatpush2.msra.mxu0 0.0
    %5987 = vmatprep.subr.mxu0 0.0
    %5988 = vmatpush2.msra.mxu0 0.0
    %5989 = vmatprep.subr.mxu0 0.0
    %5990 = vmatpush2.msra.mxu0 0.0
    %5991 = vmatprep.subr.mxu0 0.0
    %5992 = vmatpush2.msra.mxu0 0.0
    %5993 = vmatprep.subr.mxu0 0.0
    %5994 = vmatpush2.msra.mxu0 0.0
    %5995 = vmatprep.subr.mxu0 0.0
    %5996 = vmatpush2.msra.mxu0 0.0
    %5997 = vmatprep.mubr.f32.mxu0 0.0
    %5998 = vmatmul.mubr.f32.gmra.mxu0 %v5759
    %v5999 = vpop.f32.mrf.mxu0
    %v6000 = vadd.f32 %v5745, %v5999
    %v6001 = vpop.f32.mrf.mxu0
    %v6002 = vadd.f32 %v5745, %v6001
    %6003 = vmatprep.mubr.f32.mxu0 0.0
    %6004 = vmatmul.mubr.f32.gmra.mxu0 %v5762
    %v6005 = vpop.f32.mrf.mxu0
    %v6006 = vadd.f32 %v5750, %v6005
    %v6007 = vpop.f32.mrf.mxu0
    %v6008 = vadd.f32 %v5750, %v6007
    %6009 = vmatprep.mubr.f32.mxu0 0.0
    %6010 = vmatmul.mubr.f32.gmra.mxu0 %v5765
    %v6011 = vpop.f32.mrf.mxu0
    %v6012 = vadd.f32 %v5755, %v6011
    %v6013 = vpop.f32.mrf.mxu0
    %v6014 = vadd.f32 %v5755, %v6013
    %6015 = vdwg.mxu0
    %6016 = vmatprep.subr.mxu0 0.0
    %6017 = vmatpush1.msra.mxu0 0.0
    %6018 = vmatprep.subr.mxu0 0.0
    %6019 = vmatpush1.msra.mxu0 0.0
    %6020 = vmatprep.subr.mxu0 0.0
    %6021 = vmatpush1.msra.mxu0 0.0
    %6022 = vmatprep.subr.mxu0 0.0
    %6023 = vmatpush1.msra.mxu0 0.0
    %6024 = vmatprep.subr.mxu0 0.0
    %6025 = vmatpush1.msra.mxu0 0.0
    %6026 = vmatprep.subr.mxu0 0.0
    %6027 = vmatpush1.msra.mxu0 0.0
    %6028 = vmatprep.subr.mxu0 0.0
    %6029 = vmatpush1.msra.mxu0 0.0
    %6030 = vmatprep.subr.mxu0 0.0
    %6031 = vmatpush1.msra.mxu0 0.0
    %6032 = vmatprep.subr.mxu0 0.0
    %6033 = vmatpush1.msra.mxu0 0.0
    %6034 = vmatprep.subr.mxu0 0.0
    %6035 = vmatpush1.msra.mxu0 0.0
    %6036 = vmatprep.subr.mxu0 0.0
    %6037 = vmatpush1.msra.mxu0 0.0
    %6038 = vmatprep.subr.mxu0 0.0
    %6039 = vmatpush1.msra.mxu0 0.0
    %6040 = vmatprep.subr.mxu0 0.0
    %6041 = vmatpush1.msra.mxu0 0.0
    %6042 = vmatprep.subr.mxu0 0.0
    %6043 = vmatpush1.msra.mxu0 0.0
    %6044 = vmatprep.subr.mxu0 %v5721
    %6045 = vmatpush1.msra.mxu0 %v5720
    %6046 = vmatprep.subr.mxu0 %v5696
    %6047 = vmatpush1.msra.mxu0 %v5695
    %6048 = vmatprep.subr.mxu0 0.0
    %6049 = vmatpush2.msra.mxu0 0.0
    %6050 = vmatprep.subr.mxu0 0.0
    %6051 = vmatpush2.msra.mxu0 0.0
    %6052 = vmatprep.subr.mxu0 0.0
    %6053 = vmatpush2.msra.mxu0 0.0
    %6054 = vmatprep.subr.mxu0 0.0
    %6055 = vmatpush2.msra.mxu0 0.0
    %6056 = vmatprep.subr.mxu0 0.0
    %6057 = vmatpush2.msra.mxu0 0.0
    %6058 = vmatprep.subr.mxu0 0.0
    %6059 = vmatpush2.msra.mxu0 0.0
    %6060 = vmatprep.subr.mxu0 0.0
    %6061 = vmatpush2.msra.mxu0 0.0
    %6062 = vmatprep.subr.mxu0 0.0
    %6063 = vmatpush2.msra.mxu0 0.0
    %6064 = vmatprep.subr.mxu0 0.0
    %6065 = vmatpush2.msra.mxu0 0.0
    %6066 = vmatprep.subr.mxu0 0.0
    %6067 = vmatpush2.msra.mxu0 0.0
    %6068 = vmatprep.subr.mxu0 0.0
    %6069 = vmatpush2.msra.mxu0 0.0
    %6070 = vmatprep.subr.mxu0 0.0
    %6071 = vmatpush2.msra.mxu0 0.0
    %6072 = vmatprep.subr.mxu0 0.0
    %6073 = vmatpush2.msra.mxu0 0.0
    %6074 = vmatprep.subr.mxu0 0.0
    %6075 = vmatpush2.msra.mxu0 0.0
    %6076 = vmatprep.subr.mxu0 0.0
    %6077 = vmatpush2.msra.mxu0 0.0
    %6078 = vmatprep.subr.mxu0 0.0
    %6079 = vmatpush2.msra.mxu0 0.0
    %6080 = vmatprep.mubr.f32.mxu0 0.0
    %6081 = vmatmul.mubr.f32.gmra.mxu0 %v5759
    %v6082 = vpop.f32.mrf.mxu0
    %v6083 = vadd.f32 %v5745, %v6082
    %v6084 = vpop.f32.mrf.mxu0
    %v6085 = vadd.f32 %v5745, %v6084
    %6086 = vmatprep.mubr.f32.mxu0 0.0
    %6087 = vmatmul.mubr.f32.gmra.mxu0 %v5762
    %v6088 = vpop.f32.mrf.mxu0
    %v6089 = vadd.f32 %v5750, %v6088
    %v6090 = vpop.f32.mrf.mxu0
    %v6091 = vadd.f32 %v5750, %v6090
    %6092 = vmatprep.mubr.f32.mxu0 0.0
    %6093 = vmatmul.mubr.f32.gmra.mxu0 %v5765
    %v6094 = vpop.f32.mrf.mxu0
    %v6095 = vadd.f32 %v5755, %v6094
    %v6096 = vpop.f32.mrf.mxu0
    %v6097 = vadd.f32 %v5755, %v6096
    %6098 = vdwg.mxu0
    %6099 = vmatprep.subr.mxu0 0.0
    %6100 = vmatpush1.msra.mxu0 0.0
    %6101 = vmatprep.subr.mxu0 0.0
    %6102 = vmatpush1.msra.mxu0 0.0
    %6103 = vmatprep.subr.mxu0 0.0
    %6104 = vmatpush1.msra.mxu0 0.0
    %6105 = vmatprep.subr.mxu0 0.0
    %6106 = vmatpush1.msra.mxu0 0.0
    %6107 = vmatprep.subr.mxu0 0.0
    %6108 = vmatpush1.msra.mxu0 0.0
    %6109 = vmatprep.subr.mxu0 0.0
    %6110 = vmatpush1.msra.mxu0 0.0
    %6111 = vmatprep.subr.mxu0 0.0
    %6112 = vmatpush1.msra.mxu0 0.0
    %6113 = vmatprep.subr.mxu0 0.0
    %6114 = vmatpush1.msra.mxu0 0.0
    %6115 = vmatprep.subr.mxu0 0.0
    %6116 = vmatpush1.msra.mxu0 0.0
    %6117 = vmatprep.subr.mxu0 0.0
    %6118 = vmatpush1.msra.mxu0 0.0
    %6119 = vmatprep.subr.mxu0 0.0
    %6120 = vmatpush1.msra.mxu0 0.0
    %6121 = vmatprep.subr.mxu0 0.0
    %6122 = vmatpush1.msra.mxu0 0.0
    %6123 = vmatprep.subr.mxu0 0.0
    %6124 = vmatpush1.msra.mxu0 0.0
    %6125 = vmatprep.subr.mxu0 0.0
    %6126 = vmatpush1.msra.mxu0 0.0
    %6127 = vmatprep.subr.mxu0 %v5723
    %6128 = vmatpush1.msra.mxu0 %v5722
    %6129 = vmatprep.subr.mxu0 %v5698
    %6130 = vmatpush1.msra.mxu0 %v5697
    %6131 = vmatprep.subr.mxu0 0.0
    %6132 = vmatpush2.msra.mxu0 0.0
    %6133 = vmatprep.subr.mxu0 0.0
    %6134 = vmatpush2.msra.mxu0 0.0
    %6135 = vmatprep.subr.mxu0 0.0
    %6136 = vmatpush2.msra.mxu0 0.0
    %6137 = vmatprep.subr.mxu0 0.0
    %6138 = vmatpush2.msra.mxu0 0.0
    %6139 = vmatprep.subr.mxu0 0.0
    %6140 = vmatpush2.msra.mxu0 0.0
    %6141 = vmatprep.subr.mxu0 0.0
    %6142 = vmatpush2.msra.mxu0 0.0
    %6143 = vmatprep.subr.mxu0 0.0
    %6144 = vmatpush2.msra.mxu0 0.0
    %6145 = vmatprep.subr.mxu0 0.0
    %6146 = vmatpush2.msra.mxu0 0.0
    %6147 = vmatprep.subr.mxu0 0.0
    %6148 = vmatpush2.msra.mxu0 0.0
    %6149 = vmatprep.subr.mxu0 0.0
    %6150 = vmatpush2.msra.mxu0 0.0
    %6151 = vmatprep.subr.mxu0 0.0
    %6152 = vmatpush2.msra.mxu0 0.0
    %6153 = vmatprep.subr.mxu0 0.0
    %6154 = vmatpush2.msra.mxu0 0.0
    %6155 = vmatprep.subr.mxu0 0.0
    %6156 = vmatpush2.msra.mxu0 0.0
    %6157 = vmatprep.subr.mxu0 0.0
    %6158 = vmatpush2.msra.mxu0 0.0
    %6159 = vmatprep.subr.mxu0 0.0
    %6160 = vmatpush2.msra.mxu0 0.0
    %6161 = vmatprep.subr.mxu0 0.0
    %6162 = vmatpush2.msra.mxu0 0.0
    %6163 = vmatprep.mubr.f32.mxu0 0.0
    %6164 = vmatmul.mubr.f32.gmra.mxu0 %v5759
    %v6165 = vpop.f32.mrf.mxu0
    %v6166 = vadd.f32 %v5745, %v6165
    %v6167 = vpop.f32.mrf.mxu0
    %v6168 = vadd.f32 %v5745, %v6167
    %6169 = vmatprep.mubr.f32.mxu0 0.0
    %6170 = vmatmul.mubr.f32.gmra.mxu0 %v5762
    %v6171 = vpop.f32.mrf.mxu0
    %v6172 = vadd.f32 %v5750, %v6171
    %v6173 = vpop.f32.mrf.mxu0
    %v6174 = vadd.f32 %v5750, %v6173
    %6175 = vmatprep.mubr.f32.mxu0 0.0
    %6176 = vmatmul.mubr.f32.gmra.mxu0 %v5765
    %v6177 = vpop.f32.mrf.mxu0
    %v6178 = vadd.f32 %v5755, %v6177
    %v6179 = vpop.f32.mrf.mxu0
    %v6180 = vadd.f32 %v5755, %v6179
    %6181 = vdwg.mxu0
    %6182 = vmatprep.subr.mxu0 0.0
    %6183 = vmatpush1.msra.mxu0 0.0
    %6184 = vmatprep.subr.mxu0 0.0
    %6185 = vmatpush1.msra.mxu0 0.0
    %6186 = vmatprep.subr.mxu0 0.0
    %6187 = vmatpush1.msra.mxu0 0.0
    %6188 = vmatprep.subr.mxu0 0.0
    %6189 = vmatpush1.msra.mxu0 0.0
    %6190 = vmatprep.subr.mxu0 0.0
    %6191 = vmatpush1.msra.mxu0 0.0
    %6192 = vmatprep.subr.mxu0 0.0
    %6193 = vmatpush1.msra.mxu0 0.0
    %6194 = vmatprep.subr.mxu0 0.0
    %6195 = vmatpush1.msra.mxu0 0.0
    %6196 = vmatprep.subr.mxu0 0.0
    %6197 = vmatpush1.msra.mxu0 0.0
    %6198 = vmatprep.subr.mxu0 0.0
    %6199 = vmatpush1.msra.mxu0 0.0
    %6200 = vmatprep.subr.mxu0 0.0
    %6201 = vmatpush1.msra.mxu0 0.0
    %6202 = vmatprep.subr.mxu0 0.0
    %6203 = vmatpush1.msra.mxu0 0.0
    %6204 = vmatprep.subr.mxu0 0.0
    %6205 = vmatpush1.msra.mxu0 0.0
    %6206 = vmatprep.subr.mxu0 0.0
    %6207 = vmatpush1.msra.mxu0 0.0
    %6208 = vmatprep.subr.mxu0 0.0
    %6209 = vmatpush1.msra.mxu0 0.0
    %6210 = vmatprep.subr.mxu0 %v5725
    %6211 = vmatpush1.msra.mxu0 %v5724
    %6212 = vmatprep.subr.mxu0 %v5700
    %6213 = vmatpush1.msra.mxu0 %v5699
    %6214 = vmatprep.subr.mxu0 0.0
    %6215 = vmatpush2.msra.mxu0 0.0
    %6216 = vmatprep.subr.mxu0 0.0
    %6217 = vmatpush2.msra.mxu0 0.0
    %6218 = vmatprep.subr.mxu0 0.0
    %6219 = vmatpush2.msra.mxu0 0.0
    %6220 = vmatprep.subr.mxu0 0.0
    %6221 = vmatpush2.msra.mxu0 0.0
    %6222 = vmatprep.subr.mxu0 0.0
    %6223 = vmatpush2.msra.mxu0 0.0
    %6224 = vmatprep.subr.mxu0 0.0
    %6225 = vmatpush2.msra.mxu0 0.0
    %6226 = vmatprep.subr.mxu0 0.0
    %6227 = vmatpush2.msra.mxu0 0.0
    %6228 = vmatprep.subr.mxu0 0.0
    %6229 = vmatpush2.msra.mxu0 0.0
    %6230 = vmatprep.subr.mxu0 0.0
    %6231 = vmatpush2.msra.mxu0 0.0
    %6232 = vmatprep.subr.mxu0 0.0
    %6233 = vmatpush2.msra.mxu0 0.0
    %6234 = vmatprep.subr.mxu0 0.0
    %6235 = vmatpush2.msra.mxu0 0.0
    %6236 = vmatprep.subr.mxu0 0.0
    %6237 = vmatpush2.msra.mxu0 0.0
    %6238 = vmatprep.subr.mxu0 0.0
    %6239 = vmatpush2.msra.mxu0 0.0
    %6240 = vmatprep.subr.mxu0 0.0
    %6241 = vmatpush2.msra.mxu0 0.0
    %6242 = vmatprep.subr.mxu0 0.0
    %6243 = vmatpush2.msra.mxu0 0.0
    %6244 = vmatprep.subr.mxu0 0.0
    %6245 = vmatpush2.msra.mxu0 0.0
    %6246 = vmatprep.mubr.f32.mxu0 0.0
    %6247 = vmatmul.mubr.f32.gmra.mxu0 %v5759
    %v6248 = vpop.f32.mrf.mxu0
    %v6249 = vadd.f32 %v5745, %v6248
    %v6250 = vpop.f32.mrf.mxu0
    %v6251 = vadd.f32 %v5745, %v6250
    %6252 = vmatprep.mubr.f32.mxu0 0.0
    %6253 = vmatmul.mubr.f32.gmra.mxu0 %v5762
    %v6254 = vpop.f32.mrf.mxu0
    %v6255 = vadd.f32 %v5750, %v6254
    %v6256 = vpop.f32.mrf.mxu0
    %v6257 = vadd.f32 %v5750, %v6256
    %6258 = vmatprep.mubr.f32.mxu0 0.0
    %6259 = vmatmul.mubr.f32.gmra.mxu0 %v5765
    %v6260 = vpop.f32.mrf.mxu0
    %v6261 = vadd.f32 %v5755, %v6260
    %v6262 = vpop.f32.mrf.mxu0
    %v6263 = vadd.f32 %v5755, %v6262
    %6264 = vdwg.mxu0
    %6265 = vmatprep.subr.mxu0 0.0
    %6266 = vmatpush1.msra.mxu0 0.0
    %6267 = vmatprep.subr.mxu0 0.0
    %6268 = vmatpush1.msra.mxu0 0.0
    %6269 = vmatprep.subr.mxu0 0.0
    %6270 = vmatpush1.msra.mxu0 0.0
    %6271 = vmatprep.subr.mxu0 0.0
    %6272 = vmatpush1.msra.mxu0 0.0
    %6273 = vmatprep.subr.mxu0 0.0
    %6274 = vmatpush1.msra.mxu0 0.0
    %6275 = vmatprep.subr.mxu0 0.0
    %6276 = vmatpush1.msra.mxu0 0.0
    %6277 = vmatprep.subr.mxu0 0.0
    %6278 = vmatpush1.msra.mxu0 0.0
    %6279 = vmatprep.subr.mxu0 0.0
    %6280 = vmatpush1.msra.mxu0 0.0
    %6281 = vmatprep.subr.mxu0 0.0
    %6282 = vmatpush1.msra.mxu0 0.0
    %6283 = vmatprep.subr.mxu0 0.0
    %6284 = vmatpush1.msra.mxu0 0.0
    %6285 = vmatprep.subr.mxu0 0.0
    %6286 = vmatpush1.msra.mxu0 0.0
    %6287 = vmatprep.subr.mxu0 0.0
    %6288 = vmatpush1.msra.mxu0 0.0
    %6289 = vmatprep.subr.mxu0 0.0
    %6290 = vmatpush1.msra.mxu0 0.0
    %6291 = vmatprep.subr.mxu0 0.0
    %6292 = vmatpush1.msra.mxu0 0.0
    %6293 = vmatprep.subr.mxu0 %v5727
    %6294 = vmatpush1.msra.mxu0 %v5726
    %6295 = vmatprep.subr.mxu0 %v5702
    %6296 = vmatpush1.msra.mxu0 %v5701
    %6297 = vmatprep.subr.mxu0 0.0
    %6298 = vmatpush2.msra.mxu0 0.0
    %6299 = vmatprep.subr.mxu0 0.0
    %6300 = vmatpush2.msra.mxu0 0.0
    %6301 = vmatprep.subr.mxu0 0.0
    %6302 = vmatpush2.msra.mxu0 0.0
    %6303 = vmatprep.subr.mxu0 0.0
    %6304 = vmatpush2.msra.mxu0 0.0
    %6305 = vmatprep.subr.mxu0 0.0
    %6306 = vmatpush2.msra.mxu0 0.0
    %6307 = vmatprep.subr.mxu0 0.0
    %6308 = vmatpush2.msra.mxu0 0.0
    %6309 = vmatprep.subr.mxu0 0.0
    %6310 = vmatpush2.msra.mxu0 0.0
    %6311 = vmatprep.subr.mxu0 0.0
    %6312 = vmatpush2.msra.mxu0 0.0
    %6313 = vmatprep.subr.mxu0 0.0
    %6314 = vmatpush2.msra.mxu0 0.0
    %6315 = vmatprep.subr.mxu0 0.0
    %6316 = vmatpush2.msra.mxu0 0.0
    %6317 = vmatprep.subr.mxu0 0.0
    %6318 = vmatpush2.msra.mxu0 0.0
    %6319 = vmatprep.subr.mxu0 0.0
    %6320 = vmatpush2.msra.mxu0 0.0
    %6321 = vmatprep.subr.mxu0 0.0
    %6322 = vmatpush2.msra.mxu0 0.0
    %6323 = vmatprep.subr.mxu0 0.0
    %6324 = vmatpush2.msra.mxu0 0.0
    %6325 = vmatprep.subr.mxu0 0.0
    %6326 = vmatpush2.msra.mxu0 0.0
    %6327 = vmatprep.subr.mxu0 0.0
    %6328 = vmatpush2.msra.mxu0 0.0
    %6329 = vmatprep.mubr.f32.mxu0 0.0
    %6330 = vmatmul.mubr.f32.gmra.mxu0 %v5759
    %v6331 = vpop.f32.mrf.mxu0
    %v6332 = vadd.f32 %v5745, %v6331
    %v6333 = vpop.f32.mrf.mxu0
    %v6334 = vadd.f32 %v5745, %v6333
    %6335 = vmatprep.mubr.f32.mxu0 0.0
    %6336 = vmatmul.mubr.f32.gmra.mxu0 %v5762
    %v6337 = vpop.f32.mrf.mxu0
    %v6338 = vadd.f32 %v5750, %v6337
    %v6339 = vpop.f32.mrf.mxu0
    %v6340 = vadd.f32 %v5750, %v6339
    %6341 = vmatprep.mubr.f32.mxu0 0.0
    %6342 = vmatmul.mubr.f32.gmra.mxu0 %v5765
    %v6343 = vpop.f32.mrf.mxu0
    %v6344 = vadd.f32 %v5755, %v6343
    %v6345 = vpop.f32.mrf.mxu0
    %v6346 = vadd.f32 %v5755, %v6345
    %6347 = vdwg.mxu0
    %6348 = vmatprep.subr.mxu0 0.0
    %6349 = vmatpush1.msra.mxu0 0.0
    %6350 = vmatprep.subr.mxu0 0.0
    %6351 = vmatpush1.msra.mxu0 0.0
    %6352 = vmatprep.subr.mxu0 0.0
    %6353 = vmatpush1.msra.mxu0 0.0
    %6354 = vmatprep.subr.mxu0 0.0
    %6355 = vmatpush1.msra.mxu0 0.0
    %6356 = vmatprep.subr.mxu0 0.0
    %6357 = vmatpush1.msra.mxu0 0.0
    %6358 = vmatprep.subr.mxu0 0.0
    %6359 = vmatpush1.msra.mxu0 0.0
    %6360 = vmatprep.subr.mxu0 0.0
    %6361 = vmatpush1.msra.mxu0 0.0
    %6362 = vmatprep.subr.mxu0 0.0
    %6363 = vmatpush1.msra.mxu0 0.0
    %6364 = vmatprep.subr.mxu0 0.0
    %6365 = vmatpush1.msra.mxu0 0.0
    %6366 = vmatprep.subr.mxu0 0.0
    %6367 = vmatpush1.msra.mxu0 0.0
    %6368 = vmatprep.subr.mxu0 0.0
    %6369 = vmatpush1.msra.mxu0 0.0
    %6370 = vmatprep.subr.mxu0 0.0
    %6371 = vmatpush1.msra.mxu0 0.0
    %6372 = vmatprep.subr.mxu0 0.0
    %6373 = vmatpush1.msra.mxu0 0.0
    %6374 = vmatprep.subr.mxu0 0.0
    %6375 = vmatpush1.msra.mxu0 0.0
    %6376 = vmatprep.subr.mxu0 %v5729
    %6377 = vmatpush1.msra.mxu0 %v5728
    %6378 = vmatprep.subr.mxu0 %v5704
    %6379 = vmatpush1.msra.mxu0 %v5703
    %6380 = vmatprep.subr.mxu0 0.0
    %6381 = vmatpush2.msra.mxu0 0.0
    %6382 = vmatprep.subr.mxu0 0.0
    %6383 = vmatpush2.msra.mxu0 0.0
    %6384 = vmatprep.subr.mxu0 0.0
    %6385 = vmatpush2.msra.mxu0 0.0
    %6386 = vmatprep.subr.mxu0 0.0
    %6387 = vmatpush2.msra.mxu0 0.0
    %6388 = vmatprep.subr.mxu0 0.0
    %6389 = vmatpush2.msra.mxu0 0.0
    %6390 = vmatprep.subr.mxu0 0.0
    %6391 = vmatpush2.msra.mxu0 0.0
    %6392 = vmatprep.subr.mxu0 0.0
    %6393 = vmatpush2.msra.mxu0 0.0
    %6394 = vmatprep.subr.mxu0 0.0
    %6395 = vmatpush2.msra.mxu0 0.0
    %6396 = vmatprep.subr.mxu0 0.0
    %6397 = vmatpush2.msra.mxu0 0.0
    %6398 = vmatprep.subr.mxu0 0.0
    %6399 = vmatpush2.msra.mxu0 0.0
    %6400 = vmatprep.subr.mxu0 0.0
    %6401 = vmatpush2.msra.mxu0 0.0
    %6402 = vmatprep.subr.mxu0 0.0
    %6403 = vmatpush2.msra.mxu0 0.0
    %6404 = vmatprep.subr.mxu0 0.0
    %6405 = vmatpush2.msra.mxu0 0.0
    %6406 = vmatprep.subr.mxu0 0.0
    %6407 = vmatpush2.msra.mxu0 0.0
    %6408 = vmatprep.subr.mxu0 0.0
    %6409 = vmatpush2.msra.mxu0 0.0
    %6410 = vmatprep.subr.mxu0 0.0
    %6411 = vmatpush2.msra.mxu0 0.0
    %6412 = vmatprep.mubr.f32.mxu0 0.0
    %6413 = vmatmul.mubr.f32.gmra.mxu0 %v5759
    %v6414 = vpop.f32.mrf.mxu0
    %v6415 = vadd.f32 %v5745, %v6414
    %v6416 = vpop.f32.mrf.mxu0
    %v6417 = vadd.f32 %v5745, %v6416
    %6418 = vmatprep.mubr.f32.mxu0 0.0
    %6419 = vmatmul.mubr.f32.gmra.mxu0 %v5762
    %v6420 = vpop.f32.mrf.mxu0
    %v6421 = vadd.f32 %v5750, %v6420
    %v6422 = vpop.f32.mrf.mxu0
    %v6423 = vadd.f32 %v5750, %v6422
    %6424 = vmatprep.mubr.f32.mxu0 0.0
    %6425 = vmatmul.mubr.f32.gmra.mxu0 %v5765
    %v6426 = vpop.f32.mrf.mxu0
    %v6427 = vadd.f32 %v5755, %v6426
    %v6428 = vpop.f32.mrf.mxu0
    %v6429 = vadd.f32 %v5755, %v6428
    %6430 = vdwg.mxu0
    %6431 = vmatprep.subr.mxu0 0.0
    %6432 = vmatpush1.msra.mxu0 0.0
    %6433 = vmatprep.subr.mxu0 0.0
    %6434 = vmatpush1.msra.mxu0 0.0
    %6435 = vmatprep.subr.mxu0 0.0
    %6436 = vmatpush1.msra.mxu0 0.0
    %6437 = vmatprep.subr.mxu0 0.0
    %6438 = vmatpush1.msra.mxu0 0.0
    %6439 = vmatprep.subr.mxu0 0.0
    %6440 = vmatpush1.msra.mxu0 0.0
    %6441 = vmatprep.subr.mxu0 0.0
    %6442 = vmatpush1.msra.mxu0 0.0
    %6443 = vmatprep.subr.mxu0 0.0
    %6444 = vmatpush1.msra.mxu0 0.0
    %6445 = vmatprep.subr.mxu0 0.0
    %6446 = vmatpush1.msra.mxu0 0.0
    %6447 = vmatprep.subr.mxu0 0.0
    %6448 = vmatpush1.msra.mxu0 0.0
    %6449 = vmatprep.subr.mxu0 0.0
    %6450 = vmatpush1.msra.mxu0 0.0
    %6451 = vmatprep.subr.mxu0 0.0
    %6452 = vmatpush1.msra.mxu0 0.0
    %6453 = vmatprep.subr.mxu0 0.0
    %6454 = vmatpush1.msra.mxu0 0.0
    %6455 = vmatprep.subr.mxu0 0.0
    %6456 = vmatpush1.msra.mxu0 0.0
    %6457 = vmatprep.subr.mxu0 0.0
    %6458 = vmatpush1.msra.mxu0 0.0
    %6459 = vmatprep.subr.mxu0 %v5731
    %6460 = vmatpush1.msra.mxu0 %v5730
    %6461 = vmatprep.subr.mxu0 %v5706
    %6462 = vmatpush1.msra.mxu0 %v5705
    %6463 = vmatprep.subr.mxu0 0.0
    %6464 = vmatpush2.msra.mxu0 0.0
    %6465 = vmatprep.subr.mxu0 0.0
    %6466 = vmatpush2.msra.mxu0 0.0
    %6467 = vmatprep.subr.mxu0 0.0
    %6468 = vmatpush2.msra.mxu0 0.0
    %6469 = vmatprep.subr.mxu0 0.0
    %6470 = vmatpush2.msra.mxu0 0.0
    %6471 = vmatprep.subr.mxu0 0.0
    %6472 = vmatpush2.msra.mxu0 0.0
    %6473 = vmatprep.subr.mxu0 0.0
    %6474 = vmatpush2.msra.mxu0 0.0
    %6475 = vmatprep.subr.mxu0 0.0
    %6476 = vmatpush2.msra.mxu0 0.0
    %6477 = vmatprep.subr.mxu0 0.0
    %6478 = vmatpush2.msra.mxu0 0.0
    %6479 = vmatprep.subr.mxu0 0.0
    %6480 = vmatpush2.msra.mxu0 0.0
    %6481 = vmatprep.subr.mxu0 0.0
    %6482 = vmatpush2.msra.mxu0 0.0
    %6483 = vmatprep.subr.mxu0 0.0
    %6484 = vmatpush2.msra.mxu0 0.0
    %6485 = vmatprep.subr.mxu0 0.0
    %6486 = vmatpush2.msra.mxu0 0.0
    %6487 = vmatprep.subr.mxu0 0.0
    %6488 = vmatpush2.msra.mxu0 0.0
    %6489 = vmatprep.subr.mxu0 0.0
    %6490 = vmatpush2.msra.mxu0 0.0
    %6491 = vmatprep.subr.mxu0 0.0
    %6492 = vmatpush2.msra.mxu0 0.0
    %6493 = vmatprep.subr.mxu0 0.0
    %6494 = vmatpush2.msra.mxu0 0.0
    %6495 = vmatprep.mubr.f32.mxu0 0.0
    %6496 = vmatmul.mubr.f32.gmra.mxu0 %v5759
    %v6497 = vpop.f32.mrf.mxu0
    %v6498 = vadd.f32 %v5745, %v6497
    %v6499 = vpop.f32.mrf.mxu0
    %v6500 = vadd.f32 %v5745, %v6499
    %6501 = vmatprep.mubr.f32.mxu0 0.0
    %6502 = vmatmul.mubr.f32.gmra.mxu0 %v5762
    %v6503 = vpop.f32.mrf.mxu0
    %v6504 = vadd.f32 %v5750, %v6503
    %v6505 = vpop.f32.mrf.mxu0
    %v6506 = vadd.f32 %v5750, %v6505
    %6507 = vmatprep.mubr.f32.mxu0 0.0
    %6508 = vmatmul.mubr.f32.gmra.mxu0 %v5765
    %v6509 = vpop.f32.mrf.mxu0
    %v6510 = vadd.f32 %v5755, %v6509
    %v6511 = vpop.f32.mrf.mxu0
    %v6512 = vadd.f32 %v5755, %v6511
    %6513 = vdwg.mxu0
    %6514 = vmatprep.subr.mxu0 0.0
    %6515 = vmatpush1.msra.mxu0 0.0
    %6516 = vmatprep.subr.mxu0 0.0
    %6517 = vmatpush1.msra.mxu0 0.0
    %6518 = vmatprep.subr.mxu0 0.0
    %6519 = vmatpush1.msra.mxu0 0.0
    %6520 = vmatprep.subr.mxu0 0.0
    %6521 = vmatpush1.msra.mxu0 0.0
    %6522 = vmatprep.subr.mxu0 0.0
    %6523 = vmatpush1.msra.mxu0 0.0
    %6524 = vmatprep.subr.mxu0 0.0
    %6525 = vmatpush1.msra.mxu0 0.0
    %6526 = vmatprep.subr.mxu0 0.0
    %6527 = vmatpush1.msra.mxu0 0.0
    %6528 = vmatprep.subr.mxu0 0.0
    %6529 = vmatpush1.msra.mxu0 0.0
    %6530 = vmatprep.subr.mxu0 0.0
    %6531 = vmatpush1.msra.mxu0 0.0
    %6532 = vmatprep.subr.mxu0 0.0
    %6533 = vmatpush1.msra.mxu0 0.0
    %6534 = vmatprep.subr.mxu0 0.0
    %6535 = vmatpush1.msra.mxu0 0.0
    %6536 = vmatprep.subr.mxu0 0.0
    %6537 = vmatpush1.msra.mxu0 0.0
    %6538 = vmatprep.subr.mxu0 0.0
    %6539 = vmatpush1.msra.mxu0 0.0
    %6540 = vmatprep.subr.mxu0 0.0
    %6541 = vmatpush1.msra.mxu0 0.0
    %6542 = vmatprep.subr.mxu0 %v5733
    %6543 = vmatpush1.msra.mxu0 %v5732
    %6544 = vmatprep.subr.mxu0 %v5708
    %6545 = vmatpush1.msra.mxu0 %v5707
    %6546 = vmatprep.subr.mxu0 0.0
    %6547 = vmatpush2.msra.mxu0 0.0
    %6548 = vmatprep.subr.mxu0 0.0
    %6549 = vmatpush2.msra.mxu0 0.0
    %6550 = vmatprep.subr.mxu0 0.0
    %6551 = vmatpush2.msra.mxu0 0.0
    %6552 = vmatprep.subr.mxu0 0.0
    %6553 = vmatpush2.msra.mxu0 0.0
    %6554 = vmatprep.subr.mxu0 0.0
    %6555 = vmatpush2.msra.mxu0 0.0
    %6556 = vmatprep.subr.mxu0 0.0
    %6557 = vmatpush2.msra.mxu0 0.0
    %6558 = vmatprep.subr.mxu0 0.0
    %6559 = vmatpush2.msra.mxu0 0.0
    %6560 = vmatprep.subr.mxu0 0.0
    %6561 = vmatpush2.msra.mxu0 0.0
    %6562 = vmatprep.subr.mxu0 0.0
    %6563 = vmatpush2.msra.mxu0 0.0
    %6564 = vmatprep.subr.mxu0 0.0
    %6565 = vmatpush2.msra.mxu0 0.0
    %6566 = vmatprep.subr.mxu0 0.0
    %6567 = vmatpush2.msra.mxu0 0.0
    %6568 = vmatprep.subr.mxu0 0.0
    %6569 = vmatpush2.msra.mxu0 0.0
    %6570 = vmatprep.subr.mxu0 0.0
    %6571 = vmatpush2.msra.mxu0 0.0
    %6572 = vmatprep.subr.mxu0 0.0
    %6573 = vmatpush2.msra.mxu0 0.0
    %6574 = vmatprep.subr.mxu0 0.0
    %6575 = vmatpush2.msra.mxu0 0.0
    %6576 = vmatprep.subr.mxu0 0.0
    %6577 = vmatpush2.msra.mxu0 0.0
    %6578 = vmatprep.mubr.f32.mxu0 0.0
    %6579 = vmatmul.mubr.f32.gmra.mxu0 %v5759
    %v6580 = vpop.f32.mrf.mxu0
    %v6581 = vadd.f32 %v5745, %v6580
    %v6582 = vpop.f32.mrf.mxu0
    %v6583 = vadd.f32 %v5745, %v6582
    %6584 = vmatprep.mubr.f32.mxu0 0.0
    %6585 = vmatmul.mubr.f32.gmra.mxu0 %v5762
    %v6586 = vpop.f32.mrf.mxu0
    %v6587 = vadd.f32 %v5750, %v6586
    %v6588 = vpop.f32.mrf.mxu0
    %v6589 = vadd.f32 %v5750, %v6588
    %6590 = vmatprep.mubr.f32.mxu0 0.0
    %6591 = vmatmul.mubr.f32.gmra.mxu0 %v5765
    %v6592 = vpop.f32.mrf.mxu0
    %v6593 = vadd.f32 %v5755, %v6592
    %v6594 = vpop.f32.mrf.mxu0
    %v6595 = vadd.f32 %v5755, %v6594
    %6596 = vdwg.mxu0
    %6597 = vmatprep.subr.mxu0 0.0
    %6598 = vmatpush1.msra.mxu0 0.0
    %6599 = vmatprep.subr.mxu0 0.0
    %6600 = vmatpush1.msra.mxu0 0.0
    %6601 = vmatprep.subr.mxu0 0.0
    %6602 = vmatpush1.msra.mxu0 0.0
    %6603 = vmatprep.subr.mxu0 0.0
    %6604 = vmatpush1.msra.mxu0 0.0
    %6605 = vmatprep.subr.mxu0 0.0
    %6606 = vmatpush1.msra.mxu0 0.0
    %6607 = vmatprep.subr.mxu0 0.0
    %6608 = vmatpush1.msra.mxu0 0.0
    %6609 = vmatprep.subr.mxu0 0.0
    %6610 = vmatpush1.msra.mxu0 0.0
    %6611 = vmatprep.subr.mxu0 0.0
    %6612 = vmatpush1.msra.mxu0 0.0
    %6613 = vmatprep.subr.mxu0 0.0
    %6614 = vmatpush1.msra.mxu0 0.0
    %6615 = vmatprep.subr.mxu0 0.0
    %6616 = vmatpush1.msra.mxu0 0.0
    %6617 = vmatprep.subr.mxu0 0.0
    %6618 = vmatpush1.msra.mxu0 0.0
    %6619 = vmatprep.subr.mxu0 0.0
    %6620 = vmatpush1.msra.mxu0 0.0
    %6621 = vmatprep.subr.mxu0 0.0
    %6622 = vmatpush1.msra.mxu0 0.0
    %6623 = vmatprep.subr.mxu0 0.0
    %6624 = vmatpush1.msra.mxu0 0.0
    %6625 = vmatprep.subr.mxu0 %v5735
    %6626 = vmatpush1.msra.mxu0 %v5734
    %6627 = vmatprep.subr.mxu0 %v5710
    %6628 = vmatpush1.msra.mxu0 %v5709
    %6629 = vmatprep.subr.mxu0 0.0
    %6630 = vmatpush2.msra.mxu0 0.0
    %6631 = vmatprep.subr.mxu0 0.0
    %6632 = vmatpush2.msra.mxu0 0.0
    %6633 = vmatprep.subr.mxu0 0.0
    %6634 = vmatpush2.msra.mxu0 0.0
    %6635 = vmatprep.subr.mxu0 0.0
    %6636 = vmatpush2.msra.mxu0 0.0
    %6637 = vmatprep.subr.mxu0 0.0
    %6638 = vmatpush2.msra.mxu0 0.0
    %6639 = vmatprep.subr.mxu0 0.0
    %6640 = vmatpush2.msra.mxu0 0.0
    %6641 = vmatprep.subr.mxu0 0.0
    %6642 = vmatpush2.msra.mxu0 0.0
    %6643 = vmatprep.subr.mxu0 0.0
    %6644 = vmatpush2.msra.mxu0 0.0
    %6645 = vmatprep.subr.mxu0 0.0
    %6646 = vmatpush2.msra.mxu0 0.0
    %6647 = vmatprep.subr.mxu0 0.0
    %6648 = vmatpush2.msra.mxu0 0.0
    %6649 = vmatprep.subr.mxu0 0.0
    %6650 = vmatpush2.msra.mxu0 0.0
    %6651 = vmatprep.subr.mxu0 0.0
    %6652 = vmatpush2.msra.mxu0 0.0
    %6653 = vmatprep.subr.mxu0 0.0
    %6654 = vmatpush2.msra.mxu0 0.0
    %6655 = vmatprep.subr.mxu0 0.0
    %6656 = vmatpush2.msra.mxu0 0.0
    %6657 = vmatprep.subr.mxu0 0.0
    %6658 = vmatpush2.msra.mxu0 0.0
    %6659 = vmatprep.subr.mxu0 0.0
    %6660 = vmatpush2.msra.mxu0 0.0
    %6661 = vmatprep.mubr.f32.mxu0 0.0
    %6662 = vmatmul.mubr.f32.gmra.mxu0 %v5759
    %v6663 = vpop.f32.mrf.mxu0
    %v6664 = vadd.f32 %v5745, %v6663
    %v6665 = vpop.f32.mrf.mxu0
    %v6666 = vadd.f32 %v5745, %v6665
    %6667 = vmatprep.mubr.f32.mxu0 0.0
    %6668 = vmatmul.mubr.f32.gmra.mxu0 %v5762
    %v6669 = vpop.f32.mrf.mxu0
    %v6670 = vadd.f32 %v5750, %v6669
    %v6671 = vpop.f32.mrf.mxu0
    %v6672 = vadd.f32 %v5750, %v6671
    %6673 = vmatprep.mubr.f32.mxu0 0.0
    %6674 = vmatmul.mubr.f32.gmra.mxu0 %v5765
    %v6675 = vpop.f32.mrf.mxu0
    %v6676 = vadd.f32 %v5755, %v6675
    %v6677 = vpop.f32.mrf.mxu0
    %v6678 = vadd.f32 %v5755, %v6677
    %6679 = vdwg.mxu0
    %6680 = vmatprep.subr.mxu0 0.0
    %6681 = vmatpush1.msra.mxu0 0.0
    %6682 = vmatprep.subr.mxu0 0.0
    %6683 = vmatpush1.msra.mxu0 0.0
    %6684 = vmatprep.subr.mxu0 0.0
    %6685 = vmatpush1.msra.mxu0 0.0
    %6686 = vmatprep.subr.mxu0 0.0
    %6687 = vmatpush1.msra.mxu0 0.0
    %6688 = vmatprep.subr.mxu0 0.0
    %6689 = vmatpush1.msra.mxu0 0.0
    %6690 = vmatprep.subr.mxu0 0.0
    %6691 = vmatpush1.msra.mxu0 0.0
    %6692 = vmatprep.subr.mxu0 0.0
    %6693 = vmatpush1.msra.mxu0 0.0
    %6694 = vmatprep.subr.mxu0 0.0
    %6695 = vmatpush1.msra.mxu0 0.0
    %6696 = vmatprep.subr.mxu0 0.0
    %6697 = vmatpush1.msra.mxu0 0.0
    %6698 = vmatprep.subr.mxu0 0.0
    %6699 = vmatpush1.msra.mxu0 0.0
    %6700 = vmatprep.subr.mxu0 0.0
    %6701 = vmatpush1.msra.mxu0 0.0
    %6702 = vmatprep.subr.mxu0 0.0
    %6703 = vmatpush1.msra.mxu0 0.0
    %6704 = vmatprep.subr.mxu0 0.0
    %6705 = vmatpush1.msra.mxu0 0.0
    %6706 = vmatprep.subr.mxu0 0.0
    %6707 = vmatpush1.msra.mxu0 0.0
    %6708 = vmatprep.subr.mxu0 %v5737
    %6709 = vmatpush1.msra.mxu0 %v5736
    %6710 = vmatprep.subr.mxu0 %v5712
    %6711 = vmatpush1.msra.mxu0 %v5711
    %6712 = vmatprep.subr.mxu0 0.0
    %6713 = vmatpush2.msra.mxu0 0.0
    %6714 = vmatprep.subr.mxu0 0.0
    %6715 = vmatpush2.msra.mxu0 0.0
    %6716 = vmatprep.subr.mxu0 0.0
    %6717 = vmatpush2.msra.mxu0 0.0
    %6718 = vmatprep.subr.mxu0 0.0
    %6719 = vmatpush2.msra.mxu0 0.0
    %6720 = vmatprep.subr.mxu0 0.0
    %6721 = vmatpush2.msra.mxu0 0.0
    %6722 = vmatprep.subr.mxu0 0.0
    %6723 = vmatpush2.msra.mxu0 0.0
    %6724 = vmatprep.subr.mxu0 0.0
    %6725 = vmatpush2.msra.mxu0 0.0
    %6726 = vmatprep.subr.mxu0 0.0
    %6727 = vmatpush2.msra.mxu0 0.0
    %6728 = vmatprep.subr.mxu0 0.0
    %6729 = vmatpush2.msra.mxu0 0.0
    %6730 = vmatprep.subr.mxu0 0.0
    %6731 = vmatpush2.msra.mxu0 0.0
    %6732 = vmatprep.subr.mxu0 0.0
    %6733 = vmatpush2.msra.mxu0 0.0
    %6734 = vmatprep.subr.mxu0 0.0
    %6735 = vmatpush2.msra.mxu0 0.0
    %6736 = vmatprep.subr.mxu0 0.0
    %6737 = vmatpush2.msra.mxu0 0.0
    %6738 = vmatprep.subr.mxu0 0.0
    %6739 = vmatpush2.msra.mxu0 0.0
    %6740 = vmatprep.subr.mxu0 0.0
    %6741 = vmatpush2.msra.mxu0 0.0
    %6742 = vmatprep.subr.mxu0 0.0
    %6743 = vmatpush2.msra.mxu0 0.0
    %6744 = vmatprep.mubr.f32.mxu0 0.0
    %6745 = vmatmul.mubr.f32.gmra.mxu0 %v5759
    %v6746 = vpop.f32.mrf.mxu0
    %v6747 = vadd.f32 %v5745, %v6746
    %v6748 = vpop.f32.mrf.mxu0
    %v6749 = vadd.f32 %v5745, %v6748
    %6750 = vmatprep.mubr.f32.mxu0 0.0
    %6751 = vmatmul.mubr.f32.gmra.mxu0 %v5762
    %v6752 = vpop.f32.mrf.mxu0
    %v6753 = vadd.f32 %v5750, %v6752
    %v6754 = vpop.f32.mrf.mxu0
    %v6755 = vadd.f32 %v5750, %v6754
    %6756 = vmatprep.mubr.f32.mxu0 0.0
    %6757 = vmatmul.mubr.f32.gmra.mxu0 %v5765
    %v6758 = vpop.f32.mrf.mxu0
    %v6759 = vadd.f32 %v5755, %v6758
    %v6760 = vpop.f32.mrf.mxu0
    %v6761 = vadd.f32 %v5755, %v6760
    %6762 = vdwg.mxu0
    %6763 = vmatprep.subr.mxu0 0.0
    %6764 = vmatpush1.msra.mxu0 0.0
    %6765 = vmatprep.subr.mxu0 0.0
    %6766 = vmatpush1.msra.mxu0 0.0
    %6767 = vmatprep.subr.mxu0 0.0
    %6768 = vmatpush1.msra.mxu0 0.0
    %6769 = vmatprep.subr.mxu0 0.0
    %6770 = vmatpush1.msra.mxu0 0.0
    %6771 = vmatprep.subr.mxu0 0.0
    %6772 = vmatpush1.msra.mxu0 0.0
    %6773 = vmatprep.subr.mxu0 0.0
    %6774 = vmatpush1.msra.mxu0 0.0
    %6775 = vmatprep.subr.mxu0 0.0
    %6776 = vmatpush1.msra.mxu0 0.0
    %6777 = vmatprep.subr.mxu0 0.0
    %6778 = vmatpush1.msra.mxu0 0.0
    %6779 = vmatprep.subr.mxu0 0.0
    %6780 = vmatpush1.msra.mxu0 0.0
    %6781 = vmatprep.subr.mxu0 0.0
    %6782 = vmatpush1.msra.mxu0 0.0
    %6783 = vmatprep.subr.mxu0 0.0
    %6784 = vmatpush1.msra.mxu0 0.0
    %6785 = vmatprep.subr.mxu0 0.0
    %6786 = vmatpush1.msra.mxu0 0.0
    %6787 = vmatprep.subr.mxu0 0.0
    %6788 = vmatpush1.msra.mxu0 0.0
    %6789 = vmatprep.subr.mxu0 0.0
    %6790 = vmatpush1.msra.mxu0 0.0
    %6791 = vmatprep.subr.mxu0 0.0
    %6792 = vmatpush1.msra.mxu0 %v5738
    %6793 = vmatprep.subr.mxu0 0.0
    %6794 = vmatpush1.msra.mxu0 %v5713
    %6795 = vmatprep.subr.mxu0 0.0
    %6796 = vmatpush2.msra.mxu0 0.0
    %6797 = vmatprep.subr.mxu0 0.0
    %6798 = vmatpush2.msra.mxu0 0.0
    %6799 = vmatprep.subr.mxu0 0.0
    %6800 = vmatpush2.msra.mxu0 0.0
    %6801 = vmatprep.subr.mxu0 0.0
    %6802 = vmatpush2.msra.mxu0 0.0
    %6803 = vmatprep.subr.mxu0 0.0
    %6804 = vmatpush2.msra.mxu0 0.0
    %6805 = vmatprep.subr.mxu0 0.0
    %6806 = vmatpush2.msra.mxu0 0.0
    %6807 = vmatprep.subr.mxu0 0.0
    %6808 = vmatpush2.msra.mxu0 0.0
    %6809 = vmatprep.subr.mxu0 0.0
    %6810 = vmatpush2.msra.mxu0 0.0
    %6811 = vmatprep.subr.mxu0 0.0
    %6812 = vmatpush2.msra.mxu0 0.0
    %6813 = vmatprep.subr.mxu0 0.0
    %6814 = vmatpush2.msra.mxu0 0.0
    %6815 = vmatprep.subr.mxu0 0.0
    %6816 = vmatpush2.msra.mxu0 0.0
    %6817 = vmatprep.subr.mxu0 0.0
    %6818 = vmatpush2.msra.mxu0 0.0
    %6819 = vmatprep.subr.mxu0 0.0
    %6820 = vmatpush2.msra.mxu0 0.0
    %6821 = vmatprep.subr.mxu0 0.0
    %6822 = vmatpush2.msra.mxu0 0.0
    %6823 = vmatprep.subr.mxu0 0.0
    %6824 = vmatpush2.msra.mxu0 0.0
    %6825 = vmatprep.subr.mxu0 0.0
    %6826 = vmatpush2.msra.mxu0 0.0
    %6827 = vmatprep.mubr.f32.mxu0 0.0
    %6828 = vmatmul.mubr.f32.gmra.mxu0 %v5759
    %v6829 = vpop.f32.mrf.mxu0
    %v6830 = vadd.f32 %v5745, %v6829
    %v6831 = vpop.f32.mrf.mxu0
    %6832 = vmatprep.mubr.f32.mxu0 0.0
    %6833 = vmatmul.mubr.f32.gmra.mxu0 %v5762
    %v6834 = vpop.f32.mrf.mxu0
    %v6835 = vadd.f32 %v5750, %v6834
    %v6836 = vpop.f32.mrf.mxu0
    %6837 = vmatprep.mubr.f32.mxu0 0.0
    %6838 = vmatmul.mubr.f32.gmra.mxu0 %v5765
    %v6839 = vpop.f32.mrf.mxu0
    %v6840 = vadd.f32 %v5755, %v6839
    %v6841 = vpop.f32.mrf.mxu0
    %6842 = vdwg.mxu0
    %v6843 = vadd.f32 %v5834, 3.0
    %v6844 = vadd.f32 %v5836, 3.0
    %v6845 = vadd.f32 %v5917, 3.0
    %v6846 = vadd.f32 %v5919, 3.0
    %v6847 = vadd.f32 %v6000, 3.0
    %v6848 = vadd.f32 %v6002, 3.0
    %v6849 = vadd.f32 %v6083, 3.0
    %v6850 = vadd.f32 %v6085, 3.0
    %v6851 = vadd.f32 %v6166, 3.0
    %v6852 = vadd.f32 %v6168, 3.0
    %v6853 = vadd.f32 %v6249, 3.0
    %v6854 = vadd.f32 %v6251, 3.0
    %v6855 = vadd.f32 %v6332, 3.0
    %v6856 = vadd.f32 %v6334, 3.0
    %v6857 = vadd.f32 %v6415, 3.0
    %v6858 = vadd.f32 %v6417, 3.0
    %v6859 = vadd.f32 %v6498, 3.0
    %v6860 = vadd.f32 %v6500, 3.0
    %v6861 = vadd.f32 %v6581, 3.0
    %v6862 = vadd.f32 %v6583, 3.0
    %v6863 = vadd.f32 %v6664, 3.0
    %v6864 = vadd.f32 %v6666, 3.0
    %v6865 = vadd.f32 %v6747, 3.0
    %v6866 = vadd.f32 %v6749, 3.0
    %v6867 = vadd.f32 %v6830, 3.0
    %v6868 = vadd.f32 %v5840, 3.0
    %v6869 = vadd.f32 %v5842, 3.0
    %v6870 = vadd.f32 %v5923, 3.0
    %v6871 = vadd.f32 %v5925, 3.0
    %v6872 = vadd.f32 %v6006, 3.0
    %v6873 = vadd.f32 %v6008, 3.0
    %v6874 = vadd.f32 %v6089, 3.0
    %v6875 = vadd.f32 %v6091, 3.0
    %v6876 = vadd.f32 %v6172, 3.0
    %v6877 = vadd.f32 %v6174, 3.0
    %v6878 = vadd.f32 %v6255, 3.0
    %v6879 = vadd.f32 %v6257, 3.0
    %v6880 = vadd.f32 %v6338, 3.0
    %v6881 = vadd.f32 %v6340, 3.0
    %v6882 = vadd.f32 %v6421, 3.0
    %v6883 = vadd.f32 %v6423, 3.0
    %v6884 = vadd.f32 %v6504, 3.0
    %v6885 = vadd.f32 %v6506, 3.0
    %v6886 = vadd.f32 %v6587, 3.0
    %v6887 = vadd.f32 %v6589, 3.0
    %v6888 = vadd.f32 %v6670, 3.0
    %v6889 = vadd.f32 %v6672, 3.0
    %v6890 = vadd.f32 %v6753, 3.0
    %v6891 = vadd.f32 %v6755, 3.0
    %v6892 = vadd.f32 %v6835, 3.0
    %v6893 = vadd.f32 %v5846, 3.0
    %v6894 = vadd.f32 %v5848, 3.0
    %v6895 = vadd.f32 %v5929, 3.0
    %v6896 = vadd.f32 %v5931, 3.0
    %v6897 = vadd.f32 %v6012, 3.0
    %v6898 = vadd.f32 %v6014, 3.0
    %v6899 = vadd.f32 %v6095, 3.0
    %v6900 = vadd.f32 %v6097, 3.0
    %v6901 = vadd.f32 %v6178, 3.0
    %v6902 = vadd.f32 %v6180, 3.0
    %v6903 = vadd.f32 %v6261, 3.0
    %v6904 = vadd.f32 %v6263, 3.0
    %v6905 = vadd.f32 %v6344, 3.0
    %v6906 = vadd.f32 %v6346, 3.0
    %v6907 = vadd.f32 %v6427, 3.0
    %v6908 = vadd.f32 %v6429, 3.0
    %v6909 = vadd.f32 %v6510, 3.0
    %v6910 = vadd.f32 %v6512, 3.0
    %v6911 = vadd.f32 %v6593, 3.0
    %v6912 = vadd.f32 %v6595, 3.0
    %v6913 = vadd.f32 %v6676, 3.0
    %v6914 = vadd.f32 %v6678, 3.0
    %v6915 = vadd.f32 %v6759, 3.0
    %v6916 = vadd.f32 %v6761, 3.0
    %v6917 = vadd.f32 %v6840, 3.0
    %v6918 = vmax.f32 %v6843, 0.0
    %v6919 = vmax.f32 %v6844, 0.0
    %v6920 = vmax.f32 %v6845, 0.0
    %v6921 = vmax.f32 %v6846, 0.0
    %v6922 = vmax.f32 %v6847, 0.0
    %v6923 = vmax.f32 %v6848, 0.0
    %v6924 = vmax.f32 %v6849, 0.0
    %v6925 = vmax.f32 %v6850, 0.0
    %v6926 = vmax.f32 %v6851, 0.0
    %v6927 = vmax.f32 %v6852, 0.0
    %v6928 = vmax.f32 %v6853, 0.0
    %v6929 = vmax.f32 %v6854, 0.0
    %v6930 = vmax.f32 %v6855, 0.0
    %v6931 = vmax.f32 %v6856, 0.0
    %v6932 = vmax.f32 %v6857, 0.0
    %v6933 = vmax.f32 %v6858, 0.0
    %v6934 = vmax.f32 %v6859, 0.0
    %v6935 = vmax.f32 %v6860, 0.0
    %v6936 = vmax.f32 %v6861, 0.0
    %v6937 = vmax.f32 %v6862, 0.0
    %v6938 = vmax.f32 %v6863, 0.0
    %v6939 = vmax.f32 %v6864, 0.0
    %v6940 = vmax.f32 %v6865, 0.0
    %v6941 = vmax.f32 %v6866, 0.0
    %v6942 = vmax.f32 %v6867, 0.0
    %v6943 = vmax.f32 %v6868, 0.0
    %v6944 = vmax.f32 %v6869, 0.0
    %v6945 = vmax.f32 %v6870, 0.0
    %v6946 = vmax.f32 %v6871, 0.0
    %v6947 = vmax.f32 %v6872, 0.0
    %v6948 = vmax.f32 %v6873, 0.0
    %v6949 = vmax.f32 %v6874, 0.0
    %v6950 = vmax.f32 %v6875, 0.0
    %v6951 = vmax.f32 %v6876, 0.0
    %v6952 = vmax.f32 %v6877, 0.0
    %v6953 = vmax.f32 %v6878, 0.0
    %v6954 = vmax.f32 %v6879, 0.0
    %v6955 = vmax.f32 %v6880, 0.0
    %v6956 = vmax.f32 %v6881, 0.0
    %v6957 = vmax.f32 %v6882, 0.0
    %v6958 = vmax.f32 %v6883, 0.0
    %v6959 = vmax.f32 %v6884, 0.0
    %v6960 = vmax.f32 %v6885, 0.0
    %v6961 = vmax.f32 %v6886, 0.0
    %v6962 = vmax.f32 %v6887, 0.0
    %v6963 = vmax.f32 %v6888, 0.0
    %v6964 = vmax.f32 %v6889, 0.0
    %v6965 = vmax.f32 %v6890, 0.0
    %v6966 = vmax.f32 %v6891, 0.0
    %v6967 = vmax.f32 %v6892, 0.0
    %v6968 = vmax.f32 %v6893, 0.0
    %v6969 = vmax.f32 %v6894, 0.0
    %v6970 = vmax.f32 %v6895, 0.0
    %v6971 = vmax.f32 %v6896, 0.0
    %v6972 = vmax.f32 %v6897, 0.0
    %v6973 = vmax.f32 %v6898, 0.0
    %v6974 = vmax.f32 %v6899, 0.0
    %v6975 = vmax.f32 %v6900, 0.0
    %v6976 = vmax.f32 %v6901, 0.0
    %v6977 = vmax.f32 %v6902, 0.0
    %v6978 = vmax.f32 %v6903, 0.0
    %v6979 = vmax.f32 %v6904, 0.0
    %v6980 = vmax.f32 %v6905, 0.0
    %v6981 = vmax.f32 %v6906, 0.0
    %v6982 = vmax.f32 %v6907, 0.0
    %v6983 = vmax.f32 %v6908, 0.0
    %v6984 = vmax.f32 %v6909, 0.0
    %v6985 = vmax.f32 %v6910, 0.0
    %v6986 = vmax.f32 %v6911, 0.0
    %v6987 = vmax.f32 %v6912, 0.0
    %v6988 = vmax.f32 %v6913, 0.0
    %v6989 = vmax.f32 %v6914, 0.0
    %v6990 = vmax.f32 %v6915, 0.0
    %v6991 = vmax.f32 %v6916, 0.0
    %v6992 = vmax.f32 %v6917, 0.0
    %v6993 = vmin.f32 %v6918, 6.0
    %v6994 = vmin.f32 %v6919, 6.0
    %v6995 = vmin.f32 %v6920, 6.0
    %v6996 = vmin.f32 %v6921, 6.0
    %v6997 = vmin.f32 %v6922, 6.0
    %v6998 = vmin.f32 %v6923, 6.0
    %v6999 = vmin.f32 %v6924, 6.0
    %v7000 = vmin.f32 %v6925, 6.0
    %v7001 = vmin.f32 %v6926, 6.0
    %v7002 = vmin.f32 %v6927, 6.0
    %v7003 = vmin.f32 %v6928, 6.0
    %v7004 = vmin.f32 %v6929, 6.0
    %v7005 = vmin.f32 %v6930, 6.0
    %v7006 = vmin.f32 %v6931, 6.0
    %v7007 = vmin.f32 %v6932, 6.0
    %v7008 = vmin.f32 %v6933, 6.0
    %v7009 = vmin.f32 %v6934, 6.0
    %v7010 = vmin.f32 %v6935, 6.0
    %v7011 = vmin.f32 %v6936, 6.0
    %v7012 = vmin.f32 %v6937, 6.0
    %v7013 = vmin.f32 %v6938, 6.0
    %v7014 = vmin.f32 %v6939, 6.0
    %v7015 = vmin.f32 %v6940, 6.0
    %v7016 = vmin.f32 %v6941, 6.0
    %v7017 = vmin.f32 %v6942, 6.0
    %v7018 = vmin.f32 %v6943, 6.0
    %v7019 = vmin.f32 %v6944, 6.0
    %v7020 = vmin.f32 %v6945, 6.0
    %v7021 = vmin.f32 %v6946, 6.0
    %v7022 = vmin.f32 %v6947, 6.0
    %v7023 = vmin.f32 %v6948, 6.0
    %v7024 = vmin.f32 %v6949, 6.0
    %v7025 = vmin.f32 %v6950, 6.0
    %v7026 = vmin.f32 %v6951, 6.0
    %v7027 = vmin.f32 %v6952, 6.0
    %v7028 = vmin.f32 %v6953, 6.0
    %v7029 = vmin.f32 %v6954, 6.0
    %v7030 = vmin.f32 %v6955, 6.0
    %v7031 = vmin.f32 %v6956, 6.0
    %v7032 = vmin.f32 %v6957, 6.0
    %v7033 = vmin.f32 %v6958, 6.0
    %v7034 = vmin.f32 %v6959, 6.0
    %v7035 = vmin.f32 %v6960, 6.0
    %v7036 = vmin.f32 %v6961, 6.0
    %v7037 = vmin.f32 %v6962, 6.0
    %v7038 = vmin.f32 %v6963, 6.0
    %v7039 = vmin.f32 %v6964, 6.0
    %v7040 = vmin.f32 %v6965, 6.0
    %v7041 = vmin.f32 %v6966, 6.0
    %v7042 = vmin.f32 %v6967, 6.0
    %v7043 = vmin.f32 %v6968, 6.0
    %v7044 = vmin.f32 %v6969, 6.0
    %v7045 = vmin.f32 %v6970, 6.0
    %v7046 = vmin.f32 %v6971, 6.0
    %v7047 = vmin.f32 %v6972, 6.0
    %v7048 = vmin.f32 %v6973, 6.0
    %v7049 = vmin.f32 %v6974, 6.0
    %v7050 = vmin.f32 %v6975, 6.0
    %v7051 = vmin.f32 %v6976, 6.0
    %v7052 = vmin.f32 %v6977, 6.0
    %v7053 = vmin.f32 %v6978, 6.0
    %v7054 = vmin.f32 %v6979, 6.0
    %v7055 = vmin.f32 %v6980, 6.0
    %v7056 = vmin.f32 %v6981, 6.0
    %v7057 = vmin.f32 %v6982, 6.0
    %v7058 = vmin.f32 %v6983, 6.0
    %v7059 = vmin.f32 %v6984, 6.0
    %v7060 = vmin.f32 %v6985, 6.0
    %v7061 = vmin.f32 %v6986, 6.0
    %v7062 = vmin.f32 %v6987, 6.0
    %v7063 = vmin.f32 %v6988, 6.0
    %v7064 = vmin.f32 %v6989, 6.0
    %v7065 = vmin.f32 %v6990, 6.0
    %v7066 = vmin.f32 %v6991, 6.0
    %v7067 = vmin.f32 %v6992, 6.0
    %v7068 = vmul.f32 %v5834, %v6993
    %v7069 = vmul.f32 %v5836, %v6994
    %v7070 = vmul.f32 %v5917, %v6995
    %v7071 = vmul.f32 %v5919, %v6996
    %v7072 = vmul.f32 %v6000, %v6997
    %v7073 = vmul.f32 %v6002, %v6998
    %v7074 = vmul.f32 %v6083, %v6999
    %v7075 = vmul.f32 %v6085, %v7000
    %v7076 = vmul.f32 %v6166, %v7001
    %v7077 = vmul.f32 %v6168, %v7002
    %v7078 = vmul.f32 %v6249, %v7003
    %v7079 = vmul.f32 %v6251, %v7004
    %v7080 = vmul.f32 %v6332, %v7005
    %v7081 = vmul.f32 %v6334, %v7006
    %v7082 = vmul.f32 %v6415, %v7007
    %v7083 = vmul.f32 %v6417, %v7008
    %v7084 = vmul.f32 %v6498, %v7009
    %v7085 = vmul.f32 %v6500, %v7010
    %v7086 = vmul.f32 %v6581, %v7011
    %v7087 = vmul.f32 %v6583, %v7012
    %v7088 = vmul.f32 %v6664, %v7013
    %v7089 = vmul.f32 %v6666, %v7014
    %v7090 = vmul.f32 %v6747, %v7015
    %v7091 = vmul.f32 %v6749, %v7016
    %v7092 = vmul.f32 %v6830, %v7017
    %v7093 = vmul.f32 %v5840, %v7018
    %v7094 = vmul.f32 %v5842, %v7019
    %v7095 = vmul.f32 %v5923, %v7020
    %v7096 = vmul.f32 %v5925, %v7021
    %v7097 = vmul.f32 %v6006, %v7022
    %v7098 = vmul.f32 %v6008, %v7023
    %v7099 = vmul.f32 %v6089, %v7024
    %v7100 = vmul.f32 %v6091, %v7025
    %v7101 = vmul.f32 %v6172, %v7026
    %v7102 = vmul.f32 %v6174, %v7027
    %v7103 = vmul.f32 %v6255, %v7028
    %v7104 = vmul.f32 %v6257, %v7029
    %v7105 = vmul.f32 %v6338, %v7030
    %v7106 = vmul.f32 %v6340, %v7031
    %v7107 = vmul.f32 %v6421, %v7032
    %v7108 = vmul.f32 %v6423, %v7033
    %v7109 = vmul.f32 %v6504, %v7034
    %v7110 = vmul.f32 %v6506, %v7035
    %v7111 = vmul.f32 %v6587, %v7036
    %v7112 = vmul.f32 %v6589, %v7037
    %v7113 = vmul.f32 %v6670, %v7038
    %v7114 = vmul.f32 %v6672, %v7039
    %v7115 = vmul.f32 %v6753, %v7040
    %v7116 = vmul.f32 %v6755, %v7041
    %v7117 = vmul.f32 %v6835, %v7042
    %v7118 = vmul.f32 %v5846, %v7043
    %v7119 = vmul.f32 %v5848, %v7044
    %v7120 = vmul.f32 %v5929, %v7045
    %v7121 = vmul.f32 %v5931, %v7046
    %v7122 = vmul.f32 %v6012, %v7047
    %v7123 = vmul.f32 %v6014, %v7048
    %v7124 = vmul.f32 %v6095, %v7049
    %v7125 = vmul.f32 %v6097, %v7050
    %v7126 = vmul.f32 %v6178, %v7051
    %v7127 = vmul.f32 %v6180, %v7052
    %v7128 = vmul.f32 %v6261, %v7053
    %v7129 = vmul.f32 %v6263, %v7054
    %v7130 = vmul.f32 %v6344, %v7055
    %v7131 = vmul.f32 %v6346, %v7056
    %v7132 = vmul.f32 %v6427, %v7057
    %v7133 = vmul.f32 %v6429, %v7058
    %v7134 = vmul.f32 %v6510, %v7059
    %v7135 = vmul.f32 %v6512, %v7060
    %v7136 = vmul.f32 %v6593, %v7061
    %v7137 = vmul.f32 %v6595, %v7062
    %v7138 = vmul.f32 %v6676, %v7063
    %v7139 = vmul.f32 %v6678, %v7064
    %v7140 = vmul.f32 %v6759, %v7065
    %v7141 = vmul.f32 %v6761, %v7066
    %v7142 = vmul.f32 %v6840, %v7067
    %v7143 = vmul.f32 %v7068, 0.16666667
    %v7144 = vmul.f32 %v7069, 0.16666667
    %v7145 = vmul.f32 %v7070, 0.16666667
    %v7146 = vmul.f32 %v7071, 0.16666667
    %v7147 = vmul.f32 %v7072, 0.16666667
    %v7148 = vmul.f32 %v7073, 0.16666667
    %v7149 = vmul.f32 %v7074, 0.16666667
    %v7150 = vmul.f32 %v7075, 0.16666667
    %v7151 = vmul.f32 %v7076, 0.16666667
    %v7152 = vmul.f32 %v7077, 0.16666667
    %v7153 = vmul.f32 %v7078, 0.16666667
    %v7154 = vmul.f32 %v7079, 0.16666667
    %v7155 = vmul.f32 %v7080, 0.16666667
    %v7156 = vmul.f32 %v7081, 0.16666667
    %v7157 = vmul.f32 %v7082, 0.16666667
    %v7158 = vmul.f32 %v7083, 0.16666667
    %v7159 = vmul.f32 %v7084, 0.16666667
    %v7160 = vmul.f32 %v7085, 0.16666667
    %v7161 = vmul.f32 %v7086, 0.16666667
    %v7162 = vmul.f32 %v7087, 0.16666667
    %v7163 = vmul.f32 %v7088, 0.16666667
    %v7164 = vmul.f32 %v7089, 0.16666667
    %v7165 = vmul.f32 %v7090, 0.16666667
    %v7166 = vmul.f32 %v7091, 0.16666667
    %v7167 = vmul.f32 %v7092, 0.16666667
    %v7168 = vmul.f32 %v7093, 0.16666667
    %v7169 = vmul.f32 %v7094, 0.16666667
    %v7170 = vmul.f32 %v7095, 0.16666667
    %v7171 = vmul.f32 %v7096, 0.16666667
    %v7172 = vmul.f32 %v7097, 0.16666667
    %v7173 = vmul.f32 %v7098, 0.16666667
    %v7174 = vmul.f32 %v7099, 0.16666667
    %v7175 = vmul.f32 %v7100, 0.16666667
    %v7176 = vmul.f32 %v7101, 0.16666667
    %v7177 = vmul.f32 %v7102, 0.16666667
    %v7178 = vmul.f32 %v7103, 0.16666667
    %v7179 = vmul.f32 %v7104, 0.16666667
    %v7180 = vmul.f32 %v7105, 0.16666667
    %v7181 = vmul.f32 %v7106, 0.16666667
    %v7182 = vmul.f32 %v7107, 0.16666667
    %v7183 = vmul.f32 %v7108, 0.16666667
    %v7184 = vmul.f32 %v7109, 0.16666667
    %v7185 = vmul.f32 %v7110, 0.16666667
    %v7186 = vmul.f32 %v7111, 0.16666667
    %v7187 = vmul.f32 %v7112, 0.16666667
    %v7188 = vmul.f32 %v7113, 0.16666667
    %v7189 = vmul.f32 %v7114, 0.16666667
    %v7190 = vmul.f32 %v7115, 0.16666667
    %v7191 = vmul.f32 %v7116, 0.16666667
    %v7192 = vmul.f32 %v7117, 0.16666667
    %v7193 = vmul.f32 %v7118, 0.16666667
    %v7194 = vmul.f32 %v7119, 0.16666667
    %v7195 = vmul.f32 %v7120, 0.16666667
    %v7196 = vmul.f32 %v7121, 0.16666667
    %v7197 = vmul.f32 %v7122, 0.16666667
    %v7198 = vmul.f32 %v7123, 0.16666667
    %v7199 = vmul.f32 %v7124, 0.16666667
    %v7200 = vmul.f32 %v7125, 0.16666667
    %v7201 = vmul.f32 %v7126, 0.16666667
    %v7202 = vmul.f32 %v7127, 0.16666667
    %v7203 = vmul.f32 %v7128, 0.16666667
    %v7204 = vmul.f32 %v7129, 0.16666667
    %v7205 = vmul.f32 %v7130, 0.16666667
    %v7206 = vmul.f32 %v7131, 0.16666667
    %v7207 = vmul.f32 %v7132, 0.16666667
    %v7208 = vmul.f32 %v7133, 0.16666667
    %v7209 = vmul.f32 %v7134, 0.16666667
    %v7210 = vmul.f32 %v7135, 0.16666667
    %v7211 = vmul.f32 %v7136, 0.16666667
    %v7212 = vmul.f32 %v7137, 0.16666667
    %v7213 = vmul.f32 %v7138, 0.16666667
    %v7214 = vmul.f32 %v7139, 0.16666667
    %v7215 = vmul.f32 %v7140, 0.16666667
    %v7216 = vmul.f32 %v7141, 0.16666667
    %v7217 = vmul.f32 %v7142, 0.16666667
    %7218 = vst [vmem:[%s6] sm:$0xff] %v7143
    %7219 = vst [vmem:[%s6 + $0x8] sm:$0xff] %v7144
    %7220 = vst [vmem:[%s6 + $0x10] sm:$0xff] %v7145
    %7221 = vst [vmem:[%s6 + $0x18] sm:$0xff] %v7146
    %7222 = vst [vmem:[%s6 + $0x20] sm:$0xff] %v7147
    %7223 = vst [vmem:[%s6 + $0x28] sm:$0xff] %v7148
    %7224 = vst [vmem:[%s6 + $0x30] sm:$0xff] %v7149
    %7225 = vst [vmem:[%s6 + $0x38] sm:$0xff] %v7150
    %7226 = vst [vmem:[%s6 + $0x40] sm:$0xff] %v7151
    %7227 = vst [vmem:[%s6 + $0x48] sm:$0xff] %v7152
    %7228 = vst [vmem:[%s6 + $0x50] sm:$0xff] %v7153
    %7229 = vst [vmem:[%s6 + $0x58] sm:$0xff] %v7154
    %7230 = vst [vmem:[%s6 + $0x60] sm:$0xff] %v7155
    %7231 = vst [vmem:[%s6 + $0x68] sm:$0xff] %v7156
    %7232 = vst [vmem:[%s6 + $0x70] sm:$0xff] %v7157
    %7233 = vst [vmem:[%s6 + $0x78] sm:$0xff] %v7158
    %7234 = vst [vmem:[%s6 + $0x80] sm:$0xff] %v7159
    %7235 = vst [vmem:[%s6 + $0x88] sm:$0xff] %v7160
    %7236 = vst [vmem:[%s6 + $0x90] sm:$0xff] %v7161
    %7237 = vst [vmem:[%s6 + $0x98] sm:$0xff] %v7162
    %7238 = vst [vmem:[%s6 + $0xa0] sm:$0xff] %v7163
    %7239 = vst [vmem:[%s6 + $0xa8] sm:$0xff] %v7164
    %7240 = vst [vmem:[%s6 + $0xb0] sm:$0xff] %v7165
    %7241 = vst [vmem:[%s6 + $0xb8] sm:$0xff] %v7166
    %7242 = vst.msk [vmem:[%s6 + $0xc0] sm:$0xff] %vm4820, %v7167
    %7243 = vst [vmem:[%s6 + $0xc8] sm:$0xff] %v7168
    %7244 = vst [vmem:[%s6 + $0xd0] sm:$0xff] %v7169
    %7245 = vst [vmem:[%s6 + $0xd8] sm:$0xff] %v7170
    %7246 = vst [vmem:[%s6 + $0xe0] sm:$0xff] %v7171
    %7247 = vst [vmem:[%s6 + $0xe8] sm:$0xff] %v7172
    %7248 = vst [vmem:[%s6 + $0xf0] sm:$0xff] %v7173
    %7249 = vst [vmem:[%s6 + $0xf8] sm:$0xff] %v7174
    %7250 = vst [vmem:[%s6 + $0x100] sm:$0xff] %v7175
    %7251 = vst [vmem:[%s6 + $0x108] sm:$0xff] %v7176
    %7252 = vst [vmem:[%s6 + $0x110] sm:$0xff] %v7177
    %7253 = vst [vmem:[%s6 + $0x118] sm:$0xff] %v7178
    %7254 = vst [vmem:[%s6 + $0x120] sm:$0xff] %v7179
    %7255 = vst [vmem:[%s6 + $0x128] sm:$0xff] %v7180
    %7256 = vst [vmem:[%s6 + $0x130] sm:$0xff] %v7181
    %7257 = vst [vmem:[%s6 + $0x138] sm:$0xff] %v7182
    %7258 = vst [vmem:[%s6 + $0x140] sm:$0xff] %v7183
    %7259 = vst [vmem:[%s6 + $0x148] sm:$0xff] %v7184
    %7260 = vst [vmem:[%s6 + $0x150] sm:$0xff] %v7185
    %7261 = vst [vmem:[%s6 + $0x158] sm:$0xff] %v7186
    %7262 = vst [vmem:[%s6 + $0x160] sm:$0xff] %v7187
    %7263 = vst [vmem:[%s6 + $0x168] sm:$0xff] %v7188
    %7264 = vst [vmem:[%s6 + $0x170] sm:$0xff] %v7189
    %7265 = vst [vmem:[%s6 + $0x178] sm:$0xff] %v7190
    %7266 = vst [vmem:[%s6 + $0x180] sm:$0xff] %v7191
    %7267 = vst.msk [vmem:[%s6 + $0x188] sm:$0xff] %vm4820, %v7192
    %7268 = vst [vmem:[%s6 + $0x190] sm:$0xff] %v7193
    %7269 = vst [vmem:[%s6 + $0x198] sm:$0xff] %v7194
    %7270 = vst [vmem:[%s6 + $0x1a0] sm:$0xff] %v7195
    %7271 = vst [vmem:[%s6 + $0x1a8] sm:$0xff] %v7196
    %7272 = vst [vmem:[%s6 + $0x1b0] sm:$0xff] %v7197
    %7273 = vst [vmem:[%s6 + $0x1b8] sm:$0xff] %v7198
    %7274 = vst [vmem:[%s6 + $0x1c0] sm:$0xff] %v7199
    %7275 = vst [vmem:[%s6 + $0x1c8] sm:$0xff] %v7200
    %7276 = vst [vmem:[%s6 + $0x1d0] sm:$0xff] %v7201
    %7277 = vst [vmem:[%s6 + $0x1d8] sm:$0xff] %v7202
    %7278 = vst [vmem:[%s6 + $0x1e0] sm:$0xff] %v7203
    %7279 = vst [vmem:[%s6 + $0x1e8] sm:$0xff] %v7204
    %7280 = vst [vmem:[%s6 + $0x1f0] sm:$0xff] %v7205
    %7281 = vst [vmem:[%s6 + $0x1f8] sm:$0xff] %v7206
    %7282 = vst [vmem:[%s6 + $0x200] sm:$0xff] %v7207
    %7283 = vst [vmem:[%s6 + $0x208] sm:$0xff] %v7208
    %7284 = vst [vmem:[%s6 + $0x210] sm:$0xff] %v7209
    %7285 = vst [vmem:[%s6 + $0x218] sm:$0xff] %v7210
    %7286 = vst [vmem:[%s6 + $0x220] sm:$0xff] %v7211
    %7287 = vst [vmem:[%s6 + $0x228] sm:$0xff] %v7212
    %7288 = vst [vmem:[%s6 + $0x230] sm:$0xff] %v7213
    %7289 = vst [vmem:[%s6 + $0x238] sm:$0xff] %v7214
    %7290 = vst [vmem:[%s6 + $0x240] sm:$0xff] %v7215
    %7291 = vst [vmem:[%s6 + $0x248] sm:$0xff] %v7216
    %7292 = vst.msk [vmem:[%s6 + $0x250] sm:$0xff] %vm4820, %v7217
    %v7293 = vld [vmem:[%s5106] sm:$0xff]
    %v7294 = vld [vmem:[%s5106 + $0x8] sm:$0xff]
    %v7295 = vld [vmem:[%s5106 + $0x10] sm:$0xff]
    %v7296 = vld [vmem:[%s5106 + $0x18] sm:$0x3]
    %v7297 = vld [vmem:[%s5] ss:$2 sm:$0xff]
    %v7298 = vld [vmem:[%s5116] ss:$2 sm:$0xff]
    %v7299 = vld [vmem:[%s5118] ss:$2 sm:$0xff]
    %v7300 = vld [vmem:[%s5120] ss:$2 sm:$0x1]
    %7305 = vrot.lane.b32.xlu0 %v7297, 71
    %v7306 = vpop.permute.xlu0 %7305
    %7307 = vrot.lane.b32.xlu0 %v7298, 71
    %v7308 = vpop.permute.xlu0 %7307
    %7309 = vrot.lane.b32.xlu0 %v7299, 71
    %v7310 = vpop.permute.xlu0 %7309
    %7311 = vrot.lane.b32.xlu0 %v7300, 71
    %v7312 = vpop.permute.xlu0 %7311
    %v7313 = vrot.slane %v7306, 7
    %v7314 = vrot.slane %v7308, 7
    %v7315 = vrot.slane %v7310, 7
    %v7316 = vrot.slane %v7312, 7
    %v7317 = vsel %vm5138, %v7313, %v7306
    %v7318 = vsel %vm5140, %v7313, %v7314
    %v7319 = vsel %vm5138, %v7318, %v7308
    %v7320 = vsel %vm5140, %v7314, %v7315
    %v7321 = vsel %vm5138, %v7320, %v7310
    %v7322 = vsel %vm5140, %v7315, %v7316
    %v7323 = vsel %vm5138, %v7322, %v7312
    %v7328 = vmul.f32 %v7293, %v7317
    %v7329 = vmul.f32 %v7294, %v7319
    %v7330 = vmul.f32 %v7295, %v7321
    %v7331 = vmul.f32 %v7296, %v7323
    %7336 = vrot.lane.b32.xlu0 %v7328, 57
    %v7337 = vpop.permute.xlu0 %7336
    %7338 = vrot.lane.b32.xlu0 %v7329, 57
    %v7339 = vpop.permute.xlu0 %7338
    %7340 = vrot.lane.b32.xlu0 %v7330, 57
    %v7341 = vpop.permute.xlu0 %7340
    %7342 = vrot.lane.b32.xlu0 %v7331, 57
    %v7343 = vpop.permute.xlu0 %7342
    %v7344 = vrot.slane %v7337, 1
    %v7345 = vrot.slane %v7339, 1
    %v7346 = vrot.slane %v7341, 1
    %v7347 = vrot.slane %v7343, 1
    %v7348 = vsel %vm1942, %v7344, %v7345
    %v7349 = vsel %vm5172, %v7337, %v7348
    %v7350 = vsel %vm1942, %v7345, %v7346
    %v7351 = vsel %vm5172, %v7339, %v7350
    %v7352 = vsel %vm1942, %v7346, %v7347
    %v7353 = vsel %vm5172, %v7341, %v7352
    %v7354 = vsel %vm5172, %v7343, %v7347
    %7359 = vst [vmem:[#allocation3] ss:$8 sm:$0xf] %v7349
    %7360 = vst [vmem:[#allocation3] ss:$8 sm:$0xf0] %v7349
    %7361 = vst [vmem:[%s5185] ss:$8 sm:$0xf] %v7351
    %7362 = vst [vmem:[%s5185] ss:$8 sm:$0xf0] %v7351
    %7363 = vst [vmem:[%s5188] ss:$8 sm:$0xf] %v7353
    %7364 = vst [vmem:[%s5188] ss:$8 sm:$0xf0] %v7353
    %7365 = vst.msk [vmem:[%s5191] ss:$8 sm:$0x1] %vm5041, %v7354
    %7366 = vst.msk [vmem:[%s5191] ss:$8 sm:$0x0] %vm5041, %v7354
    %v7367 = vld [vmem:[%s5106] sm:$0xff]
    %v7368 = vld [vmem:[%s5106 + $0x8] sm:$0xff]
    %v7369 = vld [vmem:[%s5106 + $0x10] sm:$0xff]
    %v7370 = vld [vmem:[%s5106 + $0x18] sm:$0x3]
    %7375 = vrot.lane.b32.xlu0 %v7367, 56
    %v7376 = vpop.permute.xlu0 %7375
    %7377 = vrot.lane.b32.xlu0 %v7368, 56
    %v7378 = vpop.permute.xlu0 %7377
    %7379 = vrot.lane.b32.xlu0 %v7369, 56
    %v7380 = vpop.permute.xlu0 %7379
    %7381 = vrot.lane.b32.xlu0 %v7370, 56
    %v7382 = vpop.permute.xlu0 %7381
    %v7383 = vrot.slane %v7376, 1
    %v7384 = vrot.slane %v7378, 1
    %v7385 = vrot.slane %v7380, 1
    %v7386 = vrot.slane %v7382, 1
    %v7387 = vsel %vm1942, %v7383, %v7384
    %v7388 = vsel %vm5215, %v7376, %v7387
    %v7389 = vsel %vm1942, %v7384, %v7385
    %v7390 = vsel %vm5215, %v7378, %v7389
    %v7391 = vsel %vm1942, %v7385, %v7386
    %v7392 = vsel %vm5215, %v7380, %v7391
    %v7393 = vsel %vm5215, %v7382, %v7386
    %7398 = vst [vmem:[%s5226] ss:$8 sm:$0xf] %v7388
    %7399 = vst [vmem:[%s5226] ss:$8 sm:$0xf0] %v7388
    %7400 = vst [vmem:[%s5229] ss:$8 sm:$0xf] %v7390
    %7401 = vst [vmem:[%s5229] ss:$8 sm:$0xf0] %v7390
    %7402 = vst [vmem:[%s5232] ss:$8 sm:$0xf] %v7392
    %7403 = vst [vmem:[%s5232] ss:$8 sm:$0xf0] %v7392
    %7404 = vst.msk [vmem:[%s5235] ss:$8 sm:$0x1] %vm5041, %v7393
    %7405 = vst.msk [vmem:[%s5235] ss:$8 sm:$0x0] %vm5041, %v7393
    %v7406 = vld [vmem:[%s5106] sm:$0xff]
    %v7407 = vld [vmem:[%s5106 + $0x8] sm:$0xff]
    %v7408 = vld [vmem:[%s5106 + $0x10] sm:$0xff]
    %v7409 = vld [vmem:[%s5106 + $0x18] sm:$0x3]
    %v7410 = vld [vmem:[%s5242] ss:$2 sm:$0xff]
    %v7411 = vld [vmem:[%s5244] ss:$2 sm:$0xff]
    %v7412 = vld [vmem:[%s5246] ss:$2 sm:$0xff]
    %v7413 = vld [vmem:[%s5248] ss:$2 sm:$0x1]
    %7418 = vrot.lane.b32.xlu0 %v7410, 73
    %v7419 = vpop.permute.xlu0 %7418
    %7420 = vrot.lane.b32.xlu0 %v7411, 73
    %v7421 = vpop.permute.xlu0 %7420
    %7422 = vrot.lane.b32.xlu0 %v7412, 73
    %v7423 = vpop.permute.xlu0 %7422
    %7424 = vrot.lane.b32.xlu0 %v7413, 73
    %v7425 = vpop.permute.xlu0 %7424
    %v7426 = vrot.slane %v7419, 7
    %v7427 = vrot.slane %v7421, 7
    %v7428 = vrot.slane %v7423, 7
    %v7429 = vrot.slane %v7425, 7
    %v7430 = vsel %vm5266, %v7426, %v7419
    %v7431 = vsel %vm5140, %v7426, %v7427
    %v7432 = vsel %vm5266, %v7431, %v7421
    %v7433 = vsel %vm5140, %v7427, %v7428
    %v7434 = vsel %vm5266, %v7433, %v7423
    %v7435 = vsel %vm5140, %v7428, %v7429
    %v7436 = vsel %vm5266, %v7435, %v7425
    %v7441 = vmul.f32 %v7406, %v7430
    %v7442 = vmul.f32 %v7407, %v7432
    %v7443 = vmul.f32 %v7408, %v7434
    %v7444 = vmul.f32 %v7409, %v7436
    %7449 = vrot.lane.b32.xlu0 %v7441, 55
    %v7450 = vpop.permute.xlu0 %7449
    %7451 = vrot.lane.b32.xlu0 %v7442, 55
    %v7452 = vpop.permute.xlu0 %7451
    %7453 = vrot.lane.b32.xlu0 %v7443, 55
    %v7454 = vpop.permute.xlu0 %7453
    %7455 = vrot.lane.b32.xlu0 %v7444, 55
    %v7456 = vpop.permute.xlu0 %7455
    %v7457 = vrot.slane %v7450, 1
    %v7458 = vrot.slane %v7452, 1
    %v7459 = vrot.slane %v7454, 1
    %v7460 = vrot.slane %v7456, 1
    %v7461 = vsel %vm1942, %v7457, %v7458
    %v7462 = vsel %vm5299, %v7450, %v7461
    %v7463 = vsel %vm1942, %v7458, %v7459
    %v7464 = vsel %vm5299, %v7452, %v7463
    %v7465 = vsel %vm1942, %v7459, %v7460
    %v7466 = vsel %vm5299, %v7454, %v7465
    %v7467 = vsel %vm5299, %v7456, %v7460
    %7472 = vst [vmem:[%s5310] ss:$8 sm:$0xf] %v7462
    %7473 = vst [vmem:[%s5310] ss:$8 sm:$0xf0] %v7462
    %7474 = vst [vmem:[%s5313] ss:$8 sm:$0xf] %v7464
    %7475 = vst [vmem:[%s5313] ss:$8 sm:$0xf0] %v7464
    %7476 = vst [vmem:[%s5316] ss:$8 sm:$0xf] %v7466
    %7477 = vst [vmem:[%s5316] ss:$8 sm:$0xf0] %v7466
    %7478 = vst.msk [vmem:[%s5319] ss:$8 sm:$0x1] %vm5041, %v7467
    %7479 = vst.msk [vmem:[%s5319] ss:$8 sm:$0x0] %vm5041, %v7467
    %v7480 = vld [vmem:[%s5106] sm:$0xff]
    %v7481 = vld [vmem:[%s5106 + $0x8] sm:$0xff]
    %v7482 = vld [vmem:[%s5106 + $0x10] sm:$0xff]
    %v7483 = vld [vmem:[%s5106 + $0x18] sm:$0x3]
    %v7484 = vld [vmem:[%s5] ss:$2 sm:$0xff]
    %v7485 = vld [vmem:[%s5116] ss:$2 sm:$0xff]
    %v7486 = vld [vmem:[%s5118] ss:$2 sm:$0xff]
    %v7487 = vld [vmem:[%s5120] ss:$2 sm:$0x1]
    %7492 = vrot.lane.b32.xlu0 %v7484, 127
    %v7493 = vpop.permute.xlu0 %7492
    %7494 = vrot.lane.b32.xlu0 %v7485, 127
    %v7495 = vpop.permute.xlu0 %7494
    %7496 = vrot.lane.b32.xlu0 %v7486, 127
    %v7497 = vpop.permute.xlu0 %7496
    %7498 = vrot.lane.b32.xlu0 %v7487, 127
    %v7499 = vpop.permute.xlu0 %7498
    %v7500 = vrot.slane %v7493, 7
    %v7501 = vrot.slane %v7495, 7
    %v7502 = vrot.slane %v7497, 7
    %v7503 = vrot.slane %v7499, 7
    %v7504 = vsel %vm5346, %v7500, %v7493
    %v7505 = vsel %vm5140, %v7500, %v7501
    %v7506 = vsel %vm5346, %v7505, %v7495
    %v7507 = vsel %vm5140, %v7501, %v7502
    %v7508 = vsel %vm5346, %v7507, %v7497
    %v7509 = vsel %vm5140, %v7502, %v7503
    %v7510 = vsel %vm5346, %v7509, %v7499
    %v7515 = vmul.f32 %v7480, %v7504
    %v7516 = vmul.f32 %v7481, %v7506
    %v7517 = vmul.f32 %v7482, %v7508
    %v7518 = vmul.f32 %v7483, %v7510
    %7523 = vrot.lane.b32.xlu0 %v7515, 1
    %v7524 = vpop.permute.xlu0 %7523
    %7525 = vrot.lane.b32.xlu0 %v7516, 1
    %v7526 = vpop.permute.xlu0 %7525
    %7527 = vrot.lane.b32.xlu0 %v7517, 1
    %v7528 = vpop.permute.xlu0 %7527
    %7529 = vrot.lane.b32.xlu0 %v7518, 1
    %v7530 = vpop.permute.xlu0 %7529
    %v7531 = vrot.slane %v7524, 1
    %v7532 = vrot.slane %v7526, 1
    %v7533 = vrot.slane %v7528, 1
    %v7534 = vrot.slane %v7530, 1
    %v7535 = vsel %vm1942, %v7531, %v7532
    %v7536 = vsel %vm5379, %v7524, %v7535
    %v7537 = vsel %vm1942, %v7532, %v7533
    %v7538 = vsel %vm5379, %v7526, %v7537
    %v7539 = vsel %vm1942, %v7533, %v7534
    %v7540 = vsel %vm5379, %v7528, %v7539
    %v7541 = vsel %vm5379, %v7530, %v7534
    %7546 = vst [vmem:[%s5390] ss:$8 sm:$0xf] %v7536
    %7547 = vst [vmem:[%s5390] ss:$8 sm:$0xf0] %v7536
    %7548 = vst [vmem:[%s5393] ss:$8 sm:$0xf] %v7538
    %7549 = vst [vmem:[%s5393] ss:$8 sm:$0xf0] %v7538
    %7550 = vst [vmem:[%s5396] ss:$8 sm:$0xf] %v7540
    %7551 = vst [vmem:[%s5396] ss:$8 sm:$0xf0] %v7540
    %7552 = vst.msk [vmem:[%s5399] ss:$8 sm:$0x1] %vm5041, %v7541
    %7553 = vst.msk [vmem:[%s5399] ss:$8 sm:$0x0] %vm5041, %v7541
    %v7554 = vld [vmem:[%s5106 + $0x1] sm:$0xff]
    %v7555 = vld [vmem:[%s5106 + $0x9] sm:$0xff]
    %v7556 = vld [vmem:[%s5106 + $0x11] sm:$0xff]
    %v7557 = vld [vmem:[%s5106 + $0x19] sm:$0x1]
    %7558 = vst [vmem:[%s5406] ss:$8 sm:$0xf] %v7554
    %7559 = vst [vmem:[%s5406] ss:$8 sm:$0xf0] %v7554
    %7560 = vst [vmem:[%s5409] ss:$8 sm:$0xf] %v7555
    %7561 = vst [vmem:[%s5409] ss:$8 sm:$0xf0] %v7555
    %7562 = vst [vmem:[%s5412] ss:$8 sm:$0xf] %v7556
    %7563 = vst [vmem:[%s5412] ss:$8 sm:$0xf0] %v7556
    %7564 = vst.msk [vmem:[%s5415] ss:$8 sm:$0x1] %vm5041, %v7557
    %7565 = vst.msk [vmem:[%s5415] ss:$8 sm:$0x0] %vm5041, %v7557
    %v7566 = vld [vmem:[%s5106 + $0x1] sm:$0xff]
    %v7567 = vld [vmem:[%s5106 + $0x9] sm:$0xff]
    %v7568 = vld [vmem:[%s5106 + $0x11] sm:$0xff]
    %v7569 = vld [vmem:[%s5106 + $0x19] sm:$0x1]
    %v7570 = vld [vmem:[%s5242] ss:$2 sm:$0xff]
    %v7571 = vld [vmem:[%s5244] ss:$2 sm:$0xff]
    %v7572 = vld [vmem:[%s5246] ss:$2 sm:$0xff]
    %v7573 = vld [vmem:[%s5248] ss:$2 sm:$0x1]
    %7578 = vrot.lane.b32.xlu0 %v7570, 1
    %v7579 = vpop.permute.xlu0 %7578
    %7580 = vrot.lane.b32.xlu0 %v7571, 1
    %v7581 = vpop.permute.xlu0 %7580
    %7582 = vrot.lane.b32.xlu0 %v7572, 1
    %v7583 = vpop.permute.xlu0 %7582
    %7584 = vrot.lane.b32.xlu0 %v7573, 1
    %v7585 = vpop.permute.xlu0 %7584
    %v7586 = vrot.slane %v7579, 7
    %v7587 = vrot.slane %v7581, 7
    %v7588 = vrot.slane %v7583, 7
    %v7589 = vsel %vm5379, %v7586, %v7579
    %v7590 = vsel %vm5140, %v7586, %v7587
    %v7591 = vsel %vm5379, %v7590, %v7581
    %v7592 = vsel %vm5140, %v7587, %v7588
    %v7593 = vsel %vm5379, %v7592, %v7583
    %v7594 = vsel %vm5379, %v7588, %v7585
    %v7599 = vmul.f32 %v7566, %v7589
    %v7600 = vmul.f32 %v7567, %v7591
    %v7601 = vmul.f32 %v7568, %v7593
    %v7602 = vmul.f32 %v7569, %v7594
    %7607 = vrot.lane.b32.xlu0 %v7599, 127
    %v7608 = vpop.permute.xlu0 %7607
    %7609 = vrot.lane.b32.xlu0 %v7600, 127
    %v7610 = vpop.permute.xlu0 %7609
    %7611 = vrot.lane.b32.xlu0 %v7601, 127
    %v7612 = vpop.permute.xlu0 %7611
    %7613 = vrot.lane.b32.xlu0 %v7602, 127
    %v7614 = vpop.permute.xlu0 %7613
    %v7615 = vrot.slane %v7608, 1
    %v7616 = vrot.slane %v7610, 1
    %v7617 = vrot.slane %v7612, 1
    %v7618 = vrot.slane %v7614, 1
    %v7619 = vsel %vm1942, %v7615, %v7616
    %v7620 = vsel %vm5346, %v7608, %v7619
    %v7621 = vsel %vm1942, %v7616, %v7617
    %v7622 = vsel %vm5346, %v7610, %v7621
    %v7623 = vsel %vm1942, %v7617, %v7618
    %v7624 = vsel %vm5346, %v7612, %v7623
    %7629 = vst [vmem:[%s5481] ss:$8 sm:$0xf] %v7620
    %7630 = vst [vmem:[%s5481] ss:$8 sm:$0xf0] %v7620
    %7631 = vst [vmem:[%s5484] ss:$8 sm:$0xf] %v7622
    %7632 = vst [vmem:[%s5484] ss:$8 sm:$0xf0] %v7622
    %7633 = vst [vmem:[%s5487] ss:$8 sm:$0xf] %v7624
    %7634 = vst [vmem:[%s5487] ss:$8 sm:$0xf0] %v7624
    %7635 = vst.msk [vmem:[%s5490] ss:$8 sm:$0x1] %vm5041, %v7614
    %7636 = vst.msk [vmem:[%s5490] ss:$8 sm:$0x0] %vm5041, %v7614
    %v7637 = vld [vmem:[%s5106 + $0x1] sm:$0xff]
    %v7638 = vld [vmem:[%s5106 + $0x9] sm:$0xff]
    %v7639 = vld [vmem:[%s5106 + $0x11] sm:$0xff]
    %v7640 = vld [vmem:[%s5106 + $0x19] sm:$0x1]
    %v7641 = vld [vmem:[%s5] ss:$2 sm:$0xff]
    %v7642 = vld [vmem:[%s5116] ss:$2 sm:$0xff]
    %v7643 = vld [vmem:[%s5118] ss:$2 sm:$0xff]
    %v7644 = vld [vmem:[%s5120] ss:$2 sm:$0x1]
    %7649 = vrot.lane.b32.xlu0 %v7641, 55
    %v7650 = vpop.permute.xlu0 %7649
    %7651 = vrot.lane.b32.xlu0 %v7642, 55
    %v7652 = vpop.permute.xlu0 %7651
    %7653 = vrot.lane.b32.xlu0 %v7643, 55
    %v7654 = vpop.permute.xlu0 %7653
    %7655 = vrot.lane.b32.xlu0 %v7644, 55
    %v7656 = vpop.permute.xlu0 %7655
    %v7657 = vrot.slane %v7650, 7
    %v7658 = vrot.slane %v7652, 7
    %v7659 = vrot.slane %v7654, 7
    %v7660 = vsel %vm5299, %v7657, %v7650
    %v7661 = vsel %vm5140, %v7657, %v7658
    %v7662 = vsel %vm5299, %v7661, %v7652
    %v7663 = vsel %vm5140, %v7658, %v7659
    %v7664 = vsel %vm5299, %v7663, %v7654
    %v7665 = vsel %vm5299, %v7659, %v7656
    %v7670 = vmul.f32 %v7637, %v7660
    %v7671 = vmul.f32 %v7638, %v7662
    %v7672 = vmul.f32 %v7639, %v7664
    %v7673 = vmul.f32 %v7640, %v7665
    %7678 = vrot.lane.b32.xlu0 %v7670, 73
    %v7679 = vpop.permute.xlu0 %7678
    %7680 = vrot.lane.b32.xlu0 %v7671, 73
    %v7681 = vpop.permute.xlu0 %7680
    %7682 = vrot.lane.b32.xlu0 %v7672, 73
    %v7683 = vpop.permute.xlu0 %7682
    %7684 = vrot.lane.b32.xlu0 %v7673, 73
    %v7685 = vpop.permute.xlu0 %7684
    %v7686 = vrot.slane %v7679, 1
    %v7687 = vrot.slane %v7681, 1
    %v7688 = vrot.slane %v7683, 1
    %v7689 = vrot.slane %v7685, 1
    %v7690 = vsel %vm1942, %v7686, %v7687
    %v7691 = vsel %vm5266, %v7679, %v7690
    %v7692 = vsel %vm1942, %v7687, %v7688
    %v7693 = vsel %vm5266, %v7681, %v7692
    %v7694 = vsel %vm1942, %v7688, %v7689
    %v7695 = vsel %vm5266, %v7683, %v7694
    %7700 = vst [vmem:[%s5556] ss:$8 sm:$0xf] %v7691
    %7701 = vst [vmem:[%s5556] ss:$8 sm:$0xf0] %v7691
    %7702 = vst [vmem:[%s5559] ss:$8 sm:$0xf] %v7693
    %7703 = vst [vmem:[%s5559] ss:$8 sm:$0xf0] %v7693
    %7704 = vst [vmem:[%s5562] ss:$8 sm:$0xf] %v7695
    %7705 = vst [vmem:[%s5562] ss:$8 sm:$0xf0] %v7695
    %7706 = vst.msk [vmem:[%s5565] ss:$8 sm:$0x1] %vm5041, %v7685
    %7707 = vst.msk [vmem:[%s5565] ss:$8 sm:$0x0] %vm5041, %v7685
    %v7708 = vld [vmem:[%s5106 + $0x1] sm:$0xff]
    %v7709 = vld [vmem:[%s5106 + $0x9] sm:$0xff]
    %v7710 = vld [vmem:[%s5106 + $0x11] sm:$0xff]
    %v7711 = vld [vmem:[%s5106 + $0x19] sm:$0x1]
    %7716 = vrot.lane.b32.xlu0 %v7708, 72
    %v7717 = vpop.permute.xlu0 %7716
    %7718 = vrot.lane.b32.xlu0 %v7709, 72
    %v7719 = vpop.permute.xlu0 %7718
    %7720 = vrot.lane.b32.xlu0 %v7710, 72
    %v7721 = vpop.permute.xlu0 %7720
    %7722 = vrot.lane.b32.xlu0 %v7711, 72
    %v7723 = vpop.permute.xlu0 %7722
    %v7724 = vrot.slane %v7717, 1
    %v7725 = vrot.slane %v7719, 1
    %v7726 = vrot.slane %v7721, 1
    %v7727 = vrot.slane %v7723, 1
    %v7728 = vsel %vm1942, %v7724, %v7725
    %v7729 = vsel %vm5589, %v7717, %v7728
    %v7730 = vsel %vm1942, %v7725, %v7726
    %v7731 = vsel %vm5589, %v7719, %v7730
    %v7732 = vsel %vm1942, %v7726, %v7727
    %v7733 = vsel %vm5589, %v7721, %v7732
    %7738 = vst [vmem:[%s5599] ss:$8 sm:$0xf] %v7729
    %7739 = vst [vmem:[%s5599] ss:$8 sm:$0xf0] %v7729
    %7740 = vst [vmem:[%s5602] ss:$8 sm:$0xf] %v7731
    %7741 = vst [vmem:[%s5602] ss:$8 sm:$0xf0] %v7731
    %7742 = vst [vmem:[%s5605] ss:$8 sm:$0xf] %v7733
    %7743 = vst [vmem:[%s5605] ss:$8 sm:$0xf0] %v7733
    %7744 = vst.msk [vmem:[%s5608] ss:$8 sm:$0x1] %vm5041, %v7723
    %7745 = vst.msk [vmem:[%s5608] ss:$8 sm:$0x0] %vm5041, %v7723
    %v7746 = vld [vmem:[%s5106 + $0x1] sm:$0xff]
    %v7747 = vld [vmem:[%s5106 + $0x9] sm:$0xff]
    %v7748 = vld [vmem:[%s5106 + $0x11] sm:$0xff]
    %v7749 = vld [vmem:[%s5106 + $0x19] sm:$0x1]
    %v7750 = vld [vmem:[%s5242] ss:$2 sm:$0xff]
    %v7751 = vld [vmem:[%s5244] ss:$2 sm:$0xff]
    %v7752 = vld [vmem:[%s5246] ss:$2 sm:$0xff]
    %v7753 = vld [vmem:[%s5248] ss:$2 sm:$0x1]
    %7758 = vrot.lane.b32.xlu0 %v7750, 57
    %v7759 = vpop.permute.xlu0 %7758
    %7760 = vrot.lane.b32.xlu0 %v7751, 57
    %v7761 = vpop.permute.xlu0 %7760
    %7762 = vrot.lane.b32.xlu0 %v7752, 57
    %v7763 = vpop.permute.xlu0 %7762
    %7764 = vrot.lane.b32.xlu0 %v7753, 57
    %v7765 = vpop.permute.xlu0 %7764
    %v7766 = vrot.slane %v7759, 7
    %v7767 = vrot.slane %v7761, 7
    %v7768 = vrot.slane %v7763, 7
    %v7769 = vsel %vm5172, %v7766, %v7759
    %v7770 = vsel %vm5140, %v7766, %v7767
    %v7771 = vsel %vm5172, %v7770, %v7761
    %v7772 = vsel %vm5140, %v7767, %v7768
    %v7773 = vsel %vm5172, %v7772, %v7763
    %v7774 = vsel %vm5172, %v7768, %v7765
    %v7779 = vmul.f32 %v7746, %v7769
    %v7780 = vmul.f32 %v7747, %v7771
    %v7781 = vmul.f32 %v7748, %v7773
    %v7782 = vmul.f32 %v7749, %v7774
    %7787 = vrot.lane.b32.xlu0 %v7779, 71
    %v7788 = vpop.permute.xlu0 %7787
    %7789 = vrot.lane.b32.xlu0 %v7780, 71
    %v7790 = vpop.permute.xlu0 %7789
    %7791 = vrot.lane.b32.xlu0 %v7781, 71
    %v7792 = vpop.permute.xlu0 %7791
    %7793 = vrot.lane.b32.xlu0 %v7782, 71
    %v7794 = vpop.permute.xlu0 %7793
    %v7795 = vrot.slane %v7788, 1
    %v7796 = vrot.slane %v7790, 1
    %v7797 = vrot.slane %v7792, 1
    %v7798 = vrot.slane %v7794, 1
    %v7799 = vsel %vm1942, %v7795, %v7796
    %v7800 = vsel %vm5138, %v7788, %v7799
    %v7801 = vsel %vm1942, %v7796, %v7797
    %v7802 = vsel %vm5138, %v7790, %v7801
    %v7803 = vsel %vm1942, %v7797, %v7798
    %v7804 = vsel %vm5138, %v7792, %v7803
    %7809 = vst [vmem:[%s5674] ss:$8 sm:$0xf] %v7800
    %7810 = vst [vmem:[%s5674] ss:$8 sm:$0xf0] %v7800
    %7811 = vst [vmem:[%s5677] ss:$8 sm:$0xf] %v7802
    %7812 = vst [vmem:[%s5677] ss:$8 sm:$0xf0] %v7802
    %7813 = vst [vmem:[%s5680] ss:$8 sm:$0xf] %v7804
    %7814 = vst [vmem:[%s5680] ss:$8 sm:$0xf0] %v7804
    %7815 = vst.msk [vmem:[%s5683] ss:$8 sm:$0x1] %vm5041, %v7794
    %7816 = vst.msk [vmem:[%s5683] ss:$8 sm:$0x0] %vm5041, %v7794
    %v7817 = vld [vmem:[%s3] sm:$0xff]
    %v7818 = vld [vmem:[%s3 + $0x8] sm:$0xff]
    %v7819 = vld [vmem:[%s3 + $0x10] sm:$0xff]
    %v7820 = vld [vmem:[#allocation3] sm:$0xff]
    %v7821 = vld [vmem:[#allocation3 + $0x8] sm:$0xff]
    %v7822 = vld [vmem:[#allocation3 + $0x10] sm:$0xff]
    %v7823 = vld [vmem:[#allocation3 + $0x18] sm:$0xff]
    %v7824 = vld [vmem:[#allocation3 + $0x20] sm:$0xff]
    %v7825 = vld [vmem:[#allocation3 + $0x28] sm:$0xff]
    %v7826 = vld [vmem:[#allocation3 + $0x30] sm:$0xff]
    %v7827 = vld [vmem:[#allocation3 + $0x38] sm:$0xff]
    %v7828 = vld [vmem:[#allocation3 + $0x40] sm:$0xff]
    %v7829 = vld [vmem:[#allocation3 + $0x48] sm:$0xff]
    %v7830 = vld [vmem:[#allocation3 + $0x50] sm:$0xff]
    %v7831 = vld [vmem:[#allocation3 + $0x58] sm:$0xff]
    %v7832 = vld [vmem:[#allocation3 + $0x60] sm:$0xff]
    %v7833 = vld [vmem:[#allocation3 + $0x68] sm:$0xff]
    %v7834 = vld [vmem:[#allocation3 + $0x70] sm:$0xff]
    %v7835 = vld [vmem:[#allocation3 + $0x78] sm:$0xff]
    %v7836 = vld [vmem:[#allocation3 + $0x80] sm:$0xff]
    %v7837 = vld [vmem:[#allocation3 + $0x88] sm:$0xff]
    %v7838 = vld [vmem:[#allocation3 + $0x90] sm:$0xff]
    %v7839 = vld [vmem:[#allocation3 + $0x98] sm:$0xff]
    %v7840 = vld [vmem:[#allocation3 + $0xa0] sm:$0xff]
    %v7841 = vld [vmem:[#allocation3 + $0xa8] sm:$0xff]
    %v7842 = vld [vmem:[#allocation3 + $0xb0] sm:$0xff]
    %v7843 = vld [vmem:[#allocation3 + $0xb8] sm:$0xff]
    %v7844 = vld [vmem:[#allocation3 + $0xc0] sm:$0xff]
    %v7845 = vld [vmem:[#allocation3 + $0xc8] sm:$0xff]
    %v7846 = vld [vmem:[#allocation3 + $0xd0] sm:$0xff]
    %v7847 = vld [vmem:[#allocation3 + $0xd8] sm:$0xff]
    %v7848 = vld [vmem:[#allocation3 + $0xe0] sm:$0xff]
    %v7849 = vld [vmem:[#allocation3 + $0xe8] sm:$0xff]
    %v7850 = vld [vmem:[#allocation3 + $0xf0] sm:$0xff]
    %v7851 = vld [vmem:[#allocation3 + $0xf8] sm:$0xff]
    %v7852 = vld [vmem:[#allocation3 + $0x100] sm:$0xff]
    %v7853 = vld [vmem:[#allocation3 + $0x108] sm:$0xff]
    %v7854 = vld [vmem:[#allocation3 + $0x110] sm:$0xff]
    %v7855 = vld [vmem:[#allocation3 + $0x118] sm:$0xff]
    %v7856 = vld [vmem:[#allocation3 + $0x120] sm:$0xff]
    %v7857 = vld [vmem:[#allocation3 + $0x128] sm:$0xff]
    %v7858 = vld [vmem:[#allocation3 + $0x130] sm:$0xff]
    %v7859 = vld [vmem:[#allocation3 + $0x138] sm:$0xff]
    %v7860 = vld [vmem:[#allocation3 + $0x140] sm:$0xff]
    %v7861 = vld [vmem:[#allocation3 + $0x148] sm:$0xff]
    %v7862 = vld [vmem:[#allocation3 + $0x150] sm:$0xff]
    %v7863 = vld [vmem:[#allocation3 + $0x158] sm:$0xff]
    %v7864 = vld [vmem:[#allocation3 + $0x160] sm:$0xff]
    %v7865 = vld [vmem:[#allocation3 + $0x168] sm:$0xff]
    %v7866 = vld [vmem:[#allocation3 + $0x170] sm:$0xff]
    %v7867 = vld [vmem:[#allocation3 + $0x178] sm:$0xff]
    %v7868 = vld [vmem:[#allocation3 + $0x180] sm:$0xff]
    %v7869 = vld [vmem:[#allocation3 + $0x188] sm:$0xff]
    %v7870 = vld [vmem:[%s4] sm:$0xff]
    %v7871 = vld [vmem:[%s4 + $0x8] sm:$0xff]
    %v7872 = vld [vmem:[%s4 + $0x10] sm:$0xff]
    %7874 = vset.pattern.permute.xlu0 0
    %7875 = vperm.xlu0 %7874, %v7870
    %v7876 = vpop.permute.xlu0 %7875
    %7879 = vset.pattern.permute.xlu0 0
    %7880 = vperm.xlu0 %7879, %v7871
    %v7881 = vpop.permute.xlu0 %7880
    %7884 = vset.pattern.permute.xlu0 0
    %7885 = vperm.xlu0 %7884, %v7872
    %v7886 = vpop.permute.xlu0 %7885
    %v7889 = vsel %vm5757, %v7817, 0
    %v7892 = vsel %vm5757, %v7818, 0
    %v7895 = vsel %vm5757, %v7819, 0
    %7897 = vmatprep.subr.mxu0 0.0
    %7898 = vmatpush1.msra.mxu0 0.0
    %7899 = vmatprep.subr.mxu0 0.0
    %7900 = vmatpush1.msra.mxu0 0.0
    %7901 = vmatprep.subr.mxu0 0.0
    %7902 = vmatpush1.msra.mxu0 0.0
    %7903 = vmatprep.subr.mxu0 0.0
    %7904 = vmatpush1.msra.mxu0 0.0
    %7905 = vmatprep.subr.mxu0 0.0
    %7906 = vmatpush1.msra.mxu0 0.0
    %7907 = vmatprep.subr.mxu0 0.0
    %7908 = vmatpush1.msra.mxu0 0.0
    %7909 = vmatprep.subr.mxu0 0.0
    %7910 = vmatpush1.msra.mxu0 0.0
    %7911 = vmatprep.subr.mxu0 0.0
    %7912 = vmatpush1.msra.mxu0 0.0
    %7913 = vmatprep.subr.mxu0 0.0
    %7914 = vmatpush1.msra.mxu0 0.0
    %7915 = vmatprep.subr.mxu0 0.0
    %7916 = vmatpush1.msra.mxu0 0.0
    %7917 = vmatprep.subr.mxu0 0.0
    %7918 = vmatpush1.msra.mxu0 0.0
    %7919 = vmatprep.subr.mxu0 0.0
    %7920 = vmatpush1.msra.mxu0 0.0
    %7921 = vmatprep.subr.mxu0 0.0
    %7922 = vmatpush1.msra.mxu0 0.0
    %7923 = vmatprep.subr.mxu0 0.0
    %7924 = vmatpush1.msra.mxu0 0.0
    %7925 = vmatprep.subr.mxu0 %v7846
    %7926 = vmatpush1.msra.mxu0 %v7845
    %7927 = vmatprep.subr.mxu0 %v7821
    %7928 = vmatpush1.msra.mxu0 %v7820
    %7929 = vmatprep.subr.mxu0 0.0
    %7930 = vmatpush2.msra.mxu0 0.0
    %7931 = vmatprep.subr.mxu0 0.0
    %7932 = vmatpush2.msra.mxu0 0.0
    %7933 = vmatprep.subr.mxu0 0.0
    %7934 = vmatpush2.msra.mxu0 0.0
    %7935 = vmatprep.subr.mxu0 0.0
    %7936 = vmatpush2.msra.mxu0 0.0
    %7937 = vmatprep.subr.mxu0 0.0
    %7938 = vmatpush2.msra.mxu0 0.0
    %7939 = vmatprep.subr.mxu0 0.0
    %7940 = vmatpush2.msra.mxu0 0.0
    %7941 = vmatprep.subr.mxu0 0.0
    %7942 = vmatpush2.msra.mxu0 0.0
    %7943 = vmatprep.subr.mxu0 0.0
    %7944 = vmatpush2.msra.mxu0 0.0
    %7945 = vmatprep.subr.mxu0 0.0
    %7946 = vmatpush2.msra.mxu0 0.0
    %7947 = vmatprep.subr.mxu0 0.0
    %7948 = vmatpush2.msra.mxu0 0.0
    %7949 = vmatprep.subr.mxu0 0.0
    %7950 = vmatpush2.msra.mxu0 0.0
    %7951 = vmatprep.subr.mxu0 0.0
    %7952 = vmatpush2.msra.mxu0 0.0
    %7953 = vmatprep.subr.mxu0 0.0
    %7954 = vmatpush2.msra.mxu0 0.0
    %7955 = vmatprep.subr.mxu0 0.0
    %7956 = vmatpush2.msra.mxu0 0.0
    %7957 = vmatprep.subr.mxu0 0.0
    %7958 = vmatpush2.msra.mxu0 0.0
    %7959 = vmatprep.subr.mxu0 0.0
    %7960 = vmatpush2.msra.mxu0 0.0
    %7961 = vmatprep.mubr.f32.mxu0 0.0
    %7962 = vmatmul.mubr.f32.gmra.mxu0 %v7889
    %v7963 = vpop.f32.mrf.mxu0
    %v7964 = vadd.f32 %v7876, %v7963
    %v7965 = vpop.f32.mrf.mxu0
    %v7966 = vadd.f32 %v7876, %v7965
    %7967 = vmatprep.mubr.f32.mxu0 0.0
    %7968 = vmatmul.mubr.f32.gmra.mxu0 %v7892
    %v7969 = vpop.f32.mrf.mxu0
    %v7970 = vadd.f32 %v7881, %v7969
    %v7971 = vpop.f32.mrf.mxu0
    %v7972 = vadd.f32 %v7881, %v7971
    %7973 = vmatprep.mubr.f32.mxu0 0.0
    %7974 = vmatmul.mubr.f32.gmra.mxu0 %v7895
    %v7975 = vpop.f32.mrf.mxu0
    %v7976 = vadd.f32 %v7886, %v7975
    %v7977 = vpop.f32.mrf.mxu0
    %v7978 = vadd.f32 %v7886, %v7977
    %7979 = vdwg.mxu0
    %7980 = vmatprep.subr.mxu0 0.0
    %7981 = vmatpush1.msra.mxu0 0.0
    %7982 = vmatprep.subr.mxu0 0.0
    %7983 = vmatpush1.msra.mxu0 0.0
    %7984 = vmatprep.subr.mxu0 0.0
    %7985 = vmatpush1.msra.mxu0 0.0
    %7986 = vmatprep.subr.mxu0 0.0
    %7987 = vmatpush1.msra.mxu0 0.0
    %7988 = vmatprep.subr.mxu0 0.0
    %7989 = vmatpush1.msra.mxu0 0.0
    %7990 = vmatprep.subr.mxu0 0.0
    %7991 = vmatpush1.msra.mxu0 0.0
    %7992 = vmatprep.subr.mxu0 0.0
    %7993 = vmatpush1.msra.mxu0 0.0
    %7994 = vmatprep.subr.mxu0 0.0
    %7995 = vmatpush1.msra.mxu0 0.0
    %7996 = vmatprep.subr.mxu0 0.0
    %7997 = vmatpush1.msra.mxu0 0.0
    %7998 = vmatprep.subr.mxu0 0.0
    %7999 = vmatpush1.msra.mxu0 0.0
    %8000 = vmatprep.subr.mxu0 0.0
    %8001 = vmatpush1.msra.mxu0 0.0
    %8002 = vmatprep.subr.mxu0 0.0
    %8003 = vmatpush1.msra.mxu0 0.0
    %8004 = vmatprep.subr.mxu0 0.0
    %8005 = vmatpush1.msra.mxu0 0.0
    %8006 = vmatprep.subr.mxu0 0.0
    %8007 = vmatpush1.msra.mxu0 0.0
    %8008 = vmatprep.subr.mxu0 %v7848
    %8009 = vmatpush1.msra.mxu0 %v7847
    %8010 = vmatprep.subr.mxu0 %v7823
    %8011 = vmatpush1.msra.mxu0 %v7822
    %8012 = vmatprep.subr.mxu0 0.0
    %8013 = vmatpush2.msra.mxu0 0.0
    %8014 = vmatprep.subr.mxu0 0.0
    %8015 = vmatpush2.msra.mxu0 0.0
    %8016 = vmatprep.subr.mxu0 0.0
    %8017 = vmatpush2.msra.mxu0 0.0
    %8018 = vmatprep.subr.mxu0 0.0
    %8019 = vmatpush2.msra.mxu0 0.0
    %8020 = vmatprep.subr.mxu0 0.0
    %8021 = vmatpush2.msra.mxu0 0.0
    %8022 = vmatprep.subr.mxu0 0.0
    %8023 = vmatpush2.msra.mxu0 0.0
    %8024 = vmatprep.subr.mxu0 0.0
    %8025 = vmatpush2.msra.mxu0 0.0
    %8026 = vmatprep.subr.mxu0 0.0
    %8027 = vmatpush2.msra.mxu0 0.0
    %8028 = vmatprep.subr.mxu0 0.0
    %8029 = vmatpush2.msra.mxu0 0.0
    %8030 = vmatprep.subr.mxu0 0.0
    %8031 = vmatpush2.msra.mxu0 0.0
    %8032 = vmatprep.subr.mxu0 0.0
    %8033 = vmatpush2.msra.mxu0 0.0
    %8034 = vmatprep.subr.mxu0 0.0
    %8035 = vmatpush2.msra.mxu0 0.0
    %8036 = vmatprep.subr.mxu0 0.0
    %8037 = vmatpush2.msra.mxu0 0.0
    %8038 = vmatprep.subr.mxu0 0.0
    %8039 = vmatpush2.msra.mxu0 0.0
    %8040 = vmatprep.subr.mxu0 0.0
    %8041 = vmatpush2.msra.mxu0 0.0
    %8042 = vmatprep.subr.mxu0 0.0
    %8043 = vmatpush2.msra.mxu0 0.0
    %8044 = vmatprep.mubr.f32.mxu0 0.0
    %8045 = vmatmul.mubr.f32.gmra.mxu0 %v7889
    %v8046 = vpop.f32.mrf.mxu0
    %v8047 = vadd.f32 %v7876, %v8046
    %v8048 = vpop.f32.mrf.mxu0
    %v8049 = vadd.f32 %v7876, %v8048
    %8050 = vmatprep.mubr.f32.mxu0 0.0
    %8051 = vmatmul.mubr.f32.gmra.mxu0 %v7892
    %v8052 = vpop.f32.mrf.mxu0
    %v8053 = vadd.f32 %v7881, %v8052
    %v8054 = vpop.f32.mrf.mxu0
    %v8055 = vadd.f32 %v7881, %v8054
    %8056 = vmatprep.mubr.f32.mxu0 0.0
    %8057 = vmatmul.mubr.f32.gmra.mxu0 %v7895
    %v8058 = vpop.f32.mrf.mxu0
    %v8059 = vadd.f32 %v7886, %v8058
    %v8060 = vpop.f32.mrf.mxu0
    %v8061 = vadd.f32 %v7886, %v8060
    %8062 = vdwg.mxu0
    %8063 = vmatprep.subr.mxu0 0.0
    %8064 = vmatpush1.msra.mxu0 0.0
    %8065 = vmatprep.subr.mxu0 0.0
    %8066 = vmatpush1.msra.mxu0 0.0
    %8067 = vmatprep.subr.mxu0 0.0
    %8068 = vmatpush1.msra.mxu0 0.0
    %8069 = vmatprep.subr.mxu0 0.0
    %8070 = vmatpush1.msra.mxu0 0.0
    %8071 = vmatprep.subr.mxu0 0.0
    %8072 = vmatpush1.msra.mxu0 0.0
    %8073 = vmatprep.subr.mxu0 0.0
    %8074 = vmatpush1.msra.mxu0 0.0
    %8075 = vmatprep.subr.mxu0 0.0
    %8076 = vmatpush1.msra.mxu0 0.0
    %8077 = vmatprep.subr.mxu0 0.0
    %8078 = vmatpush1.msra.mxu0 0.0
    %8079 = vmatprep.subr.mxu0 0.0
    %8080 = vmatpush1.msra.mxu0 0.0
    %8081 = vmatprep.subr.mxu0 0.0
    %8082 = vmatpush1.msra.mxu0 0.0
    %8083 = vmatprep.subr.mxu0 0.0
    %8084 = vmatpush1.msra.mxu0 0.0
    %8085 = vmatprep.subr.mxu0 0.0
    %8086 = vmatpush1.msra.mxu0 0.0
    %8087 = vmatprep.subr.mxu0 0.0
    %8088 = vmatpush1.msra.mxu0 0.0
    %8089 = vmatprep.subr.mxu0 0.0
    %8090 = vmatpush1.msra.mxu0 0.0
    %8091 = vmatprep.subr.mxu0 %v7850
    %8092 = vmatpush1.msra.mxu0 %v7849
    %8093 = vmatprep.subr.mxu0 %v7825
    %8094 = vmatpush1.msra.mxu0 %v7824
    %8095 = vmatprep.subr.mxu0 0.0
    %8096 = vmatpush2.msra.mxu0 0.0
    %8097 = vmatprep.subr.mxu0 0.0
    %8098 = vmatpush2.msra.mxu0 0.0
    %8099 = vmatprep.subr.mxu0 0.0
    %8100 = vmatpush2.msra.mxu0 0.0
    %8101 = vmatprep.subr.mxu0 0.0
    %8102 = vmatpush2.msra.mxu0 0.0
    %8103 = vmatprep.subr.mxu0 0.0
    %8104 = vmatpush2.msra.mxu0 0.0
    %8105 = vmatprep.subr.mxu0 0.0
    %8106 = vmatpush2.msra.mxu0 0.0
    %8107 = vmatprep.subr.mxu0 0.0
    %8108 = vmatpush2.msra.mxu0 0.0
    %8109 = vmatprep.subr.mxu0 0.0
    %8110 = vmatpush2.msra.mxu0 0.0
    %8111 = vmatprep.subr.mxu0 0.0
    %8112 = vmatpush2.msra.mxu0 0.0
    %8113 = vmatprep.subr.mxu0 0.0
    %8114 = vmatpush2.msra.mxu0 0.0
    %8115 = vmatprep.subr.mxu0 0.0
    %8116 = vmatpush2.msra.mxu0 0.0
    %8117 = vmatprep.subr.mxu0 0.0
    %8118 = vmatpush2.msra.mxu0 0.0
    %8119 = vmatprep.subr.mxu0 0.0
    %8120 = vmatpush2.msra.mxu0 0.0
    %8121 = vmatprep.subr.mxu0 0.0
    %8122 = vmatpush2.msra.mxu0 0.0
    %8123 = vmatprep.subr.mxu0 0.0
    %8124 = vmatpush2.msra.mxu0 0.0
    %8125 = vmatprep.subr.mxu0 0.0
    %8126 = vmatpush2.msra.mxu0 0.0
    %8127 = vmatprep.mubr.f32.mxu0 0.0
    %8128 = vmatmul.mubr.f32.gmra.mxu0 %v7889
    %v8129 = vpop.f32.mrf.mxu0
    %v8130 = vadd.f32 %v7876, %v8129
    %v8131 = vpop.f32.mrf.mxu0
    %v8132 = vadd.f32 %v7876, %v8131
    %8133 = vmatprep.mubr.f32.mxu0 0.0
    %8134 = vmatmul.mubr.f32.gmra.mxu0 %v7892
    %v8135 = vpop.f32.mrf.mxu0
    %v8136 = vadd.f32 %v7881, %v8135
    %v8137 = vpop.f32.mrf.mxu0
    %v8138 = vadd.f32 %v7881, %v8137
    %8139 = vmatprep.mubr.f32.mxu0 0.0
    %8140 = vmatmul.mubr.f32.gmra.mxu0 %v7895
    %v8141 = vpop.f32.mrf.mxu0
    %v8142 = vadd.f32 %v7886, %v8141
    %v8143 = vpop.f32.mrf.mxu0
    %v8144 = vadd.f32 %v7886, %v8143
    %8145 = vdwg.mxu0
    %8146 = vmatprep.subr.mxu0 0.0
    %8147 = vmatpush1.msra.mxu0 0.0
    %8148 = vmatprep.subr.mxu0 0.0
    %8149 = vmatpush1.msra.mxu0 0.0
    %8150 = vmatprep.subr.mxu0 0.0
    %8151 = vmatpush1.msra.mxu0 0.0
    %8152 = vmatprep.subr.mxu0 0.0
    %8153 = vmatpush1.msra.mxu0 0.0
    %8154 = vmatprep.subr.mxu0 0.0
    %8155 = vmatpush1.msra.mxu0 0.0
    %8156 = vmatprep.subr.mxu0 0.0
    %8157 = vmatpush1.msra.mxu0 0.0
    %8158 = vmatprep.subr.mxu0 0.0
    %8159 = vmatpush1.msra.mxu0 0.0
    %8160 = vmatprep.subr.mxu0 0.0
    %8161 = vmatpush1.msra.mxu0 0.0
    %8162 = vmatprep.subr.mxu0 0.0
    %8163 = vmatpush1.msra.mxu0 0.0
    %8164 = vmatprep.subr.mxu0 0.0
    %8165 = vmatpush1.msra.mxu0 0.0
    %8166 = vmatprep.subr.mxu0 0.0
    %8167 = vmatpush1.msra.mxu0 0.0
    %8168 = vmatprep.subr.mxu0 0.0
    %8169 = vmatpush1.msra.mxu0 0.0
    %8170 = vmatprep.subr.mxu0 0.0
    %8171 = vmatpush1.msra.mxu0 0.0
    %8172 = vmatprep.subr.mxu0 0.0
    %8173 = vmatpush1.msra.mxu0 0.0
    %8174 = vmatprep.subr.mxu0 %v7852
    %8175 = vmatpush1.msra.mxu0 %v7851
    %8176 = vmatprep.subr.mxu0 %v7827
    %8177 = vmatpush1.msra.mxu0 %v7826
    %8178 = vmatprep.subr.mxu0 0.0
    %8179 = vmatpush2.msra.mxu0 0.0
    %8180 = vmatprep.subr.mxu0 0.0
    %8181 = vmatpush2.msra.mxu0 0.0
    %8182 = vmatprep.subr.mxu0 0.0
    %8183 = vmatpush2.msra.mxu0 0.0
    %8184 = vmatprep.subr.mxu0 0.0
    %8185 = vmatpush2.msra.mxu0 0.0
    %8186 = vmatprep.subr.mxu0 0.0
    %8187 = vmatpush2.msra.mxu0 0.0
    %8188 = vmatprep.subr.mxu0 0.0
    %8189 = vmatpush2.msra.mxu0 0.0
    %8190 = vmatprep.subr.mxu0 0.0
    %8191 = vmatpush2.msra.mxu0 0.0
    %8192 = vmatprep.subr.mxu0 0.0
    %8193 = vmatpush2.msra.mxu0 0.0
    %8194 = vmatprep.subr.mxu0 0.0
    %8195 = vmatpush2.msra.mxu0 0.0
    %8196 = vmatprep.subr.mxu0 0.0
    %8197 = vmatpush2.msra.mxu0 0.0
    %8198 = vmatprep.subr.mxu0 0.0
    %8199 = vmatpush2.msra.mxu0 0.0
    %8200 = vmatprep.subr.mxu0 0.0
    %8201 = vmatpush2.msra.mxu0 0.0
    %8202 = vmatprep.subr.mxu0 0.0
    %8203 = vmatpush2.msra.mxu0 0.0
    %8204 = vmatprep.subr.mxu0 0.0
    %8205 = vmatpush2.msra.mxu0 0.0
    %8206 = vmatprep.subr.mxu0 0.0
    %8207 = vmatpush2.msra.mxu0 0.0
    %8208 = vmatprep.subr.mxu0 0.0
    %8209 = vmatpush2.msra.mxu0 0.0
    %8210 = vmatprep.mubr.f32.mxu0 0.0
    %8211 = vmatmul.mubr.f32.gmra.mxu0 %v7889
    %v8212 = vpop.f32.mrf.mxu0
    %v8213 = vadd.f32 %v7876, %v8212
    %v8214 = vpop.f32.mrf.mxu0
    %v8215 = vadd.f32 %v7876, %v8214
    %8216 = vmatprep.mubr.f32.mxu0 0.0
    %8217 = vmatmul.mubr.f32.gmra.mxu0 %v7892
    %v8218 = vpop.f32.mrf.mxu0
    %v8219 = vadd.f32 %v7881, %v8218
    %v8220 = vpop.f32.mrf.mxu0
    %v8221 = vadd.f32 %v7881, %v8220
    %8222 = vmatprep.mubr.f32.mxu0 0.0
    %8223 = vmatmul.mubr.f32.gmra.mxu0 %v7895
    %v8224 = vpop.f32.mrf.mxu0
    %v8225 = vadd.f32 %v7886, %v8224
    %v8226 = vpop.f32.mrf.mxu0
    %v8227 = vadd.f32 %v7886, %v8226
    %8228 = vdwg.mxu0
    %8229 = vmatprep.subr.mxu0 0.0
    %8230 = vmatpush1.msra.mxu0 0.0
    %8231 = vmatprep.subr.mxu0 0.0
    %8232 = vmatpush1.msra.mxu0 0.0
    %8233 = vmatprep.subr.mxu0 0.0
    %8234 = vmatpush1.msra.mxu0 0.0
    %8235 = vmatprep.subr.mxu0 0.0
    %8236 = vmatpush1.msra.mxu0 0.0
    %8237 = vmatprep.subr.mxu0 0.0
    %8238 = vmatpush1.msra.mxu0 0.0
    %8239 = vmatprep.subr.mxu0 0.0
    %8240 = vmatpush1.msra.mxu0 0.0
    %8241 = vmatprep.subr.mxu0 0.0
    %8242 = vmatpush1.msra.mxu0 0.0
    %8243 = vmatprep.subr.mxu0 0.0
    %8244 = vmatpush1.msra.mxu0 0.0
    %8245 = vmatprep.subr.mxu0 0.0
    %8246 = vmatpush1.msra.mxu0 0.0
    %8247 = vmatprep.subr.mxu0 0.0
    %8248 = vmatpush1.msra.mxu0 0.0
    %8249 = vmatprep.subr.mxu0 0.0
    %8250 = vmatpush1.msra.mxu0 0.0
    %8251 = vmatprep.subr.mxu0 0.0
    %8252 = vmatpush1.msra.mxu0 0.0
    %8253 = vmatprep.subr.mxu0 0.0
    %8254 = vmatpush1.msra.mxu0 0.0
    %8255 = vmatprep.subr.mxu0 0.0
    %8256 = vmatpush1.msra.mxu0 0.0
    %8257 = vmatprep.subr.mxu0 %v7854
    %8258 = vmatpush1.msra.mxu0 %v7853
    %8259 = vmatprep.subr.mxu0 %v7829
    %8260 = vmatpush1.msra.mxu0 %v7828
    %8261 = vmatprep.subr.mxu0 0.0
    %8262 = vmatpush2.msra.mxu0 0.0
    %8263 = vmatprep.subr.mxu0 0.0
    %8264 = vmatpush2.msra.mxu0 0.0
    %8265 = vmatprep.subr.mxu0 0.0
    %8266 = vmatpush2.msra.mxu0 0.0
    %8267 = vmatprep.subr.mxu0 0.0
    %8268 = vmatpush2.msra.mxu0 0.0
    %8269 = vmatprep.subr.mxu0 0.0
    %8270 = vmatpush2.msra.mxu0 0.0
    %8271 = vmatprep.subr.mxu0 0.0
    %8272 = vmatpush2.msra.mxu0 0.0
    %8273 = vmatprep.subr.mxu0 0.0
    %8274 = vmatpush2.msra.mxu0 0.0
    %8275 = vmatprep.subr.mxu0 0.0
    %8276 = vmatpush2.msra.mxu0 0.0
    %8277 = vmatprep.subr.mxu0 0.0
    %8278 = vmatpush2.msra.mxu0 0.0
    %8279 = vmatprep.subr.mxu0 0.0
    %8280 = vmatpush2.msra.mxu0 0.0
    %8281 = vmatprep.subr.mxu0 0.0
    %8282 = vmatpush2.msra.mxu0 0.0
    %8283 = vmatprep.subr.mxu0 0.0
    %8284 = vmatpush2.msra.mxu0 0.0
    %8285 = vmatprep.subr.mxu0 0.0
    %8286 = vmatpush2.msra.mxu0 0.0
    %8287 = vmatprep.subr.mxu0 0.0
    %8288 = vmatpush2.msra.mxu0 0.0
    %8289 = vmatprep.subr.mxu0 0.0
    %8290 = vmatpush2.msra.mxu0 0.0
    %8291 = vmatprep.subr.mxu0 0.0
    %8292 = vmatpush2.msra.mxu0 0.0
    %8293 = vmatprep.mubr.f32.mxu0 0.0
    %8294 = vmatmul.mubr.f32.gmra.mxu0 %v7889
    %v8295 = vpop.f32.mrf.mxu0
    %v8296 = vadd.f32 %v7876, %v8295
    %v8297 = vpop.f32.mrf.mxu0
    %v8298 = vadd.f32 %v7876, %v8297
    %8299 = vmatprep.mubr.f32.mxu0 0.0
    %8300 = vmatmul.mubr.f32.gmra.mxu0 %v7892
    %v8301 = vpop.f32.mrf.mxu0
    %v8302 = vadd.f32 %v7881, %v8301
    %v8303 = vpop.f32.mrf.mxu0
    %v8304 = vadd.f32 %v7881, %v8303
    %8305 = vmatprep.mubr.f32.mxu0 0.0
    %8306 = vmatmul.mubr.f32.gmra.mxu0 %v7895
    %v8307 = vpop.f32.mrf.mxu0
    %v8308 = vadd.f32 %v7886, %v8307
    %v8309 = vpop.f32.mrf.mxu0
    %v8310 = vadd.f32 %v7886, %v8309
    %8311 = vdwg.mxu0
    %8312 = vmatprep.subr.mxu0 0.0
    %8313 = vmatpush1.msra.mxu0 0.0
    %8314 = vmatprep.subr.mxu0 0.0
    %8315 = vmatpush1.msra.mxu0 0.0
    %8316 = vmatprep.subr.mxu0 0.0
    %8317 = vmatpush1.msra.mxu0 0.0
    %8318 = vmatprep.subr.mxu0 0.0
    %8319 = vmatpush1.msra.mxu0 0.0
    %8320 = vmatprep.subr.mxu0 0.0
    %8321 = vmatpush1.msra.mxu0 0.0
    %8322 = vmatprep.subr.mxu0 0.0
    %8323 = vmatpush1.msra.mxu0 0.0
    %8324 = vmatprep.subr.mxu0 0.0
    %8325 = vmatpush1.msra.mxu0 0.0
    %8326 = vmatprep.subr.mxu0 0.0
    %8327 = vmatpush1.msra.mxu0 0.0
    %8328 = vmatprep.subr.mxu0 0.0
    %8329 = vmatpush1.msra.mxu0 0.0
    %8330 = vmatprep.subr.mxu0 0.0
    %8331 = vmatpush1.msra.mxu0 0.0
    %8332 = vmatprep.subr.mxu0 0.0
    %8333 = vmatpush1.msra.mxu0 0.0
    %8334 = vmatprep.subr.mxu0 0.0
    %8335 = vmatpush1.msra.mxu0 0.0
    %8336 = vmatprep.subr.mxu0 0.0
    %8337 = vmatpush1.msra.mxu0 0.0
    %8338 = vmatprep.subr.mxu0 0.0
    %8339 = vmatpush1.msra.mxu0 0.0
    %8340 = vmatprep.subr.mxu0 %v7856
    %8341 = vmatpush1.msra.mxu0 %v7855
    %8342 = vmatprep.subr.mxu0 %v7831
    %8343 = vmatpush1.msra.mxu0 %v7830
    %8344 = vmatprep.subr.mxu0 0.0
    %8345 = vmatpush2.msra.mxu0 0.0
    %8346 = vmatprep.subr.mxu0 0.0
    %8347 = vmatpush2.msra.mxu0 0.0
    %8348 = vmatprep.subr.mxu0 0.0
    %8349 = vmatpush2.msra.mxu0 0.0
    %8350 = vmatprep.subr.mxu0 0.0
    %8351 = vmatpush2.msra.mxu0 0.0
    %8352 = vmatprep.subr.mxu0 0.0
    %8353 = vmatpush2.msra.mxu0 0.0
    %8354 = vmatprep.subr.mxu0 0.0
    %8355 = vmatpush2.msra.mxu0 0.0
    %8356 = vmatprep.subr.mxu0 0.0
    %8357 = vmatpush2.msra.mxu0 0.0
    %8358 = vmatprep.subr.mxu0 0.0
    %8359 = vmatpush2.msra.mxu0 0.0
    %8360 = vmatprep.subr.mxu0 0.0
    %8361 = vmatpush2.msra.mxu0 0.0
    %8362 = vmatprep.subr.mxu0 0.0
    %8363 = vmatpush2.msra.mxu0 0.0
    %8364 = vmatprep.subr.mxu0 0.0
    %8365 = vmatpush2.msra.mxu0 0.0
    %8366 = vmatprep.subr.mxu0 0.0
    %8367 = vmatpush2.msra.mxu0 0.0
    %8368 = vmatprep.subr.mxu0 0.0
    %8369 = vmatpush2.msra.mxu0 0.0
    %8370 = vmatprep.subr.mxu0 0.0
    %8371 = vmatpush2.msra.mxu0 0.0
    %8372 = vmatprep.subr.mxu0 0.0
    %8373 = vmatpush2.msra.mxu0 0.0
    %8374 = vmatprep.subr.mxu0 0.0
    %8375 = vmatpush2.msra.mxu0 0.0
    %8376 = vmatprep.mubr.f32.mxu0 0.0
    %8377 = vmatmul.mubr.f32.gmra.mxu0 %v7889
    %v8378 = vpop.f32.mrf.mxu0
    %v8379 = vadd.f32 %v7876, %v8378
    %v8380 = vpop.f32.mrf.mxu0
    %v8381 = vadd.f32 %v7876, %v8380
    %8382 = vmatprep.mubr.f32.mxu0 0.0
    %8383 = vmatmul.mubr.f32.gmra.mxu0 %v7892
    %v8384 = vpop.f32.mrf.mxu0
    %v8385 = vadd.f32 %v7881, %v8384
    %v8386 = vpop.f32.mrf.mxu0
    %v8387 = vadd.f32 %v7881, %v8386
    %8388 = vmatprep.mubr.f32.mxu0 0.0
    %8389 = vmatmul.mubr.f32.gmra.mxu0 %v7895
    %v8390 = vpop.f32.mrf.mxu0
    %v8391 = vadd.f32 %v7886, %v8390
    %v8392 = vpop.f32.mrf.mxu0
    %v8393 = vadd.f32 %v7886, %v8392
    %8394 = vdwg.mxu0
    %8395 = vmatprep.subr.mxu0 0.0
    %8396 = vmatpush1.msra.mxu0 0.0
    %8397 = vmatprep.subr.mxu0 0.0
    %8398 = vmatpush1.msra.mxu0 0.0
    %8399 = vmatprep.subr.mxu0 0.0
    %8400 = vmatpush1.msra.mxu0 0.0
    %8401 = vmatprep.subr.mxu0 0.0
    %8402 = vmatpush1.msra.mxu0 0.0
    %8403 = vmatprep.subr.mxu0 0.0
    %8404 = vmatpush1.msra.mxu0 0.0
    %8405 = vmatprep.subr.mxu0 0.0
    %8406 = vmatpush1.msra.mxu0 0.0
    %8407 = vmatprep.subr.mxu0 0.0
    %8408 = vmatpush1.msra.mxu0 0.0
    %8409 = vmatprep.subr.mxu0 0.0
    %8410 = vmatpush1.msra.mxu0 0.0
    %8411 = vmatprep.subr.mxu0 0.0
    %8412 = vmatpush1.msra.mxu0 0.0
    %8413 = vmatprep.subr.mxu0 0.0
    %8414 = vmatpush1.msra.mxu0 0.0
    %8415 = vmatprep.subr.mxu0 0.0
    %8416 = vmatpush1.msra.mxu0 0.0
    %8417 = vmatprep.subr.mxu0 0.0
    %8418 = vmatpush1.msra.mxu0 0.0
    %8419 = vmatprep.subr.mxu0 0.0
    %8420 = vmatpush1.msra.mxu0 0.0
    %8421 = vmatprep.subr.mxu0 0.0
    %8422 = vmatpush1.msra.mxu0 0.0
    %8423 = vmatprep.subr.mxu0 %v7858
    %8424 = vmatpush1.msra.mxu0 %v7857
    %8425 = vmatprep.subr.mxu0 %v7833
    %8426 = vmatpush1.msra.mxu0 %v7832
    %8427 = vmatprep.subr.mxu0 0.0
    %8428 = vmatpush2.msra.mxu0 0.0
    %8429 = vmatprep.subr.mxu0 0.0
    %8430 = vmatpush2.msra.mxu0 0.0
    %8431 = vmatprep.subr.mxu0 0.0
    %8432 = vmatpush2.msra.mxu0 0.0
    %8433 = vmatprep.subr.mxu0 0.0
    %8434 = vmatpush2.msra.mxu0 0.0
    %8435 = vmatprep.subr.mxu0 0.0
    %8436 = vmatpush2.msra.mxu0 0.0
    %8437 = vmatprep.subr.mxu0 0.0
    %8438 = vmatpush2.msra.mxu0 0.0
    %8439 = vmatprep.subr.mxu0 0.0
    %8440 = vmatpush2.msra.mxu0 0.0
    %8441 = vmatprep.subr.mxu0 0.0
    %8442 = vmatpush2.msra.mxu0 0.0
    %8443 = vmatprep.subr.mxu0 0.0
    %8444 = vmatpush2.msra.mxu0 0.0
    %8445 = vmatprep.subr.mxu0 0.0
    %8446 = vmatpush2.msra.mxu0 0.0
    %8447 = vmatprep.subr.mxu0 0.0
    %8448 = vmatpush2.msra.mxu0 0.0
    %8449 = vmatprep.subr.mxu0 0.0
    %8450 = vmatpush2.msra.mxu0 0.0
    %8451 = vmatprep.subr.mxu0 0.0
    %8452 = vmatpush2.msra.mxu0 0.0
    %8453 = vmatprep.subr.mxu0 0.0
    %8454 = vmatpush2.msra.mxu0 0.0
    %8455 = vmatprep.subr.mxu0 0.0
    %8456 = vmatpush2.msra.mxu0 0.0
    %8457 = vmatprep.subr.mxu0 0.0
    %8458 = vmatpush2.msra.mxu0 0.0
    %8459 = vmatprep.mubr.f32.mxu0 0.0
    %8460 = vmatmul.mubr.f32.gmra.mxu0 %v7889
    %v8461 = vpop.f32.mrf.mxu0
    %v8462 = vadd.f32 %v7876, %v8461
    %v8463 = vpop.f32.mrf.mxu0
    %v8464 = vadd.f32 %v7876, %v8463
    %8465 = vmatprep.mubr.f32.mxu0 0.0
    %8466 = vmatmul.mubr.f32.gmra.mxu0 %v7892
    %v8467 = vpop.f32.mrf.mxu0
    %v8468 = vadd.f32 %v7881, %v8467
    %v8469 = vpop.f32.mrf.mxu0
    %v8470 = vadd.f32 %v7881, %v8469
    %8471 = vmatprep.mubr.f32.mxu0 0.0
    %8472 = vmatmul.mubr.f32.gmra.mxu0 %v7895
    %v8473 = vpop.f32.mrf.mxu0
    %v8474 = vadd.f32 %v7886, %v8473
    %v8475 = vpop.f32.mrf.mxu0
    %v8476 = vadd.f32 %v7886, %v8475
    %8477 = vdwg.mxu0
    %8478 = vmatprep.subr.mxu0 0.0
    %8479 = vmatpush1.msra.mxu0 0.0
    %8480 = vmatprep.subr.mxu0 0.0
    %8481 = vmatpush1.msra.mxu0 0.0
    %8482 = vmatprep.subr.mxu0 0.0
    %8483 = vmatpush1.msra.mxu0 0.0
    %8484 = vmatprep.subr.mxu0 0.0
    %8485 = vmatpush1.msra.mxu0 0.0
    %8486 = vmatprep.subr.mxu0 0.0
    %8487 = vmatpush1.msra.mxu0 0.0
    %8488 = vmatprep.subr.mxu0 0.0
    %8489 = vmatpush1.msra.mxu0 0.0
    %8490 = vmatprep.subr.mxu0 0.0
    %8491 = vmatpush1.msra.mxu0 0.0
    %8492 = vmatprep.subr.mxu0 0.0
    %8493 = vmatpush1.msra.mxu0 0.0
    %8494 = vmatprep.subr.mxu0 0.0
    %8495 = vmatpush1.msra.mxu0 0.0
    %8496 = vmatprep.subr.mxu0 0.0
    %8497 = vmatpush1.msra.mxu0 0.0
    %8498 = vmatprep.subr.mxu0 0.0
    %8499 = vmatpush1.msra.mxu0 0.0
    %8500 = vmatprep.subr.mxu0 0.0
    %8501 = vmatpush1.msra.mxu0 0.0
    %8502 = vmatprep.subr.mxu0 0.0
    %8503 = vmatpush1.msra.mxu0 0.0
    %8504 = vmatprep.subr.mxu0 0.0
    %8505 = vmatpush1.msra.mxu0 0.0
    %8506 = vmatprep.subr.mxu0 %v7860
    %8507 = vmatpush1.msra.mxu0 %v7859
    %8508 = vmatprep.subr.mxu0 %v7835
    %8509 = vmatpush1.msra.mxu0 %v7834
    %8510 = vmatprep.subr.mxu0 0.0
    %8511 = vmatpush2.msra.mxu0 0.0
    %8512 = vmatprep.subr.mxu0 0.0
    %8513 = vmatpush2.msra.mxu0 0.0
    %8514 = vmatprep.subr.mxu0 0.0
    %8515 = vmatpush2.msra.mxu0 0.0
    %8516 = vmatprep.subr.mxu0 0.0
    %8517 = vmatpush2.msra.mxu0 0.0
    %8518 = vmatprep.subr.mxu0 0.0
    %8519 = vmatpush2.msra.mxu0 0.0
    %8520 = vmatprep.subr.mxu0 0.0
    %8521 = vmatpush2.msra.mxu0 0.0
    %8522 = vmatprep.subr.mxu0 0.0
    %8523 = vmatpush2.msra.mxu0 0.0
    %8524 = vmatprep.subr.mxu0 0.0
    %8525 = vmatpush2.msra.mxu0 0.0
    %8526 = vmatprep.subr.mxu0 0.0
    %8527 = vmatpush2.msra.mxu0 0.0
    %8528 = vmatprep.subr.mxu0 0.0
    %8529 = vmatpush2.msra.mxu0 0.0
    %8530 = vmatprep.subr.mxu0 0.0
    %8531 = vmatpush2.msra.mxu0 0.0
    %8532 = vmatprep.subr.mxu0 0.0
    %8533 = vmatpush2.msra.mxu0 0.0
    %8534 = vmatprep.subr.mxu0 0.0
    %8535 = vmatpush2.msra.mxu0 0.0
    %8536 = vmatprep.subr.mxu0 0.0
    %8537 = vmatpush2.msra.mxu0 0.0
    %8538 = vmatprep.subr.mxu0 0.0
    %8539 = vmatpush2.msra.mxu0 0.0
    %8540 = vmatprep.subr.mxu0 0.0
    %8541 = vmatpush2.msra.mxu0 0.0
    %8542 = vmatprep.mubr.f32.mxu0 0.0
    %8543 = vmatmul.mubr.f32.gmra.mxu0 %v7889
    %v8544 = vpop.f32.mrf.mxu0
    %v8545 = vadd.f32 %v7876, %v8544
    %v8546 = vpop.f32.mrf.mxu0
    %v8547 = vadd.f32 %v7876, %v8546
    %8548 = vmatprep.mubr.f32.mxu0 0.0
    %8549 = vmatmul.mubr.f32.gmra.mxu0 %v7892
    %v8550 = vpop.f32.mrf.mxu0
    %v8551 = vadd.f32 %v7881, %v8550
    %v8552 = vpop.f32.mrf.mxu0
    %v8553 = vadd.f32 %v7881, %v8552
    %8554 = vmatprep.mubr.f32.mxu0 0.0
    %8555 = vmatmul.mubr.f32.gmra.mxu0 %v7895
    %v8556 = vpop.f32.mrf.mxu0
    %v8557 = vadd.f32 %v7886, %v8556
    %v8558 = vpop.f32.mrf.mxu0
    %v8559 = vadd.f32 %v7886, %v8558
    %8560 = vdwg.mxu0
    %8561 = vmatprep.subr.mxu0 0.0
    %8562 = vmatpush1.msra.mxu0 0.0
    %8563 = vmatprep.subr.mxu0 0.0
    %8564 = vmatpush1.msra.mxu0 0.0
    %8565 = vmatprep.subr.mxu0 0.0
    %8566 = vmatpush1.msra.mxu0 0.0
    %8567 = vmatprep.subr.mxu0 0.0
    %8568 = vmatpush1.msra.mxu0 0.0
    %8569 = vmatprep.subr.mxu0 0.0
    %8570 = vmatpush1.msra.mxu0 0.0
    %8571 = vmatprep.subr.mxu0 0.0
    %8572 = vmatpush1.msra.mxu0 0.0
    %8573 = vmatprep.subr.mxu0 0.0
    %8574 = vmatpush1.msra.mxu0 0.0
    %8575 = vmatprep.subr.mxu0 0.0
    %8576 = vmatpush1.msra.mxu0 0.0
    %8577 = vmatprep.subr.mxu0 0.0
    %8578 = vmatpush1.msra.mxu0 0.0
    %8579 = vmatprep.subr.mxu0 0.0
    %8580 = vmatpush1.msra.mxu0 0.0
    %8581 = vmatprep.subr.mxu0 0.0
    %8582 = vmatpush1.msra.mxu0 0.0
    %8583 = vmatprep.subr.mxu0 0.0
    %8584 = vmatpush1.msra.mxu0 0.0
    %8585 = vmatprep.subr.mxu0 0.0
    %8586 = vmatpush1.msra.mxu0 0.0
    %8587 = vmatprep.subr.mxu0 0.0
    %8588 = vmatpush1.msra.mxu0 0.0
    %8589 = vmatprep.subr.mxu0 %v7862
    %8590 = vmatpush1.msra.mxu0 %v7861
    %8591 = vmatprep.subr.mxu0 %v7837
    %8592 = vmatpush1.msra.mxu0 %v7836
    %8593 = vmatprep.subr.mxu0 0.0
    %8594 = vmatpush2.msra.mxu0 0.0
    %8595 = vmatprep.subr.mxu0 0.0
    %8596 = vmatpush2.msra.mxu0 0.0
    %8597 = vmatprep.subr.mxu0 0.0
    %8598 = vmatpush2.msra.mxu0 0.0
    %8599 = vmatprep.subr.mxu0 0.0
    %8600 = vmatpush2.msra.mxu0 0.0
    %8601 = vmatprep.subr.mxu0 0.0
    %8602 = vmatpush2.msra.mxu0 0.0
    %8603 = vmatprep.subr.mxu0 0.0
    %8604 = vmatpush2.msra.mxu0 0.0
    %8605 = vmatprep.subr.mxu0 0.0
    %8606 = vmatpush2.msra.mxu0 0.0
    %8607 = vmatprep.subr.mxu0 0.0
    %8608 = vmatpush2.msra.mxu0 0.0
    %8609 = vmatprep.subr.mxu0 0.0
    %8610 = vmatpush2.msra.mxu0 0.0
    %8611 = vmatprep.subr.mxu0 0.0
    %8612 = vmatpush2.msra.mxu0 0.0
    %8613 = vmatprep.subr.mxu0 0.0
    %8614 = vmatpush2.msra.mxu0 0.0
    %8615 = vmatprep.subr.mxu0 0.0
    %8616 = vmatpush2.msra.mxu0 0.0
    %8617 = vmatprep.subr.mxu0 0.0
    %8618 = vmatpush2.msra.mxu0 0.0
    %8619 = vmatprep.subr.mxu0 0.0
    %8620 = vmatpush2.msra.mxu0 0.0
    %8621 = vmatprep.subr.mxu0 0.0
    %8622 = vmatpush2.msra.mxu0 0.0
    %8623 = vmatprep.subr.mxu0 0.0
    %8624 = vmatpush2.msra.mxu0 0.0
    %8625 = vmatprep.mubr.f32.mxu0 0.0
    %8626 = vmatmul.mubr.f32.gmra.mxu0 %v7889
    %v8627 = vpop.f32.mrf.mxu0
    %v8628 = vadd.f32 %v7876, %v8627
    %v8629 = vpop.f32.mrf.mxu0
    %v8630 = vadd.f32 %v7876, %v8629
    %8631 = vmatprep.mubr.f32.mxu0 0.0
    %8632 = vmatmul.mubr.f32.gmra.mxu0 %v7892
    %v8633 = vpop.f32.mrf.mxu0
    %v8634 = vadd.f32 %v7881, %v8633
    %v8635 = vpop.f32.mrf.mxu0
    %v8636 = vadd.f32 %v7881, %v8635
    %8637 = vmatprep.mubr.f32.mxu0 0.0
    %8638 = vmatmul.mubr.f32.gmra.mxu0 %v7895
    %v8639 = vpop.f32.mrf.mxu0
    %v8640 = vadd.f32 %v7886, %v8639
    %v8641 = vpop.f32.mrf.mxu0
    %v8642 = vadd.f32 %v7886, %v8641
    %8643 = vdwg.mxu0
    %8644 = vmatprep.subr.mxu0 0.0
    %8645 = vmatpush1.msra.mxu0 0.0
    %8646 = vmatprep.subr.mxu0 0.0
    %8647 = vmatpush1.msra.mxu0 0.0
    %8648 = vmatprep.subr.mxu0 0.0
    %8649 = vmatpush1.msra.mxu0 0.0
    %8650 = vmatprep.subr.mxu0 0.0
    %8651 = vmatpush1.msra.mxu0 0.0
    %8652 = vmatprep.subr.mxu0 0.0
    %8653 = vmatpush1.msra.mxu0 0.0
    %8654 = vmatprep.subr.mxu0 0.0
    %8655 = vmatpush1.msra.mxu0 0.0
    %8656 = vmatprep.subr.mxu0 0.0
    %8657 = vmatpush1.msra.mxu0 0.0
    %8658 = vmatprep.subr.mxu0 0.0
    %8659 = vmatpush1.msra.mxu0 0.0
    %8660 = vmatprep.subr.mxu0 0.0
    %8661 = vmatpush1.msra.mxu0 0.0
    %8662 = vmatprep.subr.mxu0 0.0
    %8663 = vmatpush1.msra.mxu0 0.0
    %8664 = vmatprep.subr.mxu0 0.0
    %8665 = vmatpush1.msra.mxu0 0.0
    %8666 = vmatprep.subr.mxu0 0.0
    %8667 = vmatpush1.msra.mxu0 0.0
    %8668 = vmatprep.subr.mxu0 0.0
    %8669 = vmatpush1.msra.mxu0 0.0
    %8670 = vmatprep.subr.mxu0 0.0
    %8671 = vmatpush1.msra.mxu0 0.0
    %8672 = vmatprep.subr.mxu0 %v7864
    %8673 = vmatpush1.msra.mxu0 %v7863
    %8674 = vmatprep.subr.mxu0 %v7839
    %8675 = vmatpush1.msra.mxu0 %v7838
    %8676 = vmatprep.subr.mxu0 0.0
    %8677 = vmatpush2.msra.mxu0 0.0
    %8678 = vmatprep.subr.mxu0 0.0
    %8679 = vmatpush2.msra.mxu0 0.0
    %8680 = vmatprep.subr.mxu0 0.0
    %8681 = vmatpush2.msra.mxu0 0.0
    %8682 = vmatprep.subr.mxu0 0.0
    %8683 = vmatpush2.msra.mxu0 0.0
    %8684 = vmatprep.subr.mxu0 0.0
    %8685 = vmatpush2.msra.mxu0 0.0
    %8686 = vmatprep.subr.mxu0 0.0
    %8687 = vmatpush2.msra.mxu0 0.0
    %8688 = vmatprep.subr.mxu0 0.0
    %8689 = vmatpush2.msra.mxu0 0.0
    %8690 = vmatprep.subr.mxu0 0.0
    %8691 = vmatpush2.msra.mxu0 0.0
    %8692 = vmatprep.subr.mxu0 0.0
    %8693 = vmatpush2.msra.mxu0 0.0
    %8694 = vmatprep.subr.mxu0 0.0
    %8695 = vmatpush2.msra.mxu0 0.0
    %8696 = vmatprep.subr.mxu0 0.0
    %8697 = vmatpush2.msra.mxu0 0.0
    %8698 = vmatprep.subr.mxu0 0.0
    %8699 = vmatpush2.msra.mxu0 0.0
    %8700 = vmatprep.subr.mxu0 0.0
    %8701 = vmatpush2.msra.mxu0 0.0
    %8702 = vmatprep.subr.mxu0 0.0
    %8703 = vmatpush2.msra.mxu0 0.0
    %8704 = vmatprep.subr.mxu0 0.0
    %8705 = vmatpush2.msra.mxu0 0.0
    %8706 = vmatprep.subr.mxu0 0.0
    %8707 = vmatpush2.msra.mxu0 0.0
    %8708 = vmatprep.mubr.f32.mxu0 0.0
    %8709 = vmatmul.mubr.f32.gmra.mxu0 %v7889
    %v8710 = vpop.f32.mrf.mxu0
    %v8711 = vadd.f32 %v7876, %v8710
    %v8712 = vpop.f32.mrf.mxu0
    %v8713 = vadd.f32 %v7876, %v8712
    %8714 = vmatprep.mubr.f32.mxu0 0.0
    %8715 = vmatmul.mubr.f32.gmra.mxu0 %v7892
    %v8716 = vpop.f32.mrf.mxu0
    %v8717 = vadd.f32 %v7881, %v8716
    %v8718 = vpop.f32.mrf.mxu0
    %v8719 = vadd.f32 %v7881, %v8718
    %8720 = vmatprep.mubr.f32.mxu0 0.0
    %8721 = vmatmul.mubr.f32.gmra.mxu0 %v7895
    %v8722 = vpop.f32.mrf.mxu0
    %v8723 = vadd.f32 %v7886, %v8722
    %v8724 = vpop.f32.mrf.mxu0
    %v8725 = vadd.f32 %v7886, %v8724
    %8726 = vdwg.mxu0
    %8727 = vmatprep.subr.mxu0 0.0
    %8728 = vmatpush1.msra.mxu0 0.0
    %8729 = vmatprep.subr.mxu0 0.0
    %8730 = vmatpush1.msra.mxu0 0.0
    %8731 = vmatprep.subr.mxu0 0.0
    %8732 = vmatpush1.msra.mxu0 0.0
    %8733 = vmatprep.subr.mxu0 0.0
    %8734 = vmatpush1.msra.mxu0 0.0
    %8735 = vmatprep.subr.mxu0 0.0
    %8736 = vmatpush1.msra.mxu0 0.0
    %8737 = vmatprep.subr.mxu0 0.0
    %8738 = vmatpush1.msra.mxu0 0.0
    %8739 = vmatprep.subr.mxu0 0.0
    %8740 = vmatpush1.msra.mxu0 0.0
    %8741 = vmatprep.subr.mxu0 0.0
    %8742 = vmatpush1.msra.mxu0 0.0
    %8743 = vmatprep.subr.mxu0 0.0
    %8744 = vmatpush1.msra.mxu0 0.0
    %8745 = vmatprep.subr.mxu0 0.0
    %8746 = vmatpush1.msra.mxu0 0.0
    %8747 = vmatprep.subr.mxu0 0.0
    %8748 = vmatpush1.msra.mxu0 0.0
    %8749 = vmatprep.subr.mxu0 0.0
    %8750 = vmatpush1.msra.mxu0 0.0
    %8751 = vmatprep.subr.mxu0 0.0
    %8752 = vmatpush1.msra.mxu0 0.0
    %8753 = vmatprep.subr.mxu0 0.0
    %8754 = vmatpush1.msra.mxu0 0.0
    %8755 = vmatprep.subr.mxu0 %v7866
    %8756 = vmatpush1.msra.mxu0 %v7865
    %8757 = vmatprep.subr.mxu0 %v7841
    %8758 = vmatpush1.msra.mxu0 %v7840
    %8759 = vmatprep.subr.mxu0 0.0
    %8760 = vmatpush2.msra.mxu0 0.0
    %8761 = vmatprep.subr.mxu0 0.0
    %8762 = vmatpush2.msra.mxu0 0.0
    %8763 = vmatprep.subr.mxu0 0.0
    %8764 = vmatpush2.msra.mxu0 0.0
    %8765 = vmatprep.subr.mxu0 0.0
    %8766 = vmatpush2.msra.mxu0 0.0
    %8767 = vmatprep.subr.mxu0 0.0
    %8768 = vmatpush2.msra.mxu0 0.0
    %8769 = vmatprep.subr.mxu0 0.0
    %8770 = vmatpush2.msra.mxu0 0.0
    %8771 = vmatprep.subr.mxu0 0.0
    %8772 = vmatpush2.msra.mxu0 0.0
    %8773 = vmatprep.subr.mxu0 0.0
    %8774 = vmatpush2.msra.mxu0 0.0
    %8775 = vmatprep.subr.mxu0 0.0
    %8776 = vmatpush2.msra.mxu0 0.0
    %8777 = vmatprep.subr.mxu0 0.0
    %8778 = vmatpush2.msra.mxu0 0.0
    %8779 = vmatprep.subr.mxu0 0.0
    %8780 = vmatpush2.msra.mxu0 0.0
    %8781 = vmatprep.subr.mxu0 0.0
    %8782 = vmatpush2.msra.mxu0 0.0
    %8783 = vmatprep.subr.mxu0 0.0
    %8784 = vmatpush2.msra.mxu0 0.0
    %8785 = vmatprep.subr.mxu0 0.0
    %8786 = vmatpush2.msra.mxu0 0.0
    %8787 = vmatprep.subr.mxu0 0.0
    %8788 = vmatpush2.msra.mxu0 0.0
    %8789 = vmatprep.subr.mxu0 0.0
    %8790 = vmatpush2.msra.mxu0 0.0
    %8791 = vmatprep.mubr.f32.mxu0 0.0
    %8792 = vmatmul.mubr.f32.gmra.mxu0 %v7889
    %v8793 = vpop.f32.mrf.mxu0
    %v8794 = vadd.f32 %v7876, %v8793
    %v8795 = vpop.f32.mrf.mxu0
    %v8796 = vadd.f32 %v7876, %v8795
    %8797 = vmatprep.mubr.f32.mxu0 0.0
    %8798 = vmatmul.mubr.f32.gmra.mxu0 %v7892
    %v8799 = vpop.f32.mrf.mxu0
    %v8800 = vadd.f32 %v7881, %v8799
    %v8801 = vpop.f32.mrf.mxu0
    %v8802 = vadd.f32 %v7881, %v8801
    %8803 = vmatprep.mubr.f32.mxu0 0.0
    %8804 = vmatmul.mubr.f32.gmra.mxu0 %v7895
    %v8805 = vpop.f32.mrf.mxu0
    %v8806 = vadd.f32 %v7886, %v8805
    %v8807 = vpop.f32.mrf.mxu0
    %v8808 = vadd.f32 %v7886, %v8807
    %8809 = vdwg.mxu0
    %8810 = vmatprep.subr.mxu0 0.0
    %8811 = vmatpush1.msra.mxu0 0.0
    %8812 = vmatprep.subr.mxu0 0.0
    %8813 = vmatpush1.msra.mxu0 0.0
    %8814 = vmatprep.subr.mxu0 0.0
    %8815 = vmatpush1.msra.mxu0 0.0
    %8816 = vmatprep.subr.mxu0 0.0
    %8817 = vmatpush1.msra.mxu0 0.0
    %8818 = vmatprep.subr.mxu0 0.0
    %8819 = vmatpush1.msra.mxu0 0.0
    %8820 = vmatprep.subr.mxu0 0.0
    %8821 = vmatpush1.msra.mxu0 0.0
    %8822 = vmatprep.subr.mxu0 0.0
    %8823 = vmatpush1.msra.mxu0 0.0
    %8824 = vmatprep.subr.mxu0 0.0
    %8825 = vmatpush1.msra.mxu0 0.0
    %8826 = vmatprep.subr.mxu0 0.0
    %8827 = vmatpush1.msra.mxu0 0.0
    %8828 = vmatprep.subr.mxu0 0.0
    %8829 = vmatpush1.msra.mxu0 0.0
    %8830 = vmatprep.subr.mxu0 0.0
    %8831 = vmatpush1.msra.mxu0 0.0
    %8832 = vmatprep.subr.mxu0 0.0
    %8833 = vmatpush1.msra.mxu0 0.0
    %8834 = vmatprep.subr.mxu0 0.0
    %8835 = vmatpush1.msra.mxu0 0.0
    %8836 = vmatprep.subr.mxu0 0.0
    %8837 = vmatpush1.msra.mxu0 0.0
    %8838 = vmatprep.subr.mxu0 %v7868
    %8839 = vmatpush1.msra.mxu0 %v7867
    %8840 = vmatprep.subr.mxu0 %v7843
    %8841 = vmatpush1.msra.mxu0 %v7842
    %8842 = vmatprep.subr.mxu0 0.0
    %8843 = vmatpush2.msra.mxu0 0.0
    %8844 = vmatprep.subr.mxu0 0.0
    %8845 = vmatpush2.msra.mxu0 0.0
    %8846 = vmatprep.subr.mxu0 0.0
    %8847 = vmatpush2.msra.mxu0 0.0
    %8848 = vmatprep.subr.mxu0 0.0
    %8849 = vmatpush2.msra.mxu0 0.0
    %8850 = vmatprep.subr.mxu0 0.0
    %8851 = vmatpush2.msra.mxu0 0.0
    %8852 = vmatprep.subr.mxu0 0.0
    %8853 = vmatpush2.msra.mxu0 0.0
    %8854 = vmatprep.subr.mxu0 0.0
    %8855 = vmatpush2.msra.mxu0 0.0
    %8856 = vmatprep.subr.mxu0 0.0
    %8857 = vmatpush2.msra.mxu0 0.0
    %8858 = vmatprep.subr.mxu0 0.0
    %8859 = vmatpush2.msra.mxu0 0.0
    %8860 = vmatprep.subr.mxu0 0.0
    %8861 = vmatpush2.msra.mxu0 0.0
    %8862 = vmatprep.subr.mxu0 0.0
    %8863 = vmatpush2.msra.mxu0 0.0
    %8864 = vmatprep.subr.mxu0 0.0
    %8865 = vmatpush2.msra.mxu0 0.0
    %8866 = vmatprep.subr.mxu0 0.0
    %8867 = vmatpush2.msra.mxu0 0.0
    %8868 = vmatprep.subr.mxu0 0.0
    %8869 = vmatpush2.msra.mxu0 0.0
    %8870 = vmatprep.subr.mxu0 0.0
    %8871 = vmatpush2.msra.mxu0 0.0
    %8872 = vmatprep.subr.mxu0 0.0
    %8873 = vmatpush2.msra.mxu0 0.0
    %8874 = vmatprep.mubr.f32.mxu0 0.0
    %8875 = vmatmul.mubr.f32.gmra.mxu0 %v7889
    %v8876 = vpop.f32.mrf.mxu0
    %v8877 = vadd.f32 %v7876, %v8876
    %v8878 = vpop.f32.mrf.mxu0
    %v8879 = vadd.f32 %v7876, %v8878
    %8880 = vmatprep.mubr.f32.mxu0 0.0
    %8881 = vmatmul.mubr.f32.gmra.mxu0 %v7892
    %v8882 = vpop.f32.mrf.mxu0
    %v8883 = vadd.f32 %v7881, %v8882
    %v8884 = vpop.f32.mrf.mxu0
    %v8885 = vadd.f32 %v7881, %v8884
    %8886 = vmatprep.mubr.f32.mxu0 0.0
    %8887 = vmatmul.mubr.f32.gmra.mxu0 %v7895
    %v8888 = vpop.f32.mrf.mxu0
    %v8889 = vadd.f32 %v7886, %v8888
    %v8890 = vpop.f32.mrf.mxu0
    %v8891 = vadd.f32 %v7886, %v8890
    %8892 = vdwg.mxu0
    %8893 = vmatprep.subr.mxu0 0.0
    %8894 = vmatpush1.msra.mxu0 0.0
    %8895 = vmatprep.subr.mxu0 0.0
    %8896 = vmatpush1.msra.mxu0 0.0
    %8897 = vmatprep.subr.mxu0 0.0
    %8898 = vmatpush1.msra.mxu0 0.0
    %8899 = vmatprep.subr.mxu0 0.0
    %8900 = vmatpush1.msra.mxu0 0.0
    %8901 = vmatprep.subr.mxu0 0.0
    %8902 = vmatpush1.msra.mxu0 0.0
    %8903 = vmatprep.subr.mxu0 0.0
    %8904 = vmatpush1.msra.mxu0 0.0
    %8905 = vmatprep.subr.mxu0 0.0
    %8906 = vmatpush1.msra.mxu0 0.0
    %8907 = vmatprep.subr.mxu0 0.0
    %8908 = vmatpush1.msra.mxu0 0.0
    %8909 = vmatprep.subr.mxu0 0.0
    %8910 = vmatpush1.msra.mxu0 0.0
    %8911 = vmatprep.subr.mxu0 0.0
    %8912 = vmatpush1.msra.mxu0 0.0
    %8913 = vmatprep.subr.mxu0 0.0
    %8914 = vmatpush1.msra.mxu0 0.0
    %8915 = vmatprep.subr.mxu0 0.0
    %8916 = vmatpush1.msra.mxu0 0.0
    %8917 = vmatprep.subr.mxu0 0.0
    %8918 = vmatpush1.msra.mxu0 0.0
    %8919 = vmatprep.subr.mxu0 0.0
    %8920 = vmatpush1.msra.mxu0 0.0
    %8921 = vmatprep.subr.mxu0 0.0
    %8922 = vmatpush1.msra.mxu0 %v7869
    %8923 = vmatprep.subr.mxu0 0.0
    %8924 = vmatpush1.msra.mxu0 %v7844
    %8925 = vmatprep.subr.mxu0 0.0
    %8926 = vmatpush2.msra.mxu0 0.0
    %8927 = vmatprep.subr.mxu0 0.0
    %8928 = vmatpush2.msra.mxu0 0.0
    %8929 = vmatprep.subr.mxu0 0.0
    %8930 = vmatpush2.msra.mxu0 0.0
    %8931 = vmatprep.subr.mxu0 0.0
    %8932 = vmatpush2.msra.mxu0 0.0
    %8933 = vmatprep.subr.mxu0 0.0
    %8934 = vmatpush2.msra.mxu0 0.0
    %8935 = vmatprep.subr.mxu0 0.0
    %8936 = vmatpush2.msra.mxu0 0.0
    %8937 = vmatprep.subr.mxu0 0.0
    %8938 = vmatpush2.msra.mxu0 0.0
    %8939 = vmatprep.subr.mxu0 0.0
    %8940 = vmatpush2.msra.mxu0 0.0
    %8941 = vmatprep.subr.mxu0 0.0
    %8942 = vmatpush2.msra.mxu0 0.0
    %8943 = vmatprep.subr.mxu0 0.0
    %8944 = vmatpush2.msra.mxu0 0.0
    %8945 = vmatprep.subr.mxu0 0.0
    %8946 = vmatpush2.msra.mxu0 0.0
    %8947 = vmatprep.subr.mxu0 0.0
    %8948 = vmatpush2.msra.mxu0 0.0
    %8949 = vmatprep.subr.mxu0 0.0
    %8950 = vmatpush2.msra.mxu0 0.0
    %8951 = vmatprep.subr.mxu0 0.0
    %8952 = vmatpush2.msra.mxu0 0.0
    %8953 = vmatprep.subr.mxu0 0.0
    %8954 = vmatpush2.msra.mxu0 0.0
    %8955 = vmatprep.subr.mxu0 0.0
    %8956 = vmatpush2.msra.mxu0 0.0
    %8957 = vmatprep.mubr.f32.mxu0 0.0
    %8958 = vmatmul.mubr.f32.gmra.mxu0 %v7889
    %v8959 = vpop.f32.mrf.mxu0
    %v8960 = vadd.f32 %v7876, %v8959
    %v8961 = vpop.f32.mrf.mxu0
    %8962 = vmatprep.mubr.f32.mxu0 0.0
    %8963 = vmatmul.mubr.f32.gmra.mxu0 %v7892
    %v8964 = vpop.f32.mrf.mxu0
    %v8965 = vadd.f32 %v7881, %v8964
    %v8966 = vpop.f32.mrf.mxu0
    %8967 = vmatprep.mubr.f32.mxu0 0.0
    %8968 = vmatmul.mubr.f32.gmra.mxu0 %v7895
    %v8969 = vpop.f32.mrf.mxu0
    %v8970 = vadd.f32 %v7886, %v8969
    %v8971 = vpop.f32.mrf.mxu0
    %8972 = vdwg.mxu0
    %v8973 = vadd.f32 %v7964, 3.0
    %v8974 = vadd.f32 %v7966, 3.0
    %v8975 = vadd.f32 %v8047, 3.0
    %v8976 = vadd.f32 %v8049, 3.0
    %v8977 = vadd.f32 %v8130, 3.0
    %v8978 = vadd.f32 %v8132, 3.0
    %v8979 = vadd.f32 %v8213, 3.0
    %v8980 = vadd.f32 %v8215, 3.0
    %v8981 = vadd.f32 %v8296, 3.0
    %v8982 = vadd.f32 %v8298, 3.0
    %v8983 = vadd.f32 %v8379, 3.0
    %v8984 = vadd.f32 %v8381, 3.0
    %v8985 = vadd.f32 %v8462, 3.0
    %v8986 = vadd.f32 %v8464, 3.0
    %v8987 = vadd.f32 %v8545, 3.0
    %v8988 = vadd.f32 %v8547, 3.0
    %v8989 = vadd.f32 %v8628, 3.0
    %v8990 = vadd.f32 %v8630, 3.0
    %v8991 = vadd.f32 %v8711, 3.0
    %v8992 = vadd.f32 %v8713, 3.0
    %v8993 = vadd.f32 %v8794, 3.0
    %v8994 = vadd.f32 %v8796, 3.0
    %v8995 = vadd.f32 %v8877, 3.0
    %v8996 = vadd.f32 %v8879, 3.0
    %v8997 = vadd.f32 %v8960, 3.0
    %v8998 = vadd.f32 %v7970, 3.0
    %v8999 = vadd.f32 %v7972, 3.0
    %v9000 = vadd.f32 %v8053, 3.0
    %v9001 = vadd.f32 %v8055, 3.0
    %v9002 = vadd.f32 %v8136, 3.0
    %v9003 = vadd.f32 %v8138, 3.0
    %v9004 = vadd.f32 %v8219, 3.0
    %v9005 = vadd.f32 %v8221, 3.0
    %v9006 = vadd.f32 %v8302, 3.0
    %v9007 = vadd.f32 %v8304, 3.0
    %v9008 = vadd.f32 %v8385, 3.0
    %v9009 = vadd.f32 %v8387, 3.0
    %v9010 = vadd.f32 %v8468, 3.0
    %v9011 = vadd.f32 %v8470, 3.0
    %v9012 = vadd.f32 %v8551, 3.0
    %v9013 = vadd.f32 %v8553, 3.0
    %v9014 = vadd.f32 %v8634, 3.0
    %v9015 = vadd.f32 %v8636, 3.0
    %v9016 = vadd.f32 %v8717, 3.0
    %v9017 = vadd.f32 %v8719, 3.0
    %v9018 = vadd.f32 %v8800, 3.0
    %v9019 = vadd.f32 %v8802, 3.0
    %v9020 = vadd.f32 %v8883, 3.0
    %v9021 = vadd.f32 %v8885, 3.0
    %v9022 = vadd.f32 %v8965, 3.0
    %v9023 = vadd.f32 %v7976, 3.0
    %v9024 = vadd.f32 %v7978, 3.0
    %v9025 = vadd.f32 %v8059, 3.0
    %v9026 = vadd.f32 %v8061, 3.0
    %v9027 = vadd.f32 %v8142, 3.0
    %v9028 = vadd.f32 %v8144, 3.0
    %v9029 = vadd.f32 %v8225, 3.0
    %v9030 = vadd.f32 %v8227, 3.0
    %v9031 = vadd.f32 %v8308, 3.0
    %v9032 = vadd.f32 %v8310, 3.0
    %v9033 = vadd.f32 %v8391, 3.0
    %v9034 = vadd.f32 %v8393, 3.0
    %v9035 = vadd.f32 %v8474, 3.0
    %v9036 = vadd.f32 %v8476, 3.0
    %v9037 = vadd.f32 %v8557, 3.0
    %v9038 = vadd.f32 %v8559, 3.0
    %v9039 = vadd.f32 %v8640, 3.0
    %v9040 = vadd.f32 %v8642, 3.0
    %v9041 = vadd.f32 %v8723, 3.0
    %v9042 = vadd.f32 %v8725, 3.0
    %v9043 = vadd.f32 %v8806, 3.0
    %v9044 = vadd.f32 %v8808, 3.0
    %v9045 = vadd.f32 %v8889, 3.0
    %v9046 = vadd.f32 %v8891, 3.0
    %v9047 = vadd.f32 %v8970, 3.0
    %v9048 = vmax.f32 %v8973, 0.0
    %v9049 = vmax.f32 %v8974, 0.0
    %v9050 = vmax.f32 %v8975, 0.0
    %v9051 = vmax.f32 %v8976, 0.0
    %v9052 = vmax.f32 %v8977, 0.0
    %v9053 = vmax.f32 %v8978, 0.0
    %v9054 = vmax.f32 %v8979, 0.0
    %v9055 = vmax.f32 %v8980, 0.0
    %v9056 = vmax.f32 %v8981, 0.0
    %v9057 = vmax.f32 %v8982, 0.0
    %v9058 = vmax.f32 %v8983, 0.0
    %v9059 = vmax.f32 %v8984, 0.0
    %v9060 = vmax.f32 %v8985, 0.0
    %v9061 = vmax.f32 %v8986, 0.0
    %v9062 = vmax.f32 %v8987, 0.0
    %v9063 = vmax.f32 %v8988, 0.0
    %v9064 = vmax.f32 %v8989, 0.0
    %v9065 = vmax.f32 %v8990, 0.0
    %v9066 = vmax.f32 %v8991, 0.0
    %v9067 = vmax.f32 %v8992, 0.0
    %v9068 = vmax.f32 %v8993, 0.0
    %v9069 = vmax.f32 %v8994, 0.0
    %v9070 = vmax.f32 %v8995, 0.0
    %v9071 = vmax.f32 %v8996, 0.0
    %v9072 = vmax.f32 %v8997, 0.0
    %v9073 = vmax.f32 %v8998, 0.0
    %v9074 = vmax.f32 %v8999, 0.0
    %v9075 = vmax.f32 %v9000, 0.0
    %v9076 = vmax.f32 %v9001, 0.0
    %v9077 = vmax.f32 %v9002, 0.0
    %v9078 = vmax.f32 %v9003, 0.0
    %v9079 = vmax.f32 %v9004, 0.0
    %v9080 = vmax.f32 %v9005, 0.0
    %v9081 = vmax.f32 %v9006, 0.0
    %v9082 = vmax.f32 %v9007, 0.0
    %v9083 = vmax.f32 %v9008, 0.0
    %v9084 = vmax.f32 %v9009, 0.0
    %v9085 = vmax.f32 %v9010, 0.0
    %v9086 = vmax.f32 %v9011, 0.0
    %v9087 = vmax.f32 %v9012, 0.0
    %v9088 = vmax.f32 %v9013, 0.0
    %v9089 = vmax.f32 %v9014, 0.0
    %v9090 = vmax.f32 %v9015, 0.0
    %v9091 = vmax.f32 %v9016, 0.0
    %v9092 = vmax.f32 %v9017, 0.0
    %v9093 = vmax.f32 %v9018, 0.0
    %v9094 = vmax.f32 %v9019, 0.0
    %v9095 = vmax.f32 %v9020, 0.0
    %v9096 = vmax.f32 %v9021, 0.0
    %v9097 = vmax.f32 %v9022, 0.0
    %v9098 = vmax.f32 %v9023, 0.0
    %v9099 = vmax.f32 %v9024, 0.0
    %v9100 = vmax.f32 %v9025, 0.0
    %v9101 = vmax.f32 %v9026, 0.0
    %v9102 = vmax.f32 %v9027, 0.0
    %v9103 = vmax.f32 %v9028, 0.0
    %v9104 = vmax.f32 %v9029, 0.0
    %v9105 = vmax.f32 %v9030, 0.0
    %v9106 = vmax.f32 %v9031, 0.0
    %v9107 = vmax.f32 %v9032, 0.0
    %v9108 = vmax.f32 %v9033, 0.0
    %v9109 = vmax.f32 %v9034, 0.0
    %v9110 = vmax.f32 %v9035, 0.0
    %v9111 = vmax.f32 %v9036, 0.0
    %v9112 = vmax.f32 %v9037, 0.0
    %v9113 = vmax.f32 %v9038, 0.0
    %v9114 = vmax.f32 %v9039, 0.0
    %v9115 = vmax.f32 %v9040, 0.0
    %v9116 = vmax.f32 %v9041, 0.0
    %v9117 = vmax.f32 %v9042, 0.0
    %v9118 = vmax.f32 %v9043, 0.0
    %v9119 = vmax.f32 %v9044, 0.0
    %v9120 = vmax.f32 %v9045, 0.0
    %v9121 = vmax.f32 %v9046, 0.0
    %v9122 = vmax.f32 %v9047, 0.0
    %v9123 = vmin.f32 %v9048, 6.0
    %v9124 = vmin.f32 %v9049, 6.0
    %v9125 = vmin.f32 %v9050, 6.0
    %v9126 = vmin.f32 %v9051, 6.0
    %v9127 = vmin.f32 %v9052, 6.0
    %v9128 = vmin.f32 %v9053, 6.0
    %v9129 = vmin.f32 %v9054, 6.0
    %v9130 = vmin.f32 %v9055, 6.0
    %v9131 = vmin.f32 %v9056, 6.0
    %v9132 = vmin.f32 %v9057, 6.0
    %v9133 = vmin.f32 %v9058, 6.0
    %v9134 = vmin.f32 %v9059, 6.0
    %v9135 = vmin.f32 %v9060, 6.0
    %v9136 = vmin.f32 %v9061, 6.0
    %v9137 = vmin.f32 %v9062, 6.0
    %v9138 = vmin.f32 %v9063, 6.0
    %v9139 = vmin.f32 %v9064, 6.0
    %v9140 = vmin.f32 %v9065, 6.0
    %v9141 = vmin.f32 %v9066, 6.0
    %v9142 = vmin.f32 %v9067, 6.0
    %v9143 = vmin.f32 %v9068, 6.0
    %v9144 = vmin.f32 %v9069, 6.0
    %v9145 = vmin.f32 %v9070, 6.0
    %v9146 = vmin.f32 %v9071, 6.0
    %v9147 = vmin.f32 %v9072, 6.0
    %v9148 = vmin.f32 %v9073, 6.0
    %v9149 = vmin.f32 %v9074, 6.0
    %v9150 = vmin.f32 %v9075, 6.0
    %v9151 = vmin.f32 %v9076, 6.0
    %v9152 = vmin.f32 %v9077, 6.0
    %v9153 = vmin.f32 %v9078, 6.0
    %v9154 = vmin.f32 %v9079, 6.0
    %v9155 = vmin.f32 %v9080, 6.0
    %v9156 = vmin.f32 %v9081, 6.0
    %v9157 = vmin.f32 %v9082, 6.0
    %v9158 = vmin.f32 %v9083, 6.0
    %v9159 = vmin.f32 %v9084, 6.0
    %v9160 = vmin.f32 %v9085, 6.0
    %v9161 = vmin.f32 %v9086, 6.0
    %v9162 = vmin.f32 %v9087, 6.0
    %v9163 = vmin.f32 %v9088, 6.0
    %v9164 = vmin.f32 %v9089, 6.0
    %v9165 = vmin.f32 %v9090, 6.0
    %v9166 = vmin.f32 %v9091, 6.0
    %v9167 = vmin.f32 %v9092, 6.0
    %v9168 = vmin.f32 %v9093, 6.0
    %v9169 = vmin.f32 %v9094, 6.0
    %v9170 = vmin.f32 %v9095, 6.0
    %v9171 = vmin.f32 %v9096, 6.0
    %v9172 = vmin.f32 %v9097, 6.0
    %v9173 = vmin.f32 %v9098, 6.0
    %v9174 = vmin.f32 %v9099, 6.0
    %v9175 = vmin.f32 %v9100, 6.0
    %v9176 = vmin.f32 %v9101, 6.0
    %v9177 = vmin.f32 %v9102, 6.0
    %v9178 = vmin.f32 %v9103, 6.0
    %v9179 = vmin.f32 %v9104, 6.0
    %v9180 = vmin.f32 %v9105, 6.0
    %v9181 = vmin.f32 %v9106, 6.0
    %v9182 = vmin.f32 %v9107, 6.0
    %v9183 = vmin.f32 %v9108, 6.0
    %v9184 = vmin.f32 %v9109, 6.0
    %v9185 = vmin.f32 %v9110, 6.0
    %v9186 = vmin.f32 %v9111, 6.0
    %v9187 = vmin.f32 %v9112, 6.0
    %v9188 = vmin.f32 %v9113, 6.0
    %v9189 = vmin.f32 %v9114, 6.0
    %v9190 = vmin.f32 %v9115, 6.0
    %v9191 = vmin.f32 %v9116, 6.0
    %v9192 = vmin.f32 %v9117, 6.0
    %v9193 = vmin.f32 %v9118, 6.0
    %v9194 = vmin.f32 %v9119, 6.0
    %v9195 = vmin.f32 %v9120, 6.0
    %v9196 = vmin.f32 %v9121, 6.0
    %v9197 = vmin.f32 %v9122, 6.0
    %v9198 = vmul.f32 %v7964, %v9123
    %v9199 = vmul.f32 %v7966, %v9124
    %v9200 = vmul.f32 %v8047, %v9125
    %v9201 = vmul.f32 %v8049, %v9126
    %v9202 = vmul.f32 %v8130, %v9127
    %v9203 = vmul.f32 %v8132, %v9128
    %v9204 = vmul.f32 %v8213, %v9129
    %v9205 = vmul.f32 %v8215, %v9130
    %v9206 = vmul.f32 %v8296, %v9131
    %v9207 = vmul.f32 %v8298, %v9132
    %v9208 = vmul.f32 %v8379, %v9133
    %v9209 = vmul.f32 %v8381, %v9134
    %v9210 = vmul.f32 %v8462, %v9135
    %v9211 = vmul.f32 %v8464, %v9136
    %v9212 = vmul.f32 %v8545, %v9137
    %v9213 = vmul.f32 %v8547, %v9138
    %v9214 = vmul.f32 %v8628, %v9139
    %v9215 = vmul.f32 %v8630, %v9140
    %v9216 = vmul.f32 %v8711, %v9141
    %v9217 = vmul.f32 %v8713, %v9142
    %v9218 = vmul.f32 %v8794, %v9143
    %v9219 = vmul.f32 %v8796, %v9144
    %v9220 = vmul.f32 %v8877, %v9145
    %v9221 = vmul.f32 %v8879, %v9146
    %v9222 = vmul.f32 %v8960, %v9147
    %v9223 = vmul.f32 %v7970, %v9148
    %v9224 = vmul.f32 %v7972, %v9149
    %v9225 = vmul.f32 %v8053, %v9150
    %v9226 = vmul.f32 %v8055, %v9151
    %v9227 = vmul.f32 %v8136, %v9152
    %v9228 = vmul.f32 %v8138, %v9153
    %v9229 = vmul.f32 %v8219, %v9154
    %v9230 = vmul.f32 %v8221, %v9155
    %v9231 = vmul.f32 %v8302, %v9156
    %v9232 = vmul.f32 %v8304, %v9157
    %v9233 = vmul.f32 %v8385, %v9158
    %v9234 = vmul.f32 %v8387, %v9159
    %v9235 = vmul.f32 %v8468, %v9160
    %v9236 = vmul.f32 %v8470, %v9161
    %v9237 = vmul.f32 %v8551, %v9162
    %v9238 = vmul.f32 %v8553, %v9163
    %v9239 = vmul.f32 %v8634, %v9164
    %v9240 = vmul.f32 %v8636, %v9165
    %v9241 = vmul.f32 %v8717, %v9166
    %v9242 = vmul.f32 %v8719, %v9167
    %v9243 = vmul.f32 %v8800, %v9168
    %v9244 = vmul.f32 %v8802, %v9169
    %v9245 = vmul.f32 %v8883, %v9170
    %v9246 = vmul.f32 %v8885, %v9171
    %v9247 = vmul.f32 %v8965, %v9172
    %v9248 = vmul.f32 %v7976, %v9173
    %v9249 = vmul.f32 %v7978, %v9174
    %v9250 = vmul.f32 %v8059, %v9175
    %v9251 = vmul.f32 %v8061, %v9176
    %v9252 = vmul.f32 %v8142, %v9177
    %v9253 = vmul.f32 %v8144, %v9178
    %v9254 = vmul.f32 %v8225, %v9179
    %v9255 = vmul.f32 %v8227, %v9180
    %v9256 = vmul.f32 %v8308, %v9181
    %v9257 = vmul.f32 %v8310, %v9182
    %v9258 = vmul.f32 %v8391, %v9183
    %v9259 = vmul.f32 %v8393, %v9184
    %v9260 = vmul.f32 %v8474, %v9185
    %v9261 = vmul.f32 %v8476, %v9186
    %v9262 = vmul.f32 %v8557, %v9187
    %v9263 = vmul.f32 %v8559, %v9188
    %v9264 = vmul.f32 %v8640, %v9189
    %v9265 = vmul.f32 %v8642, %v9190
    %v9266 = vmul.f32 %v8723, %v9191
    %v9267 = vmul.f32 %v8725, %v9192
    %v9268 = vmul.f32 %v8806, %v9193
    %v9269 = vmul.f32 %v8808, %v9194
    %v9270 = vmul.f32 %v8889, %v9195
    %v9271 = vmul.f32 %v8891, %v9196
    %v9272 = vmul.f32 %v8970, %v9197
    %v9273 = vmul.f32 %v9198, 0.16666667
    %v9274 = vmul.f32 %v9199, 0.16666667
    %v9275 = vmul.f32 %v9200, 0.16666667
    %v9276 = vmul.f32 %v9201, 0.16666667
    %v9277 = vmul.f32 %v9202, 0.16666667
    %v9278 = vmul.f32 %v9203, 0.16666667
    %v9279 = vmul.f32 %v9204, 0.16666667
    %v9280 = vmul.f32 %v9205, 0.16666667
    %v9281 = vmul.f32 %v9206, 0.16666667
    %v9282 = vmul.f32 %v9207, 0.16666667
    %v9283 = vmul.f32 %v9208, 0.16666667
    %v9284 = vmul.f32 %v9209, 0.16666667
    %v9285 = vmul.f32 %v9210, 0.16666667
    %v9286 = vmul.f32 %v9211, 0.16666667
    %v9287 = vmul.f32 %v9212, 0.16666667
    %v9288 = vmul.f32 %v9213, 0.16666667
    %v9289 = vmul.f32 %v9214, 0.16666667
    %v9290 = vmul.f32 %v9215, 0.16666667
    %v9291 = vmul.f32 %v9216, 0.16666667
    %v9292 = vmul.f32 %v9217, 0.16666667
    %v9293 = vmul.f32 %v9218, 0.16666667
    %v9294 = vmul.f32 %v9219, 0.16666667
    %v9295 = vmul.f32 %v9220, 0.16666667
    %v9296 = vmul.f32 %v9221, 0.16666667
    %v9297 = vmul.f32 %v9222, 0.16666667
    %v9298 = vmul.f32 %v9223, 0.16666667
    %v9299 = vmul.f32 %v9224, 0.16666667
    %v9300 = vmul.f32 %v9225, 0.16666667
    %v9301 = vmul.f32 %v9226, 0.16666667
    %v9302 = vmul.f32 %v9227, 0.16666667
    %v9303 = vmul.f32 %v9228, 0.16666667
    %v9304 = vmul.f32 %v9229, 0.16666667
    %v9305 = vmul.f32 %v9230, 0.16666667
    %v9306 = vmul.f32 %v9231, 0.16666667
    %v9307 = vmul.f32 %v9232, 0.16666667
    %v9308 = vmul.f32 %v9233, 0.16666667
    %v9309 = vmul.f32 %v9234, 0.16666667
    %v9310 = vmul.f32 %v9235, 0.16666667
    %v9311 = vmul.f32 %v9236, 0.16666667
    %v9312 = vmul.f32 %v9237, 0.16666667
    %v9313 = vmul.f32 %v9238, 0.16666667
    %v9314 = vmul.f32 %v9239, 0.16666667
    %v9315 = vmul.f32 %v9240, 0.16666667
    %v9316 = vmul.f32 %v9241, 0.16666667
    %v9317 = vmul.f32 %v9242, 0.16666667
    %v9318 = vmul.f32 %v9243, 0.16666667
    %v9319 = vmul.f32 %v9244, 0.16666667
    %v9320 = vmul.f32 %v9245, 0.16666667
    %v9321 = vmul.f32 %v9246, 0.16666667
    %v9322 = vmul.f32 %v9247, 0.16666667
    %v9323 = vmul.f32 %v9248, 0.16666667
    %v9324 = vmul.f32 %v9249, 0.16666667
    %v9325 = vmul.f32 %v9250, 0.16666667
    %v9326 = vmul.f32 %v9251, 0.16666667
    %v9327 = vmul.f32 %v9252, 0.16666667
    %v9328 = vmul.f32 %v9253, 0.16666667
    %v9329 = vmul.f32 %v9254, 0.16666667
    %v9330 = vmul.f32 %v9255, 0.16666667
    %v9331 = vmul.f32 %v9256, 0.16666667
    %v9332 = vmul.f32 %v9257, 0.16666667
    %v9333 = vmul.f32 %v9258, 0.16666667
    %v9334 = vmul.f32 %v9259, 0.16666667
    %v9335 = vmul.f32 %v9260, 0.16666667
    %v9336 = vmul.f32 %v9261, 0.16666667
    %v9337 = vmul.f32 %v9262, 0.16666667
    %v9338 = vmul.f32 %v9263, 0.16666667
    %v9339 = vmul.f32 %v9264, 0.16666667
    %v9340 = vmul.f32 %v9265, 0.16666667
    %v9341 = vmul.f32 %v9266, 0.16666667
    %v9342 = vmul.f32 %v9267, 0.16666667
    %v9343 = vmul.f32 %v9268, 0.16666667
    %v9344 = vmul.f32 %v9269, 0.16666667
    %v9345 = vmul.f32 %v9270, 0.16666667
    %v9346 = vmul.f32 %v9271, 0.16666667
    %v9347 = vmul.f32 %v9272, 0.16666667
    %s9348 = scalar_lea.vmem %s6, 600
    %9349 = vst [vmem:[%s9348] sm:$0xff] %v9273
    %9350 = vst [vmem:[%s9348 + $0x8] sm:$0xff] %v9274
    %9351 = vst [vmem:[%s9348 + $0x10] sm:$0xff] %v9275
    %9352 = vst [vmem:[%s9348 + $0x18] sm:$0xff] %v9276
    %9353 = vst [vmem:[%s9348 + $0x20] sm:$0xff] %v9277
    %9354 = vst [vmem:[%s9348 + $0x28] sm:$0xff] %v9278
    %9355 = vst [vmem:[%s9348 + $0x30] sm:$0xff] %v9279
    %9356 = vst [vmem:[%s9348 + $0x38] sm:$0xff] %v9280
    %9357 = vst [vmem:[%s9348 + $0x40] sm:$0xff] %v9281
    %9358 = vst [vmem:[%s9348 + $0x48] sm:$0xff] %v9282
    %9359 = vst [vmem:[%s9348 + $0x50] sm:$0xff] %v9283
    %9360 = vst [vmem:[%s9348 + $0x58] sm:$0xff] %v9284
    %9361 = vst [vmem:[%s9348 + $0x60] sm:$0xff] %v9285
    %9362 = vst [vmem:[%s9348 + $0x68] sm:$0xff] %v9286
    %9363 = vst [vmem:[%s9348 + $0x70] sm:$0xff] %v9287
    %9364 = vst [vmem:[%s9348 + $0x78] sm:$0xff] %v9288
    %9365 = vst [vmem:[%s9348 + $0x80] sm:$0xff] %v9289
    %9366 = vst [vmem:[%s9348 + $0x88] sm:$0xff] %v9290
    %9367 = vst [vmem:[%s9348 + $0x90] sm:$0xff] %v9291
    %9368 = vst [vmem:[%s9348 + $0x98] sm:$0xff] %v9292
    %9369 = vst [vmem:[%s9348 + $0xa0] sm:$0xff] %v9293
    %9370 = vst [vmem:[%s9348 + $0xa8] sm:$0xff] %v9294
    %9371 = vst [vmem:[%s9348 + $0xb0] sm:$0xff] %v9295
    %9372 = vst [vmem:[%s9348 + $0xb8] sm:$0xff] %v9296
    %9373 = vst.msk [vmem:[%s9348 + $0xc0] sm:$0xff] %vm4820, %v9297
    %9374 = vst [vmem:[%s9348 + $0xc8] sm:$0xff] %v9298
    %9375 = vst [vmem:[%s9348 + $0xd0] sm:$0xff] %v9299
    %9376 = vst [vmem:[%s9348 + $0xd8] sm:$0xff] %v9300
    %9377 = vst [vmem:[%s9348 + $0xe0] sm:$0xff] %v9301
    %9378 = vst [vmem:[%s9348 + $0xe8] sm:$0xff] %v9302
    %9379 = vst [vmem:[%s9348 + $0xf0] sm:$0xff] %v9303
    %9380 = vst [vmem:[%s9348 + $0xf8] sm:$0xff] %v9304
    %9381 = vst [vmem:[%s9348 + $0x100] sm:$0xff] %v9305
    %9382 = vst [vmem:[%s9348 + $0x108] sm:$0xff] %v9306
    %9383 = vst [vmem:[%s9348 + $0x110] sm:$0xff] %v9307
    %9384 = vst [vmem:[%s9348 + $0x118] sm:$0xff] %v9308
    %9385 = vst [vmem:[%s9348 + $0x120] sm:$0xff] %v9309
    %9386 = vst [vmem:[%s9348 + $0x128] sm:$0xff] %v9310
    %9387 = vst [vmem:[%s9348 + $0x130] sm:$0xff] %v9311
    %9388 = vst [vmem:[%s9348 + $0x138] sm:$0xff] %v9312
    %9389 = vst [vmem:[%s9348 + $0x140] sm:$0xff] %v9313
    %9390 = vst [vmem:[%s9348 + $0x148] sm:$0xff] %v9314
    %9391 = vst [vmem:[%s9348 + $0x150] sm:$0xff] %v9315
    %9392 = vst [vmem:[%s9348 + $0x158] sm:$0xff] %v9316
    %9393 = vst [vmem:[%s9348 + $0x160] sm:$0xff] %v9317
    %9394 = vst [vmem:[%s9348 + $0x168] sm:$0xff] %v9318
    %9395 = vst [vmem:[%s9348 + $0x170] sm:$0xff] %v9319
    %9396 = vst [vmem:[%s9348 + $0x178] sm:$0xff] %v9320
    %9397 = vst [vmem:[%s9348 + $0x180] sm:$0xff] %v9321
    %9398 = vst.msk [vmem:[%s9348 + $0x188] sm:$0xff] %vm4820, %v9322
    %9399 = vst [vmem:[%s9348 + $0x190] sm:$0xff] %v9323
    %9400 = vst [vmem:[%s9348 + $0x198] sm:$0xff] %v9324
    %9401 = vst [vmem:[%s9348 + $0x1a0] sm:$0xff] %v9325
    %9402 = vst [vmem:[%s9348 + $0x1a8] sm:$0xff] %v9326
    %9403 = vst [vmem:[%s9348 + $0x1b0] sm:$0xff] %v9327
    %9404 = vst [vmem:[%s9348 + $0x1b8] sm:$0xff] %v9328
    %9405 = vst [vmem:[%s9348 + $0x1c0] sm:$0xff] %v9329
    %9406 = vst [vmem:[%s9348 + $0x1c8] sm:$0xff] %v9330
    %9407 = vst [vmem:[%s9348 + $0x1d0] sm:$0xff] %v9331
    %9408 = vst [vmem:[%s9348 + $0x1d8] sm:$0xff] %v9332
    %9409 = vst [vmem:[%s9348 + $0x1e0] sm:$0xff] %v9333
    %9410 = vst [vmem:[%s9348 + $0x1e8] sm:$0xff] %v9334
    %9411 = vst [vmem:[%s9348 + $0x1f0] sm:$0xff] %v9335
    %9412 = vst [vmem:[%s9348 + $0x1f8] sm:$0xff] %v9336
    %9413 = vst [vmem:[%s9348 + $0x200] sm:$0xff] %v9337
    %9414 = vst [vmem:[%s9348 + $0x208] sm:$0xff] %v9338
    %9415 = vst [vmem:[%s9348 + $0x210] sm:$0xff] %v9339
    %9416 = vst [vmem:[%s9348 + $0x218] sm:$0xff] %v9340
    %9417 = vst [vmem:[%s9348 + $0x220] sm:$0xff] %v9341
    %9418 = vst [vmem:[%s9348 + $0x228] sm:$0xff] %v9342
    %9419 = vst [vmem:[%s9348 + $0x230] sm:$0xff] %v9343
    %9420 = vst [vmem:[%s9348 + $0x238] sm:$0xff] %v9344
    %9421 = vst [vmem:[%s9348 + $0x240] sm:$0xff] %v9345
    %9422 = vst [vmem:[%s9348 + $0x248] sm:$0xff] %v9346
    %9423 = vst.msk [vmem:[%s9348 + $0x250] sm:$0xff] %vm4820, %v9347
    // Predicated region
    $region34: #{_pre_layer_forward.1} parent=1 // pred_check
      _
    $region35: #{_pre_layer_forward.1} parent=1 // pred_check_branch
      %9425 = sbr.rel (0) target = $region37
    $region36: #{_pre_layer_forward.1} parent=1 // pred_region
      _
    $region37: #{_pre_layer_forward.1} parent=1 // pred_fallthru
      _
    // Predicated region
    $region38: #{_pre_layer_forward.1} parent=1 // pred_check
      _
    $region39: #{_pre_layer_forward.1} parent=1 // pred_check_branch
      %9427 = sbr.rel (0) target = $region41
    $region40: #{_pre_layer_forward.1} parent=1 // pred_region
      _
    $region41: #{_pre_layer_forward.1} parent=1 // pred_fallthru
      _
    %9428 = vsyncpa [#allocation5], 1
    %9429 = vsyncpa [#allocation7], 1

</llo_original>
